<compile_context>
chip_gen: v6e
topology: v6e:2x2x1
jax: 0.10.0
libtpu: 0.0.40
codegen_flags: <defaults>
</compile_context>

<pallas_src>
import functools
import math

import jax
import jax.numpy as jnp
from jax import lax
from jax.experimental import pallas as pl
from jax.experimental.pallas import tpu as pltpu

# Accurate XLA matmuls for the pure-JAX reference used in the correctness check.
jax.config.update("jax_default_matmul_precision", "highest")

EPS = 1e-5


def _layer_norm(x, g, b):
    mu = jnp.mean(x, axis=-1, keepdims=True)
    var = jnp.mean((x - mu) ** 2, axis=-1, keepdims=True)
    return (x - mu) * lax.rsqrt(var + EPS) * g + b


# ----------------------------- Pallas kernel ---------------------------------
def _encoder_layer_kernel(x_ref, pos_ref, mask_ref,
                          wqk_ref, bqk_ref, wv_ref, bv_ref, wo_ref, bo_ref,
                          g1_ref, be1_ref, w1_ref, bf1_ref, w2_ref, bf2_ref,
                          g2_ref, be2_ref, out_ref, *, nhead):
    """One batch element:  y = LN1(x + MHA(x+pos, x+pos, x));  out = LN2(y + FFN(y))."""
    x = x_ref[0]                          # (L, D)
    qk_in = x + pos_ref[0]                # (L, D)
    L, D = x.shape
    Dh = D // nhead

    # Fused projections: one (L,D)x(D,2D) for Q|K and one (L,D)x(D,D) for V.
    # The 1/sqrt(Dh) query scaling is already folded into wqk/bqk's Q half.
    qk = jnp.dot(qk_in, wqk_ref[...], preferred_element_type=jnp.float32) + bqk_ref[...]
    v = jnp.dot(x, wv_ref[...], preferred_element_type=jnp.float32) + bv_ref[...]
    q = qk[:, :D]
    k = qk[:, D:]

    add_mask = mask_ref[0]                # (L, L) additive mask, shared across heads

    # Per-head attention; heads are static lane slices of the fused Q/K/V.
    ctx_parts = []
    for h in range(nhead):                # static unroll, nhead is small
        lo, hi = h * Dh, (h + 1) * Dh
        qh, kh, vh = q[:, lo:hi], k[:, lo:hi], v[:, lo:hi]
        s = lax.dot_general(qh, kh, (((1,), (1,)), ((), ())),
                            preferred_element_type=jnp.float32) + add_mask
        m = jnp.max(s, axis=-1, keepdims=True)
        p = jnp.exp(s - m)
        # EUP approximate reciprocal keeps the per-row divide off the VALU slot.
        p = p * pl.reciprocal(jnp.sum(p, axis=-1, keepdims=True), approx=True)
        ctx_parts.append(jnp.dot(p, vh, preferred_element_type=jnp.float32))
    ctx = jnp.concatenate(ctx_parts, axis=-1)                       # (L, D)

    # Single full-width output projection over all heads.
    attn = jnp.dot(ctx, wo_ref[...], preferred_element_type=jnp.float32) + bo_ref[...]

    # Residual + LayerNorm (post-norm), fused FFN, residual + LayerNorm.
    y = _layer_norm(x + attn, g1_ref[...], be1_ref[...])
    hid = jnp.maximum(
        jnp.dot(y, w1_ref[...], preferred_element_type=jnp.float32) + bf1_ref[...], 0.0)
    ff = jnp.dot(hid, w2_ref[...], preferred_element_type=jnp.float32) + bf2_ref[...]
    out_ref[0] = _layer_norm(y + ff, g2_ref[...], be2_ref[...]).astype(out_ref.dtype)


# ----------------------------- wrapper ----------------------------------------
def transformer_encoder_layer(packed, src, pos=None, src_mask=None,
                              src_key_padding_mask=None):
    """TransformerEncoderLayer.forward (normalize_before=False, eval mode).

    src: (B, L, D);  pos: optional (B, L, D);
    src_mask: optional (L, L) bool (True = disallowed) or float additive mask;
    src_key_padding_mask: optional (B, L) bool (True = padding).
    """
    B, L, D = src.shape
    F = packed['w1'].shape[1]
    nhead = packed['nhead']
    if pos is None:
        pos = jnp.zeros_like(src)

    # Build one additive mask. Keep it unbatched (1, L, L) unless a per-batch
    # key-padding mask forces (B, L, L); never broadcast over batch otherwise.
    add = None
    if src_mask is not None:
        m = src_mask
        if m.dtype == jnp.bool_:
            m = jnp.where(m, jnp.float32(-1e9), jnp.float32(0.0))
        add = m.astype(jnp.float32)[None]                            # (1, L, L)
    if src_key_padding_mask is not None:
        kp = jnp.where(src_key_padding_mask, jnp.float32(-1e9), jnp.float32(0.0))
        kp = jnp.broadcast_to(kp[:, None, :], (B, L, L))
        add = kp if add is None else add + kp
    if add is None:
        add = jnp.zeros((1, L, L), jnp.float32)
    bm = add.shape[0]
    mask_map = (lambda b: (0, 0, 0)) if bm == 1 else (lambda b: (b, 0, 0))

    seq = pl.BlockSpec((1, L, D), lambda b: (b, 0, 0))
    const2 = lambda shape: pl.BlockSpec(shape, lambda b: (0, 0))     # VMEM-resident params

    kernel = functools.partial(_encoder_layer_kernel, nhead=nhead)
    return pl.pallas_call(
        kernel,
        grid=(B,),
        out_shape=jax.ShapeDtypeStruct((B, L, D), jnp.float32),
        in_specs=[
            seq,                                   # src
            seq,                                   # pos
            pl.BlockSpec((1, L, L), mask_map),     # additive attention mask
            const2((D, 2 * D)), const2((1, 2 * D)),   # fused Q|K weight / bias
            const2((D, D)), const2((1, D)),           # V weight / bias
            const2((D, D)), const2((1, D)),           # out-proj weight / bias
            const2((1, D)), const2((1, D)),           # LayerNorm1 gamma / beta
            const2((D, F)), const2((1, F)),           # FFN linear1
            const2((F, D)), const2((1, D)),           # FFN linear2
            const2((1, D)), const2((1, D)),           # LayerNorm2 gamma / beta
        ],
        out_specs=seq,
        compiler_params=pltpu.CompilerParams(dimension_semantics=("parallel",)),
    )(src, pos, add,
      packed['w_qk'], packed['b_qk'], packed['w_v'], packed['b_v'],
      packed['w_o'], packed['b_o'], packed['ln1_g'], packed['ln1_b'],
      packed['w1'], packed['bf1'], packed['w2'], packed['bf2'],
      packed['ln2_g'], packed['ln2_b'])


# ----------------------------- params -----------------------------------------
def init_params(key, d, nhead, dim_ff):
    """Raw parameters in input-side layout (x @ W + b), mirroring the PyTorch layer."""
    keys = jax.random.split(key, 12)

    def w(k, fan_in, shape):
        return jax.random.normal(k, shape, jnp.float32) / math.sqrt(fan_in)

    def b(k, n):
        return jax.random.normal(k, (n,), jnp.float32) * 0.02

    return dict(
        nhead=nhead,
        wq=w(keys[0], d, (d, d)), wk=w(keys[1], d, (d, d)), wv=w(keys[2], d, (d, d)),
        bq=b(keys[3], d), bk=b(keys[4], d), bv=b(keys[5], d),
        wo=w(keys[6], d, (d, d)), bo=b(keys[7], d),
        ln1_g=jnp.ones((d,), jnp.float32), ln1_b=jnp.zeros((d,), jnp.float32),
        w1=w(keys[8], d, (d, dim_ff)), bf1=b(keys[9], dim_ff),
        w2=w(keys[10], dim_ff, (dim_ff, d)), bf2=b(keys[11], d),
        ln2_g=jnp.ones((d,), jnp.float32), ln2_b=jnp.zeros((d,), jnp.float32),
    )


def pack_params(raw):
    """Host-side param packing: fuse Q|K weights, fold the 1/sqrt(Dh) query scale
    (applied after the bias in F.multi_head_attention_forward, so it is folded into
    BOTH the Q weight and the Q bias), reshape biases to (1, N)."""
    d = raw['wq'].shape[0]
    nhead = raw['nhead']
    scale = 1.0 / math.sqrt(d // nhead)
    return dict(
        nhead=nhead,
        w_qk=jnp.concatenate([raw['wq'] * scale, raw['wk']], axis=1),      # (D, 2D)
        b_qk=jnp.concatenate([raw['bq'] * scale, raw['bk']])[None, :],     # (1, 2D)
        w_v=raw['wv'], b_v=raw['bv'][None, :],
        w_o=raw['wo'], b_o=raw['bo'][None, :],
        ln1_g=raw['ln1_g'][None, :], ln1_b=raw['ln1_b'][None, :],
        w1=raw['w1'], bf1=raw['bf1'][None, :],
        w2=raw['w2'], bf2=raw['bf2'][None, :],
        ln2_g=raw['ln2_g'][None, :], ln2_b=raw['ln2_b'][None, :],
    )


# ----------------------------- pure-JAX reference -----------------------------
def reference_forward(raw, src, pos, add_mask):
    d = src.shape[-1]
    H = raw['nhead']
    Dh = d // H
    B, L, _ = src.shape
    qk_in = src + pos
    q = (qk_in @ raw['wq'] + raw['bq']) * (1.0 / math.sqrt(Dh))
    k = qk_in @ raw['wk'] + raw['bk']
    v = src @ raw['wv'] + raw['bv']
    qh = q.reshape(B, L, H, Dh).transpose(0, 2, 1, 3)
    kh = k.reshape(B, L, H, Dh).transpose(0, 2, 1, 3)
    vh = v.reshape(B, L, H, Dh).transpose(0, 2, 1, 3)
    s = jnp.einsum('bhld,bhsd->bhls', qh, kh) + add_mask
    p = jax.nn.softmax(s, axis=-1)
    ctx = jnp.einsum('bhls,bhsd->bhld', p, vh).transpose(0, 2, 1, 3).reshape(B, L, d)
    attn = ctx @ raw['wo'] + raw['bo']
    y = _layer_norm(src + attn, raw['ln1_g'], raw['ln1_b'])
    hid = jax.nn.relu(y @ raw['w1'] + raw['bf1'])
    ff = hid @ raw['w2'] + raw['bf2']
    return _layer_norm(y + ff, raw['ln2_g'], raw['ln2_b'])


# ----------------------------- main --------------------------------------------
if __name__ == "__main__":
    B, L, D, H, F = 2, 16, 32, 4, 64

    key = jax.random.PRNGKey(0)
    k_src, k_pos, k_par = jax.random.split(key, 3)
    src = jax.random.normal(k_src, (B, L, D), jnp.float32)
    pos = jax.random.normal(k_pos, (B, L, D), jnp.float32)

    raw = init_params(k_par, D, H, F)
    packed = pack_params(raw)

    # Bool attn_mask (True = disallowed), shared over batch and heads (causal).
    src_mask = jnp.triu(jnp.ones((L, L), jnp.float32), k=1).astype(bool)

    out = transformer_encoder_layer(packed, src, pos=pos, src_mask=src_mask)
    jax.block_until_ready(out)

    ref = reference_forward(
        raw, src, pos, jnp.where(src_mask, jnp.float32(-1e9), jnp.float32(0.0)))

    assert out.shape == (B, L, D)
    assert bool(jnp.all(jnp.isfinite(out)))
    max_err = float(jnp.max(jnp.abs(out - ref)))
    # Loose tolerance covers the EUP approximate-reciprocal softmax denominator.
    assert max_err < 5e-2, f"max abs err vs reference: {max_err}"
    print("KERNEL_OK")
</pallas_src>

<mosaic_0001>
module attributes {stable_mosaic.version = 11 : i64} {
  func.func @_encoder_layer_kernel(%arg0: i32, %arg1: memref<1x16x32xf32, #tpu.memory_space<vmem>>, %arg2: memref<1x16x32xf32, #tpu.memory_space<vmem>>, %arg3: memref<1x16x16xf32, #tpu.memory_space<vmem>>, %arg4: memref<32x64xf32, #tpu.memory_space<vmem>>, %arg5: memref<1x64xf32, #tpu.memory_space<vmem>>, %arg6: memref<32x32xf32, #tpu.memory_space<vmem>>, %arg7: memref<1x32xf32, #tpu.memory_space<vmem>>, %arg8: memref<32x32xf32, #tpu.memory_space<vmem>>, %arg9: memref<1x32xf32, #tpu.memory_space<vmem>>, %arg10: memref<1x32xf32, #tpu.memory_space<vmem>>, %arg11: memref<1x32xf32, #tpu.memory_space<vmem>>, %arg12: memref<32x64xf32, #tpu.memory_space<vmem>>, %arg13: memref<1x64xf32, #tpu.memory_space<vmem>>, %arg14: memref<64x32xf32, #tpu.memory_space<vmem>>, %arg15: memref<1x32xf32, #tpu.memory_space<vmem>>, %arg16: memref<1x32xf32, #tpu.memory_space<vmem>>, %arg17: memref<1x32xf32, #tpu.memory_space<vmem>>, %arg18: memref<1x16x32xf32, #tpu.memory_space<vmem>>) attributes {dimension_semantics = [#tpu.dimension_semantics<parallel>], iteration_bounds = array<i64: 2>, scalar_prefetch = 0 : i64, scratch_operands = 0 : i64, tpu.core_type = #tpu.core_type<tc>, window_params = [{transform_indices = @transform_0, window_bounds = array<i64: 1, 16, 32>}, {transform_indices = @transform_1, window_bounds = array<i64: 1, 16, 32>}, {pipeline_mode = #tpu.pipeline_mode<synchronous>, transform_indices = @transform_2, window_bounds = array<i64: 1, 16, 16>}, {pipeline_mode = #tpu.pipeline_mode<synchronous>, transform_indices = @transform_3, window_bounds = array<i64: 32, 64>}, {pipeline_mode = #tpu.pipeline_mode<synchronous>, transform_indices = @transform_4, window_bounds = array<i64: 1, 64>}, {pipeline_mode = #tpu.pipeline_mode<synchronous>, transform_indices = @transform_5, window_bounds = array<i64: 32, 32>}, {pipeline_mode = #tpu.pipeline_mode<synchronous>, transform_indices = @transform_6, window_bounds = array<i64: 1, 32>}, {pipeline_mode = #tpu.pipeline_mode<synchronous>, transform_indices = @transform_7, window_bounds = array<i64: 32, 32>}, {pipeline_mode = #tpu.pipeline_mode<synchronous>, transform_indices = @transform_8, window_bounds = array<i64: 1, 32>}, {pipeline_mode = #tpu.pipeline_mode<synchronous>, transform_indices = @transform_9, window_bounds = array<i64: 1, 32>}, {pipeline_mode = #tpu.pipeline_mode<synchronous>, transform_indices = @transform_10, window_bounds = array<i64: 1, 32>}, {pipeline_mode = #tpu.pipeline_mode<synchronous>, transform_indices = @transform_11, window_bounds = array<i64: 32, 64>}, {pipeline_mode = #tpu.pipeline_mode<synchronous>, transform_indices = @transform_12, window_bounds = array<i64: 1, 64>}, {pipeline_mode = #tpu.pipeline_mode<synchronous>, transform_indices = @transform_13, window_bounds = array<i64: 64, 32>}, {pipeline_mode = #tpu.pipeline_mode<synchronous>, transform_indices = @transform_14, window_bounds = array<i64: 1, 32>}, {pipeline_mode = #tpu.pipeline_mode<synchronous>, transform_indices = @transform_15, window_bounds = array<i64: 1, 32>}, {pipeline_mode = #tpu.pipeline_mode<synchronous>, transform_indices = @transform_16, window_bounds = array<i64: 1, 32>}, {transform_indices = @transform_17, window_bounds = array<i64: 1, 16, 32>}]} {
    %c0 = arith.constant 0 : index
    %c0_0 = arith.constant 0 : index
    %c0_1 = arith.constant 0 : index
    %0 = vector.load %arg1[%c0, %c0_0, %c0_1] : memref<1x16x32xf32, #tpu.memory_space<vmem>>, vector<1x16x32xf32>
    %1 = vector.shape_cast %0 : vector<1x16x32xf32> to vector<16x32xf32>
    %c0_2 = arith.constant 0 : index
    %c0_3 = arith.constant 0 : index
    %c0_4 = arith.constant 0 : index
    %2 = vector.load %arg2[%c0_2, %c0_3, %c0_4] : memref<1x16x32xf32, #tpu.memory_space<vmem>>, vector<1x16x32xf32>
    %3 = vector.shape_cast %2 : vector<1x16x32xf32> to vector<16x32xf32>
    %4 = arith.addf %1, %3 : vector<16x32xf32>
    %c0_5 = arith.constant 0 : index
    %c0_6 = arith.constant 0 : index
    %5 = vector.load %arg4[%c0_5, %c0_6] : memref<32x64xf32, #tpu.memory_space<vmem>>, vector<32x64xf32>
    %cst = arith.constant dense<0.000000e+00> : vector<16x64xf32>
    %6 = tpu.matmul %4, %5, %cst {dimension_numbers = #tpu.dot_dimension_numbers<[1], [0], [0], [1], [0, 0, 1, 1], [], []>, precision = #tpu.contract_precision<fp32>} : vector<16x32xf32>, vector<32x64xf32>, vector<16x64xf32> -> vector<16x64xf32>
    %c0_7 = arith.constant 0 : index
    %c0_8 = arith.constant 0 : index
    %7 = vector.load %arg5[%c0_7, %c0_8] : memref<1x64xf32, #tpu.memory_space<vmem>>, vector<1x64xf32>
    %8 = vector.broadcast %7 : vector<1x64xf32> to vector<16x64xf32>
    %9 = arith.addf %6, %8 : vector<16x64xf32>
    %c0_9 = arith.constant 0 : index
    %c0_10 = arith.constant 0 : index
    %10 = vector.load %arg6[%c0_9, %c0_10] : memref<32x32xf32, #tpu.memory_space<vmem>>, vector<32x32xf32>
    %cst_11 = arith.constant dense<0.000000e+00> : vector<16x32xf32>
    %11 = tpu.matmul %1, %10, %cst_11 {dimension_numbers = #tpu.dot_dimension_numbers<[1], [0], [0], [1], [0, 0, 1, 1], [], []>, precision = #tpu.contract_precision<fp32>} : vector<16x32xf32>, vector<32x32xf32>, vector<16x32xf32> -> vector<16x32xf32>
    %c0_12 = arith.constant 0 : index
    %c0_13 = arith.constant 0 : index
    %12 = vector.load %arg7[%c0_12, %c0_13] : memref<1x32xf32, #tpu.memory_space<vmem>>, vector<1x32xf32>
    %13 = vector.broadcast %12 : vector<1x32xf32> to vector<16x32xf32>
    %14 = arith.addf %11, %13 : vector<16x32xf32>
    %15 = vector.extract_strided_slice %9 {offsets = [0, 0], sizes = [16, 32], strides = [1, 1]} : vector<16x64xf32> to vector<16x32xf32>
    %16 = vector.extract_strided_slice %9 {offsets = [0, 32], sizes = [16, 32], strides = [1, 1]} : vector<16x64xf32> to vector<16x32xf32>
    %c0_14 = arith.constant 0 : index
    %c0_15 = arith.constant 0 : index
    %c0_16 = arith.constant 0 : index
    %17 = vector.load %arg3[%c0_14, %c0_15, %c0_16] : memref<1x16x16xf32, #tpu.memory_space<vmem>>, vector<1x16x16xf32>
    %18 = vector.shape_cast %17 : vector<1x16x16xf32> to vector<16x16xf32>
    %19 = vector.extract_strided_slice %15 {offsets = [0, 0], sizes = [16, 8], strides = [1, 1]} : vector<16x32xf32> to vector<16x8xf32>
    %20 = vector.extract_strided_slice %16 {offsets = [0, 0], sizes = [16, 8], strides = [1, 1]} : vector<16x32xf32> to vector<16x8xf32>
    %21 = vector.extract_strided_slice %14 {offsets = [0, 0], sizes = [16, 8], strides = [1, 1]} : vector<16x32xf32> to vector<16x8xf32>
    %cst_17 = arith.constant dense<0.000000e+00> : vector<16x16xf32>
    %22 = tpu.matmul %19, %20, %cst_17 {dimension_numbers = #tpu.dot_dimension_numbers<[1], [1], [0], [0], [0, 0, 1, 0], [], []>, precision = #tpu.contract_precision<fp32>} : vector<16x8xf32>, vector<16x8xf32>, vector<16x16xf32> -> vector<16x16xf32>
    %23 = arith.addf %22, %18 : vector<16x16xf32>
    %cst_18 = arith.constant dense<0xFF800000> : vector<16xf32>
    %24 = vector.multi_reduction <maximumf>, %23, %cst_18 [1] : vector<16x16xf32> to vector<16xf32>
    %25 = vector.shape_cast %24 : vector<16xf32> to vector<16x1xf32>
    %26 = vector.broadcast %25 : vector<16x1xf32> to vector<16x16xf32>
    %27 = arith.subf %23, %26 : vector<16x16xf32>
    %28 = math.exp %27 : vector<16x16xf32>
    %cst_19 = arith.constant dense<0.000000e+00> : vector<16xf32>
    %29 = vector.multi_reduction <add>, %28, %cst_19 [1] : vector<16x16xf32> to vector<16xf32>
    %30 = vector.shape_cast %29 : vector<16xf32> to vector<16x1xf32>
    %31 = tpu.reciprocal %30 {approx = true} : vector<16x1xf32> -> vector<16x1xf32>
    %32 = vector.broadcast %31 : vector<16x1xf32> to vector<16x16xf32>
    %33 = arith.mulf %28, %32 : vector<16x16xf32>
    %cst_20 = arith.constant dense<0.000000e+00> : vector<16x8xf32>
    %34 = tpu.matmul %33, %21, %cst_20 {dimension_numbers = #tpu.dot_dimension_numbers<[1], [0], [0], [1], [0, 0, 1, 1], [], []>, precision = #tpu.contract_precision<fp32>} : vector<16x16xf32>, vector<16x8xf32>, vector<16x8xf32> -> vector<16x8xf32>
    %35 = vector.extract_strided_slice %15 {offsets = [0, 8], sizes = [16, 8], strides = [1, 1]} : vector<16x32xf32> to vector<16x8xf32>
    %36 = vector.extract_strided_slice %16 {offsets = [0, 8], sizes = [16, 8], strides = [1, 1]} : vector<16x32xf32> to vector<16x8xf32>
    %37 = vector.extract_strided_slice %14 {offsets = [0, 8], sizes = [16, 8], strides = [1, 1]} : vector<16x32xf32> to vector<16x8xf32>
    %cst_21 = arith.constant dense<0.000000e+00> : vector<16x16xf32>
    %38 = tpu.matmul %35, %36, %cst_21 {dimension_numbers = #tpu.dot_dimension_numbers<[1], [1], [0], [0], [0, 0, 1, 0], [], []>, precision = #tpu.contract_precision<fp32>} : vector<16x8xf32>, vector<16x8xf32>, vector<16x16xf32> -> vector<16x16xf32>
    %39 = arith.addf %38, %18 : vector<16x16xf32>
    %cst_22 = arith.constant dense<0xFF800000> : vector<16xf32>
    %40 = vector.multi_reduction <maximumf>, %39, %cst_22 [1] : vector<16x16xf32> to vector<16xf32>
    %41 = vector.shape_cast %40 : vector<16xf32> to vector<16x1xf32>
    %42 = vector.broadcast %41 : vector<16x1xf32> to vector<16x16xf32>
    %43 = arith.subf %39, %42 : vector<16x16xf32>
    %44 = math.exp %43 : vector<16x16xf32>
    %cst_23 = arith.constant dense<0.000000e+00> : vector<16xf32>
    %45 = vector.multi_reduction <add>, %44, %cst_23 [1] : vector<16x16xf32> to vector<16xf32>
    %46 = vector.shape_cast %45 : vector<16xf32> to vector<16x1xf32>
    %47 = tpu.reciprocal %46 {approx = true} : vector<16x1xf32> -> vector<16x1xf32>
    %48 = vector.broadcast %47 : vector<16x1xf32> to vector<16x16xf32>
    %49 = arith.mulf %44, %48 : vector<16x16xf32>
    %cst_24 = arith.constant dense<0.000000e+00> : vector<16x8xf32>
    %50 = tpu.matmul %49, %37, %cst_24 {dimension_numbers = #tpu.dot_dimension_numbers<[1], [0], [0], [1], [0, 0, 1, 1], [], []>, precision = #tpu.contract_precision<fp32>} : vector<16x16xf32>, vector<16x8xf32>, vector<16x8xf32> -> vector<16x8xf32>
    %51 = vector.extract_strided_slice %15 {offsets = [0, 16], sizes = [16, 8], strides = [1, 1]} : vector<16x32xf32> to vector<16x8xf32>
    %52 = vector.extract_strided_slice %16 {offsets = [0, 16], sizes = [16, 8], strides = [1, 1]} : vector<16x32xf32> to vector<16x8xf32>
    %53 = vector.extract_strided_slice %14 {offsets = [0, 16], sizes = [16, 8], strides = [1, 1]} : vector<16x32xf32> to vector<16x8xf32>
    %cst_25 = arith.constant dense<0.000000e+00> : vector<16x16xf32>
    %54 = tpu.matmul %51, %52, %cst_25 {dimension_numbers = #tpu.dot_dimension_numbers<[1], [1], [0], [0], [0, 0, 1, 0], [], []>, precision = #tpu.contract_precision<fp32>} : vector<16x8xf32>, vector<16x8xf32>, vector<16x16xf32> -> vector<16x16xf32>
    %55 = arith.addf %54, %18 : vector<16x16xf32>
    %cst_26 = arith.constant dense<0xFF800000> : vector<16xf32>
    %56 = vector.multi_reduction <maximumf>, %55, %cst_26 [1] : vector<16x16xf32> to vector<16xf32>
    %57 = vector.shape_cast %56 : vector<16xf32> to vector<16x1xf32>
    %58 = vector.broadcast %57 : vector<16x1xf32> to vector<16x16xf32>
    %59 = arith.subf %55, %58 : vector<16x16xf32>
    %60 = math.exp %59 : vector<16x16xf32>
    %cst_27 = arith.constant dense<0.000000e+00> : vector<16xf32>
    %61 = vector.multi_reduction <add>, %60, %cst_27 [1] : vector<16x16xf32> to vector<16xf32>
    %62 = vector.shape_cast %61 : vector<16xf32> to vector<16x1xf32>
    %63 = tpu.reciprocal %62 {approx = true} : vector<16x1xf32> -> vector<16x1xf32>
    %64 = vector.broadcast %63 : vector<16x1xf32> to vector<16x16xf32>
    %65 = arith.mulf %60, %64 : vector<16x16xf32>
    %cst_28 = arith.constant dense<0.000000e+00> : vector<16x8xf32>
    %66 = tpu.matmul %65, %53, %cst_28 {dimension_numbers = #tpu.dot_dimension_numbers<[1], [0], [0], [1], [0, 0, 1, 1], [], []>, precision = #tpu.contract_precision<fp32>} : vector<16x16xf32>, vector<16x8xf32>, vector<16x8xf32> -> vector<16x8xf32>
    %67 = vector.extract_strided_slice %15 {offsets = [0, 24], sizes = [16, 8], strides = [1, 1]} : vector<16x32xf32> to vector<16x8xf32>
    %68 = vector.extract_strided_slice %16 {offsets = [0, 24], sizes = [16, 8], strides = [1, 1]} : vector<16x32xf32> to vector<16x8xf32>
    %69 = vector.extract_strided_slice %14 {offsets = [0, 24], sizes = [16, 8], strides = [1, 1]} : vector<16x32xf32> to vector<16x8xf32>
    %cst_29 = arith.constant dense<0.000000e+00> : vector<16x16xf32>
    %70 = tpu.matmul %67, %68, %cst_29 {dimension_numbers = #tpu.dot_dimension_numbers<[1], [1], [0], [0], [0, 0, 1, 0], [], []>, precision = #tpu.contract_precision<fp32>} : vector<16x8xf32>, vector<16x8xf32>, vector<16x16xf32> -> vector<16x16xf32>
    %71 = arith.addf %70, %18 : vector<16x16xf32>
    %cst_30 = arith.constant dense<0xFF800000> : vector<16xf32>
    %72 = vector.multi_reduction <maximumf>, %71, %cst_30 [1] : vector<16x16xf32> to vector<16xf32>
    %73 = vector.shape_cast %72 : vector<16xf32> to vector<16x1xf32>
    %74 = vector.broadcast %73 : vector<16x1xf32> to vector<16x16xf32>
    %75 = arith.subf %71, %74 : vector<16x16xf32>
    %76 = math.exp %75 : vector<16x16xf32>
    %cst_31 = arith.constant dense<0.000000e+00> : vector<16xf32>
    %77 = vector.multi_reduction <add>, %76, %cst_31 [1] : vector<16x16xf32> to vector<16xf32>
    %78 = vector.shape_cast %77 : vector<16xf32> to vector<16x1xf32>
    %79 = tpu.reciprocal %78 {approx = true} : vector<16x1xf32> -> vector<16x1xf32>
    %80 = vector.broadcast %79 : vector<16x1xf32> to vector<16x16xf32>
    %81 = arith.mulf %76, %80 : vector<16x16xf32>
    %cst_32 = arith.constant dense<0.000000e+00> : vector<16x8xf32>
    %82 = tpu.matmul %81, %69, %cst_32 {dimension_numbers = #tpu.dot_dimension_numbers<[1], [0], [0], [1], [0, 0, 1, 1], [], []>, precision = #tpu.contract_precision<fp32>} : vector<16x16xf32>, vector<16x8xf32>, vector<16x8xf32> -> vector<16x8xf32>
    %83 = tpu.concatenate %34, %50, %66, %82 in 1 : vector<16x8xf32>, vector<16x8xf32>, vector<16x8xf32>, vector<16x8xf32> -> vector<16x32xf32>
    %c0_33 = arith.constant 0 : index
    %c0_34 = arith.constant 0 : index
    %84 = vector.load %arg8[%c0_33, %c0_34] : memref<32x32xf32, #tpu.memory_space<vmem>>, vector<32x32xf32>
    %cst_35 = arith.constant dense<0.000000e+00> : vector<16x32xf32>
    %85 = tpu.matmul %83, %84, %cst_35 {dimension_numbers = #tpu.dot_dimension_numbers<[1], [0], [0], [1], [0, 0, 1, 1], [], []>, precision = #tpu.contract_precision<fp32>} : vector<16x32xf32>, vector<32x32xf32>, vector<16x32xf32> -> vector<16x32xf32>
    %c0_36 = arith.constant 0 : index
    %c0_37 = arith.constant 0 : index
    %86 = vector.load %arg9[%c0_36, %c0_37] : memref<1x32xf32, #tpu.memory_space<vmem>>, vector<1x32xf32>
    %87 = vector.broadcast %86 : vector<1x32xf32> to vector<16x32xf32>
    %88 = arith.addf %85, %87 : vector<16x32xf32>
    %89 = arith.addf %1, %88 : vector<16x32xf32>
    %c0_38 = arith.constant 0 : index
    %c0_39 = arith.constant 0 : index
    %90 = vector.load %arg10[%c0_38, %c0_39] : memref<1x32xf32, #tpu.memory_space<vmem>>, vector<1x32xf32>
    %c0_40 = arith.constant 0 : index
    %c0_41 = arith.constant 0 : index
    %91 = vector.load %arg11[%c0_40, %c0_41] : memref<1x32xf32, #tpu.memory_space<vmem>>, vector<1x32xf32>
    %cst_42 = arith.constant dense<0.000000e+00> : vector<16xf32>
    %92 = vector.multi_reduction <add>, %89, %cst_42 [1] : vector<16x32xf32> to vector<16xf32>
    %93 = vector.shape_cast %92 : vector<16xf32> to vector<16x1xf32>
    %cst_43 = arith.constant 3.200000e+01 : f32
    %94 = vector.broadcast %cst_43 : f32 to vector<16x1xf32>
    %95 = arith.divf %93, %94 : vector<16x1xf32>
    %96 = vector.broadcast %95 : vector<16x1xf32> to vector<16x32xf32>
    %97 = arith.subf %89, %96 : vector<16x32xf32>
    %98 = arith.mulf %97, %97 : vector<16x32xf32>
    %cst_44 = arith.constant dense<0.000000e+00> : vector<16xf32>
    %99 = vector.multi_reduction <add>, %98, %cst_44 [1] : vector<16x32xf32> to vector<16xf32>
    %100 = vector.shape_cast %99 : vector<16xf32> to vector<16x1xf32>
    %cst_45 = arith.constant 3.200000e+01 : f32
    %101 = vector.broadcast %cst_45 : f32 to vector<16x1xf32>
    %102 = arith.divf %100, %101 : vector<16x1xf32>
    %103 = vector.broadcast %95 : vector<16x1xf32> to vector<16x32xf32>
    %104 = arith.subf %89, %103 : vector<16x32xf32>
    %cst_46 = arith.constant 9.99999974E-6 : f32
    %105 = vector.broadcast %cst_46 : f32 to vector<16x1xf32>
    %106 = arith.addf %102, %105 : vector<16x1xf32>
    %107 = math.rsqrt %106 : vector<16x1xf32>
    %108 = vector.broadcast %107 : vector<16x1xf32> to vector<16x32xf32>
    %109 = arith.mulf %104, %108 : vector<16x32xf32>
    %110 = vector.broadcast %90 : vector<1x32xf32> to vector<16x32xf32>
    %111 = arith.mulf %109, %110 : vector<16x32xf32>
    %112 = vector.broadcast %91 : vector<1x32xf32> to vector<16x32xf32>
    %113 = arith.addf %111, %112 : vector<16x32xf32>
    %c0_47 = arith.constant 0 : index
    %c0_48 = arith.constant 0 : index
    %114 = vector.load %arg12[%c0_47, %c0_48] : memref<32x64xf32, #tpu.memory_space<vmem>>, vector<32x64xf32>
    %cst_49 = arith.constant dense<0.000000e+00> : vector<16x64xf32>
    %115 = tpu.matmul %113, %114, %cst_49 {dimension_numbers = #tpu.dot_dimension_numbers<[1], [0], [0], [1], [0, 0, 1, 1], [], []>, precision = #tpu.contract_precision<fp32>} : vector<16x32xf32>, vector<32x64xf32>, vector<16x64xf32> -> vector<16x64xf32>
    %c0_50 = arith.constant 0 : index
    %c0_51 = arith.constant 0 : index
    %116 = vector.load %arg13[%c0_50, %c0_51] : memref<1x64xf32, #tpu.memory_space<vmem>>, vector<1x64xf32>
    %117 = vector.broadcast %116 : vector<1x64xf32> to vector<16x64xf32>
    %118 = arith.addf %115, %117 : vector<16x64xf32>
    %cst_52 = arith.constant 0.000000e+00 : f32
    %119 = vector.broadcast %cst_52 : f32 to vector<16x64xf32>
    %120 = arith.maximumf %118, %119 : vector<16x64xf32>
    %c0_53 = arith.constant 0 : index
    %c0_54 = arith.constant 0 : index
    %121 = vector.load %arg14[%c0_53, %c0_54] : memref<64x32xf32, #tpu.memory_space<vmem>>, vector<64x32xf32>
    %cst_55 = arith.constant dense<0.000000e+00> : vector<16x32xf32>
    %122 = tpu.matmul %120, %121, %cst_55 {dimension_numbers = #tpu.dot_dimension_numbers<[1], [0], [0], [1], [0, 0, 1, 1], [], []>, precision = #tpu.contract_precision<fp32>} : vector<16x64xf32>, vector<64x32xf32>, vector<16x32xf32> -> vector<16x32xf32>
    %c0_56 = arith.constant 0 : index
    %c0_57 = arith.constant 0 : index
    %123 = vector.load %arg15[%c0_56, %c0_57] : memref<1x32xf32, #tpu.memory_space<vmem>>, vector<1x32xf32>
    %124 = vector.broadcast %123 : vector<1x32xf32> to vector<16x32xf32>
    %125 = arith.addf %122, %124 : vector<16x32xf32>
    %126 = arith.addf %113, %125 : vector<16x32xf32>
    %c0_58 = arith.constant 0 : index
    %c0_59 = arith.constant 0 : index
    %127 = vector.load %arg16[%c0_58, %c0_59] : memref<1x32xf32, #tpu.memory_space<vmem>>, vector<1x32xf32>
    %c0_60 = arith.constant 0 : index
    %c0_61 = arith.constant 0 : index
    %128 = vector.load %arg17[%c0_60, %c0_61] : memref<1x32xf32, #tpu.memory_space<vmem>>, vector<1x32xf32>
    %cst_62 = arith.constant dense<0.000000e+00> : vector<16xf32>
    %129 = vector.multi_reduction <add>, %126, %cst_62 [1] : vector<16x32xf32> to vector<16xf32>
    %130 = vector.shape_cast %129 : vector<16xf32> to vector<16x1xf32>
    %cst_63 = arith.constant 3.200000e+01 : f32
    %131 = vector.broadcast %cst_63 : f32 to vector<16x1xf32>
    %132 = arith.divf %130, %131 : vector<16x1xf32>
    %133 = vector.broadcast %132 : vector<16x1xf32> to vector<16x32xf32>
    %134 = arith.subf %126, %133 : vector<16x32xf32>
    %135 = arith.mulf %134, %134 : vector<16x32xf32>
    %cst_64 = arith.constant dense<0.000000e+00> : vector<16xf32>
    %136 = vector.multi_reduction <add>, %135, %cst_64 [1] : vector<16x32xf32> to vector<16xf32>
    %137 = vector.shape_cast %136 : vector<16xf32> to vector<16x1xf32>
    %cst_65 = arith.constant 3.200000e+01 : f32
    %138 = vector.broadcast %cst_65 : f32 to vector<16x1xf32>
    %139 = arith.divf %137, %138 : vector<16x1xf32>
    %140 = vector.broadcast %132 : vector<16x1xf32> to vector<16x32xf32>
    %141 = arith.subf %126, %140 : vector<16x32xf32>
    %cst_66 = arith.constant 9.99999974E-6 : f32
    %142 = vector.broadcast %cst_66 : f32 to vector<16x1xf32>
    %143 = arith.addf %139, %142 : vector<16x1xf32>
    %144 = math.rsqrt %143 : vector<16x1xf32>
    %145 = vector.broadcast %144 : vector<16x1xf32> to vector<16x32xf32>
    %146 = arith.mulf %141, %145 : vector<16x32xf32>
    %147 = vector.broadcast %127 : vector<1x32xf32> to vector<16x32xf32>
    %148 = arith.mulf %146, %147 : vector<16x32xf32>
    %149 = vector.broadcast %128 : vector<1x32xf32> to vector<16x32xf32>
    %150 = arith.addf %148, %149 : vector<16x32xf32>
    %c0_67 = arith.constant 0 : index
    %c0_68 = arith.constant 0 : index
    %c0_69 = arith.constant 0 : index
    %151 = vector.load %arg18[%c0_67, %c0_68, %c0_69] : memref<1x16x32xf32, #tpu.memory_space<vmem>>, vector<1x16x32xf32>
    %152 = vector.shape_cast %151 : vector<1x16x32xf32> to vector<16x32xf32>
    %153 = vector.shape_cast %150 : vector<16x32xf32> to vector<1x16x32xf32>
    tpu.vector_store %arg18[%c0_67, %c0_68, %c0_69], %153 {strides = array<i32>} : memref<1x16x32xf32, #tpu.memory_space<vmem>>, vector<1x16x32xf32>,
    return
  }
  func.func @transform_0(%arg0: i32) -> (i32, i32, i32) {
    %c0_i32 = arith.constant 0 : i32
    %c0_i32_0 = arith.constant 0 : i32
    %c0_i32_1 = arith.constant 0 : i32
    return %arg0, %c0_i32, %c0_i32_0 : i32, i32, i32
  }
  func.func @transform_1(%arg0: i32) -> (i32, i32, i32) {
    %c0_i32 = arith.constant 0 : i32
    %c0_i32_0 = arith.constant 0 : i32
    %c0_i32_1 = arith.constant 0 : i32
    return %arg0, %c0_i32, %c0_i32_0 : i32, i32, i32
  }
  func.func @transform_2(%arg0: i32) -> (i32, i32, i32) {
    %c0_i32 = arith.constant 0 : i32
    %c0_i32_0 = arith.constant 0 : i32
    %c0_i32_1 = arith.constant 0 : i32
    %c0_i32_2 = arith.constant 0 : i32
    return %c0_i32, %c0_i32_0, %c0_i32_1 : i32, i32, i32
  }
  func.func @transform_3(%arg0: i32) -> (i32, i32) {
    %c0_i32 = arith.constant 0 : i32
    %c0_i32_0 = arith.constant 0 : i32
    %c0_i32_1 = arith.constant 0 : i32
    return %c0_i32, %c0_i32_0 : i32, i32
  }
  func.func @transform_4(%arg0: i32) -> (i32, i32) {
    %c0_i32 = arith.constant 0 : i32
    %c0_i32_0 = arith.constant 0 : i32
    %c0_i32_1 = arith.constant 0 : i32
    return %c0_i32, %c0_i32_0 : i32, i32
  }
  func.func @transform_5(%arg0: i32) -> (i32, i32) {
    %c0_i32 = arith.constant 0 : i32
    %c0_i32_0 = arith.constant 0 : i32
    %c0_i32_1 = arith.constant 0 : i32
    return %c0_i32, %c0_i32_0 : i32, i32
  }
  func.func @transform_6(%arg0: i32) -> (i32, i32) {
    %c0_i32 = arith.constant 0 : i32
    %c0_i32_0 = arith.constant 0 : i32
    %c0_i32_1 = arith.constant 0 : i32
    return %c0_i32, %c0_i32_0 : i32, i32
  }
  func.func @transform_7(%arg0: i32) -> (i32, i32) {
    %c0_i32 = arith.constant 0 : i32
    %c0_i32_0 = arith.constant 0 : i32
    %c0_i32_1 = arith.constant 0 : i32
    return %c0_i32, %c0_i32_0 : i32, i32
  }
  func.func @transform_8(%arg0: i32) -> (i32, i32) {
    %c0_i32 = arith.constant 0 : i32
    %c0_i32_0 = arith.constant 0 : i32
    %c0_i32_1 = arith.constant 0 : i32
    return %c0_i32, %c0_i32_0 : i32, i32
  }
  func.func @transform_9(%arg0: i32) -> (i32, i32) {
    %c0_i32 = arith.constant 0 : i32
    %c0_i32_0 = arith.constant 0 : i32
    %c0_i32_1 = arith.constant 0 : i32
    return %c0_i32, %c0_i32_0 : i32, i32
  }
  func.func @transform_10(%arg0: i32) -> (i32, i32) {
    %c0_i32 = arith.constant 0 : i32
    %c0_i32_0 = arith.constant 0 : i32
    %c0_i32_1 = arith.constant 0 : i32
    return %c0_i32, %c0_i32_0 : i32, i32
  }
  func.func @transform_11(%arg0: i32) -> (i32, i32) {
    %c0_i32 = arith.constant 0 : i32
    %c0_i32_0 = arith.constant 0 : i32
    %c0_i32_1 = arith.constant 0 : i32
    return %c0_i32, %c0_i32_0 : i32, i32
  }
  func.func @transform_12(%arg0: i32) -> (i32, i32) {
    %c0_i32 = arith.constant 0 : i32
    %c0_i32_0 = arith.constant 0 : i32
    %c0_i32_1 = arith.constant 0 : i32
    return %c0_i32, %c0_i32_0 : i32, i32
  }
  func.func @transform_13(%arg0: i32) -> (i32, i32) {
    %c0_i32 = arith.constant 0 : i32
    %c0_i32_0 = arith.constant 0 : i32
    %c0_i32_1 = arith.constant 0 : i32
    return %c0_i32, %c0_i32_0 : i32, i32
  }
  func.func @transform_14(%arg0: i32) -> (i32, i32) {
    %c0_i32 = arith.constant 0 : i32
    %c0_i32_0 = arith.constant 0 : i32
    %c0_i32_1 = arith.constant 0 : i32
    return %c0_i32, %c0_i32_0 : i32, i32
  }
  func.func @transform_15(%arg0: i32) -> (i32, i32) {
    %c0_i32 = arith.constant 0 : i32
    %c0_i32_0 = arith.constant 0 : i32
    %c0_i32_1 = arith.constant 0 : i32
    return %c0_i32, %c0_i32_0 : i32, i32
  }
  func.func @transform_16(%arg0: i32) -> (i32, i32) {
    %c0_i32 = arith.constant 0 : i32
    %c0_i32_0 = arith.constant 0 : i32
    %c0_i32_1 = arith.constant 0 : i32
    return %c0_i32, %c0_i32_0 : i32, i32
  }
  func.func @transform_17(%arg0: i32) -> (i32, i32, i32) {
    %c0_i32 = arith.constant 0 : i32
    %c0_i32_0 = arith.constant 0 : i32
    %c0_i32_1 = arith.constant 0 : i32
    return %arg0, %c0_i32, %c0_i32_0 : i32, i32, i32
  }
}

</mosaic_0001>

<llo_original>
// kernel: tpu_custom_call.1
$region0: #{tpu_custom_call.1}
  #allocation0 [shape = 'u32[]', space=smem, size = 0x4, offset = 0x4, fixed_abs, tag = 'smem constant byte address 0x4 - core index']
  #allocation1 [shape = 'u32[144,128]{1,0:T(1,128)}', space=vmem, size = 0x12000, scoped, tag = 'internal scratch']
  %s0 = inlined_call_operand.vmem [shape: f32[2,16,32], index: 0, kind: input, shape index: {}]
  %s1 = inlined_call_operand.vmem [shape: f32[2,16,32], index: 1, kind: input, shape index: {}]
  %s2 = inlined_call_operand.hbm [shape: f32[1,16,16], index: 2, kind: input, shape index: {}]
  %s3 = inlined_call_operand.vmem [shape: f32[32,64], index: 3, kind: input, shape index: {}]
  %s4 = inlined_call_operand.vmem [shape: f32[1,64], index: 4, kind: input, shape index: {}]
  %s5 = inlined_call_operand.hbm [shape: f32[32,32], index: 5, kind: input, shape index: {}]
  %s6 = inlined_call_operand.vmem [shape: f32[1,32], index: 6, kind: input, shape index: {}]
  %s7 = inlined_call_operand.hbm [shape: f32[32,32], index: 7, kind: input, shape index: {}]
  %s8 = inlined_call_operand.vmem [shape: f32[1,32], index: 8, kind: input, shape index: {}]
  %s9 = inlined_call_operand.vmem [shape: f32[1,32], index: 9, kind: input, shape index: {}]
  %s10 = inlined_call_operand.vmem [shape: f32[1,32], index: 10, kind: input, shape index: {}]
  %s11 = inlined_call_operand.hbm [shape: f32[32,64], index: 11, kind: input, shape index: {}]
  %s12 = inlined_call_operand.vmem [shape: f32[1,64], index: 12, kind: input, shape index: {}]
  %s13 = inlined_call_operand.vmem [shape: f32[64,32], index: 13, kind: input, shape index: {}]
  %s14 = inlined_call_operand.vmem [shape: f32[1,32], index: 14, kind: input, shape index: {}]
  %s15 = inlined_call_operand.vmem [shape: f32[1,32], index: 15, kind: input, shape index: {}]
  %s16 = inlined_call_operand.vmem [shape: f32[1,32], index: 16, kind: input, shape index: {}]
  %s17 = inlined_call_operand.hbm [shape: f32[2,16,32], index: 17, kind: output, shape index: {}]
  %s18 = sld [smem:[#allocation0]]
  $region117: #{tpu_custom_call.1} parent=0
    _
  %s20 = ssub.s32 1, %s18
  %s21 = scalar_select 0, %s20, %s18
  $region1: #{tpu_custom_call.1} parent=0
    #allocation2 [shape = 'u8[8192]{0}', space=vmem, size = 0x2000, scoped, tag = 'input window, operand 2, single buffered']
    #allocation3 [shape = 's32[2]{0}', space=sflag, size = 0x8, scoped, tag = 'scoped memory for tpu_custom_call.1']
    #allocation4 [shape = 's32[2]{0}', space=sflag, size = 0x8, scoped, tag = 'scoped memory for tpu_custom_call.1']
    #allocation5 [shape = 'u8[16384]{0}', space=vmem, size = 0x4000, scoped, tag = 'input window, operand 5, single buffered']
    #allocation6 [shape = 's32[1]{0}', space=sflag, size = 0x4, scoped, tag = 'scoped memory for tpu_custom_call.1']
    #allocation7 [shape = 'u8[16384]{0}', space=vmem, size = 0x4000, scoped, tag = 'input window, operand 7, single buffered']
    #allocation8 [shape = 'u8[16384]{0}', space=vmem, size = 0x4000, scoped, tag = 'input window, operand 11, single buffered']
    #allocation9 [shape = 's32[1]{0}', space=sflag, size = 0x4, scoped, tag = 'scoped memory for tpu_custom_call.1']
    #allocation10 [shape = 'u8[16384]{0}', space=vmem, size = 0x4000, scoped, tag = 'output window, operand 0']
    %22 = vsyncpa [#allocation3], 0
    %23 = vsyncpa [#allocation6], 0
    %24 = vsyncpa [#allocation9], 0
    %25 = vsyncpa [#allocation4], 0
    %s26 = scalar_lea.sflag [#allocation4], 1
    %27 = vsyncpa %s26, 0
    loop: start=0, step=1, limit=4
    $region2: #{tpu_custom_call.1} parent=1 // loop_pre_header
      _
    $region3: #{tpu_custom_call.1} parent=1 // loop_header
      %s29 = sphi 0, %s33
      %p30 = scmp.ge.s32.totalorder %s29, 4
      %s39 = sphi 0, %s41
      %s42 = sphi 0, %s39
      %s43 = sphi 0, %s42
      %s59 = sphi 0, %s43
      %s65 = sphi 0, %s67
      %s68 = sphi 0, %s65
      %s69 = sphi 0, %s68
      %s85 = sphi 0, %s69
      %s89 = sphi 0, %s89
      %s91 = sphi 0, %s89
      %s92 = sphi 0, %s91
      %s106 = sphi 0, %s92
      %s110 = sphi 0, %s110
      %s112 = sphi 0, %s110
      %s113 = sphi 0, %s112
      %s127 = sphi 0, %s113
      %s131 = sphi 0, %s131
      %s133 = sphi 0, %s131
      %s134 = sphi 0, %s133
      %s148 = sphi 0, %s134
      %s152 = sphi 0, %s152
      %s154 = sphi 0, %s152
      %s155 = sphi 0, %s154
      %s169 = sphi 0, %s155
      %s173 = sphi 0, %s173
      %s175 = sphi 0, %s173
      %s176 = sphi 0, %s175
      %s190 = sphi 0, %s176
      %s194 = sphi 0, %s194
      %s196 = sphi 0, %s194
      %s197 = sphi 0, %s196
      %s211 = sphi 0, %s197
      %s215 = sphi 0, %s215
      %s217 = sphi 0, %s215
      %s218 = sphi 0, %s217
      %s232 = sphi 0, %s218
      %s236 = sphi 0, %s236
      %s238 = sphi 0, %s236
      %s239 = sphi 0, %s238
      %s253 = sphi 0, %s239
      %s257 = sphi 0, %s257
      %s259 = sphi 0, %s257
      %s260 = sphi 0, %s259
      %s274 = sphi 0, %s260
      %s278 = sphi 0, %s278
      %s280 = sphi 0, %s278
      %s281 = sphi 0, %s280
      %s295 = sphi 0, %s281
      %s299 = sphi 0, %s299
      %s301 = sphi 0, %s299
      %s302 = sphi 0, %s301
      %s316 = sphi 0, %s302
      %s320 = sphi 0, %s320
      %s322 = sphi 0, %s320
      %s323 = sphi 0, %s322
      %s337 = sphi 0, %s323
      %s341 = sphi 0, %s341
      %s343 = sphi 0, %s341
      %s344 = sphi 0, %s343
      %s358 = sphi 0, %s344
      %s362 = sphi 0, %s362
      %s364 = sphi 0, %s362
      %s365 = sphi 0, %s364
      %s379 = sphi 0, %s365
      %s383 = sphi 0, %s383
      %s385 = sphi 0, %s383
      %s386 = sphi 0, %s385
      %s400 = sphi 0, %s386
      %s406 = sphi 0, %s408
      %s409 = sphi 0, %s406
      %s410 = sphi 0, %s409
      %s426 = sphi 0, %s410
    $region4: #{tpu_custom_call.1} parent=1 // loop_header_branch
      %32 = sbr.rel (%p30) target = $region8
    $region5: #{tpu_custom_call.1} parent=1 // loop_body
      %s34 = ssub.s32 %s29, 1
      %s35 = ssub.s32 %s29, 2
      %s36 = sadd.s32 %s29, 1
      %s37 = ssub.s32 %s29, %s36
      %p38 = scmp.eq.s32.totalorder %s37, 0
      %s40 = sadd.s32 %s39, 1
      %s41 = scalar_select %p38, %s39, %s40
      %p44 = pneg %p38
      %p45 = scmp.eq.s32.totalorder %s29, 1
      %p46 = por %p44, %p45
      %p47 = scmp.ne.s32.totalorder %s39, %s42
      %p48 = scmp.eq.s32.totalorder %s29, 0
      %p49 = por %p47, %p48
      %p50 = scmp.ne.s32.totalorder %s39, %s42
      %p51 = scmp.eq.s32.totalorder %s34, 1
      %p52 = por %p50, %p51
      %p53 = scmp.ne.s32.totalorder %s42, %s43
      %p54 = scmp.eq.s32.totalorder %s34, 0
      %p55 = por %p53, %p54
      %p56 = scmp.ne.s32.totalorder %s42, %s43
      %p57 = scmp.eq.s32.totalorder %s35, 1
      %p58 = por %p56, %p57
      %p60 = scmp.ne.s32.totalorder %s43, %s59
      %p61 = scmp.eq.s32.totalorder %s35, 0
      %p62 = por %p60, %p61
      %s63 = ssub.s32 %s29, %s36
      %p64 = scmp.eq.s32.totalorder %s63, 0
      %s66 = sadd.s32 %s65, 1
      %s67 = scalar_select %p64, %s65, %s66
      %p70 = pneg %p64
      %p71 = scmp.eq.s32.totalorder %s29, 1
      %p72 = por %p70, %p71
      %p73 = scmp.ne.s32.totalorder %s65, %s68
      %p74 = scmp.eq.s32.totalorder %s29, 0
      %p75 = por %p73, %p74
      %p76 = scmp.ne.s32.totalorder %s65, %s68
      %p77 = scmp.eq.s32.totalorder %s34, 1
      %p78 = por %p76, %p77
      %p79 = scmp.ne.s32.totalorder %s68, %s69
      %p80 = scmp.eq.s32.totalorder %s34, 0
      %p81 = por %p79, %p80
      %p82 = scmp.ne.s32.totalorder %s68, %s69
      %p83 = scmp.eq.s32.totalorder %s35, 1
      %p84 = por %p82, %p83
      %p86 = scmp.ne.s32.totalorder %s69, %s85
      %p87 = scmp.eq.s32.totalorder %s35, 0
      %p88 = por %p86, %p87
      %s90 = sadd.s32 %s89, 1
      %p93 = scmp.eq.s32.totalorder %s29, 1
      %p94 = scmp.ne.s32.totalorder %s89, %s91
      %p95 = scmp.eq.s32.totalorder %s29, 0
      %p96 = por %p94, %p95
      %p97 = scmp.ne.s32.totalorder %s89, %s91
      %p98 = scmp.eq.s32.totalorder %s34, 1
      %p99 = por %p97, %p98
      %p100 = scmp.ne.s32.totalorder %s91, %s92
      %p101 = scmp.eq.s32.totalorder %s34, 0
      %p102 = por %p100, %p101
      %p103 = scmp.ne.s32.totalorder %s91, %s92
      %p104 = scmp.eq.s32.totalorder %s35, 1
      %p105 = por %p103, %p104
      %p107 = scmp.ne.s32.totalorder %s92, %s106
      %p108 = scmp.eq.s32.totalorder %s35, 0
      %p109 = por %p107, %p108
      %s111 = sadd.s32 %s110, 1
      %p114 = scmp.eq.s32.totalorder %s29, 1
      %p115 = scmp.ne.s32.totalorder %s110, %s112
      %p116 = scmp.eq.s32.totalorder %s29, 0
      %p117 = por %p115, %p116
      %p118 = scmp.ne.s32.totalorder %s110, %s112
      %p119 = scmp.eq.s32.totalorder %s34, 1
      %p120 = por %p118, %p119
      %p121 = scmp.ne.s32.totalorder %s112, %s113
      %p122 = scmp.eq.s32.totalorder %s34, 0
      %p123 = por %p121, %p122
      %p124 = scmp.ne.s32.totalorder %s112, %s113
      %p125 = scmp.eq.s32.totalorder %s35, 1
      %p126 = por %p124, %p125
      %p128 = scmp.ne.s32.totalorder %s113, %s127
      %p129 = scmp.eq.s32.totalorder %s35, 0
      %p130 = por %p128, %p129
      %s132 = sadd.s32 %s131, 1
      %p135 = scmp.eq.s32.totalorder %s29, 1
      %p136 = scmp.ne.s32.totalorder %s131, %s133
      %p137 = scmp.eq.s32.totalorder %s29, 0
      %p138 = por %p136, %p137
      %p139 = scmp.ne.s32.totalorder %s131, %s133
      %p140 = scmp.eq.s32.totalorder %s34, 1
      %p141 = por %p139, %p140
      %p142 = scmp.ne.s32.totalorder %s133, %s134
      %p143 = scmp.eq.s32.totalorder %s34, 0
      %p144 = por %p142, %p143
      %p145 = scmp.ne.s32.totalorder %s133, %s134
      %p146 = scmp.eq.s32.totalorder %s35, 1
      %p147 = por %p145, %p146
      %p149 = scmp.ne.s32.totalorder %s134, %s148
      %p150 = scmp.eq.s32.totalorder %s35, 0
      %p151 = por %p149, %p150
      %s153 = sadd.s32 %s152, 1
      %p156 = scmp.eq.s32.totalorder %s29, 1
      %p157 = scmp.ne.s32.totalorder %s152, %s154
      %p158 = scmp.eq.s32.totalorder %s29, 0
      %p159 = por %p157, %p158
      %p160 = scmp.ne.s32.totalorder %s152, %s154
      %p161 = scmp.eq.s32.totalorder %s34, 1
      %p162 = por %p160, %p161
      %p163 = scmp.ne.s32.totalorder %s154, %s155
      %p164 = scmp.eq.s32.totalorder %s34, 0
      %p165 = por %p163, %p164
      %p166 = scmp.ne.s32.totalorder %s154, %s155
      %p167 = scmp.eq.s32.totalorder %s35, 1
      %p168 = por %p166, %p167
      %p170 = scmp.ne.s32.totalorder %s155, %s169
      %p171 = scmp.eq.s32.totalorder %s35, 0
      %p172 = por %p170, %p171
      %s174 = sadd.s32 %s173, 1
      %p177 = scmp.eq.s32.totalorder %s29, 1
      %p178 = scmp.ne.s32.totalorder %s173, %s175
      %p179 = scmp.eq.s32.totalorder %s29, 0
      %p180 = por %p178, %p179
      %p181 = scmp.ne.s32.totalorder %s173, %s175
      %p182 = scmp.eq.s32.totalorder %s34, 1
      %p183 = por %p181, %p182
      %p184 = scmp.ne.s32.totalorder %s175, %s176
      %p185 = scmp.eq.s32.totalorder %s34, 0
      %p186 = por %p184, %p185
      %p187 = scmp.ne.s32.totalorder %s175, %s176
      %p188 = scmp.eq.s32.totalorder %s35, 1
      %p189 = por %p187, %p188
      %p191 = scmp.ne.s32.totalorder %s176, %s190
      %p192 = scmp.eq.s32.totalorder %s35, 0
      %p193 = por %p191, %p192
      %s195 = sadd.s32 %s194, 1
      %p198 = scmp.eq.s32.totalorder %s29, 1
      %p199 = scmp.ne.s32.totalorder %s194, %s196
      %p200 = scmp.eq.s32.totalorder %s29, 0
      %p201 = por %p199, %p200
      %p202 = scmp.ne.s32.totalorder %s194, %s196
      %p203 = scmp.eq.s32.totalorder %s34, 1
      %p204 = por %p202, %p203
      %p205 = scmp.ne.s32.totalorder %s196, %s197
      %p206 = scmp.eq.s32.totalorder %s34, 0
      %p207 = por %p205, %p206
      %p208 = scmp.ne.s32.totalorder %s196, %s197
      %p209 = scmp.eq.s32.totalorder %s35, 1
      %p210 = por %p208, %p209
      %p212 = scmp.ne.s32.totalorder %s197, %s211
      %p213 = scmp.eq.s32.totalorder %s35, 0
      %p214 = por %p212, %p213
      %s216 = sadd.s32 %s215, 1
      %p219 = scmp.eq.s32.totalorder %s29, 1
      %p220 = scmp.ne.s32.totalorder %s215, %s217
      %p221 = scmp.eq.s32.totalorder %s29, 0
      %p222 = por %p220, %p221
      %p223 = scmp.ne.s32.totalorder %s215, %s217
      %p224 = scmp.eq.s32.totalorder %s34, 1
      %p225 = por %p223, %p224
      %p226 = scmp.ne.s32.totalorder %s217, %s218
      %p227 = scmp.eq.s32.totalorder %s34, 0
      %p228 = por %p226, %p227
      %p229 = scmp.ne.s32.totalorder %s217, %s218
      %p230 = scmp.eq.s32.totalorder %s35, 1
      %p231 = por %p229, %p230
      %p233 = scmp.ne.s32.totalorder %s218, %s232
      %p234 = scmp.eq.s32.totalorder %s35, 0
      %p235 = por %p233, %p234
      %s237 = sadd.s32 %s236, 1
      %p240 = scmp.eq.s32.totalorder %s29, 1
      %p241 = scmp.ne.s32.totalorder %s236, %s238
      %p242 = scmp.eq.s32.totalorder %s29, 0
      %p243 = por %p241, %p242
      %p244 = scmp.ne.s32.totalorder %s236, %s238
      %p245 = scmp.eq.s32.totalorder %s34, 1
      %p246 = por %p244, %p245
      %p247 = scmp.ne.s32.totalorder %s238, %s239
      %p248 = scmp.eq.s32.totalorder %s34, 0
      %p249 = por %p247, %p248
      %p250 = scmp.ne.s32.totalorder %s238, %s239
      %p251 = scmp.eq.s32.totalorder %s35, 1
      %p252 = por %p250, %p251
      %p254 = scmp.ne.s32.totalorder %s239, %s253
      %p255 = scmp.eq.s32.totalorder %s35, 0
      %p256 = por %p254, %p255
      %s258 = sadd.s32 %s257, 1
      %p261 = scmp.eq.s32.totalorder %s29, 1
      %p262 = scmp.ne.s32.totalorder %s257, %s259
      %p263 = scmp.eq.s32.totalorder %s29, 0
      %p264 = por %p262, %p263
      %p265 = scmp.ne.s32.totalorder %s257, %s259
      %p266 = scmp.eq.s32.totalorder %s34, 1
      %p267 = por %p265, %p266
      %p268 = scmp.ne.s32.totalorder %s259, %s260
      %p269 = scmp.eq.s32.totalorder %s34, 0
      %p270 = por %p268, %p269
      %p271 = scmp.ne.s32.totalorder %s259, %s260
      %p272 = scmp.eq.s32.totalorder %s35, 1
      %p273 = por %p271, %p272
      %p275 = scmp.ne.s32.totalorder %s260, %s274
      %p276 = scmp.eq.s32.totalorder %s35, 0
      %p277 = por %p275, %p276
      %s279 = sadd.s32 %s278, 1
      %p282 = scmp.eq.s32.totalorder %s29, 1
      %p283 = scmp.ne.s32.totalorder %s278, %s280
      %p284 = scmp.eq.s32.totalorder %s29, 0
      %p285 = por %p283, %p284
      %p286 = scmp.ne.s32.totalorder %s278, %s280
      %p287 = scmp.eq.s32.totalorder %s34, 1
      %p288 = por %p286, %p287
      %p289 = scmp.ne.s32.totalorder %s280, %s281
      %p290 = scmp.eq.s32.totalorder %s34, 0
      %p291 = por %p289, %p290
      %p292 = scmp.ne.s32.totalorder %s280, %s281
      %p293 = scmp.eq.s32.totalorder %s35, 1
      %p294 = por %p292, %p293
      %p296 = scmp.ne.s32.totalorder %s281, %s295
      %p297 = scmp.eq.s32.totalorder %s35, 0
      %p298 = por %p296, %p297
      %s300 = sadd.s32 %s299, 1
      %p303 = scmp.eq.s32.totalorder %s29, 1
      %p304 = scmp.ne.s32.totalorder %s299, %s301
      %p305 = scmp.eq.s32.totalorder %s29, 0
      %p306 = por %p304, %p305
      %p307 = scmp.ne.s32.totalorder %s299, %s301
      %p308 = scmp.eq.s32.totalorder %s34, 1
      %p309 = por %p307, %p308
      %p310 = scmp.ne.s32.totalorder %s301, %s302
      %p311 = scmp.eq.s32.totalorder %s34, 0
      %p312 = por %p310, %p311
      %p313 = scmp.ne.s32.totalorder %s301, %s302
      %p314 = scmp.eq.s32.totalorder %s35, 1
      %p315 = por %p313, %p314
      %p317 = scmp.ne.s32.totalorder %s302, %s316
      %p318 = scmp.eq.s32.totalorder %s35, 0
      %p319 = por %p317, %p318
      %s321 = sadd.s32 %s320, 1
      %p324 = scmp.eq.s32.totalorder %s29, 1
      %p325 = scmp.ne.s32.totalorder %s320, %s322
      %p326 = scmp.eq.s32.totalorder %s29, 0
      %p327 = por %p325, %p326
      %p328 = scmp.ne.s32.totalorder %s320, %s322
      %p329 = scmp.eq.s32.totalorder %s34, 1
      %p330 = por %p328, %p329
      %p331 = scmp.ne.s32.totalorder %s322, %s323
      %p332 = scmp.eq.s32.totalorder %s34, 0
      %p333 = por %p331, %p332
      %p334 = scmp.ne.s32.totalorder %s322, %s323
      %p335 = scmp.eq.s32.totalorder %s35, 1
      %p336 = por %p334, %p335
      %p338 = scmp.ne.s32.totalorder %s323, %s337
      %p339 = scmp.eq.s32.totalorder %s35, 0
      %p340 = por %p338, %p339
      %s342 = sadd.s32 %s341, 1
      %p345 = scmp.eq.s32.totalorder %s29, 1
      %p346 = scmp.ne.s32.totalorder %s341, %s343
      %p347 = scmp.eq.s32.totalorder %s29, 0
      %p348 = por %p346, %p347
      %p349 = scmp.ne.s32.totalorder %s341, %s343
      %p350 = scmp.eq.s32.totalorder %s34, 1
      %p351 = por %p349, %p350
      %p352 = scmp.ne.s32.totalorder %s343, %s344
      %p353 = scmp.eq.s32.totalorder %s34, 0
      %p354 = por %p352, %p353
      %p355 = scmp.ne.s32.totalorder %s343, %s344
      %p356 = scmp.eq.s32.totalorder %s35, 1
      %p357 = por %p355, %p356
      %p359 = scmp.ne.s32.totalorder %s344, %s358
      %p360 = scmp.eq.s32.totalorder %s35, 0
      %p361 = por %p359, %p360
      %s363 = sadd.s32 %s362, 1
      %p366 = scmp.eq.s32.totalorder %s29, 1
      %p367 = scmp.ne.s32.totalorder %s362, %s364
      %p368 = scmp.eq.s32.totalorder %s29, 0
      %p369 = por %p367, %p368
      %p370 = scmp.ne.s32.totalorder %s362, %s364
      %p371 = scmp.eq.s32.totalorder %s34, 1
      %p372 = por %p370, %p371
      %p373 = scmp.ne.s32.totalorder %s364, %s365
      %p374 = scmp.eq.s32.totalorder %s34, 0
      %p375 = por %p373, %p374
      %p376 = scmp.ne.s32.totalorder %s364, %s365
      %p377 = scmp.eq.s32.totalorder %s35, 1
      %p378 = por %p376, %p377
      %p380 = scmp.ne.s32.totalorder %s365, %s379
      %p381 = scmp.eq.s32.totalorder %s35, 0
      %p382 = por %p380, %p381
      %s384 = sadd.s32 %s383, 1
      %p387 = scmp.eq.s32.totalorder %s29, 1
      %p388 = scmp.ne.s32.totalorder %s383, %s385
      %p389 = scmp.eq.s32.totalorder %s29, 0
      %p390 = por %p388, %p389
      %p391 = scmp.ne.s32.totalorder %s383, %s385
      %p392 = scmp.eq.s32.totalorder %s34, 1
      %p393 = por %p391, %p392
      %p394 = scmp.ne.s32.totalorder %s385, %s386
      %p395 = scmp.eq.s32.totalorder %s34, 0
      %p396 = por %p394, %p395
      %p397 = scmp.ne.s32.totalorder %s385, %s386
      %p398 = scmp.eq.s32.totalorder %s35, 1
      %p399 = por %p397, %p398
      %p401 = scmp.ne.s32.totalorder %s386, %s400
      %p402 = scmp.eq.s32.totalorder %s35, 0
      %p403 = por %p401, %p402
      %s404 = ssub.s32 %s29, %s36
      %p405 = scmp.eq.s32.totalorder %s404, 0
      %s407 = sadd.s32 %s406, 1
      %s408 = scalar_select %p405, %s406, %s407
      %p411 = pneg %p405
      %p412 = scmp.eq.s32.totalorder %s29, 1
      %p413 = por %p411, %p412
      %p414 = scmp.ne.s32.totalorder %s406, %s409
      %p415 = scmp.eq.s32.totalorder %s29, 0
      %p416 = por %p414, %p415
      %p417 = scmp.ne.s32.totalorder %s406, %s409
      %p418 = scmp.eq.s32.totalorder %s34, 1
      %p419 = por %p417, %p418
      %p420 = scmp.ne.s32.totalorder %s409, %s410
      %p421 = scmp.eq.s32.totalorder %s34, 0
      %p422 = por %p420, %p421
      %p423 = scmp.ne.s32.totalorder %s409, %s410
      %p424 = scmp.eq.s32.totalorder %s35, 1
      %p425 = por %p423, %p424
      %p427 = scmp.ne.s32.totalorder %s410, %s426
      %p428 = scmp.eq.s32.totalorder %s35, 0
      %p429 = por %p427, %p428
      %p430 = scmp.le.s32.totalorder 1, %s29
      %p431 = scmp.lt.s32.totalorder %s29, 3
      %p432 = pnand %p430, %p431
      %p433 = pneg %p432
      // Predicated region
      $region9: #{tpu_custom_call.1} parent=5 // pred_check
        _
      $region10: #{tpu_custom_call.1} parent=5 // pred_check_branch
        %435 = sbr.rel (%p432) target = $region12
      $region11: #{tpu_custom_call.1} parent=5 // pred_region
        %s436 = ssub.s32 %s29, 1
        // Predicated region
        $region13: #{tpu_custom_call.1} parent=11 // pred_check
          %p437 = pneg %p102
        $region14: #{tpu_custom_call.1} parent=11 // pred_check_branch
          %439 = sbr.rel (%p437) target = $region16
        $region15: #{tpu_custom_call.1} parent=11 // pred_region
          %s441 = ssub.s32 256, 256
          %442 = vsyncadd [#allocation3], %s441
          %s443 = sshll.u32 [#allocation2], 4
          %s444 = int_to_ptr.vmem [resolvable:$true] %s443
          %449 = dma.hbm_to_vmem [thread:$0]  %s2, 256, %s444, [#allocation3], 128, 128, 8
        $region16: #{tpu_custom_call.1} parent=11 // pred_fallthru
          _
        // Predicated region
        $region17: #{tpu_custom_call.1} parent=11 // pred_check
          %p450 = pneg %p123
        $region18: #{tpu_custom_call.1} parent=11 // pred_check_branch
          %452 = sbr.rel (%p450) target = $region20
        $region19: #{tpu_custom_call.1} parent=11 // pred_region
          _
        $region20: #{tpu_custom_call.1} parent=11 // pred_fallthru
          _
        // Predicated region
        $region21: #{tpu_custom_call.1} parent=11 // pred_check
          %p453 = pneg %p144
        $region22: #{tpu_custom_call.1} parent=11 // pred_check_branch
          %455 = sbr.rel (%p453) target = $region24
        $region23: #{tpu_custom_call.1} parent=11 // pred_region
          _
        $region24: #{tpu_custom_call.1} parent=11 // pred_fallthru
          _
        // Predicated region
        $region25: #{tpu_custom_call.1} parent=11 // pred_check
          %p456 = pneg %p165
        $region26: #{tpu_custom_call.1} parent=11 // pred_check_branch
          %458 = sbr.rel (%p456) target = $region28
        $region27: #{tpu_custom_call.1} parent=11 // pred_region
          %s460 = ssub.s32 512, 512
          %461 = vsyncadd [#allocation6], %s460
          %s462 = sshll.u32 [#allocation5], 4
          %s463 = int_to_ptr.vmem [resolvable:$true] %s462
          %468 = dma.hbm_to_vmem [thread:$0]  %s5, 512, %s463, [#allocation6], 128, 128, 8
        $region28: #{tpu_custom_call.1} parent=11 // pred_fallthru
          _
        // Predicated region
        $region29: #{tpu_custom_call.1} parent=11 // pred_check
          %p469 = pneg %p186
        $region30: #{tpu_custom_call.1} parent=11 // pred_check_branch
          %471 = sbr.rel (%p469) target = $region32
        $region31: #{tpu_custom_call.1} parent=11 // pred_region
          _
        $region32: #{tpu_custom_call.1} parent=11 // pred_fallthru
          _
        // Predicated region
        $region33: #{tpu_custom_call.1} parent=11 // pred_check
          %p472 = pneg %p207
        $region34: #{tpu_custom_call.1} parent=11 // pred_check_branch
          %474 = sbr.rel (%p472) target = $region36
        $region35: #{tpu_custom_call.1} parent=11 // pred_region
          %s476 = ssub.s32 512, 512
          %477 = vsyncadd [#allocation6], %s476
          %s478 = sshll.u32 [#allocation7], 4
          %s479 = int_to_ptr.vmem [resolvable:$true] %s478
          %484 = dma.hbm_to_vmem [thread:$0]  %s7, 512, %s479, [#allocation6], 128, 128, 8
        $region36: #{tpu_custom_call.1} parent=11 // pred_fallthru
          _
        // Predicated region
        $region37: #{tpu_custom_call.1} parent=11 // pred_check
          %p485 = pneg %p228
        $region38: #{tpu_custom_call.1} parent=11 // pred_check_branch
          %487 = sbr.rel (%p485) target = $region40
        $region39: #{tpu_custom_call.1} parent=11 // pred_region
          _
        $region40: #{tpu_custom_call.1} parent=11 // pred_fallthru
          _
        // Predicated region
        $region41: #{tpu_custom_call.1} parent=11 // pred_check
          %p488 = pneg %p249
        $region42: #{tpu_custom_call.1} parent=11 // pred_check_branch
          %490 = sbr.rel (%p488) target = $region44
        $region43: #{tpu_custom_call.1} parent=11 // pred_region
          _
        $region44: #{tpu_custom_call.1} parent=11 // pred_fallthru
          _
        // Predicated region
        $region45: #{tpu_custom_call.1} parent=11 // pred_check
          %p491 = pneg %p270
        $region46: #{tpu_custom_call.1} parent=11 // pred_check_branch
          %493 = sbr.rel (%p491) target = $region48
        $region47: #{tpu_custom_call.1} parent=11 // pred_region
          _
        $region48: #{tpu_custom_call.1} parent=11 // pred_fallthru
          _
        // Predicated region
        $region49: #{tpu_custom_call.1} parent=11 // pred_check
          %p494 = pneg %p291
        $region50: #{tpu_custom_call.1} parent=11 // pred_check_branch
          %496 = sbr.rel (%p494) target = $region52
        $region51: #{tpu_custom_call.1} parent=11 // pred_region
          %s498 = ssub.s32 512, 512
          %499 = vsyncadd [#allocation9], %s498
          %s500 = sshll.u32 [#allocation8], 4
          %s501 = int_to_ptr.vmem [resolvable:$true] %s500
          %506 = dma.hbm_to_vmem [thread:$0]  %s11, 512, %s501, [#allocation9], 128, 128, 8
        $region52: #{tpu_custom_call.1} parent=11 // pred_fallthru
          _
        // Predicated region
        $region53: #{tpu_custom_call.1} parent=11 // pred_check
          %p507 = pneg %p312
        $region54: #{tpu_custom_call.1} parent=11 // pred_check_branch
          %509 = sbr.rel (%p507) target = $region56
        $region55: #{tpu_custom_call.1} parent=11 // pred_region
          _
        $region56: #{tpu_custom_call.1} parent=11 // pred_fallthru
          _
        // Predicated region
        $region57: #{tpu_custom_call.1} parent=11 // pred_check
          %p510 = pneg %p333
        $region58: #{tpu_custom_call.1} parent=11 // pred_check_branch
          %512 = sbr.rel (%p510) target = $region60
        $region59: #{tpu_custom_call.1} parent=11 // pred_region
          _
        $region60: #{tpu_custom_call.1} parent=11 // pred_fallthru
          _
        // Predicated region
        $region61: #{tpu_custom_call.1} parent=11 // pred_check
          %p513 = pneg %p354
        $region62: #{tpu_custom_call.1} parent=11 // pred_check_branch
          %515 = sbr.rel (%p513) target = $region64
        $region63: #{tpu_custom_call.1} parent=11 // pred_region
          _
        $region64: #{tpu_custom_call.1} parent=11 // pred_fallthru
          _
        // Predicated region
        $region65: #{tpu_custom_call.1} parent=11 // pred_check
          %p516 = pneg %p375
        $region66: #{tpu_custom_call.1} parent=11 // pred_check_branch
          %518 = sbr.rel (%p516) target = $region68
        $region67: #{tpu_custom_call.1} parent=11 // pred_region
          _
        $region68: #{tpu_custom_call.1} parent=11 // pred_fallthru
          _
        // Predicated region
        $region69: #{tpu_custom_call.1} parent=11 // pred_check
          %p519 = pneg %p396
        $region70: #{tpu_custom_call.1} parent=11 // pred_check_branch
          %521 = sbr.rel (%p519) target = $region72
        $region71: #{tpu_custom_call.1} parent=11 // pred_region
          _
        $region72: #{tpu_custom_call.1} parent=11 // pred_fallthru
          _
      $region12: #{tpu_custom_call.1} parent=5 // pred_fallthru
        _
      %p522 = scmp.lt.s32.totalorder %s29, 2
      // Predicated region
      $region73: #{tpu_custom_call.1} parent=5 // pred_check
        %p523 = pneg %p522
      $region74: #{tpu_custom_call.1} parent=5 // pred_check_branch
        %525 = sbr.rel (%p523) target = $region76
      $region75: #{tpu_custom_call.1} parent=5 // pred_region
        // Predicated region
        $region77: #{tpu_custom_call.1} parent=75 // pred_check
          %p526 = pneg %p49
        $region78: #{tpu_custom_call.1} parent=75 // pred_check_branch
          %528 = sbr.rel (%p526) target = $region80
        $region79: #{tpu_custom_call.1} parent=75 // pred_region
          %p529 = scmp.lt.s32.totalorder %s29, 1
          %s530 = scalar_select %p529, %s29, 1
          %s531 = smul.addr %s530, 2
          %s532 = smul.addr %s531, 8
          %s533 = scalar_lea.vmem %s0, %s532
        $region80: #{tpu_custom_call.1} parent=75 // pred_fallthru
          _
        // Predicated region
        $region81: #{tpu_custom_call.1} parent=75 // pred_check
          %p534 = pneg %p75
        $region82: #{tpu_custom_call.1} parent=75 // pred_check_branch
          %536 = sbr.rel (%p534) target = $region84
        $region83: #{tpu_custom_call.1} parent=75 // pred_region
          %p537 = scmp.lt.s32.totalorder %s29, 1
          %s538 = scalar_select %p537, %s29, 1
          %s539 = smul.addr %s538, 2
          %s540 = smul.addr %s539, 8
          %s541 = scalar_lea.vmem %s1, %s540
        $region84: #{tpu_custom_call.1} parent=75 // pred_fallthru
          _
      $region76: #{tpu_custom_call.1} parent=5 // pred_fallthru
        _
      %p542 = scmp.le.s32.totalorder 1, %s29
      %p543 = scmp.lt.s32.totalorder %s29, 3
      %p544 = pnand %p542, %p543
      %p545 = pneg %p544
      // Predicated region
      $region85: #{tpu_custom_call.1} parent=5 // pred_check
        _
      $region86: #{tpu_custom_call.1} parent=5 // pred_check_branch
        %547 = sbr.rel (%p544) target = $region88
      $region87: #{tpu_custom_call.1} parent=5 // pred_region
        %s548 = ssub.s32 %s29, 1
        // Predicated region
        $region89: #{tpu_custom_call.1} parent=87 // pred_check
          %p549 = pneg %p102
        $region90: #{tpu_custom_call.1} parent=87 // pred_check_branch
          %551 = sbr.rel (%p549) target = $region92
        $region91: #{tpu_custom_call.1} parent=87 // pred_region
          %552 = dma.done [#allocation3], 256
        $region92: #{tpu_custom_call.1} parent=87 // pred_fallthru
          _
        // Predicated region
        $region93: #{tpu_custom_call.1} parent=87 // pred_check
          %p553 = pneg %p165
        $region94: #{tpu_custom_call.1} parent=87 // pred_check_branch
          %555 = sbr.rel (%p553) target = $region96
        $region95: #{tpu_custom_call.1} parent=87 // pred_region
          %556 = dma.done [#allocation6], 512
        $region96: #{tpu_custom_call.1} parent=87 // pred_fallthru
          _
        // Predicated region
        $region97: #{tpu_custom_call.1} parent=87 // pred_check
          %p557 = pneg %p207
        $region98: #{tpu_custom_call.1} parent=87 // pred_check_branch
          %559 = sbr.rel (%p557) target = $region100
        $region99: #{tpu_custom_call.1} parent=87 // pred_region
          %560 = dma.done [#allocation6], 512
        $region100: #{tpu_custom_call.1} parent=87 // pred_fallthru
          _
        // Predicated region
        $region101: #{tpu_custom_call.1} parent=87 // pred_check
          %p561 = pneg %p291
        $region102: #{tpu_custom_call.1} parent=87 // pred_check_branch
          %563 = sbr.rel (%p561) target = $region104
        $region103: #{tpu_custom_call.1} parent=87 // pred_region
          %564 = dma.done [#allocation9], 512
        $region104: #{tpu_custom_call.1} parent=87 // pred_fallthru
          _
        %p565 = scmp.lt.s32.totalorder %s34, 1
        %s566 = scalar_select %p565, %s34, 1
        %s567 = smul.addr %s566, 2
        %s568 = smul.addr %s567, 8
        %s569 = scalar_lea.vmem %s0, %s568
        %p570 = pneg %p55
        %p571 = pneg %p52
        %p572 = scmp.lt.s32.totalorder %s34, 1
        %s573 = scalar_select %p572, %s34, 1
        %s574 = smul.addr %s573, 2
        %s575 = smul.addr %s574, 8
        %s576 = scalar_lea.vmem %s1, %s575
        %p577 = pneg %p81
        %p578 = pneg %p78
        %p579 = pneg %p102
        %p580 = pneg %p99
        %p581 = pneg %p123
        %p582 = pneg %p120
        %p583 = pneg %p144
        %p584 = pneg %p141
        %p585 = pneg %p165
        %p586 = pneg %p162
        %p587 = pneg %p186
        %p588 = pneg %p183
        %p589 = pneg %p207
        %p590 = pneg %p204
        %p591 = pneg %p228
        %p592 = pneg %p225
        %p593 = pneg %p249
        %p594 = pneg %p246
        %p595 = pneg %p270
        %p596 = pneg %p267
        %p597 = pneg %p291
        %p598 = pneg %p288
        %p599 = pneg %p312
        %p600 = pneg %p309
        %p601 = pneg %p333
        %p602 = pneg %p330
        %p603 = pneg %p354
        %p604 = pneg %p351
        %p605 = pneg %p375
        %p606 = pneg %p372
        %p607 = pneg %p396
        %p608 = pneg %p393
        %p609 = pneg %p422
        %p610 = pneg %p419
        %s611 = sand.u32 %s409, 1
        %s612 = scalar_lea.sflag [#allocation4], %s611
        %s613 = sand.u32 %s409, 1
        %s614 = smul.addr %s613, 16
        %s615 = scalar_lea.vmem [#allocation10], %s614
        %p616 = scmp.lt.s32.totalorder %s34, 1
        %s617 = scalar_select %p616, %s34, 1
        %s618 = smul.addr %s617, 2
        %s619 = smul.addr %s618, 8
        %s620 = scalar_lea.vmem %s0, %s619
        %p621 = scmp.lt.s32.totalorder %s34, 1
        %s622 = scalar_select %p621, %s34, 1
        %s623 = smul.addr %s622, 2
        %s624 = smul.addr %s623, 8
        %s625 = scalar_lea.vmem %s1, %s624
        %v626 = vld [vmem:[%s620] sm:$0xff]
        %v627 = vld [vmem:[%s620 + $0x8] sm:$0xff]
        %v628 = vld [vmem:[%s625] sm:$0xff]
        %v629 = vld [vmem:[%s625 + $0x8] sm:$0xff]
        %v630 = vadd.f32 %v626, %v628
        %v631 = vadd.f32 %v627, %v629
        %v632 = vld [vmem:[%s3] sm:$0xff]
        %v633 = vld [vmem:[%s3 + $0x8] sm:$0xff]
        %v634 = vld [vmem:[%s3 + $0x10] sm:$0xff]
        %v635 = vld [vmem:[%s3 + $0x18] sm:$0xff]
        %v636 = vld [vmem:[%s4] sm:$0x1]
        %v638 = vlaneseq
        %v639 = vshrl.u32 %v638, 7
        %v640 = vsub.s32 0, %v639
        %v641 = vrot.slane %v636, %v640
        %vm643 = vcmask 261120
        %v645 = vsel %vm643, %v630, 0
        %v648 = vsel %vm643, %v631, 0
        %650 = vmatprep.subr.mxu0 0.0
        %651 = vmatpush1.msra.mxu0 0.0
        %652 = vmatprep.subr.mxu0 0.0
        %653 = vmatpush1.msra.mxu0 0.0
        %654 = vmatprep.subr.mxu0 0.0
        %655 = vmatpush1.msra.mxu0 0.0
        %656 = vmatprep.subr.mxu0 0.0
        %657 = vmatpush1.msra.mxu0 0.0
        %658 = vmatprep.subr.mxu0 0.0
        %659 = vmatpush1.msra.mxu0 0.0
        %660 = vmatprep.subr.mxu0 0.0
        %661 = vmatpush1.msra.mxu0 0.0
        %662 = vmatprep.subr.mxu0 0.0
        %663 = vmatpush1.msra.mxu0 0.0
        %664 = vmatprep.subr.mxu0 0.0
        %665 = vmatpush1.msra.mxu0 0.0
        %666 = vmatprep.subr.mxu0 0.0
        %667 = vmatpush1.msra.mxu0 0.0
        %668 = vmatprep.subr.mxu0 0.0
        %669 = vmatpush1.msra.mxu0 0.0
        %670 = vmatprep.subr.mxu0 0.0
        %671 = vmatpush1.msra.mxu0 0.0
        %672 = vmatprep.subr.mxu0 0.0
        %673 = vmatpush1.msra.mxu0 0.0
        %674 = vmatprep.subr.mxu0 0.0
        %v675 = vand.u32 %v635, 4294901760
        %676 = vmatpush1.msra.mxu0 %v675
        %677 = vmatprep.subr.mxu0 0.0
        %v678 = vand.u32 %v634, 4294901760
        %679 = vmatpush1.msra.mxu0 %v678
        %680 = vmatprep.subr.mxu0 0.0
        %v681 = vand.u32 %v633, 4294901760
        %682 = vmatpush1.msra.mxu0 %v681
        %683 = vmatprep.subr.mxu0 0.0
        %v684 = vand.u32 %v632, 4294901760
        %685 = vmatpush1.msra.mxu0 %v684
        %686 = vmatprep.subr.mxu0 0.0
        %687 = vmatpush2.msra.mxu0 0.0
        %688 = vmatprep.subr.mxu0 0.0
        %689 = vmatpush2.msra.mxu0 0.0
        %690 = vmatprep.subr.mxu0 0.0
        %691 = vmatpush2.msra.mxu0 0.0
        %692 = vmatprep.subr.mxu0 0.0
        %693 = vmatpush2.msra.mxu0 0.0
        %694 = vmatprep.subr.mxu0 0.0
        %695 = vmatpush2.msra.mxu0 0.0
        %696 = vmatprep.subr.mxu0 0.0
        %697 = vmatpush2.msra.mxu0 0.0
        %698 = vmatprep.subr.mxu0 0.0
        %699 = vmatpush2.msra.mxu0 0.0
        %700 = vmatprep.subr.mxu0 0.0
        %701 = vmatpush2.msra.mxu0 0.0
        %702 = vmatprep.subr.mxu0 0.0
        %703 = vmatpush2.msra.mxu0 0.0
        %704 = vmatprep.subr.mxu0 0.0
        %705 = vmatpush2.msra.mxu0 0.0
        %706 = vmatprep.subr.mxu0 0.0
        %707 = vmatpush2.msra.mxu0 0.0
        %708 = vmatprep.subr.mxu0 0.0
        %709 = vmatpush2.msra.mxu0 0.0
        %710 = vmatprep.subr.mxu0 0.0
        %711 = vmatpush2.msra.mxu0 0.0
        %712 = vmatprep.subr.mxu0 0.0
        %713 = vmatpush2.msra.mxu0 0.0
        %714 = vmatprep.subr.mxu0 0.0
        %715 = vmatpush2.msra.mxu0 0.0
        %716 = vmatprep.subr.mxu0 0.0
        %717 = vmatpush2.msra.mxu0 0.0
        %718 = vmatprep.mubr.f32.mxu0 0.0
        %v719 = vand.u32 %v645, 4294901760
        %v720 = vsub.f32 %v645, %v719
        %v721 = vand.u32 %v720, 4294901760
        %v722 = vsub.f32 %v720, %v721
        %v723 = vand.u32 %v722, 4294901760
        %724 = vmatmul.mubr.f32.gmra.mxu0 %v723
        %v725 = vpop.f32.mrf.mxu0
        %v726 = vadd.f32 %v641, %v725
        %v727 = vpop.f32.mrf.mxu0
        %728 = vmatprep.mubr.f32.mxu0 0.0
        %v729 = vand.u32 %v648, 4294901760
        %v730 = vsub.f32 %v648, %v729
        %v731 = vand.u32 %v730, 4294901760
        %v732 = vsub.f32 %v730, %v731
        %v733 = vand.u32 %v732, 4294901760
        %734 = vmatmul.mubr.f32.gmra.mxu0 %v733
        %v735 = vpop.f32.mrf.mxu0
        %v736 = vadd.f32 %v641, %v735
        %v737 = vpop.f32.mrf.mxu0
        %738 = vdwg.mxu0
        %739 = vmatprep.subr.mxu0 0.0
        %740 = vmatpush1.msra.mxu0 0.0
        %741 = vmatprep.subr.mxu0 0.0
        %742 = vmatpush1.msra.mxu0 0.0
        %743 = vmatprep.subr.mxu0 0.0
        %744 = vmatpush1.msra.mxu0 0.0
        %745 = vmatprep.subr.mxu0 0.0
        %746 = vmatpush1.msra.mxu0 0.0
        %747 = vmatprep.subr.mxu0 0.0
        %748 = vmatpush1.msra.mxu0 0.0
        %749 = vmatprep.subr.mxu0 0.0
        %750 = vmatpush1.msra.mxu0 0.0
        %751 = vmatprep.subr.mxu0 0.0
        %752 = vmatpush1.msra.mxu0 0.0
        %753 = vmatprep.subr.mxu0 0.0
        %754 = vmatpush1.msra.mxu0 0.0
        %755 = vmatprep.subr.mxu0 0.0
        %756 = vmatpush1.msra.mxu0 0.0
        %757 = vmatprep.subr.mxu0 0.0
        %758 = vmatpush1.msra.mxu0 0.0
        %759 = vmatprep.subr.mxu0 0.0
        %760 = vmatpush1.msra.mxu0 0.0
        %761 = vmatprep.subr.mxu0 0.0
        %762 = vmatpush1.msra.mxu0 0.0
        %763 = vmatprep.subr.mxu0 0.0
        %v764 = vand.u32 %v635, 4294901760
        %v765 = vsub.f32 %v635, %v764
        %v766 = vand.u32 %v765, 4294901760
        %v767 = vsub.f32 %v765, %v766
        %v768 = vand.u32 %v767, 4294901760
        %769 = vmatpush1.msra.mxu0 %v768
        %770 = vmatprep.subr.mxu0 0.0
        %v771 = vand.u32 %v634, 4294901760
        %v772 = vsub.f32 %v634, %v771
        %v773 = vand.u32 %v772, 4294901760
        %v774 = vsub.f32 %v772, %v773
        %v775 = vand.u32 %v774, 4294901760
        %776 = vmatpush1.msra.mxu0 %v775
        %777 = vmatprep.subr.mxu0 0.0
        %v778 = vand.u32 %v633, 4294901760
        %v779 = vsub.f32 %v633, %v778
        %v780 = vand.u32 %v779, 4294901760
        %v781 = vsub.f32 %v779, %v780
        %v782 = vand.u32 %v781, 4294901760
        %783 = vmatpush1.msra.mxu0 %v782
        %784 = vmatprep.subr.mxu0 0.0
        %v785 = vand.u32 %v632, 4294901760
        %v786 = vsub.f32 %v632, %v785
        %v787 = vand.u32 %v786, 4294901760
        %v788 = vsub.f32 %v786, %v787
        %v789 = vand.u32 %v788, 4294901760
        %790 = vmatpush1.msra.mxu0 %v789
        %791 = vmatprep.subr.mxu0 0.0
        %792 = vmatpush2.msra.mxu0 0.0
        %793 = vmatprep.subr.mxu0 0.0
        %794 = vmatpush2.msra.mxu0 0.0
        %795 = vmatprep.subr.mxu0 0.0
        %796 = vmatpush2.msra.mxu0 0.0
        %797 = vmatprep.subr.mxu0 0.0
        %798 = vmatpush2.msra.mxu0 0.0
        %799 = vmatprep.subr.mxu0 0.0
        %800 = vmatpush2.msra.mxu0 0.0
        %801 = vmatprep.subr.mxu0 0.0
        %802 = vmatpush2.msra.mxu0 0.0
        %803 = vmatprep.subr.mxu0 0.0
        %804 = vmatpush2.msra.mxu0 0.0
        %805 = vmatprep.subr.mxu0 0.0
        %806 = vmatpush2.msra.mxu0 0.0
        %807 = vmatprep.subr.mxu0 0.0
        %808 = vmatpush2.msra.mxu0 0.0
        %809 = vmatprep.subr.mxu0 0.0
        %810 = vmatpush2.msra.mxu0 0.0
        %811 = vmatprep.subr.mxu0 0.0
        %812 = vmatpush2.msra.mxu0 0.0
        %813 = vmatprep.subr.mxu0 0.0
        %814 = vmatpush2.msra.mxu0 0.0
        %815 = vmatprep.subr.mxu0 0.0
        %816 = vmatpush2.msra.mxu0 0.0
        %817 = vmatprep.subr.mxu0 0.0
        %818 = vmatpush2.msra.mxu0 0.0
        %819 = vmatprep.subr.mxu0 0.0
        %820 = vmatpush2.msra.mxu0 0.0
        %821 = vmatprep.subr.mxu0 0.0
        %822 = vmatpush2.msra.mxu0 0.0
        %823 = vmatprep.mubr.f32.mxu0 0.0
        %v824 = vand.u32 %v645, 4294901760
        %825 = vmatmul.mubr.f32.gmra.mxu0 %v824
        %v826 = vpop.f32.mrf.mxu0
        %v827 = vadd.f32 %v726, %v826
        %v828 = vpop.f32.mrf.mxu0
        %829 = vmatprep.mubr.f32.mxu0 0.0
        %v830 = vand.u32 %v648, 4294901760
        %831 = vmatmul.mubr.f32.gmra.mxu0 %v830
        %v832 = vpop.f32.mrf.mxu0
        %v833 = vadd.f32 %v736, %v832
        %v834 = vpop.f32.mrf.mxu0
        %835 = vdwg.mxu0
        %836 = vmatprep.subr.mxu0 0.0
        %837 = vmatpush1.msra.mxu0 0.0
        %838 = vmatprep.subr.mxu0 0.0
        %839 = vmatpush1.msra.mxu0 0.0
        %840 = vmatprep.subr.mxu0 0.0
        %841 = vmatpush1.msra.mxu0 0.0
        %842 = vmatprep.subr.mxu0 0.0
        %843 = vmatpush1.msra.mxu0 0.0
        %844 = vmatprep.subr.mxu0 0.0
        %845 = vmatpush1.msra.mxu0 0.0
        %846 = vmatprep.subr.mxu0 0.0
        %847 = vmatpush1.msra.mxu0 0.0
        %848 = vmatprep.subr.mxu0 0.0
        %849 = vmatpush1.msra.mxu0 0.0
        %850 = vmatprep.subr.mxu0 0.0
        %851 = vmatpush1.msra.mxu0 0.0
        %852 = vmatprep.subr.mxu0 0.0
        %853 = vmatpush1.msra.mxu0 0.0
        %854 = vmatprep.subr.mxu0 0.0
        %855 = vmatpush1.msra.mxu0 0.0
        %856 = vmatprep.subr.mxu0 0.0
        %857 = vmatpush1.msra.mxu0 0.0
        %858 = vmatprep.subr.mxu0 0.0
        %859 = vmatpush1.msra.mxu0 0.0
        %860 = vmatprep.subr.mxu0 0.0
        %v861 = vand.u32 %v635, 4294901760
        %v862 = vsub.f32 %v635, %v861
        %863 = vmatpush1.msra.mxu0 %v862
        %864 = vmatprep.subr.mxu0 0.0
        %v865 = vand.u32 %v634, 4294901760
        %v866 = vsub.f32 %v634, %v865
        %867 = vmatpush1.msra.mxu0 %v866
        %868 = vmatprep.subr.mxu0 0.0
        %v869 = vand.u32 %v633, 4294901760
        %v870 = vsub.f32 %v633, %v869
        %871 = vmatpush1.msra.mxu0 %v870
        %872 = vmatprep.subr.mxu0 0.0
        %v873 = vand.u32 %v632, 4294901760
        %v874 = vsub.f32 %v632, %v873
        %875 = vmatpush1.msra.mxu0 %v874
        %876 = vmatprep.subr.mxu0 0.0
        %877 = vmatpush2.msra.mxu0 0.0
        %878 = vmatprep.subr.mxu0 0.0
        %879 = vmatpush2.msra.mxu0 0.0
        %880 = vmatprep.subr.mxu0 0.0
        %881 = vmatpush2.msra.mxu0 0.0
        %882 = vmatprep.subr.mxu0 0.0
        %883 = vmatpush2.msra.mxu0 0.0
        %884 = vmatprep.subr.mxu0 0.0
        %885 = vmatpush2.msra.mxu0 0.0
        %886 = vmatprep.subr.mxu0 0.0
        %887 = vmatpush2.msra.mxu0 0.0
        %888 = vmatprep.subr.mxu0 0.0
        %889 = vmatpush2.msra.mxu0 0.0
        %890 = vmatprep.subr.mxu0 0.0
        %891 = vmatpush2.msra.mxu0 0.0
        %892 = vmatprep.subr.mxu0 0.0
        %893 = vmatpush2.msra.mxu0 0.0
        %894 = vmatprep.subr.mxu0 0.0
        %895 = vmatpush2.msra.mxu0 0.0
        %896 = vmatprep.subr.mxu0 0.0
        %897 = vmatpush2.msra.mxu0 0.0
        %898 = vmatprep.subr.mxu0 0.0
        %899 = vmatpush2.msra.mxu0 0.0
        %900 = vmatprep.subr.mxu0 0.0
        %901 = vmatpush2.msra.mxu0 0.0
        %902 = vmatprep.subr.mxu0 0.0
        %903 = vmatpush2.msra.mxu0 0.0
        %904 = vmatprep.subr.mxu0 0.0
        %905 = vmatpush2.msra.mxu0 0.0
        %906 = vmatprep.subr.mxu0 0.0
        %907 = vmatpush2.msra.mxu0 0.0
        %908 = vmatprep.mubr.f32.mxu0 0.0
        %v909 = vand.u32 %v645, 4294901760
        %v910 = vsub.f32 %v645, %v909
        %911 = vmatmul.mubr.f32.gmra.mxu0 %v910
        %v912 = vpop.f32.mrf.mxu0
        %v913 = vadd.f32 %v827, %v912
        %v914 = vpop.f32.mrf.mxu0
        %915 = vmatprep.mubr.f32.mxu0 0.0
        %v916 = vand.u32 %v648, 4294901760
        %v917 = vsub.f32 %v648, %v916
        %918 = vmatmul.mubr.f32.gmra.mxu0 %v917
        %v919 = vpop.f32.mrf.mxu0
        %v920 = vadd.f32 %v833, %v919
        %v921 = vpop.f32.mrf.mxu0
        %922 = vdwg.mxu0
        %923 = vmatprep.subr.mxu0 0.0
        %924 = vmatpush1.msra.mxu0 0.0
        %925 = vmatprep.subr.mxu0 0.0
        %926 = vmatpush1.msra.mxu0 0.0
        %927 = vmatprep.subr.mxu0 0.0
        %928 = vmatpush1.msra.mxu0 0.0
        %929 = vmatprep.subr.mxu0 0.0
        %930 = vmatpush1.msra.mxu0 0.0
        %931 = vmatprep.subr.mxu0 0.0
        %932 = vmatpush1.msra.mxu0 0.0
        %933 = vmatprep.subr.mxu0 0.0
        %934 = vmatpush1.msra.mxu0 0.0
        %935 = vmatprep.subr.mxu0 0.0
        %936 = vmatpush1.msra.mxu0 0.0
        %937 = vmatprep.subr.mxu0 0.0
        %938 = vmatpush1.msra.mxu0 0.0
        %939 = vmatprep.subr.mxu0 0.0
        %940 = vmatpush1.msra.mxu0 0.0
        %941 = vmatprep.subr.mxu0 0.0
        %942 = vmatpush1.msra.mxu0 0.0
        %943 = vmatprep.subr.mxu0 0.0
        %944 = vmatpush1.msra.mxu0 0.0
        %945 = vmatprep.subr.mxu0 0.0
        %946 = vmatpush1.msra.mxu0 0.0
        %947 = vmatprep.subr.mxu0 0.0
        %v948 = vand.u32 %v635, 4294901760
        %949 = vmatpush1.msra.mxu0 %v948
        %950 = vmatprep.subr.mxu0 0.0
        %v951 = vand.u32 %v634, 4294901760
        %952 = vmatpush1.msra.mxu0 %v951
        %953 = vmatprep.subr.mxu0 0.0
        %v954 = vand.u32 %v633, 4294901760
        %955 = vmatpush1.msra.mxu0 %v954
        %956 = vmatprep.subr.mxu0 0.0
        %v957 = vand.u32 %v632, 4294901760
        %958 = vmatpush1.msra.mxu0 %v957
        %959 = vmatprep.subr.mxu0 0.0
        %960 = vmatpush2.msra.mxu0 0.0
        %961 = vmatprep.subr.mxu0 0.0
        %962 = vmatpush2.msra.mxu0 0.0
        %963 = vmatprep.subr.mxu0 0.0
        %964 = vmatpush2.msra.mxu0 0.0
        %965 = vmatprep.subr.mxu0 0.0
        %966 = vmatpush2.msra.mxu0 0.0
        %967 = vmatprep.subr.mxu0 0.0
        %968 = vmatpush2.msra.mxu0 0.0
        %969 = vmatprep.subr.mxu0 0.0
        %970 = vmatpush2.msra.mxu0 0.0
        %971 = vmatprep.subr.mxu0 0.0
        %972 = vmatpush2.msra.mxu0 0.0
        %973 = vmatprep.subr.mxu0 0.0
        %974 = vmatpush2.msra.mxu0 0.0
        %975 = vmatprep.subr.mxu0 0.0
        %976 = vmatpush2.msra.mxu0 0.0
        %977 = vmatprep.subr.mxu0 0.0
        %978 = vmatpush2.msra.mxu0 0.0
        %979 = vmatprep.subr.mxu0 0.0
        %980 = vmatpush2.msra.mxu0 0.0
        %981 = vmatprep.subr.mxu0 0.0
        %982 = vmatpush2.msra.mxu0 0.0
        %983 = vmatprep.subr.mxu0 0.0
        %984 = vmatpush2.msra.mxu0 0.0
        %985 = vmatprep.subr.mxu0 0.0
        %986 = vmatpush2.msra.mxu0 0.0
        %987 = vmatprep.subr.mxu0 0.0
        %988 = vmatpush2.msra.mxu0 0.0
        %989 = vmatprep.subr.mxu0 0.0
        %990 = vmatpush2.msra.mxu0 0.0
        %991 = vmatprep.mubr.f32.mxu0 0.0
        %v992 = vand.u32 %v645, 4294901760
        %v993 = vsub.f32 %v645, %v992
        %v994 = vand.u32 %v993, 4294901760
        %995 = vmatmul.mubr.f32.gmra.mxu0 %v994
        %v996 = vpop.f32.mrf.mxu0
        %v997 = vadd.f32 %v913, %v996
        %v998 = vpop.f32.mrf.mxu0
        %999 = vmatprep.mubr.f32.mxu0 0.0
        %v1000 = vand.u32 %v648, 4294901760
        %v1001 = vsub.f32 %v648, %v1000
        %v1002 = vand.u32 %v1001, 4294901760
        %1003 = vmatmul.mubr.f32.gmra.mxu0 %v1002
        %v1004 = vpop.f32.mrf.mxu0
        %v1005 = vadd.f32 %v920, %v1004
        %v1006 = vpop.f32.mrf.mxu0
        %1007 = vdwg.mxu0
        %1008 = vmatprep.subr.mxu0 0.0
        %1009 = vmatpush1.msra.mxu0 0.0
        %1010 = vmatprep.subr.mxu0 0.0
        %1011 = vmatpush1.msra.mxu0 0.0
        %1012 = vmatprep.subr.mxu0 0.0
        %1013 = vmatpush1.msra.mxu0 0.0
        %1014 = vmatprep.subr.mxu0 0.0
        %1015 = vmatpush1.msra.mxu0 0.0
        %1016 = vmatprep.subr.mxu0 0.0
        %1017 = vmatpush1.msra.mxu0 0.0
        %1018 = vmatprep.subr.mxu0 0.0
        %1019 = vmatpush1.msra.mxu0 0.0
        %1020 = vmatprep.subr.mxu0 0.0
        %1021 = vmatpush1.msra.mxu0 0.0
        %1022 = vmatprep.subr.mxu0 0.0
        %1023 = vmatpush1.msra.mxu0 0.0
        %1024 = vmatprep.subr.mxu0 0.0
        %1025 = vmatpush1.msra.mxu0 0.0
        %1026 = vmatprep.subr.mxu0 0.0
        %1027 = vmatpush1.msra.mxu0 0.0
        %1028 = vmatprep.subr.mxu0 0.0
        %1029 = vmatpush1.msra.mxu0 0.0
        %1030 = vmatprep.subr.mxu0 0.0
        %1031 = vmatpush1.msra.mxu0 0.0
        %1032 = vmatprep.subr.mxu0 0.0
        %v1033 = vand.u32 %v635, 4294901760
        %v1034 = vsub.f32 %v635, %v1033
        %v1035 = vand.u32 %v1034, 4294901760
        %1036 = vmatpush1.msra.mxu0 %v1035
        %1037 = vmatprep.subr.mxu0 0.0
        %v1038 = vand.u32 %v634, 4294901760
        %v1039 = vsub.f32 %v634, %v1038
        %v1040 = vand.u32 %v1039, 4294901760
        %1041 = vmatpush1.msra.mxu0 %v1040
        %1042 = vmatprep.subr.mxu0 0.0
        %v1043 = vand.u32 %v633, 4294901760
        %v1044 = vsub.f32 %v633, %v1043
        %v1045 = vand.u32 %v1044, 4294901760
        %1046 = vmatpush1.msra.mxu0 %v1045
        %1047 = vmatprep.subr.mxu0 0.0
        %v1048 = vand.u32 %v632, 4294901760
        %v1049 = vsub.f32 %v632, %v1048
        %v1050 = vand.u32 %v1049, 4294901760
        %1051 = vmatpush1.msra.mxu0 %v1050
        %1052 = vmatprep.subr.mxu0 0.0
        %1053 = vmatpush2.msra.mxu0 0.0
        %1054 = vmatprep.subr.mxu0 0.0
        %1055 = vmatpush2.msra.mxu0 0.0
        %1056 = vmatprep.subr.mxu0 0.0
        %1057 = vmatpush2.msra.mxu0 0.0
        %1058 = vmatprep.subr.mxu0 0.0
        %1059 = vmatpush2.msra.mxu0 0.0
        %1060 = vmatprep.subr.mxu0 0.0
        %1061 = vmatpush2.msra.mxu0 0.0
        %1062 = vmatprep.subr.mxu0 0.0
        %1063 = vmatpush2.msra.mxu0 0.0
        %1064 = vmatprep.subr.mxu0 0.0
        %1065 = vmatpush2.msra.mxu0 0.0
        %1066 = vmatprep.subr.mxu0 0.0
        %1067 = vmatpush2.msra.mxu0 0.0
        %1068 = vmatprep.subr.mxu0 0.0
        %1069 = vmatpush2.msra.mxu0 0.0
        %1070 = vmatprep.subr.mxu0 0.0
        %1071 = vmatpush2.msra.mxu0 0.0
        %1072 = vmatprep.subr.mxu0 0.0
        %1073 = vmatpush2.msra.mxu0 0.0
        %1074 = vmatprep.subr.mxu0 0.0
        %1075 = vmatpush2.msra.mxu0 0.0
        %1076 = vmatprep.subr.mxu0 0.0
        %1077 = vmatpush2.msra.mxu0 0.0
        %1078 = vmatprep.subr.mxu0 0.0
        %1079 = vmatpush2.msra.mxu0 0.0
        %1080 = vmatprep.subr.mxu0 0.0
        %1081 = vmatpush2.msra.mxu0 0.0
        %1082 = vmatprep.subr.mxu0 0.0
        %1083 = vmatpush2.msra.mxu0 0.0
        %1084 = vmatprep.mubr.f32.mxu0 0.0
        %v1085 = vand.u32 %v645, 4294901760
        %1086 = vmatmul.mubr.f32.gmra.mxu0 %v1085
        %v1087 = vpop.f32.mrf.mxu0
        %v1088 = vadd.f32 %v997, %v1087
        %v1089 = vpop.f32.mrf.mxu0
        %1090 = vmatprep.mubr.f32.mxu0 0.0
        %v1091 = vand.u32 %v648, 4294901760
        %1092 = vmatmul.mubr.f32.gmra.mxu0 %v1091
        %v1093 = vpop.f32.mrf.mxu0
        %v1094 = vadd.f32 %v1005, %v1093
        %v1095 = vpop.f32.mrf.mxu0
        %1096 = vdwg.mxu0
        %1097 = vmatprep.subr.mxu0 0.0
        %1098 = vmatpush1.msra.mxu0 0.0
        %1099 = vmatprep.subr.mxu0 0.0
        %1100 = vmatpush1.msra.mxu0 0.0
        %1101 = vmatprep.subr.mxu0 0.0
        %1102 = vmatpush1.msra.mxu0 0.0
        %1103 = vmatprep.subr.mxu0 0.0
        %1104 = vmatpush1.msra.mxu0 0.0
        %1105 = vmatprep.subr.mxu0 0.0
        %1106 = vmatpush1.msra.mxu0 0.0
        %1107 = vmatprep.subr.mxu0 0.0
        %1108 = vmatpush1.msra.mxu0 0.0
        %1109 = vmatprep.subr.mxu0 0.0
        %1110 = vmatpush1.msra.mxu0 0.0
        %1111 = vmatprep.subr.mxu0 0.0
        %1112 = vmatpush1.msra.mxu0 0.0
        %1113 = vmatprep.subr.mxu0 0.0
        %1114 = vmatpush1.msra.mxu0 0.0
        %1115 = vmatprep.subr.mxu0 0.0
        %1116 = vmatpush1.msra.mxu0 0.0
        %1117 = vmatprep.subr.mxu0 0.0
        %1118 = vmatpush1.msra.mxu0 0.0
        %1119 = vmatprep.subr.mxu0 0.0
        %1120 = vmatpush1.msra.mxu0 0.0
        %1121 = vmatprep.subr.mxu0 0.0
        %v1122 = vand.u32 %v635, 4294901760
        %1123 = vmatpush1.msra.mxu0 %v1122
        %1124 = vmatprep.subr.mxu0 0.0
        %v1125 = vand.u32 %v634, 4294901760
        %1126 = vmatpush1.msra.mxu0 %v1125
        %1127 = vmatprep.subr.mxu0 0.0
        %v1128 = vand.u32 %v633, 4294901760
        %1129 = vmatpush1.msra.mxu0 %v1128
        %1130 = vmatprep.subr.mxu0 0.0
        %v1131 = vand.u32 %v632, 4294901760
        %1132 = vmatpush1.msra.mxu0 %v1131
        %1133 = vmatprep.subr.mxu0 0.0
        %1134 = vmatpush2.msra.mxu0 0.0
        %1135 = vmatprep.subr.mxu0 0.0
        %1136 = vmatpush2.msra.mxu0 0.0
        %1137 = vmatprep.subr.mxu0 0.0
        %1138 = vmatpush2.msra.mxu0 0.0
        %1139 = vmatprep.subr.mxu0 0.0
        %1140 = vmatpush2.msra.mxu0 0.0
        %1141 = vmatprep.subr.mxu0 0.0
        %1142 = vmatpush2.msra.mxu0 0.0
        %1143 = vmatprep.subr.mxu0 0.0
        %1144 = vmatpush2.msra.mxu0 0.0
        %1145 = vmatprep.subr.mxu0 0.0
        %1146 = vmatpush2.msra.mxu0 0.0
        %1147 = vmatprep.subr.mxu0 0.0
        %1148 = vmatpush2.msra.mxu0 0.0
        %1149 = vmatprep.subr.mxu0 0.0
        %1150 = vmatpush2.msra.mxu0 0.0
        %1151 = vmatprep.subr.mxu0 0.0
        %1152 = vmatpush2.msra.mxu0 0.0
        %1153 = vmatprep.subr.mxu0 0.0
        %1154 = vmatpush2.msra.mxu0 0.0
        %1155 = vmatprep.subr.mxu0 0.0
        %1156 = vmatpush2.msra.mxu0 0.0
        %1157 = vmatprep.subr.mxu0 0.0
        %1158 = vmatpush2.msra.mxu0 0.0
        %1159 = vmatprep.subr.mxu0 0.0
        %1160 = vmatpush2.msra.mxu0 0.0
        %1161 = vmatprep.subr.mxu0 0.0
        %1162 = vmatpush2.msra.mxu0 0.0
        %1163 = vmatprep.subr.mxu0 0.0
        %1164 = vmatpush2.msra.mxu0 0.0
        %1165 = vmatprep.mubr.f32.mxu0 0.0
        %v1166 = vand.u32 %v645, 4294901760
        %1167 = vmatmul.mubr.f32.gmra.mxu0 %v1166
        %v1168 = vpop.f32.mrf.mxu0
        %v1169 = vadd.f32 %v1088, %v1168
        %v1170 = vpop.f32.mrf.mxu0
        %1171 = vmatprep.mubr.f32.mxu0 0.0
        %v1172 = vand.u32 %v648, 4294901760
        %1173 = vmatmul.mubr.f32.gmra.mxu0 %v1172
        %v1174 = vpop.f32.mrf.mxu0
        %v1175 = vadd.f32 %v1094, %v1174
        %v1176 = vpop.f32.mrf.mxu0
        %1177 = vdwg.mxu0
        %v1178 = vld [vmem:[#allocation5] sm:$0xff]
        %v1179 = vld [vmem:[#allocation5 + $0x8] sm:$0xff]
        %v1180 = vld [vmem:[#allocation5 + $0x10] sm:$0xff]
        %v1181 = vld [vmem:[#allocation5 + $0x18] sm:$0xff]
        %v1182 = vld [vmem:[%s6] sm:$0x1]
        %v1184 = vlaneseq
        %v1185 = vshrl.u32 %v1184, 7
        %v1186 = vsub.s32 0, %v1185
        %v1187 = vrot.slane %v1182, %v1186
        %v1190 = vsel %vm643, %v626, 0
        %v1193 = vsel %vm643, %v627, 0
        %1195 = vmatprep.subr.mxu0 0.0
        %1196 = vmatpush1.msra.mxu0 0.0
        %1197 = vmatprep.subr.mxu0 0.0
        %1198 = vmatpush1.msra.mxu0 0.0
        %1199 = vmatprep.subr.mxu0 0.0
        %1200 = vmatpush1.msra.mxu0 0.0
        %1201 = vmatprep.subr.mxu0 0.0
        %1202 = vmatpush1.msra.mxu0 0.0
        %1203 = vmatprep.subr.mxu0 0.0
        %1204 = vmatpush1.msra.mxu0 0.0
        %1205 = vmatprep.subr.mxu0 0.0
        %1206 = vmatpush1.msra.mxu0 0.0
        %1207 = vmatprep.subr.mxu0 0.0
        %1208 = vmatpush1.msra.mxu0 0.0
        %1209 = vmatprep.subr.mxu0 0.0
        %1210 = vmatpush1.msra.mxu0 0.0
        %1211 = vmatprep.subr.mxu0 0.0
        %1212 = vmatpush1.msra.mxu0 0.0
        %1213 = vmatprep.subr.mxu0 0.0
        %1214 = vmatpush1.msra.mxu0 0.0
        %1215 = vmatprep.subr.mxu0 0.0
        %1216 = vmatpush1.msra.mxu0 0.0
        %1217 = vmatprep.subr.mxu0 0.0
        %1218 = vmatpush1.msra.mxu0 0.0
        %1219 = vmatprep.subr.mxu0 0.0
        %v1220 = vand.u32 %v1181, 4294901760
        %1221 = vmatpush1.msra.mxu0 %v1220
        %1222 = vmatprep.subr.mxu0 0.0
        %v1223 = vand.u32 %v1180, 4294901760
        %1224 = vmatpush1.msra.mxu0 %v1223
        %1225 = vmatprep.subr.mxu0 0.0
        %v1226 = vand.u32 %v1179, 4294901760
        %1227 = vmatpush1.msra.mxu0 %v1226
        %1228 = vmatprep.subr.mxu0 0.0
        %v1229 = vand.u32 %v1178, 4294901760
        %1230 = vmatpush1.msra.mxu0 %v1229
        %1231 = vmatprep.subr.mxu0 0.0
        %1232 = vmatpush2.msra.mxu0 0.0
        %1233 = vmatprep.subr.mxu0 0.0
        %1234 = vmatpush2.msra.mxu0 0.0
        %1235 = vmatprep.subr.mxu0 0.0
        %1236 = vmatpush2.msra.mxu0 0.0
        %1237 = vmatprep.subr.mxu0 0.0
        %1238 = vmatpush2.msra.mxu0 0.0
        %1239 = vmatprep.subr.mxu0 0.0
        %1240 = vmatpush2.msra.mxu0 0.0
        %1241 = vmatprep.subr.mxu0 0.0
        %1242 = vmatpush2.msra.mxu0 0.0
        %1243 = vmatprep.subr.mxu0 0.0
        %1244 = vmatpush2.msra.mxu0 0.0
        %1245 = vmatprep.subr.mxu0 0.0
        %1246 = vmatpush2.msra.mxu0 0.0
        %1247 = vmatprep.subr.mxu0 0.0
        %1248 = vmatpush2.msra.mxu0 0.0
        %1249 = vmatprep.subr.mxu0 0.0
        %1250 = vmatpush2.msra.mxu0 0.0
        %1251 = vmatprep.subr.mxu0 0.0
        %1252 = vmatpush2.msra.mxu0 0.0
        %1253 = vmatprep.subr.mxu0 0.0
        %1254 = vmatpush2.msra.mxu0 0.0
        %1255 = vmatprep.subr.mxu0 0.0
        %1256 = vmatpush2.msra.mxu0 0.0
        %1257 = vmatprep.subr.mxu0 0.0
        %1258 = vmatpush2.msra.mxu0 0.0
        %1259 = vmatprep.subr.mxu0 0.0
        %1260 = vmatpush2.msra.mxu0 0.0
        %1261 = vmatprep.subr.mxu0 0.0
        %1262 = vmatpush2.msra.mxu0 0.0
        %1263 = vmatprep.mubr.f32.mxu0 0.0
        %v1264 = vand.u32 %v1190, 4294901760
        %v1265 = vsub.f32 %v1190, %v1264
        %v1266 = vand.u32 %v1265, 4294901760
        %v1267 = vsub.f32 %v1265, %v1266
        %v1268 = vand.u32 %v1267, 4294901760
        %1269 = vmatmul.mubr.f32.gmra.mxu0 %v1268
        %v1270 = vpop.f32.mrf.mxu0
        %v1271 = vadd.f32 %v1187, %v1270
        %v1272 = vpop.f32.mrf.mxu0
        %1273 = vmatprep.mubr.f32.mxu0 0.0
        %v1274 = vand.u32 %v1193, 4294901760
        %v1275 = vsub.f32 %v1193, %v1274
        %v1276 = vand.u32 %v1275, 4294901760
        %v1277 = vsub.f32 %v1275, %v1276
        %v1278 = vand.u32 %v1277, 4294901760
        %1279 = vmatmul.mubr.f32.gmra.mxu0 %v1278
        %v1280 = vpop.f32.mrf.mxu0
        %v1281 = vadd.f32 %v1187, %v1280
        %v1282 = vpop.f32.mrf.mxu0
        %1283 = vdwg.mxu0
        %1284 = vmatprep.subr.mxu0 0.0
        %1285 = vmatpush1.msra.mxu0 0.0
        %1286 = vmatprep.subr.mxu0 0.0
        %1287 = vmatpush1.msra.mxu0 0.0
        %1288 = vmatprep.subr.mxu0 0.0
        %1289 = vmatpush1.msra.mxu0 0.0
        %1290 = vmatprep.subr.mxu0 0.0
        %1291 = vmatpush1.msra.mxu0 0.0
        %1292 = vmatprep.subr.mxu0 0.0
        %1293 = vmatpush1.msra.mxu0 0.0
        %1294 = vmatprep.subr.mxu0 0.0
        %1295 = vmatpush1.msra.mxu0 0.0
        %1296 = vmatprep.subr.mxu0 0.0
        %1297 = vmatpush1.msra.mxu0 0.0
        %1298 = vmatprep.subr.mxu0 0.0
        %1299 = vmatpush1.msra.mxu0 0.0
        %1300 = vmatprep.subr.mxu0 0.0
        %1301 = vmatpush1.msra.mxu0 0.0
        %1302 = vmatprep.subr.mxu0 0.0
        %1303 = vmatpush1.msra.mxu0 0.0
        %1304 = vmatprep.subr.mxu0 0.0
        %1305 = vmatpush1.msra.mxu0 0.0
        %1306 = vmatprep.subr.mxu0 0.0
        %1307 = vmatpush1.msra.mxu0 0.0
        %1308 = vmatprep.subr.mxu0 0.0
        %v1309 = vand.u32 %v1181, 4294901760
        %v1310 = vsub.f32 %v1181, %v1309
        %v1311 = vand.u32 %v1310, 4294901760
        %v1312 = vsub.f32 %v1310, %v1311
        %v1313 = vand.u32 %v1312, 4294901760
        %1314 = vmatpush1.msra.mxu0 %v1313
        %1315 = vmatprep.subr.mxu0 0.0
        %v1316 = vand.u32 %v1180, 4294901760
        %v1317 = vsub.f32 %v1180, %v1316
        %v1318 = vand.u32 %v1317, 4294901760
        %v1319 = vsub.f32 %v1317, %v1318
        %v1320 = vand.u32 %v1319, 4294901760
        %1321 = vmatpush1.msra.mxu0 %v1320
        %1322 = vmatprep.subr.mxu0 0.0
        %v1323 = vand.u32 %v1179, 4294901760
        %v1324 = vsub.f32 %v1179, %v1323
        %v1325 = vand.u32 %v1324, 4294901760
        %v1326 = vsub.f32 %v1324, %v1325
        %v1327 = vand.u32 %v1326, 4294901760
        %1328 = vmatpush1.msra.mxu0 %v1327
        %1329 = vmatprep.subr.mxu0 0.0
        %v1330 = vand.u32 %v1178, 4294901760
        %v1331 = vsub.f32 %v1178, %v1330
        %v1332 = vand.u32 %v1331, 4294901760
        %v1333 = vsub.f32 %v1331, %v1332
        %v1334 = vand.u32 %v1333, 4294901760
        %1335 = vmatpush1.msra.mxu0 %v1334
        %1336 = vmatprep.subr.mxu0 0.0
        %1337 = vmatpush2.msra.mxu0 0.0
        %1338 = vmatprep.subr.mxu0 0.0
        %1339 = vmatpush2.msra.mxu0 0.0
        %1340 = vmatprep.subr.mxu0 0.0
        %1341 = vmatpush2.msra.mxu0 0.0
        %1342 = vmatprep.subr.mxu0 0.0
        %1343 = vmatpush2.msra.mxu0 0.0
        %1344 = vmatprep.subr.mxu0 0.0
        %1345 = vmatpush2.msra.mxu0 0.0
        %1346 = vmatprep.subr.mxu0 0.0
        %1347 = vmatpush2.msra.mxu0 0.0
        %1348 = vmatprep.subr.mxu0 0.0
        %1349 = vmatpush2.msra.mxu0 0.0
        %1350 = vmatprep.subr.mxu0 0.0
        %1351 = vmatpush2.msra.mxu0 0.0
        %1352 = vmatprep.subr.mxu0 0.0
        %1353 = vmatpush2.msra.mxu0 0.0
        %1354 = vmatprep.subr.mxu0 0.0
        %1355 = vmatpush2.msra.mxu0 0.0
        %1356 = vmatprep.subr.mxu0 0.0
        %1357 = vmatpush2.msra.mxu0 0.0
        %1358 = vmatprep.subr.mxu0 0.0
        %1359 = vmatpush2.msra.mxu0 0.0
        %1360 = vmatprep.subr.mxu0 0.0
        %1361 = vmatpush2.msra.mxu0 0.0
        %1362 = vmatprep.subr.mxu0 0.0
        %1363 = vmatpush2.msra.mxu0 0.0
        %1364 = vmatprep.subr.mxu0 0.0
        %1365 = vmatpush2.msra.mxu0 0.0
        %1366 = vmatprep.subr.mxu0 0.0
        %1367 = vmatpush2.msra.mxu0 0.0
        %1368 = vmatprep.mubr.f32.mxu0 0.0
        %v1369 = vand.u32 %v1190, 4294901760
        %1370 = vmatmul.mubr.f32.gmra.mxu0 %v1369
        %v1371 = vpop.f32.mrf.mxu0
        %v1372 = vadd.f32 %v1271, %v1371
        %v1373 = vpop.f32.mrf.mxu0
        %1374 = vmatprep.mubr.f32.mxu0 0.0
        %v1375 = vand.u32 %v1193, 4294901760
        %1376 = vmatmul.mubr.f32.gmra.mxu0 %v1375
        %v1377 = vpop.f32.mrf.mxu0
        %v1378 = vadd.f32 %v1281, %v1377
        %v1379 = vpop.f32.mrf.mxu0
        %1380 = vdwg.mxu0
        %1381 = vmatprep.subr.mxu0 0.0
        %1382 = vmatpush1.msra.mxu0 0.0
        %1383 = vmatprep.subr.mxu0 0.0
        %1384 = vmatpush1.msra.mxu0 0.0
        %1385 = vmatprep.subr.mxu0 0.0
        %1386 = vmatpush1.msra.mxu0 0.0
        %1387 = vmatprep.subr.mxu0 0.0
        %1388 = vmatpush1.msra.mxu0 0.0
        %1389 = vmatprep.subr.mxu0 0.0
        %1390 = vmatpush1.msra.mxu0 0.0
        %1391 = vmatprep.subr.mxu0 0.0
        %1392 = vmatpush1.msra.mxu0 0.0
        %1393 = vmatprep.subr.mxu0 0.0
        %1394 = vmatpush1.msra.mxu0 0.0
        %1395 = vmatprep.subr.mxu0 0.0
        %1396 = vmatpush1.msra.mxu0 0.0
        %1397 = vmatprep.subr.mxu0 0.0
        %1398 = vmatpush1.msra.mxu0 0.0
        %1399 = vmatprep.subr.mxu0 0.0
        %1400 = vmatpush1.msra.mxu0 0.0
        %1401 = vmatprep.subr.mxu0 0.0
        %1402 = vmatpush1.msra.mxu0 0.0
        %1403 = vmatprep.subr.mxu0 0.0
        %1404 = vmatpush1.msra.mxu0 0.0
        %1405 = vmatprep.subr.mxu0 0.0
        %v1406 = vand.u32 %v1181, 4294901760
        %v1407 = vsub.f32 %v1181, %v1406
        %1408 = vmatpush1.msra.mxu0 %v1407
        %1409 = vmatprep.subr.mxu0 0.0
        %v1410 = vand.u32 %v1180, 4294901760
        %v1411 = vsub.f32 %v1180, %v1410
        %1412 = vmatpush1.msra.mxu0 %v1411
        %1413 = vmatprep.subr.mxu0 0.0
        %v1414 = vand.u32 %v1179, 4294901760
        %v1415 = vsub.f32 %v1179, %v1414
        %1416 = vmatpush1.msra.mxu0 %v1415
        %1417 = vmatprep.subr.mxu0 0.0
        %v1418 = vand.u32 %v1178, 4294901760
        %v1419 = vsub.f32 %v1178, %v1418
        %1420 = vmatpush1.msra.mxu0 %v1419
        %1421 = vmatprep.subr.mxu0 0.0
        %1422 = vmatpush2.msra.mxu0 0.0
        %1423 = vmatprep.subr.mxu0 0.0
        %1424 = vmatpush2.msra.mxu0 0.0
        %1425 = vmatprep.subr.mxu0 0.0
        %1426 = vmatpush2.msra.mxu0 0.0
        %1427 = vmatprep.subr.mxu0 0.0
        %1428 = vmatpush2.msra.mxu0 0.0
        %1429 = vmatprep.subr.mxu0 0.0
        %1430 = vmatpush2.msra.mxu0 0.0
        %1431 = vmatprep.subr.mxu0 0.0
        %1432 = vmatpush2.msra.mxu0 0.0
        %1433 = vmatprep.subr.mxu0 0.0
        %1434 = vmatpush2.msra.mxu0 0.0
        %1435 = vmatprep.subr.mxu0 0.0
        %1436 = vmatpush2.msra.mxu0 0.0
        %1437 = vmatprep.subr.mxu0 0.0
        %1438 = vmatpush2.msra.mxu0 0.0
        %1439 = vmatprep.subr.mxu0 0.0
        %1440 = vmatpush2.msra.mxu0 0.0
        %1441 = vmatprep.subr.mxu0 0.0
        %1442 = vmatpush2.msra.mxu0 0.0
        %1443 = vmatprep.subr.mxu0 0.0
        %1444 = vmatpush2.msra.mxu0 0.0
        %1445 = vmatprep.subr.mxu0 0.0
        %1446 = vmatpush2.msra.mxu0 0.0
        %1447 = vmatprep.subr.mxu0 0.0
        %1448 = vmatpush2.msra.mxu0 0.0
        %1449 = vmatprep.subr.mxu0 0.0
        %1450 = vmatpush2.msra.mxu0 0.0
        %1451 = vmatprep.subr.mxu0 0.0
        %1452 = vmatpush2.msra.mxu0 0.0
        %1453 = vmatprep.mubr.f32.mxu0 0.0
        %v1454 = vand.u32 %v1190, 4294901760
        %v1455 = vsub.f32 %v1190, %v1454
        %1456 = vmatmul.mubr.f32.gmra.mxu0 %v1455
        %v1457 = vpop.f32.mrf.mxu0
        %v1458 = vadd.f32 %v1372, %v1457
        %v1459 = vpop.f32.mrf.mxu0
        %1460 = vmatprep.mubr.f32.mxu0 0.0
        %v1461 = vand.u32 %v1193, 4294901760
        %v1462 = vsub.f32 %v1193, %v1461
        %1463 = vmatmul.mubr.f32.gmra.mxu0 %v1462
        %v1464 = vpop.f32.mrf.mxu0
        %v1465 = vadd.f32 %v1378, %v1464
        %v1466 = vpop.f32.mrf.mxu0
        %1467 = vdwg.mxu0
        %1468 = vmatprep.subr.mxu0 0.0
        %1469 = vmatpush1.msra.mxu0 0.0
        %1470 = vmatprep.subr.mxu0 0.0
        %1471 = vmatpush1.msra.mxu0 0.0
        %1472 = vmatprep.subr.mxu0 0.0
        %1473 = vmatpush1.msra.mxu0 0.0
        %1474 = vmatprep.subr.mxu0 0.0
        %1475 = vmatpush1.msra.mxu0 0.0
        %1476 = vmatprep.subr.mxu0 0.0
        %1477 = vmatpush1.msra.mxu0 0.0
        %1478 = vmatprep.subr.mxu0 0.0
        %1479 = vmatpush1.msra.mxu0 0.0
        %1480 = vmatprep.subr.mxu0 0.0
        %1481 = vmatpush1.msra.mxu0 0.0
        %1482 = vmatprep.subr.mxu0 0.0
        %1483 = vmatpush1.msra.mxu0 0.0
        %1484 = vmatprep.subr.mxu0 0.0
        %1485 = vmatpush1.msra.mxu0 0.0
        %1486 = vmatprep.subr.mxu0 0.0
        %1487 = vmatpush1.msra.mxu0 0.0
        %1488 = vmatprep.subr.mxu0 0.0
        %1489 = vmatpush1.msra.mxu0 0.0
        %1490 = vmatprep.subr.mxu0 0.0
        %1491 = vmatpush1.msra.mxu0 0.0
        %1492 = vmatprep.subr.mxu0 0.0
        %v1493 = vand.u32 %v1181, 4294901760
        %1494 = vmatpush1.msra.mxu0 %v1493
        %1495 = vmatprep.subr.mxu0 0.0
        %v1496 = vand.u32 %v1180, 4294901760
        %1497 = vmatpush1.msra.mxu0 %v1496
        %1498 = vmatprep.subr.mxu0 0.0
        %v1499 = vand.u32 %v1179, 4294901760
        %1500 = vmatpush1.msra.mxu0 %v1499
        %1501 = vmatprep.subr.mxu0 0.0
        %v1502 = vand.u32 %v1178, 4294901760
        %1503 = vmatpush1.msra.mxu0 %v1502
        %1504 = vmatprep.subr.mxu0 0.0
        %1505 = vmatpush2.msra.mxu0 0.0
        %1506 = vmatprep.subr.mxu0 0.0
        %1507 = vmatpush2.msra.mxu0 0.0
        %1508 = vmatprep.subr.mxu0 0.0
        %1509 = vmatpush2.msra.mxu0 0.0
        %1510 = vmatprep.subr.mxu0 0.0
        %1511 = vmatpush2.msra.mxu0 0.0
        %1512 = vmatprep.subr.mxu0 0.0
        %1513 = vmatpush2.msra.mxu0 0.0
        %1514 = vmatprep.subr.mxu0 0.0
        %1515 = vmatpush2.msra.mxu0 0.0
        %1516 = vmatprep.subr.mxu0 0.0
        %1517 = vmatpush2.msra.mxu0 0.0
        %1518 = vmatprep.subr.mxu0 0.0
        %1519 = vmatpush2.msra.mxu0 0.0
        %1520 = vmatprep.subr.mxu0 0.0
        %1521 = vmatpush2.msra.mxu0 0.0
        %1522 = vmatprep.subr.mxu0 0.0
        %1523 = vmatpush2.msra.mxu0 0.0
        %1524 = vmatprep.subr.mxu0 0.0
        %1525 = vmatpush2.msra.mxu0 0.0
        %1526 = vmatprep.subr.mxu0 0.0
        %1527 = vmatpush2.msra.mxu0 0.0
        %1528 = vmatprep.subr.mxu0 0.0
        %1529 = vmatpush2.msra.mxu0 0.0
        %1530 = vmatprep.subr.mxu0 0.0
        %1531 = vmatpush2.msra.mxu0 0.0
        %1532 = vmatprep.subr.mxu0 0.0
        %1533 = vmatpush2.msra.mxu0 0.0
        %1534 = vmatprep.subr.mxu0 0.0
        %1535 = vmatpush2.msra.mxu0 0.0
        %1536 = vmatprep.mubr.f32.mxu0 0.0
        %v1537 = vand.u32 %v1190, 4294901760
        %v1538 = vsub.f32 %v1190, %v1537
        %v1539 = vand.u32 %v1538, 4294901760
        %1540 = vmatmul.mubr.f32.gmra.mxu0 %v1539
        %v1541 = vpop.f32.mrf.mxu0
        %v1542 = vadd.f32 %v1458, %v1541
        %v1543 = vpop.f32.mrf.mxu0
        %1544 = vmatprep.mubr.f32.mxu0 0.0
        %v1545 = vand.u32 %v1193, 4294901760
        %v1546 = vsub.f32 %v1193, %v1545
        %v1547 = vand.u32 %v1546, 4294901760
        %1548 = vmatmul.mubr.f32.gmra.mxu0 %v1547
        %v1549 = vpop.f32.mrf.mxu0
        %v1550 = vadd.f32 %v1465, %v1549
        %v1551 = vpop.f32.mrf.mxu0
        %1552 = vdwg.mxu0
        %1553 = vmatprep.subr.mxu0 0.0
        %1554 = vmatpush1.msra.mxu0 0.0
        %1555 = vmatprep.subr.mxu0 0.0
        %1556 = vmatpush1.msra.mxu0 0.0
        %1557 = vmatprep.subr.mxu0 0.0
        %1558 = vmatpush1.msra.mxu0 0.0
        %1559 = vmatprep.subr.mxu0 0.0
        %1560 = vmatpush1.msra.mxu0 0.0
        %1561 = vmatprep.subr.mxu0 0.0
        %1562 = vmatpush1.msra.mxu0 0.0
        %1563 = vmatprep.subr.mxu0 0.0
        %1564 = vmatpush1.msra.mxu0 0.0
        %1565 = vmatprep.subr.mxu0 0.0
        %1566 = vmatpush1.msra.mxu0 0.0
        %1567 = vmatprep.subr.mxu0 0.0
        %1568 = vmatpush1.msra.mxu0 0.0
        %1569 = vmatprep.subr.mxu0 0.0
        %1570 = vmatpush1.msra.mxu0 0.0
        %1571 = vmatprep.subr.mxu0 0.0
        %1572 = vmatpush1.msra.mxu0 0.0
        %1573 = vmatprep.subr.mxu0 0.0
        %1574 = vmatpush1.msra.mxu0 0.0
        %1575 = vmatprep.subr.mxu0 0.0
        %1576 = vmatpush1.msra.mxu0 0.0
        %1577 = vmatprep.subr.mxu0 0.0
        %v1578 = vand.u32 %v1181, 4294901760
        %v1579 = vsub.f32 %v1181, %v1578
        %v1580 = vand.u32 %v1579, 4294901760
        %1581 = vmatpush1.msra.mxu0 %v1580
        %1582 = vmatprep.subr.mxu0 0.0
        %v1583 = vand.u32 %v1180, 4294901760
        %v1584 = vsub.f32 %v1180, %v1583
        %v1585 = vand.u32 %v1584, 4294901760
        %1586 = vmatpush1.msra.mxu0 %v1585
        %1587 = vmatprep.subr.mxu0 0.0
        %v1588 = vand.u32 %v1179, 4294901760
        %v1589 = vsub.f32 %v1179, %v1588
        %v1590 = vand.u32 %v1589, 4294901760
        %1591 = vmatpush1.msra.mxu0 %v1590
        %1592 = vmatprep.subr.mxu0 0.0
        %v1593 = vand.u32 %v1178, 4294901760
        %v1594 = vsub.f32 %v1178, %v1593
        %v1595 = vand.u32 %v1594, 4294901760
        %1596 = vmatpush1.msra.mxu0 %v1595
        %1597 = vmatprep.subr.mxu0 0.0
        %1598 = vmatpush2.msra.mxu0 0.0
        %1599 = vmatprep.subr.mxu0 0.0
        %1600 = vmatpush2.msra.mxu0 0.0
        %1601 = vmatprep.subr.mxu0 0.0
        %1602 = vmatpush2.msra.mxu0 0.0
        %1603 = vmatprep.subr.mxu0 0.0
        %1604 = vmatpush2.msra.mxu0 0.0
        %1605 = vmatprep.subr.mxu0 0.0
        %1606 = vmatpush2.msra.mxu0 0.0
        %1607 = vmatprep.subr.mxu0 0.0
        %1608 = vmatpush2.msra.mxu0 0.0
        %1609 = vmatprep.subr.mxu0 0.0
        %1610 = vmatpush2.msra.mxu0 0.0
        %1611 = vmatprep.subr.mxu0 0.0
        %1612 = vmatpush2.msra.mxu0 0.0
        %1613 = vmatprep.subr.mxu0 0.0
        %1614 = vmatpush2.msra.mxu0 0.0
        %1615 = vmatprep.subr.mxu0 0.0
        %1616 = vmatpush2.msra.mxu0 0.0
        %1617 = vmatprep.subr.mxu0 0.0
        %1618 = vmatpush2.msra.mxu0 0.0
        %1619 = vmatprep.subr.mxu0 0.0
        %1620 = vmatpush2.msra.mxu0 0.0
        %1621 = vmatprep.subr.mxu0 0.0
        %1622 = vmatpush2.msra.mxu0 0.0
        %1623 = vmatprep.subr.mxu0 0.0
        %1624 = vmatpush2.msra.mxu0 0.0
        %1625 = vmatprep.subr.mxu0 0.0
        %1626 = vmatpush2.msra.mxu0 0.0
        %1627 = vmatprep.subr.mxu0 0.0
        %1628 = vmatpush2.msra.mxu0 0.0
        %1629 = vmatprep.mubr.f32.mxu0 0.0
        %v1630 = vand.u32 %v1190, 4294901760
        %1631 = vmatmul.mubr.f32.gmra.mxu0 %v1630
        %v1632 = vpop.f32.mrf.mxu0
        %v1633 = vadd.f32 %v1542, %v1632
        %v1634 = vpop.f32.mrf.mxu0
        %1635 = vmatprep.mubr.f32.mxu0 0.0
        %v1636 = vand.u32 %v1193, 4294901760
        %1637 = vmatmul.mubr.f32.gmra.mxu0 %v1636
        %v1638 = vpop.f32.mrf.mxu0
        %v1639 = vadd.f32 %v1550, %v1638
        %v1640 = vpop.f32.mrf.mxu0
        %1641 = vdwg.mxu0
        %1642 = vmatprep.subr.mxu0 0.0
        %1643 = vmatpush1.msra.mxu0 0.0
        %1644 = vmatprep.subr.mxu0 0.0
        %1645 = vmatpush1.msra.mxu0 0.0
        %1646 = vmatprep.subr.mxu0 0.0
        %1647 = vmatpush1.msra.mxu0 0.0
        %1648 = vmatprep.subr.mxu0 0.0
        %1649 = vmatpush1.msra.mxu0 0.0
        %1650 = vmatprep.subr.mxu0 0.0
        %1651 = vmatpush1.msra.mxu0 0.0
        %1652 = vmatprep.subr.mxu0 0.0
        %1653 = vmatpush1.msra.mxu0 0.0
        %1654 = vmatprep.subr.mxu0 0.0
        %1655 = vmatpush1.msra.mxu0 0.0
        %1656 = vmatprep.subr.mxu0 0.0
        %1657 = vmatpush1.msra.mxu0 0.0
        %1658 = vmatprep.subr.mxu0 0.0
        %1659 = vmatpush1.msra.mxu0 0.0
        %1660 = vmatprep.subr.mxu0 0.0
        %1661 = vmatpush1.msra.mxu0 0.0
        %1662 = vmatprep.subr.mxu0 0.0
        %1663 = vmatpush1.msra.mxu0 0.0
        %1664 = vmatprep.subr.mxu0 0.0
        %1665 = vmatpush1.msra.mxu0 0.0
        %1666 = vmatprep.subr.mxu0 0.0
        %v1667 = vand.u32 %v1181, 4294901760
        %1668 = vmatpush1.msra.mxu0 %v1667
        %1669 = vmatprep.subr.mxu0 0.0
        %v1670 = vand.u32 %v1180, 4294901760
        %1671 = vmatpush1.msra.mxu0 %v1670
        %1672 = vmatprep.subr.mxu0 0.0
        %v1673 = vand.u32 %v1179, 4294901760
        %1674 = vmatpush1.msra.mxu0 %v1673
        %1675 = vmatprep.subr.mxu0 0.0
        %v1676 = vand.u32 %v1178, 4294901760
        %1677 = vmatpush1.msra.mxu0 %v1676
        %1678 = vmatprep.subr.mxu0 0.0
        %1679 = vmatpush2.msra.mxu0 0.0
        %1680 = vmatprep.subr.mxu0 0.0
        %1681 = vmatpush2.msra.mxu0 0.0
        %1682 = vmatprep.subr.mxu0 0.0
        %1683 = vmatpush2.msra.mxu0 0.0
        %1684 = vmatprep.subr.mxu0 0.0
        %1685 = vmatpush2.msra.mxu0 0.0
        %1686 = vmatprep.subr.mxu0 0.0
        %1687 = vmatpush2.msra.mxu0 0.0
        %1688 = vmatprep.subr.mxu0 0.0
        %1689 = vmatpush2.msra.mxu0 0.0
        %1690 = vmatprep.subr.mxu0 0.0
        %1691 = vmatpush2.msra.mxu0 0.0
        %1692 = vmatprep.subr.mxu0 0.0
        %1693 = vmatpush2.msra.mxu0 0.0
        %1694 = vmatprep.subr.mxu0 0.0
        %1695 = vmatpush2.msra.mxu0 0.0
        %1696 = vmatprep.subr.mxu0 0.0
        %1697 = vmatpush2.msra.mxu0 0.0
        %1698 = vmatprep.subr.mxu0 0.0
        %1699 = vmatpush2.msra.mxu0 0.0
        %1700 = vmatprep.subr.mxu0 0.0
        %1701 = vmatpush2.msra.mxu0 0.0
        %1702 = vmatprep.subr.mxu0 0.0
        %1703 = vmatpush2.msra.mxu0 0.0
        %1704 = vmatprep.subr.mxu0 0.0
        %1705 = vmatpush2.msra.mxu0 0.0
        %1706 = vmatprep.subr.mxu0 0.0
        %1707 = vmatpush2.msra.mxu0 0.0
        %1708 = vmatprep.subr.mxu0 0.0
        %1709 = vmatpush2.msra.mxu0 0.0
        %1710 = vmatprep.mubr.f32.mxu0 0.0
        %v1711 = vand.u32 %v1190, 4294901760
        %1712 = vmatmul.mubr.f32.gmra.mxu0 %v1711
        %v1713 = vpop.f32.mrf.mxu0
        %v1714 = vadd.f32 %v1633, %v1713
        %v1715 = vpop.f32.mrf.mxu0
        %1716 = vmatprep.mubr.f32.mxu0 0.0
        %v1717 = vand.u32 %v1193, 4294901760
        %1718 = vmatmul.mubr.f32.gmra.mxu0 %v1717
        %v1719 = vpop.f32.mrf.mxu0
        %v1720 = vadd.f32 %v1639, %v1719
        %v1721 = vpop.f32.mrf.mxu0
        %1722 = vdwg.mxu0
        %v1723 = vld [vmem:[#allocation2] sm:$0xff]
        %v1724 = vld [vmem:[#allocation2 + $0x8] sm:$0xff]
        %1727 = vrot.lane.b32.xlu0 %v1169, 96
        %v1728 = vpop.permute.xlu0 %1727
        %1729 = vrot.lane.b32.xlu0 %v1175, 96
        %v1730 = vpop.permute.xlu0 %1729
        %vm1731 = vcmask 64512
        %v1732 = vsel %vm1731, %v1169, 0
        %v1734 = vsel %vm1731, %v1175, 0
        %v1736 = vsel %vm1731, %v1728, 0
        %v1738 = vsel %vm1731, %v1730, 0
        %1740 = vmatprep.subr.mxu0 0.0
        %1741 = vmatpush1.xpose.msra.mxu0 0.0
        %1742 = vmatprep.subr.mxu0 0.0
        %1743 = vmatpush1.xpose.msra.mxu0 0.0
        %1744 = vmatprep.subr.mxu0 0.0
        %1745 = vmatpush1.xpose.msra.mxu0 0.0
        %1746 = vmatprep.subr.mxu0 0.0
        %1747 = vmatpush1.xpose.msra.mxu0 0.0
        %1748 = vmatprep.subr.mxu0 0.0
        %1749 = vmatpush1.xpose.msra.mxu0 0.0
        %1750 = vmatprep.subr.mxu0 0.0
        %1751 = vmatpush1.xpose.msra.mxu0 0.0
        %1752 = vmatprep.subr.mxu0 0.0
        %1753 = vmatpush1.xpose.msra.mxu0 0.0
        %1754 = vmatprep.subr.mxu0 0.0
        %1755 = vmatpush1.xpose.msra.mxu0 0.0
        %1756 = vmatprep.subr.mxu0 0.0
        %1757 = vmatpush1.xpose.msra.mxu0 0.0
        %1758 = vmatprep.subr.mxu0 0.0
        %1759 = vmatpush1.xpose.msra.mxu0 0.0
        %1760 = vmatprep.subr.mxu0 0.0
        %1761 = vmatpush1.xpose.msra.mxu0 0.0
        %1762 = vmatprep.subr.mxu0 0.0
        %1763 = vmatpush1.xpose.msra.mxu0 0.0
        %1764 = vmatprep.subr.mxu0 0.0
        %1765 = vmatpush1.xpose.msra.mxu0 0.0
        %1766 = vmatprep.subr.mxu0 0.0
        %1767 = vmatpush1.xpose.msra.mxu0 0.0
        %1768 = vmatprep.subr.mxu0 0.0
        %v1769 = vand.u32 %v1738, 4294901760
        %1770 = vmatpush1.xpose.msra.mxu0 %v1769
        %1771 = vmatprep.subr.mxu0 0.0
        %v1772 = vand.u32 %v1736, 4294901760
        %1773 = vmatpush1.xpose.msra.mxu0 %v1772
        %1774 = vmatprep.subr.mxu0 0.0
        %1775 = vmatpush2.xpose.msra.mxu0 0.0
        %1776 = vmatprep.subr.mxu0 0.0
        %1777 = vmatpush2.xpose.msra.mxu0 0.0
        %1778 = vmatprep.subr.mxu0 0.0
        %1779 = vmatpush2.xpose.msra.mxu0 0.0
        %1780 = vmatprep.subr.mxu0 0.0
        %1781 = vmatpush2.xpose.msra.mxu0 0.0
        %1782 = vmatprep.subr.mxu0 0.0
        %1783 = vmatpush2.xpose.msra.mxu0 0.0
        %1784 = vmatprep.subr.mxu0 0.0
        %1785 = vmatpush2.xpose.msra.mxu0 0.0
        %1786 = vmatprep.subr.mxu0 0.0
        %1787 = vmatpush2.xpose.msra.mxu0 0.0
        %1788 = vmatprep.subr.mxu0 0.0
        %1789 = vmatpush2.xpose.msra.mxu0 0.0
        %1790 = vmatprep.subr.mxu0 0.0
        %1791 = vmatpush2.xpose.msra.mxu0 0.0
        %1792 = vmatprep.subr.mxu0 0.0
        %1793 = vmatpush2.xpose.msra.mxu0 0.0
        %1794 = vmatprep.subr.mxu0 0.0
        %1795 = vmatpush2.xpose.msra.mxu0 0.0
        %1796 = vmatprep.subr.mxu0 0.0
        %1797 = vmatpush2.xpose.msra.mxu0 0.0
        %1798 = vmatprep.subr.mxu0 0.0
        %1799 = vmatpush2.xpose.msra.mxu0 0.0
        %1800 = vmatprep.subr.mxu0 0.0
        %1801 = vmatpush2.xpose.msra.mxu0 0.0
        %1802 = vmatprep.subr.mxu0 0.0
        %1803 = vmatpush2.xpose.msra.mxu0 0.0
        %1804 = vmatprep.subr.mxu0 0.0
        %1805 = vmatpush2.xpose.msra.mxu0 0.0
        %1806 = vmatprep.mubr.f32.mxu0 0.0
        %v1807 = vand.u32 %v1732, 4294901760
        %v1808 = vsub.f32 %v1732, %v1807
        %v1809 = vand.u32 %v1808, 4294901760
        %v1810 = vsub.f32 %v1808, %v1809
        %v1811 = vand.u32 %v1810, 4294901760
        %1812 = vmatmul.mubr.f32.gmra.mxu0 %v1811
        %v1813 = vpop.f32.mrf.mxu0
        %v1814 = vadd.f32 %v1723, %v1813
        %v1815 = vpop.f32.mrf.mxu0
        %1816 = vmatprep.mubr.f32.mxu0 0.0
        %v1817 = vand.u32 %v1734, 4294901760
        %v1818 = vsub.f32 %v1734, %v1817
        %v1819 = vand.u32 %v1818, 4294901760
        %v1820 = vsub.f32 %v1818, %v1819
        %v1821 = vand.u32 %v1820, 4294901760
        %1822 = vmatmul.mubr.f32.gmra.mxu0 %v1821
        %v1823 = vpop.f32.mrf.mxu0
        %v1824 = vadd.f32 %v1724, %v1823
        %v1825 = vpop.f32.mrf.mxu0
        %1826 = vdwg.mxu0
        %1827 = vmatprep.subr.mxu0 0.0
        %1828 = vmatpush1.xpose.msra.mxu0 0.0
        %1829 = vmatprep.subr.mxu0 0.0
        %1830 = vmatpush1.xpose.msra.mxu0 0.0
        %1831 = vmatprep.subr.mxu0 0.0
        %1832 = vmatpush1.xpose.msra.mxu0 0.0
        %1833 = vmatprep.subr.mxu0 0.0
        %1834 = vmatpush1.xpose.msra.mxu0 0.0
        %1835 = vmatprep.subr.mxu0 0.0
        %1836 = vmatpush1.xpose.msra.mxu0 0.0
        %1837 = vmatprep.subr.mxu0 0.0
        %1838 = vmatpush1.xpose.msra.mxu0 0.0
        %1839 = vmatprep.subr.mxu0 0.0
        %1840 = vmatpush1.xpose.msra.mxu0 0.0
        %1841 = vmatprep.subr.mxu0 0.0
        %1842 = vmatpush1.xpose.msra.mxu0 0.0
        %1843 = vmatprep.subr.mxu0 0.0
        %1844 = vmatpush1.xpose.msra.mxu0 0.0
        %1845 = vmatprep.subr.mxu0 0.0
        %1846 = vmatpush1.xpose.msra.mxu0 0.0
        %1847 = vmatprep.subr.mxu0 0.0
        %1848 = vmatpush1.xpose.msra.mxu0 0.0
        %1849 = vmatprep.subr.mxu0 0.0
        %1850 = vmatpush1.xpose.msra.mxu0 0.0
        %1851 = vmatprep.subr.mxu0 0.0
        %1852 = vmatpush1.xpose.msra.mxu0 0.0
        %1853 = vmatprep.subr.mxu0 0.0
        %1854 = vmatpush1.xpose.msra.mxu0 0.0
        %1855 = vmatprep.subr.mxu0 0.0
        %v1856 = vand.u32 %v1738, 4294901760
        %v1857 = vsub.f32 %v1738, %v1856
        %v1858 = vand.u32 %v1857, 4294901760
        %v1859 = vsub.f32 %v1857, %v1858
        %v1860 = vand.u32 %v1859, 4294901760
        %1861 = vmatpush1.xpose.msra.mxu0 %v1860
        %1862 = vmatprep.subr.mxu0 0.0
        %v1863 = vand.u32 %v1736, 4294901760
        %v1864 = vsub.f32 %v1736, %v1863
        %v1865 = vand.u32 %v1864, 4294901760
        %v1866 = vsub.f32 %v1864, %v1865
        %v1867 = vand.u32 %v1866, 4294901760
        %1868 = vmatpush1.xpose.msra.mxu0 %v1867
        %1869 = vmatprep.subr.mxu0 0.0
        %1870 = vmatpush2.xpose.msra.mxu0 0.0
        %1871 = vmatprep.subr.mxu0 0.0
        %1872 = vmatpush2.xpose.msra.mxu0 0.0
        %1873 = vmatprep.subr.mxu0 0.0
        %1874 = vmatpush2.xpose.msra.mxu0 0.0
        %1875 = vmatprep.subr.mxu0 0.0
        %1876 = vmatpush2.xpose.msra.mxu0 0.0
        %1877 = vmatprep.subr.mxu0 0.0
        %1878 = vmatpush2.xpose.msra.mxu0 0.0
        %1879 = vmatprep.subr.mxu0 0.0
        %1880 = vmatpush2.xpose.msra.mxu0 0.0
        %1881 = vmatprep.subr.mxu0 0.0
        %1882 = vmatpush2.xpose.msra.mxu0 0.0
        %1883 = vmatprep.subr.mxu0 0.0
        %1884 = vmatpush2.xpose.msra.mxu0 0.0
        %1885 = vmatprep.subr.mxu0 0.0
        %1886 = vmatpush2.xpose.msra.mxu0 0.0
        %1887 = vmatprep.subr.mxu0 0.0
        %1888 = vmatpush2.xpose.msra.mxu0 0.0
        %1889 = vmatprep.subr.mxu0 0.0
        %1890 = vmatpush2.xpose.msra.mxu0 0.0
        %1891 = vmatprep.subr.mxu0 0.0
        %1892 = vmatpush2.xpose.msra.mxu0 0.0
        %1893 = vmatprep.subr.mxu0 0.0
        %1894 = vmatpush2.xpose.msra.mxu0 0.0
        %1895 = vmatprep.subr.mxu0 0.0
        %1896 = vmatpush2.xpose.msra.mxu0 0.0
        %1897 = vmatprep.subr.mxu0 0.0
        %1898 = vmatpush2.xpose.msra.mxu0 0.0
        %1899 = vmatprep.subr.mxu0 0.0
        %1900 = vmatpush2.xpose.msra.mxu0 0.0
        %1901 = vmatprep.mubr.f32.mxu0 0.0
        %v1902 = vand.u32 %v1732, 4294901760
        %1903 = vmatmul.mubr.f32.gmra.mxu0 %v1902
        %v1904 = vpop.f32.mrf.mxu0
        %v1905 = vadd.f32 %v1814, %v1904
        %v1906 = vpop.f32.mrf.mxu0
        %1907 = vmatprep.mubr.f32.mxu0 0.0
        %v1908 = vand.u32 %v1734, 4294901760
        %1909 = vmatmul.mubr.f32.gmra.mxu0 %v1908
        %v1910 = vpop.f32.mrf.mxu0
        %v1911 = vadd.f32 %v1824, %v1910
        %v1912 = vpop.f32.mrf.mxu0
        %1913 = vdwg.mxu0
        %1914 = vmatprep.subr.mxu0 0.0
        %1915 = vmatpush1.xpose.msra.mxu0 0.0
        %1916 = vmatprep.subr.mxu0 0.0
        %1917 = vmatpush1.xpose.msra.mxu0 0.0
        %1918 = vmatprep.subr.mxu0 0.0
        %1919 = vmatpush1.xpose.msra.mxu0 0.0
        %1920 = vmatprep.subr.mxu0 0.0
        %1921 = vmatpush1.xpose.msra.mxu0 0.0
        %1922 = vmatprep.subr.mxu0 0.0
        %1923 = vmatpush1.xpose.msra.mxu0 0.0
        %1924 = vmatprep.subr.mxu0 0.0
        %1925 = vmatpush1.xpose.msra.mxu0 0.0
        %1926 = vmatprep.subr.mxu0 0.0
        %1927 = vmatpush1.xpose.msra.mxu0 0.0
        %1928 = vmatprep.subr.mxu0 0.0
        %1929 = vmatpush1.xpose.msra.mxu0 0.0
        %1930 = vmatprep.subr.mxu0 0.0
        %1931 = vmatpush1.xpose.msra.mxu0 0.0
        %1932 = vmatprep.subr.mxu0 0.0
        %1933 = vmatpush1.xpose.msra.mxu0 0.0
        %1934 = vmatprep.subr.mxu0 0.0
        %1935 = vmatpush1.xpose.msra.mxu0 0.0
        %1936 = vmatprep.subr.mxu0 0.0
        %1937 = vmatpush1.xpose.msra.mxu0 0.0
        %1938 = vmatprep.subr.mxu0 0.0
        %1939 = vmatpush1.xpose.msra.mxu0 0.0
        %1940 = vmatprep.subr.mxu0 0.0
        %1941 = vmatpush1.xpose.msra.mxu0 0.0
        %1942 = vmatprep.subr.mxu0 0.0
        %v1943 = vand.u32 %v1738, 4294901760
        %v1944 = vsub.f32 %v1738, %v1943
        %1945 = vmatpush1.xpose.msra.mxu0 %v1944
        %1946 = vmatprep.subr.mxu0 0.0
        %v1947 = vand.u32 %v1736, 4294901760
        %v1948 = vsub.f32 %v1736, %v1947
        %1949 = vmatpush1.xpose.msra.mxu0 %v1948
        %1950 = vmatprep.subr.mxu0 0.0
        %1951 = vmatpush2.xpose.msra.mxu0 0.0
        %1952 = vmatprep.subr.mxu0 0.0
        %1953 = vmatpush2.xpose.msra.mxu0 0.0
        %1954 = vmatprep.subr.mxu0 0.0
        %1955 = vmatpush2.xpose.msra.mxu0 0.0
        %1956 = vmatprep.subr.mxu0 0.0
        %1957 = vmatpush2.xpose.msra.mxu0 0.0
        %1958 = vmatprep.subr.mxu0 0.0
        %1959 = vmatpush2.xpose.msra.mxu0 0.0
        %1960 = vmatprep.subr.mxu0 0.0
        %1961 = vmatpush2.xpose.msra.mxu0 0.0
        %1962 = vmatprep.subr.mxu0 0.0
        %1963 = vmatpush2.xpose.msra.mxu0 0.0
        %1964 = vmatprep.subr.mxu0 0.0
        %1965 = vmatpush2.xpose.msra.mxu0 0.0
        %1966 = vmatprep.subr.mxu0 0.0
        %1967 = vmatpush2.xpose.msra.mxu0 0.0
        %1968 = vmatprep.subr.mxu0 0.0
        %1969 = vmatpush2.xpose.msra.mxu0 0.0
        %1970 = vmatprep.subr.mxu0 0.0
        %1971 = vmatpush2.xpose.msra.mxu0 0.0
        %1972 = vmatprep.subr.mxu0 0.0
        %1973 = vmatpush2.xpose.msra.mxu0 0.0
        %1974 = vmatprep.subr.mxu0 0.0
        %1975 = vmatpush2.xpose.msra.mxu0 0.0
        %1976 = vmatprep.subr.mxu0 0.0
        %1977 = vmatpush2.xpose.msra.mxu0 0.0
        %1978 = vmatprep.subr.mxu0 0.0
        %1979 = vmatpush2.xpose.msra.mxu0 0.0
        %1980 = vmatprep.subr.mxu0 0.0
        %1981 = vmatpush2.xpose.msra.mxu0 0.0
        %1982 = vmatprep.mubr.f32.mxu0 0.0
        %v1983 = vand.u32 %v1732, 4294901760
        %v1984 = vsub.f32 %v1732, %v1983
        %1985 = vmatmul.mubr.f32.gmra.mxu0 %v1984
        %v1986 = vpop.f32.mrf.mxu0
        %v1987 = vadd.f32 %v1905, %v1986
        %v1988 = vpop.f32.mrf.mxu0
        %1989 = vmatprep.mubr.f32.mxu0 0.0
        %v1990 = vand.u32 %v1734, 4294901760
        %v1991 = vsub.f32 %v1734, %v1990
        %1992 = vmatmul.mubr.f32.gmra.mxu0 %v1991
        %v1993 = vpop.f32.mrf.mxu0
        %v1994 = vadd.f32 %v1911, %v1993
        %v1995 = vpop.f32.mrf.mxu0
        %1996 = vdwg.mxu0
        %1997 = vmatprep.subr.mxu0 0.0
        %1998 = vmatpush1.xpose.msra.mxu0 0.0
        %1999 = vmatprep.subr.mxu0 0.0
        %2000 = vmatpush1.xpose.msra.mxu0 0.0
        %2001 = vmatprep.subr.mxu0 0.0
        %2002 = vmatpush1.xpose.msra.mxu0 0.0
        %2003 = vmatprep.subr.mxu0 0.0
        %2004 = vmatpush1.xpose.msra.mxu0 0.0
        %2005 = vmatprep.subr.mxu0 0.0
        %2006 = vmatpush1.xpose.msra.mxu0 0.0
        %2007 = vmatprep.subr.mxu0 0.0
        %2008 = vmatpush1.xpose.msra.mxu0 0.0
        %2009 = vmatprep.subr.mxu0 0.0
        %2010 = vmatpush1.xpose.msra.mxu0 0.0
        %2011 = vmatprep.subr.mxu0 0.0
        %2012 = vmatpush1.xpose.msra.mxu0 0.0
        %2013 = vmatprep.subr.mxu0 0.0
        %2014 = vmatpush1.xpose.msra.mxu0 0.0
        %2015 = vmatprep.subr.mxu0 0.0
        %2016 = vmatpush1.xpose.msra.mxu0 0.0
        %2017 = vmatprep.subr.mxu0 0.0
        %2018 = vmatpush1.xpose.msra.mxu0 0.0
        %2019 = vmatprep.subr.mxu0 0.0
        %2020 = vmatpush1.xpose.msra.mxu0 0.0
        %2021 = vmatprep.subr.mxu0 0.0
        %2022 = vmatpush1.xpose.msra.mxu0 0.0
        %2023 = vmatprep.subr.mxu0 0.0
        %2024 = vmatpush1.xpose.msra.mxu0 0.0
        %2025 = vmatprep.subr.mxu0 0.0
        %v2026 = vand.u32 %v1738, 4294901760
        %2027 = vmatpush1.xpose.msra.mxu0 %v2026
        %2028 = vmatprep.subr.mxu0 0.0
        %v2029 = vand.u32 %v1736, 4294901760
        %2030 = vmatpush1.xpose.msra.mxu0 %v2029
        %2031 = vmatprep.subr.mxu0 0.0
        %2032 = vmatpush2.xpose.msra.mxu0 0.0
        %2033 = vmatprep.subr.mxu0 0.0
        %2034 = vmatpush2.xpose.msra.mxu0 0.0
        %2035 = vmatprep.subr.mxu0 0.0
        %2036 = vmatpush2.xpose.msra.mxu0 0.0
        %2037 = vmatprep.subr.mxu0 0.0
        %2038 = vmatpush2.xpose.msra.mxu0 0.0
        %2039 = vmatprep.subr.mxu0 0.0
        %2040 = vmatpush2.xpose.msra.mxu0 0.0
        %2041 = vmatprep.subr.mxu0 0.0
        %2042 = vmatpush2.xpose.msra.mxu0 0.0
        %2043 = vmatprep.subr.mxu0 0.0
        %2044 = vmatpush2.xpose.msra.mxu0 0.0
        %2045 = vmatprep.subr.mxu0 0.0
        %2046 = vmatpush2.xpose.msra.mxu0 0.0
        %2047 = vmatprep.subr.mxu0 0.0
        %2048 = vmatpush2.xpose.msra.mxu0 0.0
        %2049 = vmatprep.subr.mxu0 0.0
        %2050 = vmatpush2.xpose.msra.mxu0 0.0
        %2051 = vmatprep.subr.mxu0 0.0
        %2052 = vmatpush2.xpose.msra.mxu0 0.0
        %2053 = vmatprep.subr.mxu0 0.0
        %2054 = vmatpush2.xpose.msra.mxu0 0.0
        %2055 = vmatprep.subr.mxu0 0.0
        %2056 = vmatpush2.xpose.msra.mxu0 0.0
        %2057 = vmatprep.subr.mxu0 0.0
        %2058 = vmatpush2.xpose.msra.mxu0 0.0
        %2059 = vmatprep.subr.mxu0 0.0
        %2060 = vmatpush2.xpose.msra.mxu0 0.0
        %2061 = vmatprep.subr.mxu0 0.0
        %2062 = vmatpush2.xpose.msra.mxu0 0.0
        %2063 = vmatprep.mubr.f32.mxu0 0.0
        %v2064 = vand.u32 %v1732, 4294901760
        %v2065 = vsub.f32 %v1732, %v2064
        %v2066 = vand.u32 %v2065, 4294901760
        %2067 = vmatmul.mubr.f32.gmra.mxu0 %v2066
        %v2068 = vpop.f32.mrf.mxu0
        %v2069 = vadd.f32 %v1987, %v2068
        %v2070 = vpop.f32.mrf.mxu0
        %2071 = vmatprep.mubr.f32.mxu0 0.0
        %v2072 = vand.u32 %v1734, 4294901760
        %v2073 = vsub.f32 %v1734, %v2072
        %v2074 = vand.u32 %v2073, 4294901760
        %2075 = vmatmul.mubr.f32.gmra.mxu0 %v2074
        %v2076 = vpop.f32.mrf.mxu0
        %v2077 = vadd.f32 %v1994, %v2076
        %v2078 = vpop.f32.mrf.mxu0
        %2079 = vdwg.mxu0
        %2080 = vmatprep.subr.mxu0 0.0
        %2081 = vmatpush1.xpose.msra.mxu0 0.0
        %2082 = vmatprep.subr.mxu0 0.0
        %2083 = vmatpush1.xpose.msra.mxu0 0.0
        %2084 = vmatprep.subr.mxu0 0.0
        %2085 = vmatpush1.xpose.msra.mxu0 0.0
        %2086 = vmatprep.subr.mxu0 0.0
        %2087 = vmatpush1.xpose.msra.mxu0 0.0
        %2088 = vmatprep.subr.mxu0 0.0
        %2089 = vmatpush1.xpose.msra.mxu0 0.0
        %2090 = vmatprep.subr.mxu0 0.0
        %2091 = vmatpush1.xpose.msra.mxu0 0.0
        %2092 = vmatprep.subr.mxu0 0.0
        %2093 = vmatpush1.xpose.msra.mxu0 0.0
        %2094 = vmatprep.subr.mxu0 0.0
        %2095 = vmatpush1.xpose.msra.mxu0 0.0
        %2096 = vmatprep.subr.mxu0 0.0
        %2097 = vmatpush1.xpose.msra.mxu0 0.0
        %2098 = vmatprep.subr.mxu0 0.0
        %2099 = vmatpush1.xpose.msra.mxu0 0.0
        %2100 = vmatprep.subr.mxu0 0.0
        %2101 = vmatpush1.xpose.msra.mxu0 0.0
        %2102 = vmatprep.subr.mxu0 0.0
        %2103 = vmatpush1.xpose.msra.mxu0 0.0
        %2104 = vmatprep.subr.mxu0 0.0
        %2105 = vmatpush1.xpose.msra.mxu0 0.0
        %2106 = vmatprep.subr.mxu0 0.0
        %2107 = vmatpush1.xpose.msra.mxu0 0.0
        %2108 = vmatprep.subr.mxu0 0.0
        %v2109 = vand.u32 %v1738, 4294901760
        %v2110 = vsub.f32 %v1738, %v2109
        %v2111 = vand.u32 %v2110, 4294901760
        %2112 = vmatpush1.xpose.msra.mxu0 %v2111
        %2113 = vmatprep.subr.mxu0 0.0
        %v2114 = vand.u32 %v1736, 4294901760
        %v2115 = vsub.f32 %v1736, %v2114
        %v2116 = vand.u32 %v2115, 4294901760
        %2117 = vmatpush1.xpose.msra.mxu0 %v2116
        %2118 = vmatprep.subr.mxu0 0.0
        %2119 = vmatpush2.xpose.msra.mxu0 0.0
        %2120 = vmatprep.subr.mxu0 0.0
        %2121 = vmatpush2.xpose.msra.mxu0 0.0
        %2122 = vmatprep.subr.mxu0 0.0
        %2123 = vmatpush2.xpose.msra.mxu0 0.0
        %2124 = vmatprep.subr.mxu0 0.0
        %2125 = vmatpush2.xpose.msra.mxu0 0.0
        %2126 = vmatprep.subr.mxu0 0.0
        %2127 = vmatpush2.xpose.msra.mxu0 0.0
        %2128 = vmatprep.subr.mxu0 0.0
        %2129 = vmatpush2.xpose.msra.mxu0 0.0
        %2130 = vmatprep.subr.mxu0 0.0
        %2131 = vmatpush2.xpose.msra.mxu0 0.0
        %2132 = vmatprep.subr.mxu0 0.0
        %2133 = vmatpush2.xpose.msra.mxu0 0.0
        %2134 = vmatprep.subr.mxu0 0.0
        %2135 = vmatpush2.xpose.msra.mxu0 0.0
        %2136 = vmatprep.subr.mxu0 0.0
        %2137 = vmatpush2.xpose.msra.mxu0 0.0
        %2138 = vmatprep.subr.mxu0 0.0
        %2139 = vmatpush2.xpose.msra.mxu0 0.0
        %2140 = vmatprep.subr.mxu0 0.0
        %2141 = vmatpush2.xpose.msra.mxu0 0.0
        %2142 = vmatprep.subr.mxu0 0.0
        %2143 = vmatpush2.xpose.msra.mxu0 0.0
        %2144 = vmatprep.subr.mxu0 0.0
        %2145 = vmatpush2.xpose.msra.mxu0 0.0
        %2146 = vmatprep.subr.mxu0 0.0
        %2147 = vmatpush2.xpose.msra.mxu0 0.0
        %2148 = vmatprep.subr.mxu0 0.0
        %2149 = vmatpush2.xpose.msra.mxu0 0.0
        %2150 = vmatprep.mubr.f32.mxu0 0.0
        %v2151 = vand.u32 %v1732, 4294901760
        %2152 = vmatmul.mubr.f32.gmra.mxu0 %v2151
        %v2153 = vpop.f32.mrf.mxu0
        %v2154 = vadd.f32 %v2069, %v2153
        %v2155 = vpop.f32.mrf.mxu0
        %2156 = vmatprep.mubr.f32.mxu0 0.0
        %v2157 = vand.u32 %v1734, 4294901760
        %2158 = vmatmul.mubr.f32.gmra.mxu0 %v2157
        %v2159 = vpop.f32.mrf.mxu0
        %v2160 = vadd.f32 %v2077, %v2159
        %v2161 = vpop.f32.mrf.mxu0
        %2162 = vdwg.mxu0
        %2163 = vmatprep.subr.mxu0 0.0
        %2164 = vmatpush1.xpose.msra.mxu0 0.0
        %2165 = vmatprep.subr.mxu0 0.0
        %2166 = vmatpush1.xpose.msra.mxu0 0.0
        %2167 = vmatprep.subr.mxu0 0.0
        %2168 = vmatpush1.xpose.msra.mxu0 0.0
        %2169 = vmatprep.subr.mxu0 0.0
        %2170 = vmatpush1.xpose.msra.mxu0 0.0
        %2171 = vmatprep.subr.mxu0 0.0
        %2172 = vmatpush1.xpose.msra.mxu0 0.0
        %2173 = vmatprep.subr.mxu0 0.0
        %2174 = vmatpush1.xpose.msra.mxu0 0.0
        %2175 = vmatprep.subr.mxu0 0.0
        %2176 = vmatpush1.xpose.msra.mxu0 0.0
        %2177 = vmatprep.subr.mxu0 0.0
        %2178 = vmatpush1.xpose.msra.mxu0 0.0
        %2179 = vmatprep.subr.mxu0 0.0
        %2180 = vmatpush1.xpose.msra.mxu0 0.0
        %2181 = vmatprep.subr.mxu0 0.0
        %2182 = vmatpush1.xpose.msra.mxu0 0.0
        %2183 = vmatprep.subr.mxu0 0.0
        %2184 = vmatpush1.xpose.msra.mxu0 0.0
        %2185 = vmatprep.subr.mxu0 0.0
        %2186 = vmatpush1.xpose.msra.mxu0 0.0
        %2187 = vmatprep.subr.mxu0 0.0
        %2188 = vmatpush1.xpose.msra.mxu0 0.0
        %2189 = vmatprep.subr.mxu0 0.0
        %2190 = vmatpush1.xpose.msra.mxu0 0.0
        %2191 = vmatprep.subr.mxu0 0.0
        %v2192 = vand.u32 %v1738, 4294901760
        %2193 = vmatpush1.xpose.msra.mxu0 %v2192
        %2194 = vmatprep.subr.mxu0 0.0
        %v2195 = vand.u32 %v1736, 4294901760
        %2196 = vmatpush1.xpose.msra.mxu0 %v2195
        %2197 = vmatprep.subr.mxu0 0.0
        %2198 = vmatpush2.xpose.msra.mxu0 0.0
        %2199 = vmatprep.subr.mxu0 0.0
        %2200 = vmatpush2.xpose.msra.mxu0 0.0
        %2201 = vmatprep.subr.mxu0 0.0
        %2202 = vmatpush2.xpose.msra.mxu0 0.0
        %2203 = vmatprep.subr.mxu0 0.0
        %2204 = vmatpush2.xpose.msra.mxu0 0.0
        %2205 = vmatprep.subr.mxu0 0.0
        %2206 = vmatpush2.xpose.msra.mxu0 0.0
        %2207 = vmatprep.subr.mxu0 0.0
        %2208 = vmatpush2.xpose.msra.mxu0 0.0
        %2209 = vmatprep.subr.mxu0 0.0
        %2210 = vmatpush2.xpose.msra.mxu0 0.0
        %2211 = vmatprep.subr.mxu0 0.0
        %2212 = vmatpush2.xpose.msra.mxu0 0.0
        %2213 = vmatprep.subr.mxu0 0.0
        %2214 = vmatpush2.xpose.msra.mxu0 0.0
        %2215 = vmatprep.subr.mxu0 0.0
        %2216 = vmatpush2.xpose.msra.mxu0 0.0
        %2217 = vmatprep.subr.mxu0 0.0
        %2218 = vmatpush2.xpose.msra.mxu0 0.0
        %2219 = vmatprep.subr.mxu0 0.0
        %2220 = vmatpush2.xpose.msra.mxu0 0.0
        %2221 = vmatprep.subr.mxu0 0.0
        %2222 = vmatpush2.xpose.msra.mxu0 0.0
        %2223 = vmatprep.subr.mxu0 0.0
        %2224 = vmatpush2.xpose.msra.mxu0 0.0
        %2225 = vmatprep.subr.mxu0 0.0
        %2226 = vmatpush2.xpose.msra.mxu0 0.0
        %2227 = vmatprep.subr.mxu0 0.0
        %2228 = vmatpush2.xpose.msra.mxu0 0.0
        %2229 = vmatprep.mubr.f32.mxu0 0.0
        %v2230 = vand.u32 %v1732, 4294901760
        %2231 = vmatmul.mubr.f32.gmra.mxu0 %v2230
        %v2232 = vpop.f32.mrf.mxu0
        %v2233 = vadd.f32 %v2154, %v2232
        %v2234 = vpop.f32.mrf.mxu0
        %2235 = vmatprep.mubr.f32.mxu0 0.0
        %v2236 = vand.u32 %v1734, 4294901760
        %2237 = vmatmul.mubr.f32.gmra.mxu0 %v2236
        %v2238 = vpop.f32.mrf.mxu0
        %v2239 = vadd.f32 %v2160, %v2238
        %v2240 = vpop.f32.mrf.mxu0
        %2241 = vdwg.mxu0
        %vm2242 = vcmask 130048
        %v2243 = vsel %vm2242, %v2233, -inf
        %2244 = vmax.xlane.f32.xlu0 %v2243
        %v2245 = vpop.xlane.xlu0 %2244
        %v2246 = vsel %vm2242, %v2239, -inf
        %2247 = vmax.xlane.f32.xlu0 %v2246
        %v2248 = vpop.xlane.xlu0 %2247
        %v2249 = vsub.f32 %v2233, %v2245
        %v2250 = vsub.f32 %v2239, %v2248
        %v2251 = vmul.f32 %v2249, 1.442695
        %v2252 = vpow.pop %v2251
        %v2253 = vmul.f32 %v2250, 1.442695
        %v2254 = vpow.pop %v2253
        %v2255 = vsel %vm2242, %v2252, 0.0
        %2256 = vadd.xlane.f32.xlu0 %v2255
        %v2257 = vpop.xlane.xlu0 %2256
        %v2258 = vsel %vm2242, %v2254, 0.0
        %2259 = vadd.xlane.f32.xlu0 %v2258
        %v2260 = vpop.xlane.xlu0 %2259
        %v2261 = vrcp.pop %v2257
        %v2262 = vrcp.pop %v2260
        %v2263 = vmul.f32 %v2252, %v2261
        %v2264 = vmul.f32 %v2254, %v2262
        %v2266 = vsel %vm2242, %v2263, 0
        %v2269 = vsel %vm2242, %v2264, 0
        %2271 = vmatprep.subr.mxu0 0.0
        %2272 = vmatpush1.msra.mxu0 0.0
        %2273 = vmatprep.subr.mxu0 0.0
        %2274 = vmatpush1.msra.mxu0 0.0
        %2275 = vmatprep.subr.mxu0 0.0
        %2276 = vmatpush1.msra.mxu0 0.0
        %2277 = vmatprep.subr.mxu0 0.0
        %2278 = vmatpush1.msra.mxu0 0.0
        %2279 = vmatprep.subr.mxu0 0.0
        %2280 = vmatpush1.msra.mxu0 0.0
        %2281 = vmatprep.subr.mxu0 0.0
        %2282 = vmatpush1.msra.mxu0 0.0
        %2283 = vmatprep.subr.mxu0 0.0
        %2284 = vmatpush1.msra.mxu0 0.0
        %2285 = vmatprep.subr.mxu0 0.0
        %2286 = vmatpush1.msra.mxu0 0.0
        %2287 = vmatprep.subr.mxu0 0.0
        %2288 = vmatpush1.msra.mxu0 0.0
        %2289 = vmatprep.subr.mxu0 0.0
        %2290 = vmatpush1.msra.mxu0 0.0
        %2291 = vmatprep.subr.mxu0 0.0
        %2292 = vmatpush1.msra.mxu0 0.0
        %2293 = vmatprep.subr.mxu0 0.0
        %2294 = vmatpush1.msra.mxu0 0.0
        %2295 = vmatprep.subr.mxu0 0.0
        %2296 = vmatpush1.msra.mxu0 0.0
        %2297 = vmatprep.subr.mxu0 0.0
        %2298 = vmatpush1.msra.mxu0 0.0
        %2299 = vmatprep.subr.mxu0 0.0
        %v2300 = vand.u32 %v1720, 4294901760
        %2301 = vmatpush1.msra.mxu0 %v2300
        %2302 = vmatprep.subr.mxu0 0.0
        %v2303 = vand.u32 %v1714, 4294901760
        %2304 = vmatpush1.msra.mxu0 %v2303
        %2305 = vmatprep.subr.mxu0 0.0
        %2306 = vmatpush2.msra.mxu0 0.0
        %2307 = vmatprep.subr.mxu0 0.0
        %2308 = vmatpush2.msra.mxu0 0.0
        %2309 = vmatprep.subr.mxu0 0.0
        %2310 = vmatpush2.msra.mxu0 0.0
        %2311 = vmatprep.subr.mxu0 0.0
        %2312 = vmatpush2.msra.mxu0 0.0
        %2313 = vmatprep.subr.mxu0 0.0
        %2314 = vmatpush2.msra.mxu0 0.0
        %2315 = vmatprep.subr.mxu0 0.0
        %2316 = vmatpush2.msra.mxu0 0.0
        %2317 = vmatprep.subr.mxu0 0.0
        %2318 = vmatpush2.msra.mxu0 0.0
        %2319 = vmatprep.subr.mxu0 0.0
        %2320 = vmatpush2.msra.mxu0 0.0
        %2321 = vmatprep.subr.mxu0 0.0
        %2322 = vmatpush2.msra.mxu0 0.0
        %2323 = vmatprep.subr.mxu0 0.0
        %2324 = vmatpush2.msra.mxu0 0.0
        %2325 = vmatprep.subr.mxu0 0.0
        %2326 = vmatpush2.msra.mxu0 0.0
        %2327 = vmatprep.subr.mxu0 0.0
        %2328 = vmatpush2.msra.mxu0 0.0
        %2329 = vmatprep.subr.mxu0 0.0
        %2330 = vmatpush2.msra.mxu0 0.0
        %2331 = vmatprep.subr.mxu0 0.0
        %2332 = vmatpush2.msra.mxu0 0.0
        %2333 = vmatprep.subr.mxu0 0.0
        %2334 = vmatpush2.msra.mxu0 0.0
        %2335 = vmatprep.subr.mxu0 0.0
        %2336 = vmatpush2.msra.mxu0 0.0
        %2337 = vmatprep.mubr.f32.mxu0 0.0
        %v2338 = vand.u32 %v2266, 4294901760
        %v2339 = vsub.f32 %v2266, %v2338
        %v2340 = vand.u32 %v2339, 4294901760
        %v2341 = vsub.f32 %v2339, %v2340
        %v2342 = vand.u32 %v2341, 4294901760
        %2343 = vmatmul.mubr.f32.gmra.mxu0 %v2342
        %v2344 = vpop.f32.mrf.mxu0
        %v2345 = vadd.f32 0.0, %v2344
        %v2346 = vpop.f32.mrf.mxu0
        %2347 = vmatprep.mubr.f32.mxu0 0.0
        %v2348 = vand.u32 %v2269, 4294901760
        %v2349 = vsub.f32 %v2269, %v2348
        %v2350 = vand.u32 %v2349, 4294901760
        %v2351 = vsub.f32 %v2349, %v2350
        %v2352 = vand.u32 %v2351, 4294901760
        %2353 = vmatmul.mubr.f32.gmra.mxu0 %v2352
        %v2354 = vpop.f32.mrf.mxu0
        %v2355 = vadd.f32 0.0, %v2354
        %v2356 = vpop.f32.mrf.mxu0
        %2357 = vdwg.mxu0
        %2358 = vmatprep.subr.mxu0 0.0
        %2359 = vmatpush1.msra.mxu0 0.0
        %2360 = vmatprep.subr.mxu0 0.0
        %2361 = vmatpush1.msra.mxu0 0.0
        %2362 = vmatprep.subr.mxu0 0.0
        %2363 = vmatpush1.msra.mxu0 0.0
        %2364 = vmatprep.subr.mxu0 0.0
        %2365 = vmatpush1.msra.mxu0 0.0
        %2366 = vmatprep.subr.mxu0 0.0
        %2367 = vmatpush1.msra.mxu0 0.0
        %2368 = vmatprep.subr.mxu0 0.0
        %2369 = vmatpush1.msra.mxu0 0.0
        %2370 = vmatprep.subr.mxu0 0.0
        %2371 = vmatpush1.msra.mxu0 0.0
        %2372 = vmatprep.subr.mxu0 0.0
        %2373 = vmatpush1.msra.mxu0 0.0
        %2374 = vmatprep.subr.mxu0 0.0
        %2375 = vmatpush1.msra.mxu0 0.0
        %2376 = vmatprep.subr.mxu0 0.0
        %2377 = vmatpush1.msra.mxu0 0.0
        %2378 = vmatprep.subr.mxu0 0.0
        %2379 = vmatpush1.msra.mxu0 0.0
        %2380 = vmatprep.subr.mxu0 0.0
        %2381 = vmatpush1.msra.mxu0 0.0
        %2382 = vmatprep.subr.mxu0 0.0
        %2383 = vmatpush1.msra.mxu0 0.0
        %2384 = vmatprep.subr.mxu0 0.0
        %2385 = vmatpush1.msra.mxu0 0.0
        %2386 = vmatprep.subr.mxu0 0.0
        %v2387 = vand.u32 %v1720, 4294901760
        %v2388 = vsub.f32 %v1720, %v2387
        %v2389 = vand.u32 %v2388, 4294901760
        %v2390 = vsub.f32 %v2388, %v2389
        %v2391 = vand.u32 %v2390, 4294901760
        %2392 = vmatpush1.msra.mxu0 %v2391
        %2393 = vmatprep.subr.mxu0 0.0
        %v2394 = vand.u32 %v1714, 4294901760
        %v2395 = vsub.f32 %v1714, %v2394
        %v2396 = vand.u32 %v2395, 4294901760
        %v2397 = vsub.f32 %v2395, %v2396
        %v2398 = vand.u32 %v2397, 4294901760
        %2399 = vmatpush1.msra.mxu0 %v2398
        %2400 = vmatprep.subr.mxu0 0.0
        %2401 = vmatpush2.msra.mxu0 0.0
        %2402 = vmatprep.subr.mxu0 0.0
        %2403 = vmatpush2.msra.mxu0 0.0
        %2404 = vmatprep.subr.mxu0 0.0
        %2405 = vmatpush2.msra.mxu0 0.0
        %2406 = vmatprep.subr.mxu0 0.0
        %2407 = vmatpush2.msra.mxu0 0.0
        %2408 = vmatprep.subr.mxu0 0.0
        %2409 = vmatpush2.msra.mxu0 0.0
        %2410 = vmatprep.subr.mxu0 0.0
        %2411 = vmatpush2.msra.mxu0 0.0
        %2412 = vmatprep.subr.mxu0 0.0
        %2413 = vmatpush2.msra.mxu0 0.0
        %2414 = vmatprep.subr.mxu0 0.0
        %2415 = vmatpush2.msra.mxu0 0.0
        %2416 = vmatprep.subr.mxu0 0.0
        %2417 = vmatpush2.msra.mxu0 0.0
        %2418 = vmatprep.subr.mxu0 0.0
        %2419 = vmatpush2.msra.mxu0 0.0
        %2420 = vmatprep.subr.mxu0 0.0
        %2421 = vmatpush2.msra.mxu0 0.0
        %2422 = vmatprep.subr.mxu0 0.0
        %2423 = vmatpush2.msra.mxu0 0.0
        %2424 = vmatprep.subr.mxu0 0.0
        %2425 = vmatpush2.msra.mxu0 0.0
        %2426 = vmatprep.subr.mxu0 0.0
        %2427 = vmatpush2.msra.mxu0 0.0
        %2428 = vmatprep.subr.mxu0 0.0
        %2429 = vmatpush2.msra.mxu0 0.0
        %2430 = vmatprep.subr.mxu0 0.0
        %2431 = vmatpush2.msra.mxu0 0.0
        %2432 = vmatprep.mubr.f32.mxu0 0.0
        %v2433 = vand.u32 %v2266, 4294901760
        %2434 = vmatmul.mubr.f32.gmra.mxu0 %v2433
        %v2435 = vpop.f32.mrf.mxu0
        %v2436 = vadd.f32 %v2345, %v2435
        %v2437 = vpop.f32.mrf.mxu0
        %2438 = vmatprep.mubr.f32.mxu0 0.0
        %v2439 = vand.u32 %v2269, 4294901760
        %2440 = vmatmul.mubr.f32.gmra.mxu0 %v2439
        %v2441 = vpop.f32.mrf.mxu0
        %v2442 = vadd.f32 %v2355, %v2441
        %v2443 = vpop.f32.mrf.mxu0
        %2444 = vdwg.mxu0
        %2445 = vmatprep.subr.mxu0 0.0
        %2446 = vmatpush1.msra.mxu0 0.0
        %2447 = vmatprep.subr.mxu0 0.0
        %2448 = vmatpush1.msra.mxu0 0.0
        %2449 = vmatprep.subr.mxu0 0.0
        %2450 = vmatpush1.msra.mxu0 0.0
        %2451 = vmatprep.subr.mxu0 0.0
        %2452 = vmatpush1.msra.mxu0 0.0
        %2453 = vmatprep.subr.mxu0 0.0
        %2454 = vmatpush1.msra.mxu0 0.0
        %2455 = vmatprep.subr.mxu0 0.0
        %2456 = vmatpush1.msra.mxu0 0.0
        %2457 = vmatprep.subr.mxu0 0.0
        %2458 = vmatpush1.msra.mxu0 0.0
        %2459 = vmatprep.subr.mxu0 0.0
        %2460 = vmatpush1.msra.mxu0 0.0
        %2461 = vmatprep.subr.mxu0 0.0
        %2462 = vmatpush1.msra.mxu0 0.0
        %2463 = vmatprep.subr.mxu0 0.0
        %2464 = vmatpush1.msra.mxu0 0.0
        %2465 = vmatprep.subr.mxu0 0.0
        %2466 = vmatpush1.msra.mxu0 0.0
        %2467 = vmatprep.subr.mxu0 0.0
        %2468 = vmatpush1.msra.mxu0 0.0
        %2469 = vmatprep.subr.mxu0 0.0
        %2470 = vmatpush1.msra.mxu0 0.0
        %2471 = vmatprep.subr.mxu0 0.0
        %2472 = vmatpush1.msra.mxu0 0.0
        %2473 = vmatprep.subr.mxu0 0.0
        %v2474 = vand.u32 %v1720, 4294901760
        %v2475 = vsub.f32 %v1720, %v2474
        %2476 = vmatpush1.msra.mxu0 %v2475
        %2477 = vmatprep.subr.mxu0 0.0
        %v2478 = vand.u32 %v1714, 4294901760
        %v2479 = vsub.f32 %v1714, %v2478
        %2480 = vmatpush1.msra.mxu0 %v2479
        %2481 = vmatprep.subr.mxu0 0.0
        %2482 = vmatpush2.msra.mxu0 0.0
        %2483 = vmatprep.subr.mxu0 0.0
        %2484 = vmatpush2.msra.mxu0 0.0
        %2485 = vmatprep.subr.mxu0 0.0
        %2486 = vmatpush2.msra.mxu0 0.0
        %2487 = vmatprep.subr.mxu0 0.0
        %2488 = vmatpush2.msra.mxu0 0.0
        %2489 = vmatprep.subr.mxu0 0.0
        %2490 = vmatpush2.msra.mxu0 0.0
        %2491 = vmatprep.subr.mxu0 0.0
        %2492 = vmatpush2.msra.mxu0 0.0
        %2493 = vmatprep.subr.mxu0 0.0
        %2494 = vmatpush2.msra.mxu0 0.0
        %2495 = vmatprep.subr.mxu0 0.0
        %2496 = vmatpush2.msra.mxu0 0.0
        %2497 = vmatprep.subr.mxu0 0.0
        %2498 = vmatpush2.msra.mxu0 0.0
        %2499 = vmatprep.subr.mxu0 0.0
        %2500 = vmatpush2.msra.mxu0 0.0
        %2501 = vmatprep.subr.mxu0 0.0
        %2502 = vmatpush2.msra.mxu0 0.0
        %2503 = vmatprep.subr.mxu0 0.0
        %2504 = vmatpush2.msra.mxu0 0.0
        %2505 = vmatprep.subr.mxu0 0.0
        %2506 = vmatpush2.msra.mxu0 0.0
        %2507 = vmatprep.subr.mxu0 0.0
        %2508 = vmatpush2.msra.mxu0 0.0
        %2509 = vmatprep.subr.mxu0 0.0
        %2510 = vmatpush2.msra.mxu0 0.0
        %2511 = vmatprep.subr.mxu0 0.0
        %2512 = vmatpush2.msra.mxu0 0.0
        %2513 = vmatprep.mubr.f32.mxu0 0.0
        %v2514 = vand.u32 %v2266, 4294901760
        %v2515 = vsub.f32 %v2266, %v2514
        %2516 = vmatmul.mubr.f32.gmra.mxu0 %v2515
        %v2517 = vpop.f32.mrf.mxu0
        %v2518 = vadd.f32 %v2436, %v2517
        %v2519 = vpop.f32.mrf.mxu0
        %2520 = vmatprep.mubr.f32.mxu0 0.0
        %v2521 = vand.u32 %v2269, 4294901760
        %v2522 = vsub.f32 %v2269, %v2521
        %2523 = vmatmul.mubr.f32.gmra.mxu0 %v2522
        %v2524 = vpop.f32.mrf.mxu0
        %v2525 = vadd.f32 %v2442, %v2524
        %v2526 = vpop.f32.mrf.mxu0
        %2527 = vdwg.mxu0
        %2528 = vmatprep.subr.mxu0 0.0
        %2529 = vmatpush1.msra.mxu0 0.0
        %2530 = vmatprep.subr.mxu0 0.0
        %2531 = vmatpush1.msra.mxu0 0.0
        %2532 = vmatprep.subr.mxu0 0.0
        %2533 = vmatpush1.msra.mxu0 0.0
        %2534 = vmatprep.subr.mxu0 0.0
        %2535 = vmatpush1.msra.mxu0 0.0
        %2536 = vmatprep.subr.mxu0 0.0
        %2537 = vmatpush1.msra.mxu0 0.0
        %2538 = vmatprep.subr.mxu0 0.0
        %2539 = vmatpush1.msra.mxu0 0.0
        %2540 = vmatprep.subr.mxu0 0.0
        %2541 = vmatpush1.msra.mxu0 0.0
        %2542 = vmatprep.subr.mxu0 0.0
        %2543 = vmatpush1.msra.mxu0 0.0
        %2544 = vmatprep.subr.mxu0 0.0
        %2545 = vmatpush1.msra.mxu0 0.0
        %2546 = vmatprep.subr.mxu0 0.0
        %2547 = vmatpush1.msra.mxu0 0.0
        %2548 = vmatprep.subr.mxu0 0.0
        %2549 = vmatpush1.msra.mxu0 0.0
        %2550 = vmatprep.subr.mxu0 0.0
        %2551 = vmatpush1.msra.mxu0 0.0
        %2552 = vmatprep.subr.mxu0 0.0
        %2553 = vmatpush1.msra.mxu0 0.0
        %2554 = vmatprep.subr.mxu0 0.0
        %2555 = vmatpush1.msra.mxu0 0.0
        %2556 = vmatprep.subr.mxu0 0.0
        %v2557 = vand.u32 %v1720, 4294901760
        %2558 = vmatpush1.msra.mxu0 %v2557
        %2559 = vmatprep.subr.mxu0 0.0
        %v2560 = vand.u32 %v1714, 4294901760
        %2561 = vmatpush1.msra.mxu0 %v2560
        %2562 = vmatprep.subr.mxu0 0.0
        %2563 = vmatpush2.msra.mxu0 0.0
        %2564 = vmatprep.subr.mxu0 0.0
        %2565 = vmatpush2.msra.mxu0 0.0
        %2566 = vmatprep.subr.mxu0 0.0
        %2567 = vmatpush2.msra.mxu0 0.0
        %2568 = vmatprep.subr.mxu0 0.0
        %2569 = vmatpush2.msra.mxu0 0.0
        %2570 = vmatprep.subr.mxu0 0.0
        %2571 = vmatpush2.msra.mxu0 0.0
        %2572 = vmatprep.subr.mxu0 0.0
        %2573 = vmatpush2.msra.mxu0 0.0
        %2574 = vmatprep.subr.mxu0 0.0
        %2575 = vmatpush2.msra.mxu0 0.0
        %2576 = vmatprep.subr.mxu0 0.0
        %2577 = vmatpush2.msra.mxu0 0.0
        %2578 = vmatprep.subr.mxu0 0.0
        %2579 = vmatpush2.msra.mxu0 0.0
        %2580 = vmatprep.subr.mxu0 0.0
        %2581 = vmatpush2.msra.mxu0 0.0
        %2582 = vmatprep.subr.mxu0 0.0
        %2583 = vmatpush2.msra.mxu0 0.0
        %2584 = vmatprep.subr.mxu0 0.0
        %2585 = vmatpush2.msra.mxu0 0.0
        %2586 = vmatprep.subr.mxu0 0.0
        %2587 = vmatpush2.msra.mxu0 0.0
        %2588 = vmatprep.subr.mxu0 0.0
        %2589 = vmatpush2.msra.mxu0 0.0
        %2590 = vmatprep.subr.mxu0 0.0
        %2591 = vmatpush2.msra.mxu0 0.0
        %2592 = vmatprep.subr.mxu0 0.0
        %2593 = vmatpush2.msra.mxu0 0.0
        %2594 = vmatprep.mubr.f32.mxu0 0.0
        %v2595 = vand.u32 %v2266, 4294901760
        %v2596 = vsub.f32 %v2266, %v2595
        %v2597 = vand.u32 %v2596, 4294901760
        %2598 = vmatmul.mubr.f32.gmra.mxu0 %v2597
        %v2599 = vpop.f32.mrf.mxu0
        %v2600 = vadd.f32 %v2518, %v2599
        %v2601 = vpop.f32.mrf.mxu0
        %2602 = vmatprep.mubr.f32.mxu0 0.0
        %v2603 = vand.u32 %v2269, 4294901760
        %v2604 = vsub.f32 %v2269, %v2603
        %v2605 = vand.u32 %v2604, 4294901760
        %2606 = vmatmul.mubr.f32.gmra.mxu0 %v2605
        %v2607 = vpop.f32.mrf.mxu0
        %v2608 = vadd.f32 %v2525, %v2607
        %v2609 = vpop.f32.mrf.mxu0
        %2610 = vdwg.mxu0
        %2611 = vmatprep.subr.mxu0 0.0
        %2612 = vmatpush1.msra.mxu0 0.0
        %2613 = vmatprep.subr.mxu0 0.0
        %2614 = vmatpush1.msra.mxu0 0.0
        %2615 = vmatprep.subr.mxu0 0.0
        %2616 = vmatpush1.msra.mxu0 0.0
        %2617 = vmatprep.subr.mxu0 0.0
        %2618 = vmatpush1.msra.mxu0 0.0
        %2619 = vmatprep.subr.mxu0 0.0
        %2620 = vmatpush1.msra.mxu0 0.0
        %2621 = vmatprep.subr.mxu0 0.0
        %2622 = vmatpush1.msra.mxu0 0.0
        %2623 = vmatprep.subr.mxu0 0.0
        %2624 = vmatpush1.msra.mxu0 0.0
        %2625 = vmatprep.subr.mxu0 0.0
        %2626 = vmatpush1.msra.mxu0 0.0
        %2627 = vmatprep.subr.mxu0 0.0
        %2628 = vmatpush1.msra.mxu0 0.0
        %2629 = vmatprep.subr.mxu0 0.0
        %2630 = vmatpush1.msra.mxu0 0.0
        %2631 = vmatprep.subr.mxu0 0.0
        %2632 = vmatpush1.msra.mxu0 0.0
        %2633 = vmatprep.subr.mxu0 0.0
        %2634 = vmatpush1.msra.mxu0 0.0
        %2635 = vmatprep.subr.mxu0 0.0
        %2636 = vmatpush1.msra.mxu0 0.0
        %2637 = vmatprep.subr.mxu0 0.0
        %2638 = vmatpush1.msra.mxu0 0.0
        %2639 = vmatprep.subr.mxu0 0.0
        %v2640 = vand.u32 %v1720, 4294901760
        %v2641 = vsub.f32 %v1720, %v2640
        %v2642 = vand.u32 %v2641, 4294901760
        %2643 = vmatpush1.msra.mxu0 %v2642
        %2644 = vmatprep.subr.mxu0 0.0
        %v2645 = vand.u32 %v1714, 4294901760
        %v2646 = vsub.f32 %v1714, %v2645
        %v2647 = vand.u32 %v2646, 4294901760
        %2648 = vmatpush1.msra.mxu0 %v2647
        %2649 = vmatprep.subr.mxu0 0.0
        %2650 = vmatpush2.msra.mxu0 0.0
        %2651 = vmatprep.subr.mxu0 0.0
        %2652 = vmatpush2.msra.mxu0 0.0
        %2653 = vmatprep.subr.mxu0 0.0
        %2654 = vmatpush2.msra.mxu0 0.0
        %2655 = vmatprep.subr.mxu0 0.0
        %2656 = vmatpush2.msra.mxu0 0.0
        %2657 = vmatprep.subr.mxu0 0.0
        %2658 = vmatpush2.msra.mxu0 0.0
        %2659 = vmatprep.subr.mxu0 0.0
        %2660 = vmatpush2.msra.mxu0 0.0
        %2661 = vmatprep.subr.mxu0 0.0
        %2662 = vmatpush2.msra.mxu0 0.0
        %2663 = vmatprep.subr.mxu0 0.0
        %2664 = vmatpush2.msra.mxu0 0.0
        %2665 = vmatprep.subr.mxu0 0.0
        %2666 = vmatpush2.msra.mxu0 0.0
        %2667 = vmatprep.subr.mxu0 0.0
        %2668 = vmatpush2.msra.mxu0 0.0
        %2669 = vmatprep.subr.mxu0 0.0
        %2670 = vmatpush2.msra.mxu0 0.0
        %2671 = vmatprep.subr.mxu0 0.0
        %2672 = vmatpush2.msra.mxu0 0.0
        %2673 = vmatprep.subr.mxu0 0.0
        %2674 = vmatpush2.msra.mxu0 0.0
        %2675 = vmatprep.subr.mxu0 0.0
        %2676 = vmatpush2.msra.mxu0 0.0
        %2677 = vmatprep.subr.mxu0 0.0
        %2678 = vmatpush2.msra.mxu0 0.0
        %2679 = vmatprep.subr.mxu0 0.0
        %2680 = vmatpush2.msra.mxu0 0.0
        %2681 = vmatprep.mubr.f32.mxu0 0.0
        %v2682 = vand.u32 %v2266, 4294901760
        %2683 = vmatmul.mubr.f32.gmra.mxu0 %v2682
        %v2684 = vpop.f32.mrf.mxu0
        %v2685 = vadd.f32 %v2600, %v2684
        %v2686 = vpop.f32.mrf.mxu0
        %2687 = vmatprep.mubr.f32.mxu0 0.0
        %v2688 = vand.u32 %v2269, 4294901760
        %2689 = vmatmul.mubr.f32.gmra.mxu0 %v2688
        %v2690 = vpop.f32.mrf.mxu0
        %v2691 = vadd.f32 %v2608, %v2690
        %v2692 = vpop.f32.mrf.mxu0
        %2693 = vdwg.mxu0
        %2694 = vmatprep.subr.mxu0 0.0
        %2695 = vmatpush1.msra.mxu0 0.0
        %2696 = vmatprep.subr.mxu0 0.0
        %2697 = vmatpush1.msra.mxu0 0.0
        %2698 = vmatprep.subr.mxu0 0.0
        %2699 = vmatpush1.msra.mxu0 0.0
        %2700 = vmatprep.subr.mxu0 0.0
        %2701 = vmatpush1.msra.mxu0 0.0
        %2702 = vmatprep.subr.mxu0 0.0
        %2703 = vmatpush1.msra.mxu0 0.0
        %2704 = vmatprep.subr.mxu0 0.0
        %2705 = vmatpush1.msra.mxu0 0.0
        %2706 = vmatprep.subr.mxu0 0.0
        %2707 = vmatpush1.msra.mxu0 0.0
        %2708 = vmatprep.subr.mxu0 0.0
        %2709 = vmatpush1.msra.mxu0 0.0
        %2710 = vmatprep.subr.mxu0 0.0
        %2711 = vmatpush1.msra.mxu0 0.0
        %2712 = vmatprep.subr.mxu0 0.0
        %2713 = vmatpush1.msra.mxu0 0.0
        %2714 = vmatprep.subr.mxu0 0.0
        %2715 = vmatpush1.msra.mxu0 0.0
        %2716 = vmatprep.subr.mxu0 0.0
        %2717 = vmatpush1.msra.mxu0 0.0
        %2718 = vmatprep.subr.mxu0 0.0
        %2719 = vmatpush1.msra.mxu0 0.0
        %2720 = vmatprep.subr.mxu0 0.0
        %2721 = vmatpush1.msra.mxu0 0.0
        %2722 = vmatprep.subr.mxu0 0.0
        %v2723 = vand.u32 %v1720, 4294901760
        %2724 = vmatpush1.msra.mxu0 %v2723
        %2725 = vmatprep.subr.mxu0 0.0
        %v2726 = vand.u32 %v1714, 4294901760
        %2727 = vmatpush1.msra.mxu0 %v2726
        %2728 = vmatprep.subr.mxu0 0.0
        %2729 = vmatpush2.msra.mxu0 0.0
        %2730 = vmatprep.subr.mxu0 0.0
        %2731 = vmatpush2.msra.mxu0 0.0
        %2732 = vmatprep.subr.mxu0 0.0
        %2733 = vmatpush2.msra.mxu0 0.0
        %2734 = vmatprep.subr.mxu0 0.0
        %2735 = vmatpush2.msra.mxu0 0.0
        %2736 = vmatprep.subr.mxu0 0.0
        %2737 = vmatpush2.msra.mxu0 0.0
        %2738 = vmatprep.subr.mxu0 0.0
        %2739 = vmatpush2.msra.mxu0 0.0
        %2740 = vmatprep.subr.mxu0 0.0
        %2741 = vmatpush2.msra.mxu0 0.0
        %2742 = vmatprep.subr.mxu0 0.0
        %2743 = vmatpush2.msra.mxu0 0.0
        %2744 = vmatprep.subr.mxu0 0.0
        %2745 = vmatpush2.msra.mxu0 0.0
        %2746 = vmatprep.subr.mxu0 0.0
        %2747 = vmatpush2.msra.mxu0 0.0
        %2748 = vmatprep.subr.mxu0 0.0
        %2749 = vmatpush2.msra.mxu0 0.0
        %2750 = vmatprep.subr.mxu0 0.0
        %2751 = vmatpush2.msra.mxu0 0.0
        %2752 = vmatprep.subr.mxu0 0.0
        %2753 = vmatpush2.msra.mxu0 0.0
        %2754 = vmatprep.subr.mxu0 0.0
        %2755 = vmatpush2.msra.mxu0 0.0
        %2756 = vmatprep.subr.mxu0 0.0
        %2757 = vmatpush2.msra.mxu0 0.0
        %2758 = vmatprep.subr.mxu0 0.0
        %2759 = vmatpush2.msra.mxu0 0.0
        %2760 = vmatprep.mubr.f32.mxu0 0.0
        %v2761 = vand.u32 %v2266, 4294901760
        %2762 = vmatmul.mubr.f32.gmra.mxu0 %v2761
        %v2763 = vpop.f32.mrf.mxu0
        %v2764 = vadd.f32 %v2685, %v2763
        %v2765 = vpop.f32.mrf.mxu0
        %2766 = vmatprep.mubr.f32.mxu0 0.0
        %v2767 = vand.u32 %v2269, 4294901760
        %2768 = vmatmul.mubr.f32.gmra.mxu0 %v2767
        %v2769 = vpop.f32.mrf.mxu0
        %v2770 = vadd.f32 %v2691, %v2769
        %v2771 = vpop.f32.mrf.mxu0
        %2772 = vdwg.mxu0
        %2773 = vrot.lane.b32.xlu0 %v1169, 120
        %v2774 = vpop.permute.xlu0 %2773
        %2775 = vrot.lane.b32.xlu0 %v1175, 120
        %v2776 = vpop.permute.xlu0 %2775
        %2777 = vrot.lane.b32.xlu0 %v1169, 88
        %v2778 = vpop.permute.xlu0 %2777
        %2779 = vrot.lane.b32.xlu0 %v1175, 88
        %v2780 = vpop.permute.xlu0 %2779
        %v2781 = vsel %vm1731, %v2774, 0
        %v2783 = vsel %vm1731, %v2776, 0
        %v2785 = vsel %vm1731, %v2778, 0
        %v2787 = vsel %vm1731, %v2780, 0
        %2789 = vmatprep.subr.mxu0 0.0
        %2790 = vmatpush1.xpose.msra.mxu0 0.0
        %2791 = vmatprep.subr.mxu0 0.0
        %2792 = vmatpush1.xpose.msra.mxu0 0.0
        %2793 = vmatprep.subr.mxu0 0.0
        %2794 = vmatpush1.xpose.msra.mxu0 0.0
        %2795 = vmatprep.subr.mxu0 0.0
        %2796 = vmatpush1.xpose.msra.mxu0 0.0
        %2797 = vmatprep.subr.mxu0 0.0
        %2798 = vmatpush1.xpose.msra.mxu0 0.0
        %2799 = vmatprep.subr.mxu0 0.0
        %2800 = vmatpush1.xpose.msra.mxu0 0.0
        %2801 = vmatprep.subr.mxu0 0.0
        %2802 = vmatpush1.xpose.msra.mxu0 0.0
        %2803 = vmatprep.subr.mxu0 0.0
        %2804 = vmatpush1.xpose.msra.mxu0 0.0
        %2805 = vmatprep.subr.mxu0 0.0
        %2806 = vmatpush1.xpose.msra.mxu0 0.0
        %2807 = vmatprep.subr.mxu0 0.0
        %2808 = vmatpush1.xpose.msra.mxu0 0.0
        %2809 = vmatprep.subr.mxu0 0.0
        %2810 = vmatpush1.xpose.msra.mxu0 0.0
        %2811 = vmatprep.subr.mxu0 0.0
        %2812 = vmatpush1.xpose.msra.mxu0 0.0
        %2813 = vmatprep.subr.mxu0 0.0
        %2814 = vmatpush1.xpose.msra.mxu0 0.0
        %2815 = vmatprep.subr.mxu0 0.0
        %2816 = vmatpush1.xpose.msra.mxu0 0.0
        %2817 = vmatprep.subr.mxu0 0.0
        %v2818 = vand.u32 %v2787, 4294901760
        %2819 = vmatpush1.xpose.msra.mxu0 %v2818
        %2820 = vmatprep.subr.mxu0 0.0
        %v2821 = vand.u32 %v2785, 4294901760
        %2822 = vmatpush1.xpose.msra.mxu0 %v2821
        %2823 = vmatprep.subr.mxu0 0.0
        %2824 = vmatpush2.xpose.msra.mxu0 0.0
        %2825 = vmatprep.subr.mxu0 0.0
        %2826 = vmatpush2.xpose.msra.mxu0 0.0
        %2827 = vmatprep.subr.mxu0 0.0
        %2828 = vmatpush2.xpose.msra.mxu0 0.0
        %2829 = vmatprep.subr.mxu0 0.0
        %2830 = vmatpush2.xpose.msra.mxu0 0.0
        %2831 = vmatprep.subr.mxu0 0.0
        %2832 = vmatpush2.xpose.msra.mxu0 0.0
        %2833 = vmatprep.subr.mxu0 0.0
        %2834 = vmatpush2.xpose.msra.mxu0 0.0
        %2835 = vmatprep.subr.mxu0 0.0
        %2836 = vmatpush2.xpose.msra.mxu0 0.0
        %2837 = vmatprep.subr.mxu0 0.0
        %2838 = vmatpush2.xpose.msra.mxu0 0.0
        %2839 = vmatprep.subr.mxu0 0.0
        %2840 = vmatpush2.xpose.msra.mxu0 0.0
        %2841 = vmatprep.subr.mxu0 0.0
        %2842 = vmatpush2.xpose.msra.mxu0 0.0
        %2843 = vmatprep.subr.mxu0 0.0
        %2844 = vmatpush2.xpose.msra.mxu0 0.0
        %2845 = vmatprep.subr.mxu0 0.0
        %2846 = vmatpush2.xpose.msra.mxu0 0.0
        %2847 = vmatprep.subr.mxu0 0.0
        %2848 = vmatpush2.xpose.msra.mxu0 0.0
        %2849 = vmatprep.subr.mxu0 0.0
        %2850 = vmatpush2.xpose.msra.mxu0 0.0
        %2851 = vmatprep.subr.mxu0 0.0
        %2852 = vmatpush2.xpose.msra.mxu0 0.0
        %2853 = vmatprep.subr.mxu0 0.0
        %2854 = vmatpush2.xpose.msra.mxu0 0.0
        %2855 = vmatprep.mubr.f32.mxu0 0.0
        %v2856 = vand.u32 %v2781, 4294901760
        %v2857 = vsub.f32 %v2781, %v2856
        %v2858 = vand.u32 %v2857, 4294901760
        %v2859 = vsub.f32 %v2857, %v2858
        %v2860 = vand.u32 %v2859, 4294901760
        %2861 = vmatmul.mubr.f32.gmra.mxu0 %v2860
        %v2862 = vpop.f32.mrf.mxu0
        %v2863 = vadd.f32 %v1723, %v2862
        %v2864 = vpop.f32.mrf.mxu0
        %2865 = vmatprep.mubr.f32.mxu0 0.0
        %v2866 = vand.u32 %v2783, 4294901760
        %v2867 = vsub.f32 %v2783, %v2866
        %v2868 = vand.u32 %v2867, 4294901760
        %v2869 = vsub.f32 %v2867, %v2868
        %v2870 = vand.u32 %v2869, 4294901760
        %2871 = vmatmul.mubr.f32.gmra.mxu0 %v2870
        %v2872 = vpop.f32.mrf.mxu0
        %v2873 = vadd.f32 %v1724, %v2872
        %v2874 = vpop.f32.mrf.mxu0
        %2875 = vdwg.mxu0
        %2876 = vmatprep.subr.mxu0 0.0
        %2877 = vmatpush1.xpose.msra.mxu0 0.0
        %2878 = vmatprep.subr.mxu0 0.0
        %2879 = vmatpush1.xpose.msra.mxu0 0.0
        %2880 = vmatprep.subr.mxu0 0.0
        %2881 = vmatpush1.xpose.msra.mxu0 0.0
        %2882 = vmatprep.subr.mxu0 0.0
        %2883 = vmatpush1.xpose.msra.mxu0 0.0
        %2884 = vmatprep.subr.mxu0 0.0
        %2885 = vmatpush1.xpose.msra.mxu0 0.0
        %2886 = vmatprep.subr.mxu0 0.0
        %2887 = vmatpush1.xpose.msra.mxu0 0.0
        %2888 = vmatprep.subr.mxu0 0.0
        %2889 = vmatpush1.xpose.msra.mxu0 0.0
        %2890 = vmatprep.subr.mxu0 0.0
        %2891 = vmatpush1.xpose.msra.mxu0 0.0
        %2892 = vmatprep.subr.mxu0 0.0
        %2893 = vmatpush1.xpose.msra.mxu0 0.0
        %2894 = vmatprep.subr.mxu0 0.0
        %2895 = vmatpush1.xpose.msra.mxu0 0.0
        %2896 = vmatprep.subr.mxu0 0.0
        %2897 = vmatpush1.xpose.msra.mxu0 0.0
        %2898 = vmatprep.subr.mxu0 0.0
        %2899 = vmatpush1.xpose.msra.mxu0 0.0
        %2900 = vmatprep.subr.mxu0 0.0
        %2901 = vmatpush1.xpose.msra.mxu0 0.0
        %2902 = vmatprep.subr.mxu0 0.0
        %2903 = vmatpush1.xpose.msra.mxu0 0.0
        %2904 = vmatprep.subr.mxu0 0.0
        %v2905 = vand.u32 %v2787, 4294901760
        %v2906 = vsub.f32 %v2787, %v2905
        %v2907 = vand.u32 %v2906, 4294901760
        %v2908 = vsub.f32 %v2906, %v2907
        %v2909 = vand.u32 %v2908, 4294901760
        %2910 = vmatpush1.xpose.msra.mxu0 %v2909
        %2911 = vmatprep.subr.mxu0 0.0
        %v2912 = vand.u32 %v2785, 4294901760
        %v2913 = vsub.f32 %v2785, %v2912
        %v2914 = vand.u32 %v2913, 4294901760
        %v2915 = vsub.f32 %v2913, %v2914
        %v2916 = vand.u32 %v2915, 4294901760
        %2917 = vmatpush1.xpose.msra.mxu0 %v2916
        %2918 = vmatprep.subr.mxu0 0.0
        %2919 = vmatpush2.xpose.msra.mxu0 0.0
        %2920 = vmatprep.subr.mxu0 0.0
        %2921 = vmatpush2.xpose.msra.mxu0 0.0
        %2922 = vmatprep.subr.mxu0 0.0
        %2923 = vmatpush2.xpose.msra.mxu0 0.0
        %2924 = vmatprep.subr.mxu0 0.0
        %2925 = vmatpush2.xpose.msra.mxu0 0.0
        %2926 = vmatprep.subr.mxu0 0.0
        %2927 = vmatpush2.xpose.msra.mxu0 0.0
        %2928 = vmatprep.subr.mxu0 0.0
        %2929 = vmatpush2.xpose.msra.mxu0 0.0
        %2930 = vmatprep.subr.mxu0 0.0
        %2931 = vmatpush2.xpose.msra.mxu0 0.0
        %2932 = vmatprep.subr.mxu0 0.0
        %2933 = vmatpush2.xpose.msra.mxu0 0.0
        %2934 = vmatprep.subr.mxu0 0.0
        %2935 = vmatpush2.xpose.msra.mxu0 0.0
        %2936 = vmatprep.subr.mxu0 0.0
        %2937 = vmatpush2.xpose.msra.mxu0 0.0
        %2938 = vmatprep.subr.mxu0 0.0
        %2939 = vmatpush2.xpose.msra.mxu0 0.0
        %2940 = vmatprep.subr.mxu0 0.0
        %2941 = vmatpush2.xpose.msra.mxu0 0.0
        %2942 = vmatprep.subr.mxu0 0.0
        %2943 = vmatpush2.xpose.msra.mxu0 0.0
        %2944 = vmatprep.subr.mxu0 0.0
        %2945 = vmatpush2.xpose.msra.mxu0 0.0
        %2946 = vmatprep.subr.mxu0 0.0
        %2947 = vmatpush2.xpose.msra.mxu0 0.0
        %2948 = vmatprep.subr.mxu0 0.0
        %2949 = vmatpush2.xpose.msra.mxu0 0.0
        %2950 = vmatprep.mubr.f32.mxu0 0.0
        %v2951 = vand.u32 %v2781, 4294901760
        %2952 = vmatmul.mubr.f32.gmra.mxu0 %v2951
        %v2953 = vpop.f32.mrf.mxu0
        %v2954 = vadd.f32 %v2863, %v2953
        %v2955 = vpop.f32.mrf.mxu0
        %2956 = vmatprep.mubr.f32.mxu0 0.0
        %v2957 = vand.u32 %v2783, 4294901760
        %2958 = vmatmul.mubr.f32.gmra.mxu0 %v2957
        %v2959 = vpop.f32.mrf.mxu0
        %v2960 = vadd.f32 %v2873, %v2959
        %v2961 = vpop.f32.mrf.mxu0
        %2962 = vdwg.mxu0
        %2963 = vmatprep.subr.mxu0 0.0
        %2964 = vmatpush1.xpose.msra.mxu0 0.0
        %2965 = vmatprep.subr.mxu0 0.0
        %2966 = vmatpush1.xpose.msra.mxu0 0.0
        %2967 = vmatprep.subr.mxu0 0.0
        %2968 = vmatpush1.xpose.msra.mxu0 0.0
        %2969 = vmatprep.subr.mxu0 0.0
        %2970 = vmatpush1.xpose.msra.mxu0 0.0
        %2971 = vmatprep.subr.mxu0 0.0
        %2972 = vmatpush1.xpose.msra.mxu0 0.0
        %2973 = vmatprep.subr.mxu0 0.0
        %2974 = vmatpush1.xpose.msra.mxu0 0.0
        %2975 = vmatprep.subr.mxu0 0.0
        %2976 = vmatpush1.xpose.msra.mxu0 0.0
        %2977 = vmatprep.subr.mxu0 0.0
        %2978 = vmatpush1.xpose.msra.mxu0 0.0
        %2979 = vmatprep.subr.mxu0 0.0
        %2980 = vmatpush1.xpose.msra.mxu0 0.0
        %2981 = vmatprep.subr.mxu0 0.0
        %2982 = vmatpush1.xpose.msra.mxu0 0.0
        %2983 = vmatprep.subr.mxu0 0.0
        %2984 = vmatpush1.xpose.msra.mxu0 0.0
        %2985 = vmatprep.subr.mxu0 0.0
        %2986 = vmatpush1.xpose.msra.mxu0 0.0
        %2987 = vmatprep.subr.mxu0 0.0
        %2988 = vmatpush1.xpose.msra.mxu0 0.0
        %2989 = vmatprep.subr.mxu0 0.0
        %2990 = vmatpush1.xpose.msra.mxu0 0.0
        %2991 = vmatprep.subr.mxu0 0.0
        %v2992 = vand.u32 %v2787, 4294901760
        %v2993 = vsub.f32 %v2787, %v2992
        %2994 = vmatpush1.xpose.msra.mxu0 %v2993
        %2995 = vmatprep.subr.mxu0 0.0
        %v2996 = vand.u32 %v2785, 4294901760
        %v2997 = vsub.f32 %v2785, %v2996
        %2998 = vmatpush1.xpose.msra.mxu0 %v2997
        %2999 = vmatprep.subr.mxu0 0.0
        %3000 = vmatpush2.xpose.msra.mxu0 0.0
        %3001 = vmatprep.subr.mxu0 0.0
        %3002 = vmatpush2.xpose.msra.mxu0 0.0
        %3003 = vmatprep.subr.mxu0 0.0
        %3004 = vmatpush2.xpose.msra.mxu0 0.0
        %3005 = vmatprep.subr.mxu0 0.0
        %3006 = vmatpush2.xpose.msra.mxu0 0.0
        %3007 = vmatprep.subr.mxu0 0.0
        %3008 = vmatpush2.xpose.msra.mxu0 0.0
        %3009 = vmatprep.subr.mxu0 0.0
        %3010 = vmatpush2.xpose.msra.mxu0 0.0
        %3011 = vmatprep.subr.mxu0 0.0
        %3012 = vmatpush2.xpose.msra.mxu0 0.0
        %3013 = vmatprep.subr.mxu0 0.0
        %3014 = vmatpush2.xpose.msra.mxu0 0.0
        %3015 = vmatprep.subr.mxu0 0.0
        %3016 = vmatpush2.xpose.msra.mxu0 0.0
        %3017 = vmatprep.subr.mxu0 0.0
        %3018 = vmatpush2.xpose.msra.mxu0 0.0
        %3019 = vmatprep.subr.mxu0 0.0
        %3020 = vmatpush2.xpose.msra.mxu0 0.0
        %3021 = vmatprep.subr.mxu0 0.0
        %3022 = vmatpush2.xpose.msra.mxu0 0.0
        %3023 = vmatprep.subr.mxu0 0.0
        %3024 = vmatpush2.xpose.msra.mxu0 0.0
        %3025 = vmatprep.subr.mxu0 0.0
        %3026 = vmatpush2.xpose.msra.mxu0 0.0
        %3027 = vmatprep.subr.mxu0 0.0
        %3028 = vmatpush2.xpose.msra.mxu0 0.0
        %3029 = vmatprep.subr.mxu0 0.0
        %3030 = vmatpush2.xpose.msra.mxu0 0.0
        %3031 = vmatprep.mubr.f32.mxu0 0.0
        %v3032 = vand.u32 %v2781, 4294901760
        %v3033 = vsub.f32 %v2781, %v3032
        %3034 = vmatmul.mubr.f32.gmra.mxu0 %v3033
        %v3035 = vpop.f32.mrf.mxu0
        %v3036 = vadd.f32 %v2954, %v3035
        %v3037 = vpop.f32.mrf.mxu0
        %3038 = vmatprep.mubr.f32.mxu0 0.0
        %v3039 = vand.u32 %v2783, 4294901760
        %v3040 = vsub.f32 %v2783, %v3039
        %3041 = vmatmul.mubr.f32.gmra.mxu0 %v3040
        %v3042 = vpop.f32.mrf.mxu0
        %v3043 = vadd.f32 %v2960, %v3042
        %v3044 = vpop.f32.mrf.mxu0
        %3045 = vdwg.mxu0
        %3046 = vmatprep.subr.mxu0 0.0
        %3047 = vmatpush1.xpose.msra.mxu0 0.0
        %3048 = vmatprep.subr.mxu0 0.0
        %3049 = vmatpush1.xpose.msra.mxu0 0.0
        %3050 = vmatprep.subr.mxu0 0.0
        %3051 = vmatpush1.xpose.msra.mxu0 0.0
        %3052 = vmatprep.subr.mxu0 0.0
        %3053 = vmatpush1.xpose.msra.mxu0 0.0
        %3054 = vmatprep.subr.mxu0 0.0
        %3055 = vmatpush1.xpose.msra.mxu0 0.0
        %3056 = vmatprep.subr.mxu0 0.0
        %3057 = vmatpush1.xpose.msra.mxu0 0.0
        %3058 = vmatprep.subr.mxu0 0.0
        %3059 = vmatpush1.xpose.msra.mxu0 0.0
        %3060 = vmatprep.subr.mxu0 0.0
        %3061 = vmatpush1.xpose.msra.mxu0 0.0
        %3062 = vmatprep.subr.mxu0 0.0
        %3063 = vmatpush1.xpose.msra.mxu0 0.0
        %3064 = vmatprep.subr.mxu0 0.0
        %3065 = vmatpush1.xpose.msra.mxu0 0.0
        %3066 = vmatprep.subr.mxu0 0.0
        %3067 = vmatpush1.xpose.msra.mxu0 0.0
        %3068 = vmatprep.subr.mxu0 0.0
        %3069 = vmatpush1.xpose.msra.mxu0 0.0
        %3070 = vmatprep.subr.mxu0 0.0
        %3071 = vmatpush1.xpose.msra.mxu0 0.0
        %3072 = vmatprep.subr.mxu0 0.0
        %3073 = vmatpush1.xpose.msra.mxu0 0.0
        %3074 = vmatprep.subr.mxu0 0.0
        %v3075 = vand.u32 %v2787, 4294901760
        %3076 = vmatpush1.xpose.msra.mxu0 %v3075
        %3077 = vmatprep.subr.mxu0 0.0
        %v3078 = vand.u32 %v2785, 4294901760
        %3079 = vmatpush1.xpose.msra.mxu0 %v3078
        %3080 = vmatprep.subr.mxu0 0.0
        %3081 = vmatpush2.xpose.msra.mxu0 0.0
        %3082 = vmatprep.subr.mxu0 0.0
        %3083 = vmatpush2.xpose.msra.mxu0 0.0
        %3084 = vmatprep.subr.mxu0 0.0
        %3085 = vmatpush2.xpose.msra.mxu0 0.0
        %3086 = vmatprep.subr.mxu0 0.0
        %3087 = vmatpush2.xpose.msra.mxu0 0.0
        %3088 = vmatprep.subr.mxu0 0.0
        %3089 = vmatpush2.xpose.msra.mxu0 0.0
        %3090 = vmatprep.subr.mxu0 0.0
        %3091 = vmatpush2.xpose.msra.mxu0 0.0
        %3092 = vmatprep.subr.mxu0 0.0
        %3093 = vmatpush2.xpose.msra.mxu0 0.0
        %3094 = vmatprep.subr.mxu0 0.0
        %3095 = vmatpush2.xpose.msra.mxu0 0.0
        %3096 = vmatprep.subr.mxu0 0.0
        %3097 = vmatpush2.xpose.msra.mxu0 0.0
        %3098 = vmatprep.subr.mxu0 0.0
        %3099 = vmatpush2.xpose.msra.mxu0 0.0
        %3100 = vmatprep.subr.mxu0 0.0
        %3101 = vmatpush2.xpose.msra.mxu0 0.0
        %3102 = vmatprep.subr.mxu0 0.0
        %3103 = vmatpush2.xpose.msra.mxu0 0.0
        %3104 = vmatprep.subr.mxu0 0.0
        %3105 = vmatpush2.xpose.msra.mxu0 0.0
        %3106 = vmatprep.subr.mxu0 0.0
        %3107 = vmatpush2.xpose.msra.mxu0 0.0
        %3108 = vmatprep.subr.mxu0 0.0
        %3109 = vmatpush2.xpose.msra.mxu0 0.0
        %3110 = vmatprep.subr.mxu0 0.0
        %3111 = vmatpush2.xpose.msra.mxu0 0.0
        %3112 = vmatprep.mubr.f32.mxu0 0.0
        %v3113 = vand.u32 %v2781, 4294901760
        %v3114 = vsub.f32 %v2781, %v3113
        %v3115 = vand.u32 %v3114, 4294901760
        %3116 = vmatmul.mubr.f32.gmra.mxu0 %v3115
        %v3117 = vpop.f32.mrf.mxu0
        %v3118 = vadd.f32 %v3036, %v3117
        %v3119 = vpop.f32.mrf.mxu0
        %3120 = vmatprep.mubr.f32.mxu0 0.0
        %v3121 = vand.u32 %v2783, 4294901760
        %v3122 = vsub.f32 %v2783, %v3121
        %v3123 = vand.u32 %v3122, 4294901760
        %3124 = vmatmul.mubr.f32.gmra.mxu0 %v3123
        %v3125 = vpop.f32.mrf.mxu0
        %v3126 = vadd.f32 %v3043, %v3125
        %v3127 = vpop.f32.mrf.mxu0
        %3128 = vdwg.mxu0
        %3129 = vmatprep.subr.mxu0 0.0
        %3130 = vmatpush1.xpose.msra.mxu0 0.0
        %3131 = vmatprep.subr.mxu0 0.0
        %3132 = vmatpush1.xpose.msra.mxu0 0.0
        %3133 = vmatprep.subr.mxu0 0.0
        %3134 = vmatpush1.xpose.msra.mxu0 0.0
        %3135 = vmatprep.subr.mxu0 0.0
        %3136 = vmatpush1.xpose.msra.mxu0 0.0
        %3137 = vmatprep.subr.mxu0 0.0
        %3138 = vmatpush1.xpose.msra.mxu0 0.0
        %3139 = vmatprep.subr.mxu0 0.0
        %3140 = vmatpush1.xpose.msra.mxu0 0.0
        %3141 = vmatprep.subr.mxu0 0.0
        %3142 = vmatpush1.xpose.msra.mxu0 0.0
        %3143 = vmatprep.subr.mxu0 0.0
        %3144 = vmatpush1.xpose.msra.mxu0 0.0
        %3145 = vmatprep.subr.mxu0 0.0
        %3146 = vmatpush1.xpose.msra.mxu0 0.0
        %3147 = vmatprep.subr.mxu0 0.0
        %3148 = vmatpush1.xpose.msra.mxu0 0.0
        %3149 = vmatprep.subr.mxu0 0.0
        %3150 = vmatpush1.xpose.msra.mxu0 0.0
        %3151 = vmatprep.subr.mxu0 0.0
        %3152 = vmatpush1.xpose.msra.mxu0 0.0
        %3153 = vmatprep.subr.mxu0 0.0
        %3154 = vmatpush1.xpose.msra.mxu0 0.0
        %3155 = vmatprep.subr.mxu0 0.0
        %3156 = vmatpush1.xpose.msra.mxu0 0.0
        %3157 = vmatprep.subr.mxu0 0.0
        %v3158 = vand.u32 %v2787, 4294901760
        %v3159 = vsub.f32 %v2787, %v3158
        %v3160 = vand.u32 %v3159, 4294901760
        %3161 = vmatpush1.xpose.msra.mxu0 %v3160
        %3162 = vmatprep.subr.mxu0 0.0
        %v3163 = vand.u32 %v2785, 4294901760
        %v3164 = vsub.f32 %v2785, %v3163
        %v3165 = vand.u32 %v3164, 4294901760
        %3166 = vmatpush1.xpose.msra.mxu0 %v3165
        %3167 = vmatprep.subr.mxu0 0.0
        %3168 = vmatpush2.xpose.msra.mxu0 0.0
        %3169 = vmatprep.subr.mxu0 0.0
        %3170 = vmatpush2.xpose.msra.mxu0 0.0
        %3171 = vmatprep.subr.mxu0 0.0
        %3172 = vmatpush2.xpose.msra.mxu0 0.0
        %3173 = vmatprep.subr.mxu0 0.0
        %3174 = vmatpush2.xpose.msra.mxu0 0.0
        %3175 = vmatprep.subr.mxu0 0.0
        %3176 = vmatpush2.xpose.msra.mxu0 0.0
        %3177 = vmatprep.subr.mxu0 0.0
        %3178 = vmatpush2.xpose.msra.mxu0 0.0
        %3179 = vmatprep.subr.mxu0 0.0
        %3180 = vmatpush2.xpose.msra.mxu0 0.0
        %3181 = vmatprep.subr.mxu0 0.0
        %3182 = vmatpush2.xpose.msra.mxu0 0.0
        %3183 = vmatprep.subr.mxu0 0.0
        %3184 = vmatpush2.xpose.msra.mxu0 0.0
        %3185 = vmatprep.subr.mxu0 0.0
        %3186 = vmatpush2.xpose.msra.mxu0 0.0
        %3187 = vmatprep.subr.mxu0 0.0
        %3188 = vmatpush2.xpose.msra.mxu0 0.0
        %3189 = vmatprep.subr.mxu0 0.0
        %3190 = vmatpush2.xpose.msra.mxu0 0.0
        %3191 = vmatprep.subr.mxu0 0.0
        %3192 = vmatpush2.xpose.msra.mxu0 0.0
        %3193 = vmatprep.subr.mxu0 0.0
        %3194 = vmatpush2.xpose.msra.mxu0 0.0
        %3195 = vmatprep.subr.mxu0 0.0
        %3196 = vmatpush2.xpose.msra.mxu0 0.0
        %3197 = vmatprep.subr.mxu0 0.0
        %3198 = vmatpush2.xpose.msra.mxu0 0.0
        %3199 = vmatprep.mubr.f32.mxu0 0.0
        %v3200 = vand.u32 %v2781, 4294901760
        %3201 = vmatmul.mubr.f32.gmra.mxu0 %v3200
        %v3202 = vpop.f32.mrf.mxu0
        %v3203 = vadd.f32 %v3118, %v3202
        %v3204 = vpop.f32.mrf.mxu0
        %3205 = vmatprep.mubr.f32.mxu0 0.0
        %v3206 = vand.u32 %v2783, 4294901760
        %3207 = vmatmul.mubr.f32.gmra.mxu0 %v3206
        %v3208 = vpop.f32.mrf.mxu0
        %v3209 = vadd.f32 %v3126, %v3208
        %v3210 = vpop.f32.mrf.mxu0
        %3211 = vdwg.mxu0
        %3212 = vmatprep.subr.mxu0 0.0
        %3213 = vmatpush1.xpose.msra.mxu0 0.0
        %3214 = vmatprep.subr.mxu0 0.0
        %3215 = vmatpush1.xpose.msra.mxu0 0.0
        %3216 = vmatprep.subr.mxu0 0.0
        %3217 = vmatpush1.xpose.msra.mxu0 0.0
        %3218 = vmatprep.subr.mxu0 0.0
        %3219 = vmatpush1.xpose.msra.mxu0 0.0
        %3220 = vmatprep.subr.mxu0 0.0
        %3221 = vmatpush1.xpose.msra.mxu0 0.0
        %3222 = vmatprep.subr.mxu0 0.0
        %3223 = vmatpush1.xpose.msra.mxu0 0.0
        %3224 = vmatprep.subr.mxu0 0.0
        %3225 = vmatpush1.xpose.msra.mxu0 0.0
        %3226 = vmatprep.subr.mxu0 0.0
        %3227 = vmatpush1.xpose.msra.mxu0 0.0
        %3228 = vmatprep.subr.mxu0 0.0
        %3229 = vmatpush1.xpose.msra.mxu0 0.0
        %3230 = vmatprep.subr.mxu0 0.0
        %3231 = vmatpush1.xpose.msra.mxu0 0.0
        %3232 = vmatprep.subr.mxu0 0.0
        %3233 = vmatpush1.xpose.msra.mxu0 0.0
        %3234 = vmatprep.subr.mxu0 0.0
        %3235 = vmatpush1.xpose.msra.mxu0 0.0
        %3236 = vmatprep.subr.mxu0 0.0
        %3237 = vmatpush1.xpose.msra.mxu0 0.0
        %3238 = vmatprep.subr.mxu0 0.0
        %3239 = vmatpush1.xpose.msra.mxu0 0.0
        %3240 = vmatprep.subr.mxu0 0.0
        %v3241 = vand.u32 %v2787, 4294901760
        %3242 = vmatpush1.xpose.msra.mxu0 %v3241
        %3243 = vmatprep.subr.mxu0 0.0
        %v3244 = vand.u32 %v2785, 4294901760
        %3245 = vmatpush1.xpose.msra.mxu0 %v3244
        %3246 = vmatprep.subr.mxu0 0.0
        %3247 = vmatpush2.xpose.msra.mxu0 0.0
        %3248 = vmatprep.subr.mxu0 0.0
        %3249 = vmatpush2.xpose.msra.mxu0 0.0
        %3250 = vmatprep.subr.mxu0 0.0
        %3251 = vmatpush2.xpose.msra.mxu0 0.0
        %3252 = vmatprep.subr.mxu0 0.0
        %3253 = vmatpush2.xpose.msra.mxu0 0.0
        %3254 = vmatprep.subr.mxu0 0.0
        %3255 = vmatpush2.xpose.msra.mxu0 0.0
        %3256 = vmatprep.subr.mxu0 0.0
        %3257 = vmatpush2.xpose.msra.mxu0 0.0
        %3258 = vmatprep.subr.mxu0 0.0
        %3259 = vmatpush2.xpose.msra.mxu0 0.0
        %3260 = vmatprep.subr.mxu0 0.0
        %3261 = vmatpush2.xpose.msra.mxu0 0.0
        %3262 = vmatprep.subr.mxu0 0.0
        %3263 = vmatpush2.xpose.msra.mxu0 0.0
        %3264 = vmatprep.subr.mxu0 0.0
        %3265 = vmatpush2.xpose.msra.mxu0 0.0
        %3266 = vmatprep.subr.mxu0 0.0
        %3267 = vmatpush2.xpose.msra.mxu0 0.0
        %3268 = vmatprep.subr.mxu0 0.0
        %3269 = vmatpush2.xpose.msra.mxu0 0.0
        %3270 = vmatprep.subr.mxu0 0.0
        %3271 = vmatpush2.xpose.msra.mxu0 0.0
        %3272 = vmatprep.subr.mxu0 0.0
        %3273 = vmatpush2.xpose.msra.mxu0 0.0
        %3274 = vmatprep.subr.mxu0 0.0
        %3275 = vmatpush2.xpose.msra.mxu0 0.0
        %3276 = vmatprep.subr.mxu0 0.0
        %3277 = vmatpush2.xpose.msra.mxu0 0.0
        %3278 = vmatprep.mubr.f32.mxu0 0.0
        %v3279 = vand.u32 %v2781, 4294901760
        %3280 = vmatmul.mubr.f32.gmra.mxu0 %v3279
        %v3281 = vpop.f32.mrf.mxu0
        %v3282 = vadd.f32 %v3203, %v3281
        %v3283 = vpop.f32.mrf.mxu0
        %3284 = vmatprep.mubr.f32.mxu0 0.0
        %v3285 = vand.u32 %v2783, 4294901760
        %3286 = vmatmul.mubr.f32.gmra.mxu0 %v3285
        %v3287 = vpop.f32.mrf.mxu0
        %v3288 = vadd.f32 %v3209, %v3287
        %v3289 = vpop.f32.mrf.mxu0
        %3290 = vdwg.mxu0
        %v3291 = vsel %vm2242, %v3282, -inf
        %3292 = vmax.xlane.f32.xlu0 %v3291
        %v3293 = vpop.xlane.xlu0 %3292
        %v3294 = vsel %vm2242, %v3288, -inf
        %3295 = vmax.xlane.f32.xlu0 %v3294
        %v3296 = vpop.xlane.xlu0 %3295
        %v3297 = vsub.f32 %v3282, %v3293
        %v3298 = vsub.f32 %v3288, %v3296
        %v3299 = vmul.f32 %v3297, 1.442695
        %v3300 = vpow.pop %v3299
        %v3301 = vmul.f32 %v3298, 1.442695
        %v3302 = vpow.pop %v3301
        %v3303 = vsel %vm2242, %v3300, 0.0
        %3304 = vadd.xlane.f32.xlu0 %v3303
        %v3305 = vpop.xlane.xlu0 %3304
        %v3306 = vsel %vm2242, %v3302, 0.0
        %3307 = vadd.xlane.f32.xlu0 %v3306
        %v3308 = vpop.xlane.xlu0 %3307
        %v3309 = vrcp.pop %v3305
        %v3310 = vrcp.pop %v3308
        %v3311 = vmul.f32 %v3300, %v3309
        %v3312 = vmul.f32 %v3302, %v3310
        %3315 = vrot.lane.b32.xlu0 %v1714, 120
        %v3316 = vpop.permute.xlu0 %3315
        %3317 = vrot.lane.b32.xlu0 %v1720, 120
        %v3318 = vpop.permute.xlu0 %3317
        %v3322 = vsel %vm2242, %v3311, 0
        %v3325 = vsel %vm2242, %v3312, 0
        %3327 = vmatprep.subr.mxu0 0.0
        %3328 = vmatpush1.msra.mxu0 0.0
        %3329 = vmatprep.subr.mxu0 0.0
        %3330 = vmatpush1.msra.mxu0 0.0
        %3331 = vmatprep.subr.mxu0 0.0
        %3332 = vmatpush1.msra.mxu0 0.0
        %3333 = vmatprep.subr.mxu0 0.0
        %3334 = vmatpush1.msra.mxu0 0.0
        %3335 = vmatprep.subr.mxu0 0.0
        %3336 = vmatpush1.msra.mxu0 0.0
        %3337 = vmatprep.subr.mxu0 0.0
        %3338 = vmatpush1.msra.mxu0 0.0
        %3339 = vmatprep.subr.mxu0 0.0
        %3340 = vmatpush1.msra.mxu0 0.0
        %3341 = vmatprep.subr.mxu0 0.0
        %3342 = vmatpush1.msra.mxu0 0.0
        %3343 = vmatprep.subr.mxu0 0.0
        %3344 = vmatpush1.msra.mxu0 0.0
        %3345 = vmatprep.subr.mxu0 0.0
        %3346 = vmatpush1.msra.mxu0 0.0
        %3347 = vmatprep.subr.mxu0 0.0
        %3348 = vmatpush1.msra.mxu0 0.0
        %3349 = vmatprep.subr.mxu0 0.0
        %3350 = vmatpush1.msra.mxu0 0.0
        %3351 = vmatprep.subr.mxu0 0.0
        %3352 = vmatpush1.msra.mxu0 0.0
        %3353 = vmatprep.subr.mxu0 0.0
        %3354 = vmatpush1.msra.mxu0 0.0
        %3355 = vmatprep.subr.mxu0 0.0
        %v3356 = vand.u32 %v3318, 4294901760
        %3357 = vmatpush1.msra.mxu0 %v3356
        %3358 = vmatprep.subr.mxu0 0.0
        %v3359 = vand.u32 %v3316, 4294901760
        %3360 = vmatpush1.msra.mxu0 %v3359
        %3361 = vmatprep.subr.mxu0 0.0
        %3362 = vmatpush2.msra.mxu0 0.0
        %3363 = vmatprep.subr.mxu0 0.0
        %3364 = vmatpush2.msra.mxu0 0.0
        %3365 = vmatprep.subr.mxu0 0.0
        %3366 = vmatpush2.msra.mxu0 0.0
        %3367 = vmatprep.subr.mxu0 0.0
        %3368 = vmatpush2.msra.mxu0 0.0
        %3369 = vmatprep.subr.mxu0 0.0
        %3370 = vmatpush2.msra.mxu0 0.0
        %3371 = vmatprep.subr.mxu0 0.0
        %3372 = vmatpush2.msra.mxu0 0.0
        %3373 = vmatprep.subr.mxu0 0.0
        %3374 = vmatpush2.msra.mxu0 0.0
        %3375 = vmatprep.subr.mxu0 0.0
        %3376 = vmatpush2.msra.mxu0 0.0
        %3377 = vmatprep.subr.mxu0 0.0
        %3378 = vmatpush2.msra.mxu0 0.0
        %3379 = vmatprep.subr.mxu0 0.0
        %3380 = vmatpush2.msra.mxu0 0.0
        %3381 = vmatprep.subr.mxu0 0.0
        %3382 = vmatpush2.msra.mxu0 0.0
        %3383 = vmatprep.subr.mxu0 0.0
        %3384 = vmatpush2.msra.mxu0 0.0
        %3385 = vmatprep.subr.mxu0 0.0
        %3386 = vmatpush2.msra.mxu0 0.0
        %3387 = vmatprep.subr.mxu0 0.0
        %3388 = vmatpush2.msra.mxu0 0.0
        %3389 = vmatprep.subr.mxu0 0.0
        %3390 = vmatpush2.msra.mxu0 0.0
        %3391 = vmatprep.subr.mxu0 0.0
        %3392 = vmatpush2.msra.mxu0 0.0
        %3393 = vmatprep.mubr.f32.mxu0 0.0
        %v3394 = vand.u32 %v3322, 4294901760
        %v3395 = vsub.f32 %v3322, %v3394
        %v3396 = vand.u32 %v3395, 4294901760
        %v3397 = vsub.f32 %v3395, %v3396
        %v3398 = vand.u32 %v3397, 4294901760
        %3399 = vmatmul.mubr.f32.gmra.mxu0 %v3398
        %v3400 = vpop.f32.mrf.mxu0
        %v3401 = vadd.f32 0.0, %v3400
        %v3402 = vpop.f32.mrf.mxu0
        %3403 = vmatprep.mubr.f32.mxu0 0.0
        %v3404 = vand.u32 %v3325, 4294901760
        %v3405 = vsub.f32 %v3325, %v3404
        %v3406 = vand.u32 %v3405, 4294901760
        %v3407 = vsub.f32 %v3405, %v3406
        %v3408 = vand.u32 %v3407, 4294901760
        %3409 = vmatmul.mubr.f32.gmra.mxu0 %v3408
        %v3410 = vpop.f32.mrf.mxu0
        %v3411 = vadd.f32 0.0, %v3410
        %v3412 = vpop.f32.mrf.mxu0
        %3413 = vdwg.mxu0
        %3414 = vmatprep.subr.mxu0 0.0
        %3415 = vmatpush1.msra.mxu0 0.0
        %3416 = vmatprep.subr.mxu0 0.0
        %3417 = vmatpush1.msra.mxu0 0.0
        %3418 = vmatprep.subr.mxu0 0.0
        %3419 = vmatpush1.msra.mxu0 0.0
        %3420 = vmatprep.subr.mxu0 0.0
        %3421 = vmatpush1.msra.mxu0 0.0
        %3422 = vmatprep.subr.mxu0 0.0
        %3423 = vmatpush1.msra.mxu0 0.0
        %3424 = vmatprep.subr.mxu0 0.0
        %3425 = vmatpush1.msra.mxu0 0.0
        %3426 = vmatprep.subr.mxu0 0.0
        %3427 = vmatpush1.msra.mxu0 0.0
        %3428 = vmatprep.subr.mxu0 0.0
        %3429 = vmatpush1.msra.mxu0 0.0
        %3430 = vmatprep.subr.mxu0 0.0
        %3431 = vmatpush1.msra.mxu0 0.0
        %3432 = vmatprep.subr.mxu0 0.0
        %3433 = vmatpush1.msra.mxu0 0.0
        %3434 = vmatprep.subr.mxu0 0.0
        %3435 = vmatpush1.msra.mxu0 0.0
        %3436 = vmatprep.subr.mxu0 0.0
        %3437 = vmatpush1.msra.mxu0 0.0
        %3438 = vmatprep.subr.mxu0 0.0
        %3439 = vmatpush1.msra.mxu0 0.0
        %3440 = vmatprep.subr.mxu0 0.0
        %3441 = vmatpush1.msra.mxu0 0.0
        %3442 = vmatprep.subr.mxu0 0.0
        %v3443 = vand.u32 %v3318, 4294901760
        %v3444 = vsub.f32 %v3318, %v3443
        %v3445 = vand.u32 %v3444, 4294901760
        %v3446 = vsub.f32 %v3444, %v3445
        %v3447 = vand.u32 %v3446, 4294901760
        %3448 = vmatpush1.msra.mxu0 %v3447
        %3449 = vmatprep.subr.mxu0 0.0
        %v3450 = vand.u32 %v3316, 4294901760
        %v3451 = vsub.f32 %v3316, %v3450
        %v3452 = vand.u32 %v3451, 4294901760
        %v3453 = vsub.f32 %v3451, %v3452
        %v3454 = vand.u32 %v3453, 4294901760
        %3455 = vmatpush1.msra.mxu0 %v3454
        %3456 = vmatprep.subr.mxu0 0.0
        %3457 = vmatpush2.msra.mxu0 0.0
        %3458 = vmatprep.subr.mxu0 0.0
        %3459 = vmatpush2.msra.mxu0 0.0
        %3460 = vmatprep.subr.mxu0 0.0
        %3461 = vmatpush2.msra.mxu0 0.0
        %3462 = vmatprep.subr.mxu0 0.0
        %3463 = vmatpush2.msra.mxu0 0.0
        %3464 = vmatprep.subr.mxu0 0.0
        %3465 = vmatpush2.msra.mxu0 0.0
        %3466 = vmatprep.subr.mxu0 0.0
        %3467 = vmatpush2.msra.mxu0 0.0
        %3468 = vmatprep.subr.mxu0 0.0
        %3469 = vmatpush2.msra.mxu0 0.0
        %3470 = vmatprep.subr.mxu0 0.0
        %3471 = vmatpush2.msra.mxu0 0.0
        %3472 = vmatprep.subr.mxu0 0.0
        %3473 = vmatpush2.msra.mxu0 0.0
        %3474 = vmatprep.subr.mxu0 0.0
        %3475 = vmatpush2.msra.mxu0 0.0
        %3476 = vmatprep.subr.mxu0 0.0
        %3477 = vmatpush2.msra.mxu0 0.0
        %3478 = vmatprep.subr.mxu0 0.0
        %3479 = vmatpush2.msra.mxu0 0.0
        %3480 = vmatprep.subr.mxu0 0.0
        %3481 = vmatpush2.msra.mxu0 0.0
        %3482 = vmatprep.subr.mxu0 0.0
        %3483 = vmatpush2.msra.mxu0 0.0
        %3484 = vmatprep.subr.mxu0 0.0
        %3485 = vmatpush2.msra.mxu0 0.0
        %3486 = vmatprep.subr.mxu0 0.0
        %3487 = vmatpush2.msra.mxu0 0.0
        %3488 = vmatprep.mubr.f32.mxu0 0.0
        %v3489 = vand.u32 %v3322, 4294901760
        %3490 = vmatmul.mubr.f32.gmra.mxu0 %v3489
        %v3491 = vpop.f32.mrf.mxu0
        %v3492 = vadd.f32 %v3401, %v3491
        %v3493 = vpop.f32.mrf.mxu0
        %3494 = vmatprep.mubr.f32.mxu0 0.0
        %v3495 = vand.u32 %v3325, 4294901760
        %3496 = vmatmul.mubr.f32.gmra.mxu0 %v3495
        %v3497 = vpop.f32.mrf.mxu0
        %v3498 = vadd.f32 %v3411, %v3497
        %v3499 = vpop.f32.mrf.mxu0
        %3500 = vdwg.mxu0
        %3501 = vmatprep.subr.mxu0 0.0
        %3502 = vmatpush1.msra.mxu0 0.0
        %3503 = vmatprep.subr.mxu0 0.0
        %3504 = vmatpush1.msra.mxu0 0.0
        %3505 = vmatprep.subr.mxu0 0.0
        %3506 = vmatpush1.msra.mxu0 0.0
        %3507 = vmatprep.subr.mxu0 0.0
        %3508 = vmatpush1.msra.mxu0 0.0
        %3509 = vmatprep.subr.mxu0 0.0
        %3510 = vmatpush1.msra.mxu0 0.0
        %3511 = vmatprep.subr.mxu0 0.0
        %3512 = vmatpush1.msra.mxu0 0.0
        %3513 = vmatprep.subr.mxu0 0.0
        %3514 = vmatpush1.msra.mxu0 0.0
        %3515 = vmatprep.subr.mxu0 0.0
        %3516 = vmatpush1.msra.mxu0 0.0
        %3517 = vmatprep.subr.mxu0 0.0
        %3518 = vmatpush1.msra.mxu0 0.0
        %3519 = vmatprep.subr.mxu0 0.0
        %3520 = vmatpush1.msra.mxu0 0.0
        %3521 = vmatprep.subr.mxu0 0.0
        %3522 = vmatpush1.msra.mxu0 0.0
        %3523 = vmatprep.subr.mxu0 0.0
        %3524 = vmatpush1.msra.mxu0 0.0
        %3525 = vmatprep.subr.mxu0 0.0
        %3526 = vmatpush1.msra.mxu0 0.0
        %3527 = vmatprep.subr.mxu0 0.0
        %3528 = vmatpush1.msra.mxu0 0.0
        %3529 = vmatprep.subr.mxu0 0.0
        %v3530 = vand.u32 %v3318, 4294901760
        %v3531 = vsub.f32 %v3318, %v3530
        %3532 = vmatpush1.msra.mxu0 %v3531
        %3533 = vmatprep.subr.mxu0 0.0
        %v3534 = vand.u32 %v3316, 4294901760
        %v3535 = vsub.f32 %v3316, %v3534
        %3536 = vmatpush1.msra.mxu0 %v3535
        %3537 = vmatprep.subr.mxu0 0.0
        %3538 = vmatpush2.msra.mxu0 0.0
        %3539 = vmatprep.subr.mxu0 0.0
        %3540 = vmatpush2.msra.mxu0 0.0
        %3541 = vmatprep.subr.mxu0 0.0
        %3542 = vmatpush2.msra.mxu0 0.0
        %3543 = vmatprep.subr.mxu0 0.0
        %3544 = vmatpush2.msra.mxu0 0.0
        %3545 = vmatprep.subr.mxu0 0.0
        %3546 = vmatpush2.msra.mxu0 0.0
        %3547 = vmatprep.subr.mxu0 0.0
        %3548 = vmatpush2.msra.mxu0 0.0
        %3549 = vmatprep.subr.mxu0 0.0
        %3550 = vmatpush2.msra.mxu0 0.0
        %3551 = vmatprep.subr.mxu0 0.0
        %3552 = vmatpush2.msra.mxu0 0.0
        %3553 = vmatprep.subr.mxu0 0.0
        %3554 = vmatpush2.msra.mxu0 0.0
        %3555 = vmatprep.subr.mxu0 0.0
        %3556 = vmatpush2.msra.mxu0 0.0
        %3557 = vmatprep.subr.mxu0 0.0
        %3558 = vmatpush2.msra.mxu0 0.0
        %3559 = vmatprep.subr.mxu0 0.0
        %3560 = vmatpush2.msra.mxu0 0.0
        %3561 = vmatprep.subr.mxu0 0.0
        %3562 = vmatpush2.msra.mxu0 0.0
        %3563 = vmatprep.subr.mxu0 0.0
        %3564 = vmatpush2.msra.mxu0 0.0
        %3565 = vmatprep.subr.mxu0 0.0
        %3566 = vmatpush2.msra.mxu0 0.0
        %3567 = vmatprep.subr.mxu0 0.0
        %3568 = vmatpush2.msra.mxu0 0.0
        %3569 = vmatprep.mubr.f32.mxu0 0.0
        %v3570 = vand.u32 %v3322, 4294901760
        %v3571 = vsub.f32 %v3322, %v3570
        %3572 = vmatmul.mubr.f32.gmra.mxu0 %v3571
        %v3573 = vpop.f32.mrf.mxu0
        %v3574 = vadd.f32 %v3492, %v3573
        %v3575 = vpop.f32.mrf.mxu0
        %3576 = vmatprep.mubr.f32.mxu0 0.0
        %v3577 = vand.u32 %v3325, 4294901760
        %v3578 = vsub.f32 %v3325, %v3577
        %3579 = vmatmul.mubr.f32.gmra.mxu0 %v3578
        %v3580 = vpop.f32.mrf.mxu0
        %v3581 = vadd.f32 %v3498, %v3580
        %v3582 = vpop.f32.mrf.mxu0
        %3583 = vdwg.mxu0
        %3584 = vmatprep.subr.mxu0 0.0
        %3585 = vmatpush1.msra.mxu0 0.0
        %3586 = vmatprep.subr.mxu0 0.0
        %3587 = vmatpush1.msra.mxu0 0.0
        %3588 = vmatprep.subr.mxu0 0.0
        %3589 = vmatpush1.msra.mxu0 0.0
        %3590 = vmatprep.subr.mxu0 0.0
        %3591 = vmatpush1.msra.mxu0 0.0
        %3592 = vmatprep.subr.mxu0 0.0
        %3593 = vmatpush1.msra.mxu0 0.0
        %3594 = vmatprep.subr.mxu0 0.0
        %3595 = vmatpush1.msra.mxu0 0.0
        %3596 = vmatprep.subr.mxu0 0.0
        %3597 = vmatpush1.msra.mxu0 0.0
        %3598 = vmatprep.subr.mxu0 0.0
        %3599 = vmatpush1.msra.mxu0 0.0
        %3600 = vmatprep.subr.mxu0 0.0
        %3601 = vmatpush1.msra.mxu0 0.0
        %3602 = vmatprep.subr.mxu0 0.0
        %3603 = vmatpush1.msra.mxu0 0.0
        %3604 = vmatprep.subr.mxu0 0.0
        %3605 = vmatpush1.msra.mxu0 0.0
        %3606 = vmatprep.subr.mxu0 0.0
        %3607 = vmatpush1.msra.mxu0 0.0
        %3608 = vmatprep.subr.mxu0 0.0
        %3609 = vmatpush1.msra.mxu0 0.0
        %3610 = vmatprep.subr.mxu0 0.0
        %3611 = vmatpush1.msra.mxu0 0.0
        %3612 = vmatprep.subr.mxu0 0.0
        %v3613 = vand.u32 %v3318, 4294901760
        %3614 = vmatpush1.msra.mxu0 %v3613
        %3615 = vmatprep.subr.mxu0 0.0
        %v3616 = vand.u32 %v3316, 4294901760
        %3617 = vmatpush1.msra.mxu0 %v3616
        %3618 = vmatprep.subr.mxu0 0.0
        %3619 = vmatpush2.msra.mxu0 0.0
        %3620 = vmatprep.subr.mxu0 0.0
        %3621 = vmatpush2.msra.mxu0 0.0
        %3622 = vmatprep.subr.mxu0 0.0
        %3623 = vmatpush2.msra.mxu0 0.0
        %3624 = vmatprep.subr.mxu0 0.0
        %3625 = vmatpush2.msra.mxu0 0.0
        %3626 = vmatprep.subr.mxu0 0.0
        %3627 = vmatpush2.msra.mxu0 0.0
        %3628 = vmatprep.subr.mxu0 0.0
        %3629 = vmatpush2.msra.mxu0 0.0
        %3630 = vmatprep.subr.mxu0 0.0
        %3631 = vmatpush2.msra.mxu0 0.0
        %3632 = vmatprep.subr.mxu0 0.0
        %3633 = vmatpush2.msra.mxu0 0.0
        %3634 = vmatprep.subr.mxu0 0.0
        %3635 = vmatpush2.msra.mxu0 0.0
        %3636 = vmatprep.subr.mxu0 0.0
        %3637 = vmatpush2.msra.mxu0 0.0
        %3638 = vmatprep.subr.mxu0 0.0
        %3639 = vmatpush2.msra.mxu0 0.0
        %3640 = vmatprep.subr.mxu0 0.0
        %3641 = vmatpush2.msra.mxu0 0.0
        %3642 = vmatprep.subr.mxu0 0.0
        %3643 = vmatpush2.msra.mxu0 0.0
        %3644 = vmatprep.subr.mxu0 0.0
        %3645 = vmatpush2.msra.mxu0 0.0
        %3646 = vmatprep.subr.mxu0 0.0
        %3647 = vmatpush2.msra.mxu0 0.0
        %3648 = vmatprep.subr.mxu0 0.0
        %3649 = vmatpush2.msra.mxu0 0.0
        %3650 = vmatprep.mubr.f32.mxu0 0.0
        %v3651 = vand.u32 %v3322, 4294901760
        %v3652 = vsub.f32 %v3322, %v3651
        %v3653 = vand.u32 %v3652, 4294901760
        %3654 = vmatmul.mubr.f32.gmra.mxu0 %v3653
        %v3655 = vpop.f32.mrf.mxu0
        %v3656 = vadd.f32 %v3574, %v3655
        %v3657 = vpop.f32.mrf.mxu0
        %3658 = vmatprep.mubr.f32.mxu0 0.0
        %v3659 = vand.u32 %v3325, 4294901760
        %v3660 = vsub.f32 %v3325, %v3659
        %v3661 = vand.u32 %v3660, 4294901760
        %3662 = vmatmul.mubr.f32.gmra.mxu0 %v3661
        %v3663 = vpop.f32.mrf.mxu0
        %v3664 = vadd.f32 %v3581, %v3663
        %v3665 = vpop.f32.mrf.mxu0
        %3666 = vdwg.mxu0
        %3667 = vmatprep.subr.mxu0 0.0
        %3668 = vmatpush1.msra.mxu0 0.0
        %3669 = vmatprep.subr.mxu0 0.0
        %3670 = vmatpush1.msra.mxu0 0.0
        %3671 = vmatprep.subr.mxu0 0.0
        %3672 = vmatpush1.msra.mxu0 0.0
        %3673 = vmatprep.subr.mxu0 0.0
        %3674 = vmatpush1.msra.mxu0 0.0
        %3675 = vmatprep.subr.mxu0 0.0
        %3676 = vmatpush1.msra.mxu0 0.0
        %3677 = vmatprep.subr.mxu0 0.0
        %3678 = vmatpush1.msra.mxu0 0.0
        %3679 = vmatprep.subr.mxu0 0.0
        %3680 = vmatpush1.msra.mxu0 0.0
        %3681 = vmatprep.subr.mxu0 0.0
        %3682 = vmatpush1.msra.mxu0 0.0
        %3683 = vmatprep.subr.mxu0 0.0
        %3684 = vmatpush1.msra.mxu0 0.0
        %3685 = vmatprep.subr.mxu0 0.0
        %3686 = vmatpush1.msra.mxu0 0.0
        %3687 = vmatprep.subr.mxu0 0.0
        %3688 = vmatpush1.msra.mxu0 0.0
        %3689 = vmatprep.subr.mxu0 0.0
        %3690 = vmatpush1.msra.mxu0 0.0
        %3691 = vmatprep.subr.mxu0 0.0
        %3692 = vmatpush1.msra.mxu0 0.0
        %3693 = vmatprep.subr.mxu0 0.0
        %3694 = vmatpush1.msra.mxu0 0.0
        %3695 = vmatprep.subr.mxu0 0.0
        %v3696 = vand.u32 %v3318, 4294901760
        %v3697 = vsub.f32 %v3318, %v3696
        %v3698 = vand.u32 %v3697, 4294901760
        %3699 = vmatpush1.msra.mxu0 %v3698
        %3700 = vmatprep.subr.mxu0 0.0
        %v3701 = vand.u32 %v3316, 4294901760
        %v3702 = vsub.f32 %v3316, %v3701
        %v3703 = vand.u32 %v3702, 4294901760
        %3704 = vmatpush1.msra.mxu0 %v3703
        %3705 = vmatprep.subr.mxu0 0.0
        %3706 = vmatpush2.msra.mxu0 0.0
        %3707 = vmatprep.subr.mxu0 0.0
        %3708 = vmatpush2.msra.mxu0 0.0
        %3709 = vmatprep.subr.mxu0 0.0
        %3710 = vmatpush2.msra.mxu0 0.0
        %3711 = vmatprep.subr.mxu0 0.0
        %3712 = vmatpush2.msra.mxu0 0.0
        %3713 = vmatprep.subr.mxu0 0.0
        %3714 = vmatpush2.msra.mxu0 0.0
        %3715 = vmatprep.subr.mxu0 0.0
        %3716 = vmatpush2.msra.mxu0 0.0
        %3717 = vmatprep.subr.mxu0 0.0
        %3718 = vmatpush2.msra.mxu0 0.0
        %3719 = vmatprep.subr.mxu0 0.0
        %3720 = vmatpush2.msra.mxu0 0.0
        %3721 = vmatprep.subr.mxu0 0.0
        %3722 = vmatpush2.msra.mxu0 0.0
        %3723 = vmatprep.subr.mxu0 0.0
        %3724 = vmatpush2.msra.mxu0 0.0
        %3725 = vmatprep.subr.mxu0 0.0
        %3726 = vmatpush2.msra.mxu0 0.0
        %3727 = vmatprep.subr.mxu0 0.0
        %3728 = vmatpush2.msra.mxu0 0.0
        %3729 = vmatprep.subr.mxu0 0.0
        %3730 = vmatpush2.msra.mxu0 0.0
        %3731 = vmatprep.subr.mxu0 0.0
        %3732 = vmatpush2.msra.mxu0 0.0
        %3733 = vmatprep.subr.mxu0 0.0
        %3734 = vmatpush2.msra.mxu0 0.0
        %3735 = vmatprep.subr.mxu0 0.0
        %3736 = vmatpush2.msra.mxu0 0.0
        %3737 = vmatprep.mubr.f32.mxu0 0.0
        %v3738 = vand.u32 %v3322, 4294901760
        %3739 = vmatmul.mubr.f32.gmra.mxu0 %v3738
        %v3740 = vpop.f32.mrf.mxu0
        %v3741 = vadd.f32 %v3656, %v3740
        %v3742 = vpop.f32.mrf.mxu0
        %3743 = vmatprep.mubr.f32.mxu0 0.0
        %v3744 = vand.u32 %v3325, 4294901760
        %3745 = vmatmul.mubr.f32.gmra.mxu0 %v3744
        %v3746 = vpop.f32.mrf.mxu0
        %v3747 = vadd.f32 %v3664, %v3746
        %v3748 = vpop.f32.mrf.mxu0
        %3749 = vdwg.mxu0
        %3750 = vmatprep.subr.mxu0 0.0
        %3751 = vmatpush1.msra.mxu0 0.0
        %3752 = vmatprep.subr.mxu0 0.0
        %3753 = vmatpush1.msra.mxu0 0.0
        %3754 = vmatprep.subr.mxu0 0.0
        %3755 = vmatpush1.msra.mxu0 0.0
        %3756 = vmatprep.subr.mxu0 0.0
        %3757 = vmatpush1.msra.mxu0 0.0
        %3758 = vmatprep.subr.mxu0 0.0
        %3759 = vmatpush1.msra.mxu0 0.0
        %3760 = vmatprep.subr.mxu0 0.0
        %3761 = vmatpush1.msra.mxu0 0.0
        %3762 = vmatprep.subr.mxu0 0.0
        %3763 = vmatpush1.msra.mxu0 0.0
        %3764 = vmatprep.subr.mxu0 0.0
        %3765 = vmatpush1.msra.mxu0 0.0
        %3766 = vmatprep.subr.mxu0 0.0
        %3767 = vmatpush1.msra.mxu0 0.0
        %3768 = vmatprep.subr.mxu0 0.0
        %3769 = vmatpush1.msra.mxu0 0.0
        %3770 = vmatprep.subr.mxu0 0.0
        %3771 = vmatpush1.msra.mxu0 0.0
        %3772 = vmatprep.subr.mxu0 0.0
        %3773 = vmatpush1.msra.mxu0 0.0
        %3774 = vmatprep.subr.mxu0 0.0
        %3775 = vmatpush1.msra.mxu0 0.0
        %3776 = vmatprep.subr.mxu0 0.0
        %3777 = vmatpush1.msra.mxu0 0.0
        %3778 = vmatprep.subr.mxu0 0.0
        %v3779 = vand.u32 %v3318, 4294901760
        %3780 = vmatpush1.msra.mxu0 %v3779
        %3781 = vmatprep.subr.mxu0 0.0
        %v3782 = vand.u32 %v3316, 4294901760
        %3783 = vmatpush1.msra.mxu0 %v3782
        %3784 = vmatprep.subr.mxu0 0.0
        %3785 = vmatpush2.msra.mxu0 0.0
        %3786 = vmatprep.subr.mxu0 0.0
        %3787 = vmatpush2.msra.mxu0 0.0
        %3788 = vmatprep.subr.mxu0 0.0
        %3789 = vmatpush2.msra.mxu0 0.0
        %3790 = vmatprep.subr.mxu0 0.0
        %3791 = vmatpush2.msra.mxu0 0.0
        %3792 = vmatprep.subr.mxu0 0.0
        %3793 = vmatpush2.msra.mxu0 0.0
        %3794 = vmatprep.subr.mxu0 0.0
        %3795 = vmatpush2.msra.mxu0 0.0
        %3796 = vmatprep.subr.mxu0 0.0
        %3797 = vmatpush2.msra.mxu0 0.0
        %3798 = vmatprep.subr.mxu0 0.0
        %3799 = vmatpush2.msra.mxu0 0.0
        %3800 = vmatprep.subr.mxu0 0.0
        %3801 = vmatpush2.msra.mxu0 0.0
        %3802 = vmatprep.subr.mxu0 0.0
        %3803 = vmatpush2.msra.mxu0 0.0
        %3804 = vmatprep.subr.mxu0 0.0
        %3805 = vmatpush2.msra.mxu0 0.0
        %3806 = vmatprep.subr.mxu0 0.0
        %3807 = vmatpush2.msra.mxu0 0.0
        %3808 = vmatprep.subr.mxu0 0.0
        %3809 = vmatpush2.msra.mxu0 0.0
        %3810 = vmatprep.subr.mxu0 0.0
        %3811 = vmatpush2.msra.mxu0 0.0
        %3812 = vmatprep.subr.mxu0 0.0
        %3813 = vmatpush2.msra.mxu0 0.0
        %3814 = vmatprep.subr.mxu0 0.0
        %3815 = vmatpush2.msra.mxu0 0.0
        %3816 = vmatprep.mubr.f32.mxu0 0.0
        %v3817 = vand.u32 %v3322, 4294901760
        %3818 = vmatmul.mubr.f32.gmra.mxu0 %v3817
        %v3819 = vpop.f32.mrf.mxu0
        %v3820 = vadd.f32 %v3741, %v3819
        %v3821 = vpop.f32.mrf.mxu0
        %3822 = vmatprep.mubr.f32.mxu0 0.0
        %v3823 = vand.u32 %v3325, 4294901760
        %3824 = vmatmul.mubr.f32.gmra.mxu0 %v3823
        %v3825 = vpop.f32.mrf.mxu0
        %v3826 = vadd.f32 %v3747, %v3825
        %v3827 = vpop.f32.mrf.mxu0
        %3828 = vdwg.mxu0
        %3829 = vrot.lane.b32.xlu0 %v1169, 112
        %v3830 = vpop.permute.xlu0 %3829
        %3831 = vrot.lane.b32.xlu0 %v1175, 112
        %v3832 = vpop.permute.xlu0 %3831
        %3833 = vrot.lane.b32.xlu0 %v1169, 80
        %v3834 = vpop.permute.xlu0 %3833
        %3835 = vrot.lane.b32.xlu0 %v1175, 80
        %v3836 = vpop.permute.xlu0 %3835
        %v3837 = vsel %vm1731, %v3830, 0
        %v3839 = vsel %vm1731, %v3832, 0
        %v3841 = vsel %vm1731, %v3834, 0
        %v3843 = vsel %vm1731, %v3836, 0
        %3845 = vmatprep.subr.mxu0 0.0
        %3846 = vmatpush1.xpose.msra.mxu0 0.0
        %3847 = vmatprep.subr.mxu0 0.0
        %3848 = vmatpush1.xpose.msra.mxu0 0.0
        %3849 = vmatprep.subr.mxu0 0.0
        %3850 = vmatpush1.xpose.msra.mxu0 0.0
        %3851 = vmatprep.subr.mxu0 0.0
        %3852 = vmatpush1.xpose.msra.mxu0 0.0
        %3853 = vmatprep.subr.mxu0 0.0
        %3854 = vmatpush1.xpose.msra.mxu0 0.0
        %3855 = vmatprep.subr.mxu0 0.0
        %3856 = vmatpush1.xpose.msra.mxu0 0.0
        %3857 = vmatprep.subr.mxu0 0.0
        %3858 = vmatpush1.xpose.msra.mxu0 0.0
        %3859 = vmatprep.subr.mxu0 0.0
        %3860 = vmatpush1.xpose.msra.mxu0 0.0
        %3861 = vmatprep.subr.mxu0 0.0
        %3862 = vmatpush1.xpose.msra.mxu0 0.0
        %3863 = vmatprep.subr.mxu0 0.0
        %3864 = vmatpush1.xpose.msra.mxu0 0.0
        %3865 = vmatprep.subr.mxu0 0.0
        %3866 = vmatpush1.xpose.msra.mxu0 0.0
        %3867 = vmatprep.subr.mxu0 0.0
        %3868 = vmatpush1.xpose.msra.mxu0 0.0
        %3869 = vmatprep.subr.mxu0 0.0
        %3870 = vmatpush1.xpose.msra.mxu0 0.0
        %3871 = vmatprep.subr.mxu0 0.0
        %3872 = vmatpush1.xpose.msra.mxu0 0.0
        %3873 = vmatprep.subr.mxu0 0.0
        %v3874 = vand.u32 %v3843, 4294901760
        %3875 = vmatpush1.xpose.msra.mxu0 %v3874
        %3876 = vmatprep.subr.mxu0 0.0
        %v3877 = vand.u32 %v3841, 4294901760
        %3878 = vmatpush1.xpose.msra.mxu0 %v3877
        %3879 = vmatprep.subr.mxu0 0.0
        %3880 = vmatpush2.xpose.msra.mxu0 0.0
        %3881 = vmatprep.subr.mxu0 0.0
        %3882 = vmatpush2.xpose.msra.mxu0 0.0
        %3883 = vmatprep.subr.mxu0 0.0
        %3884 = vmatpush2.xpose.msra.mxu0 0.0
        %3885 = vmatprep.subr.mxu0 0.0
        %3886 = vmatpush2.xpose.msra.mxu0 0.0
        %3887 = vmatprep.subr.mxu0 0.0
        %3888 = vmatpush2.xpose.msra.mxu0 0.0
        %3889 = vmatprep.subr.mxu0 0.0
        %3890 = vmatpush2.xpose.msra.mxu0 0.0
        %3891 = vmatprep.subr.mxu0 0.0
        %3892 = vmatpush2.xpose.msra.mxu0 0.0
        %3893 = vmatprep.subr.mxu0 0.0
        %3894 = vmatpush2.xpose.msra.mxu0 0.0
        %3895 = vmatprep.subr.mxu0 0.0
        %3896 = vmatpush2.xpose.msra.mxu0 0.0
        %3897 = vmatprep.subr.mxu0 0.0
        %3898 = vmatpush2.xpose.msra.mxu0 0.0
        %3899 = vmatprep.subr.mxu0 0.0
        %3900 = vmatpush2.xpose.msra.mxu0 0.0
        %3901 = vmatprep.subr.mxu0 0.0
        %3902 = vmatpush2.xpose.msra.mxu0 0.0
        %3903 = vmatprep.subr.mxu0 0.0
        %3904 = vmatpush2.xpose.msra.mxu0 0.0
        %3905 = vmatprep.subr.mxu0 0.0
        %3906 = vmatpush2.xpose.msra.mxu0 0.0
        %3907 = vmatprep.subr.mxu0 0.0
        %3908 = vmatpush2.xpose.msra.mxu0 0.0
        %3909 = vmatprep.subr.mxu0 0.0
        %3910 = vmatpush2.xpose.msra.mxu0 0.0
        %3911 = vmatprep.mubr.f32.mxu0 0.0
        %v3912 = vand.u32 %v3837, 4294901760
        %v3913 = vsub.f32 %v3837, %v3912
        %v3914 = vand.u32 %v3913, 4294901760
        %v3915 = vsub.f32 %v3913, %v3914
        %v3916 = vand.u32 %v3915, 4294901760
        %3917 = vmatmul.mubr.f32.gmra.mxu0 %v3916
        %v3918 = vpop.f32.mrf.mxu0
        %v3919 = vadd.f32 %v1723, %v3918
        %v3920 = vpop.f32.mrf.mxu0
        %3921 = vmatprep.mubr.f32.mxu0 0.0
        %v3922 = vand.u32 %v3839, 4294901760
        %v3923 = vsub.f32 %v3839, %v3922
        %v3924 = vand.u32 %v3923, 4294901760
        %v3925 = vsub.f32 %v3923, %v3924
        %v3926 = vand.u32 %v3925, 4294901760
        %3927 = vmatmul.mubr.f32.gmra.mxu0 %v3926
        %v3928 = vpop.f32.mrf.mxu0
        %v3929 = vadd.f32 %v1724, %v3928
        %v3930 = vpop.f32.mrf.mxu0
        %3931 = vdwg.mxu0
        %3932 = vmatprep.subr.mxu0 0.0
        %3933 = vmatpush1.xpose.msra.mxu0 0.0
        %3934 = vmatprep.subr.mxu0 0.0
        %3935 = vmatpush1.xpose.msra.mxu0 0.0
        %3936 = vmatprep.subr.mxu0 0.0
        %3937 = vmatpush1.xpose.msra.mxu0 0.0
        %3938 = vmatprep.subr.mxu0 0.0
        %3939 = vmatpush1.xpose.msra.mxu0 0.0
        %3940 = vmatprep.subr.mxu0 0.0
        %3941 = vmatpush1.xpose.msra.mxu0 0.0
        %3942 = vmatprep.subr.mxu0 0.0
        %3943 = vmatpush1.xpose.msra.mxu0 0.0
        %3944 = vmatprep.subr.mxu0 0.0
        %3945 = vmatpush1.xpose.msra.mxu0 0.0
        %3946 = vmatprep.subr.mxu0 0.0
        %3947 = vmatpush1.xpose.msra.mxu0 0.0
        %3948 = vmatprep.subr.mxu0 0.0
        %3949 = vmatpush1.xpose.msra.mxu0 0.0
        %3950 = vmatprep.subr.mxu0 0.0
        %3951 = vmatpush1.xpose.msra.mxu0 0.0
        %3952 = vmatprep.subr.mxu0 0.0
        %3953 = vmatpush1.xpose.msra.mxu0 0.0
        %3954 = vmatprep.subr.mxu0 0.0
        %3955 = vmatpush1.xpose.msra.mxu0 0.0
        %3956 = vmatprep.subr.mxu0 0.0
        %3957 = vmatpush1.xpose.msra.mxu0 0.0
        %3958 = vmatprep.subr.mxu0 0.0
        %3959 = vmatpush1.xpose.msra.mxu0 0.0
        %3960 = vmatprep.subr.mxu0 0.0
        %v3961 = vand.u32 %v3843, 4294901760
        %v3962 = vsub.f32 %v3843, %v3961
        %v3963 = vand.u32 %v3962, 4294901760
        %v3964 = vsub.f32 %v3962, %v3963
        %v3965 = vand.u32 %v3964, 4294901760
        %3966 = vmatpush1.xpose.msra.mxu0 %v3965
        %3967 = vmatprep.subr.mxu0 0.0
        %v3968 = vand.u32 %v3841, 4294901760
        %v3969 = vsub.f32 %v3841, %v3968
        %v3970 = vand.u32 %v3969, 4294901760
        %v3971 = vsub.f32 %v3969, %v3970
        %v3972 = vand.u32 %v3971, 4294901760
        %3973 = vmatpush1.xpose.msra.mxu0 %v3972
        %3974 = vmatprep.subr.mxu0 0.0
        %3975 = vmatpush2.xpose.msra.mxu0 0.0
        %3976 = vmatprep.subr.mxu0 0.0
        %3977 = vmatpush2.xpose.msra.mxu0 0.0
        %3978 = vmatprep.subr.mxu0 0.0
        %3979 = vmatpush2.xpose.msra.mxu0 0.0
        %3980 = vmatprep.subr.mxu0 0.0
        %3981 = vmatpush2.xpose.msra.mxu0 0.0
        %3982 = vmatprep.subr.mxu0 0.0
        %3983 = vmatpush2.xpose.msra.mxu0 0.0
        %3984 = vmatprep.subr.mxu0 0.0
        %3985 = vmatpush2.xpose.msra.mxu0 0.0
        %3986 = vmatprep.subr.mxu0 0.0
        %3987 = vmatpush2.xpose.msra.mxu0 0.0
        %3988 = vmatprep.subr.mxu0 0.0
        %3989 = vmatpush2.xpose.msra.mxu0 0.0
        %3990 = vmatprep.subr.mxu0 0.0
        %3991 = vmatpush2.xpose.msra.mxu0 0.0
        %3992 = vmatprep.subr.mxu0 0.0
        %3993 = vmatpush2.xpose.msra.mxu0 0.0
        %3994 = vmatprep.subr.mxu0 0.0
        %3995 = vmatpush2.xpose.msra.mxu0 0.0
        %3996 = vmatprep.subr.mxu0 0.0
        %3997 = vmatpush2.xpose.msra.mxu0 0.0
        %3998 = vmatprep.subr.mxu0 0.0
        %3999 = vmatpush2.xpose.msra.mxu0 0.0
        %4000 = vmatprep.subr.mxu0 0.0
        %4001 = vmatpush2.xpose.msra.mxu0 0.0
        %4002 = vmatprep.subr.mxu0 0.0
        %4003 = vmatpush2.xpose.msra.mxu0 0.0
        %4004 = vmatprep.subr.mxu0 0.0
        %4005 = vmatpush2.xpose.msra.mxu0 0.0
        %4006 = vmatprep.mubr.f32.mxu0 0.0
        %v4007 = vand.u32 %v3837, 4294901760
        %4008 = vmatmul.mubr.f32.gmra.mxu0 %v4007
        %v4009 = vpop.f32.mrf.mxu0
        %v4010 = vadd.f32 %v3919, %v4009
        %v4011 = vpop.f32.mrf.mxu0
        %4012 = vmatprep.mubr.f32.mxu0 0.0
        %v4013 = vand.u32 %v3839, 4294901760
        %4014 = vmatmul.mubr.f32.gmra.mxu0 %v4013
        %v4015 = vpop.f32.mrf.mxu0
        %v4016 = vadd.f32 %v3929, %v4015
        %v4017 = vpop.f32.mrf.mxu0
        %4018 = vdwg.mxu0
        %4019 = vmatprep.subr.mxu0 0.0
        %4020 = vmatpush1.xpose.msra.mxu0 0.0
        %4021 = vmatprep.subr.mxu0 0.0
        %4022 = vmatpush1.xpose.msra.mxu0 0.0
        %4023 = vmatprep.subr.mxu0 0.0
        %4024 = vmatpush1.xpose.msra.mxu0 0.0
        %4025 = vmatprep.subr.mxu0 0.0
        %4026 = vmatpush1.xpose.msra.mxu0 0.0
        %4027 = vmatprep.subr.mxu0 0.0
        %4028 = vmatpush1.xpose.msra.mxu0 0.0
        %4029 = vmatprep.subr.mxu0 0.0
        %4030 = vmatpush1.xpose.msra.mxu0 0.0
        %4031 = vmatprep.subr.mxu0 0.0
        %4032 = vmatpush1.xpose.msra.mxu0 0.0
        %4033 = vmatprep.subr.mxu0 0.0
        %4034 = vmatpush1.xpose.msra.mxu0 0.0
        %4035 = vmatprep.subr.mxu0 0.0
        %4036 = vmatpush1.xpose.msra.mxu0 0.0
        %4037 = vmatprep.subr.mxu0 0.0
        %4038 = vmatpush1.xpose.msra.mxu0 0.0
        %4039 = vmatprep.subr.mxu0 0.0
        %4040 = vmatpush1.xpose.msra.mxu0 0.0
        %4041 = vmatprep.subr.mxu0 0.0
        %4042 = vmatpush1.xpose.msra.mxu0 0.0
        %4043 = vmatprep.subr.mxu0 0.0
        %4044 = vmatpush1.xpose.msra.mxu0 0.0
        %4045 = vmatprep.subr.mxu0 0.0
        %4046 = vmatpush1.xpose.msra.mxu0 0.0
        %4047 = vmatprep.subr.mxu0 0.0
        %v4048 = vand.u32 %v3843, 4294901760
        %v4049 = vsub.f32 %v3843, %v4048
        %4050 = vmatpush1.xpose.msra.mxu0 %v4049
        %4051 = vmatprep.subr.mxu0 0.0
        %v4052 = vand.u32 %v3841, 4294901760
        %v4053 = vsub.f32 %v3841, %v4052
        %4054 = vmatpush1.xpose.msra.mxu0 %v4053
        %4055 = vmatprep.subr.mxu0 0.0
        %4056 = vmatpush2.xpose.msra.mxu0 0.0
        %4057 = vmatprep.subr.mxu0 0.0
        %4058 = vmatpush2.xpose.msra.mxu0 0.0
        %4059 = vmatprep.subr.mxu0 0.0
        %4060 = vmatpush2.xpose.msra.mxu0 0.0
        %4061 = vmatprep.subr.mxu0 0.0
        %4062 = vmatpush2.xpose.msra.mxu0 0.0
        %4063 = vmatprep.subr.mxu0 0.0
        %4064 = vmatpush2.xpose.msra.mxu0 0.0
        %4065 = vmatprep.subr.mxu0 0.0
        %4066 = vmatpush2.xpose.msra.mxu0 0.0
        %4067 = vmatprep.subr.mxu0 0.0
        %4068 = vmatpush2.xpose.msra.mxu0 0.0
        %4069 = vmatprep.subr.mxu0 0.0
        %4070 = vmatpush2.xpose.msra.mxu0 0.0
        %4071 = vmatprep.subr.mxu0 0.0
        %4072 = vmatpush2.xpose.msra.mxu0 0.0
        %4073 = vmatprep.subr.mxu0 0.0
        %4074 = vmatpush2.xpose.msra.mxu0 0.0
        %4075 = vmatprep.subr.mxu0 0.0
        %4076 = vmatpush2.xpose.msra.mxu0 0.0
        %4077 = vmatprep.subr.mxu0 0.0
        %4078 = vmatpush2.xpose.msra.mxu0 0.0
        %4079 = vmatprep.subr.mxu0 0.0
        %4080 = vmatpush2.xpose.msra.mxu0 0.0
        %4081 = vmatprep.subr.mxu0 0.0
        %4082 = vmatpush2.xpose.msra.mxu0 0.0
        %4083 = vmatprep.subr.mxu0 0.0
        %4084 = vmatpush2.xpose.msra.mxu0 0.0
        %4085 = vmatprep.subr.mxu0 0.0
        %4086 = vmatpush2.xpose.msra.mxu0 0.0
        %4087 = vmatprep.mubr.f32.mxu0 0.0
        %v4088 = vand.u32 %v3837, 4294901760
        %v4089 = vsub.f32 %v3837, %v4088
        %4090 = vmatmul.mubr.f32.gmra.mxu0 %v4089
        %v4091 = vpop.f32.mrf.mxu0
        %v4092 = vadd.f32 %v4010, %v4091
        %v4093 = vpop.f32.mrf.mxu0
        %4094 = vmatprep.mubr.f32.mxu0 0.0
        %v4095 = vand.u32 %v3839, 4294901760
        %v4096 = vsub.f32 %v3839, %v4095
        %4097 = vmatmul.mubr.f32.gmra.mxu0 %v4096
        %v4098 = vpop.f32.mrf.mxu0
        %v4099 = vadd.f32 %v4016, %v4098
        %v4100 = vpop.f32.mrf.mxu0
        %4101 = vdwg.mxu0
        %4102 = vmatprep.subr.mxu0 0.0
        %4103 = vmatpush1.xpose.msra.mxu0 0.0
        %4104 = vmatprep.subr.mxu0 0.0
        %4105 = vmatpush1.xpose.msra.mxu0 0.0
        %4106 = vmatprep.subr.mxu0 0.0
        %4107 = vmatpush1.xpose.msra.mxu0 0.0
        %4108 = vmatprep.subr.mxu0 0.0
        %4109 = vmatpush1.xpose.msra.mxu0 0.0
        %4110 = vmatprep.subr.mxu0 0.0
        %4111 = vmatpush1.xpose.msra.mxu0 0.0
        %4112 = vmatprep.subr.mxu0 0.0
        %4113 = vmatpush1.xpose.msra.mxu0 0.0
        %4114 = vmatprep.subr.mxu0 0.0
        %4115 = vmatpush1.xpose.msra.mxu0 0.0
        %4116 = vmatprep.subr.mxu0 0.0
        %4117 = vmatpush1.xpose.msra.mxu0 0.0
        %4118 = vmatprep.subr.mxu0 0.0
        %4119 = vmatpush1.xpose.msra.mxu0 0.0
        %4120 = vmatprep.subr.mxu0 0.0
        %4121 = vmatpush1.xpose.msra.mxu0 0.0
        %4122 = vmatprep.subr.mxu0 0.0
        %4123 = vmatpush1.xpose.msra.mxu0 0.0
        %4124 = vmatprep.subr.mxu0 0.0
        %4125 = vmatpush1.xpose.msra.mxu0 0.0
        %4126 = vmatprep.subr.mxu0 0.0
        %4127 = vmatpush1.xpose.msra.mxu0 0.0
        %4128 = vmatprep.subr.mxu0 0.0
        %4129 = vmatpush1.xpose.msra.mxu0 0.0
        %4130 = vmatprep.subr.mxu0 0.0
        %v4131 = vand.u32 %v3843, 4294901760
        %4132 = vmatpush1.xpose.msra.mxu0 %v4131
        %4133 = vmatprep.subr.mxu0 0.0
        %v4134 = vand.u32 %v3841, 4294901760
        %4135 = vmatpush1.xpose.msra.mxu0 %v4134
        %4136 = vmatprep.subr.mxu0 0.0
        %4137 = vmatpush2.xpose.msra.mxu0 0.0
        %4138 = vmatprep.subr.mxu0 0.0
        %4139 = vmatpush2.xpose.msra.mxu0 0.0
        %4140 = vmatprep.subr.mxu0 0.0
        %4141 = vmatpush2.xpose.msra.mxu0 0.0
        %4142 = vmatprep.subr.mxu0 0.0
        %4143 = vmatpush2.xpose.msra.mxu0 0.0
        %4144 = vmatprep.subr.mxu0 0.0
        %4145 = vmatpush2.xpose.msra.mxu0 0.0
        %4146 = vmatprep.subr.mxu0 0.0
        %4147 = vmatpush2.xpose.msra.mxu0 0.0
        %4148 = vmatprep.subr.mxu0 0.0
        %4149 = vmatpush2.xpose.msra.mxu0 0.0
        %4150 = vmatprep.subr.mxu0 0.0
        %4151 = vmatpush2.xpose.msra.mxu0 0.0
        %4152 = vmatprep.subr.mxu0 0.0
        %4153 = vmatpush2.xpose.msra.mxu0 0.0
        %4154 = vmatprep.subr.mxu0 0.0
        %4155 = vmatpush2.xpose.msra.mxu0 0.0
        %4156 = vmatprep.subr.mxu0 0.0
        %4157 = vmatpush2.xpose.msra.mxu0 0.0
        %4158 = vmatprep.subr.mxu0 0.0
        %4159 = vmatpush2.xpose.msra.mxu0 0.0
        %4160 = vmatprep.subr.mxu0 0.0
        %4161 = vmatpush2.xpose.msra.mxu0 0.0
        %4162 = vmatprep.subr.mxu0 0.0
        %4163 = vmatpush2.xpose.msra.mxu0 0.0
        %4164 = vmatprep.subr.mxu0 0.0
        %4165 = vmatpush2.xpose.msra.mxu0 0.0
        %4166 = vmatprep.subr.mxu0 0.0
        %4167 = vmatpush2.xpose.msra.mxu0 0.0
        %4168 = vmatprep.mubr.f32.mxu0 0.0
        %v4169 = vand.u32 %v3837, 4294901760
        %v4170 = vsub.f32 %v3837, %v4169
        %v4171 = vand.u32 %v4170, 4294901760
        %4172 = vmatmul.mubr.f32.gmra.mxu0 %v4171
        %v4173 = vpop.f32.mrf.mxu0
        %v4174 = vadd.f32 %v4092, %v4173
        %v4175 = vpop.f32.mrf.mxu0
        %4176 = vmatprep.mubr.f32.mxu0 0.0
        %v4177 = vand.u32 %v3839, 4294901760
        %v4178 = vsub.f32 %v3839, %v4177
        %v4179 = vand.u32 %v4178, 4294901760
        %4180 = vmatmul.mubr.f32.gmra.mxu0 %v4179
        %v4181 = vpop.f32.mrf.mxu0
        %v4182 = vadd.f32 %v4099, %v4181
        %v4183 = vpop.f32.mrf.mxu0
        %4184 = vdwg.mxu0
        %4185 = vmatprep.subr.mxu0 0.0
        %4186 = vmatpush1.xpose.msra.mxu0 0.0
        %4187 = vmatprep.subr.mxu0 0.0
        %4188 = vmatpush1.xpose.msra.mxu0 0.0
        %4189 = vmatprep.subr.mxu0 0.0
        %4190 = vmatpush1.xpose.msra.mxu0 0.0
        %4191 = vmatprep.subr.mxu0 0.0
        %4192 = vmatpush1.xpose.msra.mxu0 0.0
        %4193 = vmatprep.subr.mxu0 0.0
        %4194 = vmatpush1.xpose.msra.mxu0 0.0
        %4195 = vmatprep.subr.mxu0 0.0
        %4196 = vmatpush1.xpose.msra.mxu0 0.0
        %4197 = vmatprep.subr.mxu0 0.0
        %4198 = vmatpush1.xpose.msra.mxu0 0.0
        %4199 = vmatprep.subr.mxu0 0.0
        %4200 = vmatpush1.xpose.msra.mxu0 0.0
        %4201 = vmatprep.subr.mxu0 0.0
        %4202 = vmatpush1.xpose.msra.mxu0 0.0
        %4203 = vmatprep.subr.mxu0 0.0
        %4204 = vmatpush1.xpose.msra.mxu0 0.0
        %4205 = vmatprep.subr.mxu0 0.0
        %4206 = vmatpush1.xpose.msra.mxu0 0.0
        %4207 = vmatprep.subr.mxu0 0.0
        %4208 = vmatpush1.xpose.msra.mxu0 0.0
        %4209 = vmatprep.subr.mxu0 0.0
        %4210 = vmatpush1.xpose.msra.mxu0 0.0
        %4211 = vmatprep.subr.mxu0 0.0
        %4212 = vmatpush1.xpose.msra.mxu0 0.0
        %4213 = vmatprep.subr.mxu0 0.0
        %v4214 = vand.u32 %v3843, 4294901760
        %v4215 = vsub.f32 %v3843, %v4214
        %v4216 = vand.u32 %v4215, 4294901760
        %4217 = vmatpush1.xpose.msra.mxu0 %v4216
        %4218 = vmatprep.subr.mxu0 0.0
        %v4219 = vand.u32 %v3841, 4294901760
        %v4220 = vsub.f32 %v3841, %v4219
        %v4221 = vand.u32 %v4220, 4294901760
        %4222 = vmatpush1.xpose.msra.mxu0 %v4221
        %4223 = vmatprep.subr.mxu0 0.0
        %4224 = vmatpush2.xpose.msra.mxu0 0.0
        %4225 = vmatprep.subr.mxu0 0.0
        %4226 = vmatpush2.xpose.msra.mxu0 0.0
        %4227 = vmatprep.subr.mxu0 0.0
        %4228 = vmatpush2.xpose.msra.mxu0 0.0
        %4229 = vmatprep.subr.mxu0 0.0
        %4230 = vmatpush2.xpose.msra.mxu0 0.0
        %4231 = vmatprep.subr.mxu0 0.0
        %4232 = vmatpush2.xpose.msra.mxu0 0.0
        %4233 = vmatprep.subr.mxu0 0.0
        %4234 = vmatpush2.xpose.msra.mxu0 0.0
        %4235 = vmatprep.subr.mxu0 0.0
        %4236 = vmatpush2.xpose.msra.mxu0 0.0
        %4237 = vmatprep.subr.mxu0 0.0
        %4238 = vmatpush2.xpose.msra.mxu0 0.0
        %4239 = vmatprep.subr.mxu0 0.0
        %4240 = vmatpush2.xpose.msra.mxu0 0.0
        %4241 = vmatprep.subr.mxu0 0.0
        %4242 = vmatpush2.xpose.msra.mxu0 0.0
        %4243 = vmatprep.subr.mxu0 0.0
        %4244 = vmatpush2.xpose.msra.mxu0 0.0
        %4245 = vmatprep.subr.mxu0 0.0
        %4246 = vmatpush2.xpose.msra.mxu0 0.0
        %4247 = vmatprep.subr.mxu0 0.0
        %4248 = vmatpush2.xpose.msra.mxu0 0.0
        %4249 = vmatprep.subr.mxu0 0.0
        %4250 = vmatpush2.xpose.msra.mxu0 0.0
        %4251 = vmatprep.subr.mxu0 0.0
        %4252 = vmatpush2.xpose.msra.mxu0 0.0
        %4253 = vmatprep.subr.mxu0 0.0
        %4254 = vmatpush2.xpose.msra.mxu0 0.0
        %4255 = vmatprep.mubr.f32.mxu0 0.0
        %v4256 = vand.u32 %v3837, 4294901760
        %4257 = vmatmul.mubr.f32.gmra.mxu0 %v4256
        %v4258 = vpop.f32.mrf.mxu0
        %v4259 = vadd.f32 %v4174, %v4258
        %v4260 = vpop.f32.mrf.mxu0
        %4261 = vmatprep.mubr.f32.mxu0 0.0
        %v4262 = vand.u32 %v3839, 4294901760
        %4263 = vmatmul.mubr.f32.gmra.mxu0 %v4262
        %v4264 = vpop.f32.mrf.mxu0
        %v4265 = vadd.f32 %v4182, %v4264
        %v4266 = vpop.f32.mrf.mxu0
        %4267 = vdwg.mxu0
        %4268 = vmatprep.subr.mxu0 0.0
        %4269 = vmatpush1.xpose.msra.mxu0 0.0
        %4270 = vmatprep.subr.mxu0 0.0
        %4271 = vmatpush1.xpose.msra.mxu0 0.0
        %4272 = vmatprep.subr.mxu0 0.0
        %4273 = vmatpush1.xpose.msra.mxu0 0.0
        %4274 = vmatprep.subr.mxu0 0.0
        %4275 = vmatpush1.xpose.msra.mxu0 0.0
        %4276 = vmatprep.subr.mxu0 0.0
        %4277 = vmatpush1.xpose.msra.mxu0 0.0
        %4278 = vmatprep.subr.mxu0 0.0
        %4279 = vmatpush1.xpose.msra.mxu0 0.0
        %4280 = vmatprep.subr.mxu0 0.0
        %4281 = vmatpush1.xpose.msra.mxu0 0.0
        %4282 = vmatprep.subr.mxu0 0.0
        %4283 = vmatpush1.xpose.msra.mxu0 0.0
        %4284 = vmatprep.subr.mxu0 0.0
        %4285 = vmatpush1.xpose.msra.mxu0 0.0
        %4286 = vmatprep.subr.mxu0 0.0
        %4287 = vmatpush1.xpose.msra.mxu0 0.0
        %4288 = vmatprep.subr.mxu0 0.0
        %4289 = vmatpush1.xpose.msra.mxu0 0.0
        %4290 = vmatprep.subr.mxu0 0.0
        %4291 = vmatpush1.xpose.msra.mxu0 0.0
        %4292 = vmatprep.subr.mxu0 0.0
        %4293 = vmatpush1.xpose.msra.mxu0 0.0
        %4294 = vmatprep.subr.mxu0 0.0
        %4295 = vmatpush1.xpose.msra.mxu0 0.0
        %4296 = vmatprep.subr.mxu0 0.0
        %v4297 = vand.u32 %v3843, 4294901760
        %4298 = vmatpush1.xpose.msra.mxu0 %v4297
        %4299 = vmatprep.subr.mxu0 0.0
        %v4300 = vand.u32 %v3841, 4294901760
        %4301 = vmatpush1.xpose.msra.mxu0 %v4300
        %4302 = vmatprep.subr.mxu0 0.0
        %4303 = vmatpush2.xpose.msra.mxu0 0.0
        %4304 = vmatprep.subr.mxu0 0.0
        %4305 = vmatpush2.xpose.msra.mxu0 0.0
        %4306 = vmatprep.subr.mxu0 0.0
        %4307 = vmatpush2.xpose.msra.mxu0 0.0
        %4308 = vmatprep.subr.mxu0 0.0
        %4309 = vmatpush2.xpose.msra.mxu0 0.0
        %4310 = vmatprep.subr.mxu0 0.0
        %4311 = vmatpush2.xpose.msra.mxu0 0.0
        %4312 = vmatprep.subr.mxu0 0.0
        %4313 = vmatpush2.xpose.msra.mxu0 0.0
        %4314 = vmatprep.subr.mxu0 0.0
        %4315 = vmatpush2.xpose.msra.mxu0 0.0
        %4316 = vmatprep.subr.mxu0 0.0
        %4317 = vmatpush2.xpose.msra.mxu0 0.0
        %4318 = vmatprep.subr.mxu0 0.0
        %4319 = vmatpush2.xpose.msra.mxu0 0.0
        %4320 = vmatprep.subr.mxu0 0.0
        %4321 = vmatpush2.xpose.msra.mxu0 0.0
        %4322 = vmatprep.subr.mxu0 0.0
        %4323 = vmatpush2.xpose.msra.mxu0 0.0
        %4324 = vmatprep.subr.mxu0 0.0
        %4325 = vmatpush2.xpose.msra.mxu0 0.0
        %4326 = vmatprep.subr.mxu0 0.0
        %4327 = vmatpush2.xpose.msra.mxu0 0.0
        %4328 = vmatprep.subr.mxu0 0.0
        %4329 = vmatpush2.xpose.msra.mxu0 0.0
        %4330 = vmatprep.subr.mxu0 0.0
        %4331 = vmatpush2.xpose.msra.mxu0 0.0
        %4332 = vmatprep.subr.mxu0 0.0
        %4333 = vmatpush2.xpose.msra.mxu0 0.0
        %4334 = vmatprep.mubr.f32.mxu0 0.0
        %v4335 = vand.u32 %v3837, 4294901760
        %4336 = vmatmul.mubr.f32.gmra.mxu0 %v4335
        %v4337 = vpop.f32.mrf.mxu0
        %v4338 = vadd.f32 %v4259, %v4337
        %v4339 = vpop.f32.mrf.mxu0
        %4340 = vmatprep.mubr.f32.mxu0 0.0
        %v4341 = vand.u32 %v3839, 4294901760
        %4342 = vmatmul.mubr.f32.gmra.mxu0 %v4341
        %v4343 = vpop.f32.mrf.mxu0
        %v4344 = vadd.f32 %v4265, %v4343
        %v4345 = vpop.f32.mrf.mxu0
        %4346 = vdwg.mxu0
        %v4347 = vsel %vm2242, %v4338, -inf
        %4348 = vmax.xlane.f32.xlu0 %v4347
        %v4349 = vpop.xlane.xlu0 %4348
        %v4350 = vsel %vm2242, %v4344, -inf
        %4351 = vmax.xlane.f32.xlu0 %v4350
        %v4352 = vpop.xlane.xlu0 %4351
        %v4353 = vsub.f32 %v4338, %v4349
        %v4354 = vsub.f32 %v4344, %v4352
        %v4355 = vmul.f32 %v4353, 1.442695
        %v4356 = vpow.pop %v4355
        %v4357 = vmul.f32 %v4354, 1.442695
        %v4358 = vpow.pop %v4357
        %v4359 = vsel %vm2242, %v4356, 0.0
        %4360 = vadd.xlane.f32.xlu0 %v4359
        %v4361 = vpop.xlane.xlu0 %4360
        %v4362 = vsel %vm2242, %v4358, 0.0
        %4363 = vadd.xlane.f32.xlu0 %v4362
        %v4364 = vpop.xlane.xlu0 %4363
        %v4365 = vrcp.pop %v4361
        %v4366 = vrcp.pop %v4364
        %v4367 = vmul.f32 %v4356, %v4365
        %v4368 = vmul.f32 %v4358, %v4366
        %4369 = vrot.lane.b32.xlu0 %v1714, 112
        %v4370 = vpop.permute.xlu0 %4369
        %4371 = vrot.lane.b32.xlu0 %v1720, 112
        %v4372 = vpop.permute.xlu0 %4371
        %v4376 = vsel %vm2242, %v4367, 0
        %v4379 = vsel %vm2242, %v4368, 0
        %4381 = vmatprep.subr.mxu0 0.0
        %4382 = vmatpush1.msra.mxu0 0.0
        %4383 = vmatprep.subr.mxu0 0.0
        %4384 = vmatpush1.msra.mxu0 0.0
        %4385 = vmatprep.subr.mxu0 0.0
        %4386 = vmatpush1.msra.mxu0 0.0
        %4387 = vmatprep.subr.mxu0 0.0
        %4388 = vmatpush1.msra.mxu0 0.0
        %4389 = vmatprep.subr.mxu0 0.0
        %4390 = vmatpush1.msra.mxu0 0.0
        %4391 = vmatprep.subr.mxu0 0.0
        %4392 = vmatpush1.msra.mxu0 0.0
        %4393 = vmatprep.subr.mxu0 0.0
        %4394 = vmatpush1.msra.mxu0 0.0
        %4395 = vmatprep.subr.mxu0 0.0
        %4396 = vmatpush1.msra.mxu0 0.0
        %4397 = vmatprep.subr.mxu0 0.0
        %4398 = vmatpush1.msra.mxu0 0.0
        %4399 = vmatprep.subr.mxu0 0.0
        %4400 = vmatpush1.msra.mxu0 0.0
        %4401 = vmatprep.subr.mxu0 0.0
        %4402 = vmatpush1.msra.mxu0 0.0
        %4403 = vmatprep.subr.mxu0 0.0
        %4404 = vmatpush1.msra.mxu0 0.0
        %4405 = vmatprep.subr.mxu0 0.0
        %4406 = vmatpush1.msra.mxu0 0.0
        %4407 = vmatprep.subr.mxu0 0.0
        %4408 = vmatpush1.msra.mxu0 0.0
        %4409 = vmatprep.subr.mxu0 0.0
        %v4410 = vand.u32 %v4372, 4294901760
        %4411 = vmatpush1.msra.mxu0 %v4410
        %4412 = vmatprep.subr.mxu0 0.0
        %v4413 = vand.u32 %v4370, 4294901760
        %4414 = vmatpush1.msra.mxu0 %v4413
        %4415 = vmatprep.subr.mxu0 0.0
        %4416 = vmatpush2.msra.mxu0 0.0
        %4417 = vmatprep.subr.mxu0 0.0
        %4418 = vmatpush2.msra.mxu0 0.0
        %4419 = vmatprep.subr.mxu0 0.0
        %4420 = vmatpush2.msra.mxu0 0.0
        %4421 = vmatprep.subr.mxu0 0.0
        %4422 = vmatpush2.msra.mxu0 0.0
        %4423 = vmatprep.subr.mxu0 0.0
        %4424 = vmatpush2.msra.mxu0 0.0
        %4425 = vmatprep.subr.mxu0 0.0
        %4426 = vmatpush2.msra.mxu0 0.0
        %4427 = vmatprep.subr.mxu0 0.0
        %4428 = vmatpush2.msra.mxu0 0.0
        %4429 = vmatprep.subr.mxu0 0.0
        %4430 = vmatpush2.msra.mxu0 0.0
        %4431 = vmatprep.subr.mxu0 0.0
        %4432 = vmatpush2.msra.mxu0 0.0
        %4433 = vmatprep.subr.mxu0 0.0
        %4434 = vmatpush2.msra.mxu0 0.0
        %4435 = vmatprep.subr.mxu0 0.0
        %4436 = vmatpush2.msra.mxu0 0.0
        %4437 = vmatprep.subr.mxu0 0.0
        %4438 = vmatpush2.msra.mxu0 0.0
        %4439 = vmatprep.subr.mxu0 0.0
        %4440 = vmatpush2.msra.mxu0 0.0
        %4441 = vmatprep.subr.mxu0 0.0
        %4442 = vmatpush2.msra.mxu0 0.0
        %4443 = vmatprep.subr.mxu0 0.0
        %4444 = vmatpush2.msra.mxu0 0.0
        %4445 = vmatprep.subr.mxu0 0.0
        %4446 = vmatpush2.msra.mxu0 0.0
        %4447 = vmatprep.mubr.f32.mxu0 0.0
        %v4448 = vand.u32 %v4376, 4294901760
        %v4449 = vsub.f32 %v4376, %v4448
        %v4450 = vand.u32 %v4449, 4294901760
        %v4451 = vsub.f32 %v4449, %v4450
        %v4452 = vand.u32 %v4451, 4294901760
        %4453 = vmatmul.mubr.f32.gmra.mxu0 %v4452
        %v4454 = vpop.f32.mrf.mxu0
        %v4455 = vadd.f32 0.0, %v4454
        %v4456 = vpop.f32.mrf.mxu0
        %4457 = vmatprep.mubr.f32.mxu0 0.0
        %v4458 = vand.u32 %v4379, 4294901760
        %v4459 = vsub.f32 %v4379, %v4458
        %v4460 = vand.u32 %v4459, 4294901760
        %v4461 = vsub.f32 %v4459, %v4460
        %v4462 = vand.u32 %v4461, 4294901760
        %4463 = vmatmul.mubr.f32.gmra.mxu0 %v4462
        %v4464 = vpop.f32.mrf.mxu0
        %v4465 = vadd.f32 0.0, %v4464
        %v4466 = vpop.f32.mrf.mxu0
        %4467 = vdwg.mxu0
        %4468 = vmatprep.subr.mxu0 0.0
        %4469 = vmatpush1.msra.mxu0 0.0
        %4470 = vmatprep.subr.mxu0 0.0
        %4471 = vmatpush1.msra.mxu0 0.0
        %4472 = vmatprep.subr.mxu0 0.0
        %4473 = vmatpush1.msra.mxu0 0.0
        %4474 = vmatprep.subr.mxu0 0.0
        %4475 = vmatpush1.msra.mxu0 0.0
        %4476 = vmatprep.subr.mxu0 0.0
        %4477 = vmatpush1.msra.mxu0 0.0
        %4478 = vmatprep.subr.mxu0 0.0
        %4479 = vmatpush1.msra.mxu0 0.0
        %4480 = vmatprep.subr.mxu0 0.0
        %4481 = vmatpush1.msra.mxu0 0.0
        %4482 = vmatprep.subr.mxu0 0.0
        %4483 = vmatpush1.msra.mxu0 0.0
        %4484 = vmatprep.subr.mxu0 0.0
        %4485 = vmatpush1.msra.mxu0 0.0
        %4486 = vmatprep.subr.mxu0 0.0
        %4487 = vmatpush1.msra.mxu0 0.0
        %4488 = vmatprep.subr.mxu0 0.0
        %4489 = vmatpush1.msra.mxu0 0.0
        %4490 = vmatprep.subr.mxu0 0.0
        %4491 = vmatpush1.msra.mxu0 0.0
        %4492 = vmatprep.subr.mxu0 0.0
        %4493 = vmatpush1.msra.mxu0 0.0
        %4494 = vmatprep.subr.mxu0 0.0
        %4495 = vmatpush1.msra.mxu0 0.0
        %4496 = vmatprep.subr.mxu0 0.0
        %v4497 = vand.u32 %v4372, 4294901760
        %v4498 = vsub.f32 %v4372, %v4497
        %v4499 = vand.u32 %v4498, 4294901760
        %v4500 = vsub.f32 %v4498, %v4499
        %v4501 = vand.u32 %v4500, 4294901760
        %4502 = vmatpush1.msra.mxu0 %v4501
        %4503 = vmatprep.subr.mxu0 0.0
        %v4504 = vand.u32 %v4370, 4294901760
        %v4505 = vsub.f32 %v4370, %v4504
        %v4506 = vand.u32 %v4505, 4294901760
        %v4507 = vsub.f32 %v4505, %v4506
        %v4508 = vand.u32 %v4507, 4294901760
        %4509 = vmatpush1.msra.mxu0 %v4508
        %4510 = vmatprep.subr.mxu0 0.0
        %4511 = vmatpush2.msra.mxu0 0.0
        %4512 = vmatprep.subr.mxu0 0.0
        %4513 = vmatpush2.msra.mxu0 0.0
        %4514 = vmatprep.subr.mxu0 0.0
        %4515 = vmatpush2.msra.mxu0 0.0
        %4516 = vmatprep.subr.mxu0 0.0
        %4517 = vmatpush2.msra.mxu0 0.0
        %4518 = vmatprep.subr.mxu0 0.0
        %4519 = vmatpush2.msra.mxu0 0.0
        %4520 = vmatprep.subr.mxu0 0.0
        %4521 = vmatpush2.msra.mxu0 0.0
        %4522 = vmatprep.subr.mxu0 0.0
        %4523 = vmatpush2.msra.mxu0 0.0
        %4524 = vmatprep.subr.mxu0 0.0
        %4525 = vmatpush2.msra.mxu0 0.0
        %4526 = vmatprep.subr.mxu0 0.0
        %4527 = vmatpush2.msra.mxu0 0.0
        %4528 = vmatprep.subr.mxu0 0.0
        %4529 = vmatpush2.msra.mxu0 0.0
        %4530 = vmatprep.subr.mxu0 0.0
        %4531 = vmatpush2.msra.mxu0 0.0
        %4532 = vmatprep.subr.mxu0 0.0
        %4533 = vmatpush2.msra.mxu0 0.0
        %4534 = vmatprep.subr.mxu0 0.0
        %4535 = vmatpush2.msra.mxu0 0.0
        %4536 = vmatprep.subr.mxu0 0.0
        %4537 = vmatpush2.msra.mxu0 0.0
        %4538 = vmatprep.subr.mxu0 0.0
        %4539 = vmatpush2.msra.mxu0 0.0
        %4540 = vmatprep.subr.mxu0 0.0
        %4541 = vmatpush2.msra.mxu0 0.0
        %4542 = vmatprep.mubr.f32.mxu0 0.0
        %v4543 = vand.u32 %v4376, 4294901760
        %4544 = vmatmul.mubr.f32.gmra.mxu0 %v4543
        %v4545 = vpop.f32.mrf.mxu0
        %v4546 = vadd.f32 %v4455, %v4545
        %v4547 = vpop.f32.mrf.mxu0
        %4548 = vmatprep.mubr.f32.mxu0 0.0
        %v4549 = vand.u32 %v4379, 4294901760
        %4550 = vmatmul.mubr.f32.gmra.mxu0 %v4549
        %v4551 = vpop.f32.mrf.mxu0
        %v4552 = vadd.f32 %v4465, %v4551
        %v4553 = vpop.f32.mrf.mxu0
        %4554 = vdwg.mxu0
        %4555 = vmatprep.subr.mxu0 0.0
        %4556 = vmatpush1.msra.mxu0 0.0
        %4557 = vmatprep.subr.mxu0 0.0
        %4558 = vmatpush1.msra.mxu0 0.0
        %4559 = vmatprep.subr.mxu0 0.0
        %4560 = vmatpush1.msra.mxu0 0.0
        %4561 = vmatprep.subr.mxu0 0.0
        %4562 = vmatpush1.msra.mxu0 0.0
        %4563 = vmatprep.subr.mxu0 0.0
        %4564 = vmatpush1.msra.mxu0 0.0
        %4565 = vmatprep.subr.mxu0 0.0
        %4566 = vmatpush1.msra.mxu0 0.0
        %4567 = vmatprep.subr.mxu0 0.0
        %4568 = vmatpush1.msra.mxu0 0.0
        %4569 = vmatprep.subr.mxu0 0.0
        %4570 = vmatpush1.msra.mxu0 0.0
        %4571 = vmatprep.subr.mxu0 0.0
        %4572 = vmatpush1.msra.mxu0 0.0
        %4573 = vmatprep.subr.mxu0 0.0
        %4574 = vmatpush1.msra.mxu0 0.0
        %4575 = vmatprep.subr.mxu0 0.0
        %4576 = vmatpush1.msra.mxu0 0.0
        %4577 = vmatprep.subr.mxu0 0.0
        %4578 = vmatpush1.msra.mxu0 0.0
        %4579 = vmatprep.subr.mxu0 0.0
        %4580 = vmatpush1.msra.mxu0 0.0
        %4581 = vmatprep.subr.mxu0 0.0
        %4582 = vmatpush1.msra.mxu0 0.0
        %4583 = vmatprep.subr.mxu0 0.0
        %v4584 = vand.u32 %v4372, 4294901760
        %v4585 = vsub.f32 %v4372, %v4584
        %4586 = vmatpush1.msra.mxu0 %v4585
        %4587 = vmatprep.subr.mxu0 0.0
        %v4588 = vand.u32 %v4370, 4294901760
        %v4589 = vsub.f32 %v4370, %v4588
        %4590 = vmatpush1.msra.mxu0 %v4589
        %4591 = vmatprep.subr.mxu0 0.0
        %4592 = vmatpush2.msra.mxu0 0.0
        %4593 = vmatprep.subr.mxu0 0.0
        %4594 = vmatpush2.msra.mxu0 0.0
        %4595 = vmatprep.subr.mxu0 0.0
        %4596 = vmatpush2.msra.mxu0 0.0
        %4597 = vmatprep.subr.mxu0 0.0
        %4598 = vmatpush2.msra.mxu0 0.0
        %4599 = vmatprep.subr.mxu0 0.0
        %4600 = vmatpush2.msra.mxu0 0.0
        %4601 = vmatprep.subr.mxu0 0.0
        %4602 = vmatpush2.msra.mxu0 0.0
        %4603 = vmatprep.subr.mxu0 0.0
        %4604 = vmatpush2.msra.mxu0 0.0
        %4605 = vmatprep.subr.mxu0 0.0
        %4606 = vmatpush2.msra.mxu0 0.0
        %4607 = vmatprep.subr.mxu0 0.0
        %4608 = vmatpush2.msra.mxu0 0.0
        %4609 = vmatprep.subr.mxu0 0.0
        %4610 = vmatpush2.msra.mxu0 0.0
        %4611 = vmatprep.subr.mxu0 0.0
        %4612 = vmatpush2.msra.mxu0 0.0
        %4613 = vmatprep.subr.mxu0 0.0
        %4614 = vmatpush2.msra.mxu0 0.0
        %4615 = vmatprep.subr.mxu0 0.0
        %4616 = vmatpush2.msra.mxu0 0.0
        %4617 = vmatprep.subr.mxu0 0.0
        %4618 = vmatpush2.msra.mxu0 0.0
        %4619 = vmatprep.subr.mxu0 0.0
        %4620 = vmatpush2.msra.mxu0 0.0
        %4621 = vmatprep.subr.mxu0 0.0
        %4622 = vmatpush2.msra.mxu0 0.0
        %4623 = vmatprep.mubr.f32.mxu0 0.0
        %v4624 = vand.u32 %v4376, 4294901760
        %v4625 = vsub.f32 %v4376, %v4624
        %4626 = vmatmul.mubr.f32.gmra.mxu0 %v4625
        %v4627 = vpop.f32.mrf.mxu0
        %v4628 = vadd.f32 %v4546, %v4627
        %v4629 = vpop.f32.mrf.mxu0
        %4630 = vmatprep.mubr.f32.mxu0 0.0
        %v4631 = vand.u32 %v4379, 4294901760
        %v4632 = vsub.f32 %v4379, %v4631
        %4633 = vmatmul.mubr.f32.gmra.mxu0 %v4632
        %v4634 = vpop.f32.mrf.mxu0
        %v4635 = vadd.f32 %v4552, %v4634
        %v4636 = vpop.f32.mrf.mxu0
        %4637 = vdwg.mxu0
        %4638 = vmatprep.subr.mxu0 0.0
        %4639 = vmatpush1.msra.mxu0 0.0
        %4640 = vmatprep.subr.mxu0 0.0
        %4641 = vmatpush1.msra.mxu0 0.0
        %4642 = vmatprep.subr.mxu0 0.0
        %4643 = vmatpush1.msra.mxu0 0.0
        %4644 = vmatprep.subr.mxu0 0.0
        %4645 = vmatpush1.msra.mxu0 0.0
        %4646 = vmatprep.subr.mxu0 0.0
        %4647 = vmatpush1.msra.mxu0 0.0
        %4648 = vmatprep.subr.mxu0 0.0
        %4649 = vmatpush1.msra.mxu0 0.0
        %4650 = vmatprep.subr.mxu0 0.0
        %4651 = vmatpush1.msra.mxu0 0.0
        %4652 = vmatprep.subr.mxu0 0.0
        %4653 = vmatpush1.msra.mxu0 0.0
        %4654 = vmatprep.subr.mxu0 0.0
        %4655 = vmatpush1.msra.mxu0 0.0
        %4656 = vmatprep.subr.mxu0 0.0
        %4657 = vmatpush1.msra.mxu0 0.0
        %4658 = vmatprep.subr.mxu0 0.0
        %4659 = vmatpush1.msra.mxu0 0.0
        %4660 = vmatprep.subr.mxu0 0.0
        %4661 = vmatpush1.msra.mxu0 0.0
        %4662 = vmatprep.subr.mxu0 0.0
        %4663 = vmatpush1.msra.mxu0 0.0
        %4664 = vmatprep.subr.mxu0 0.0
        %4665 = vmatpush1.msra.mxu0 0.0
        %4666 = vmatprep.subr.mxu0 0.0
        %v4667 = vand.u32 %v4372, 4294901760
        %4668 = vmatpush1.msra.mxu0 %v4667
        %4669 = vmatprep.subr.mxu0 0.0
        %v4670 = vand.u32 %v4370, 4294901760
        %4671 = vmatpush1.msra.mxu0 %v4670
        %4672 = vmatprep.subr.mxu0 0.0
        %4673 = vmatpush2.msra.mxu0 0.0
        %4674 = vmatprep.subr.mxu0 0.0
        %4675 = vmatpush2.msra.mxu0 0.0
        %4676 = vmatprep.subr.mxu0 0.0
        %4677 = vmatpush2.msra.mxu0 0.0
        %4678 = vmatprep.subr.mxu0 0.0
        %4679 = vmatpush2.msra.mxu0 0.0
        %4680 = vmatprep.subr.mxu0 0.0
        %4681 = vmatpush2.msra.mxu0 0.0
        %4682 = vmatprep.subr.mxu0 0.0
        %4683 = vmatpush2.msra.mxu0 0.0
        %4684 = vmatprep.subr.mxu0 0.0
        %4685 = vmatpush2.msra.mxu0 0.0
        %4686 = vmatprep.subr.mxu0 0.0
        %4687 = vmatpush2.msra.mxu0 0.0
        %4688 = vmatprep.subr.mxu0 0.0
        %4689 = vmatpush2.msra.mxu0 0.0
        %4690 = vmatprep.subr.mxu0 0.0
        %4691 = vmatpush2.msra.mxu0 0.0
        %4692 = vmatprep.subr.mxu0 0.0
        %4693 = vmatpush2.msra.mxu0 0.0
        %4694 = vmatprep.subr.mxu0 0.0
        %4695 = vmatpush2.msra.mxu0 0.0
        %4696 = vmatprep.subr.mxu0 0.0
        %4697 = vmatpush2.msra.mxu0 0.0
        %4698 = vmatprep.subr.mxu0 0.0
        %4699 = vmatpush2.msra.mxu0 0.0
        %4700 = vmatprep.subr.mxu0 0.0
        %4701 = vmatpush2.msra.mxu0 0.0
        %4702 = vmatprep.subr.mxu0 0.0
        %4703 = vmatpush2.msra.mxu0 0.0
        %4704 = vmatprep.mubr.f32.mxu0 0.0
        %v4705 = vand.u32 %v4376, 4294901760
        %v4706 = vsub.f32 %v4376, %v4705
        %v4707 = vand.u32 %v4706, 4294901760
        %4708 = vmatmul.mubr.f32.gmra.mxu0 %v4707
        %v4709 = vpop.f32.mrf.mxu0
        %v4710 = vadd.f32 %v4628, %v4709
        %v4711 = vpop.f32.mrf.mxu0
        %4712 = vmatprep.mubr.f32.mxu0 0.0
        %v4713 = vand.u32 %v4379, 4294901760
        %v4714 = vsub.f32 %v4379, %v4713
        %v4715 = vand.u32 %v4714, 4294901760
        %4716 = vmatmul.mubr.f32.gmra.mxu0 %v4715
        %v4717 = vpop.f32.mrf.mxu0
        %v4718 = vadd.f32 %v4635, %v4717
        %v4719 = vpop.f32.mrf.mxu0
        %4720 = vdwg.mxu0
        %4721 = vmatprep.subr.mxu0 0.0
        %4722 = vmatpush1.msra.mxu0 0.0
        %4723 = vmatprep.subr.mxu0 0.0
        %4724 = vmatpush1.msra.mxu0 0.0
        %4725 = vmatprep.subr.mxu0 0.0
        %4726 = vmatpush1.msra.mxu0 0.0
        %4727 = vmatprep.subr.mxu0 0.0
        %4728 = vmatpush1.msra.mxu0 0.0
        %4729 = vmatprep.subr.mxu0 0.0
        %4730 = vmatpush1.msra.mxu0 0.0
        %4731 = vmatprep.subr.mxu0 0.0
        %4732 = vmatpush1.msra.mxu0 0.0
        %4733 = vmatprep.subr.mxu0 0.0
        %4734 = vmatpush1.msra.mxu0 0.0
        %4735 = vmatprep.subr.mxu0 0.0
        %4736 = vmatpush1.msra.mxu0 0.0
        %4737 = vmatprep.subr.mxu0 0.0
        %4738 = vmatpush1.msra.mxu0 0.0
        %4739 = vmatprep.subr.mxu0 0.0
        %4740 = vmatpush1.msra.mxu0 0.0
        %4741 = vmatprep.subr.mxu0 0.0
        %4742 = vmatpush1.msra.mxu0 0.0
        %4743 = vmatprep.subr.mxu0 0.0
        %4744 = vmatpush1.msra.mxu0 0.0
        %4745 = vmatprep.subr.mxu0 0.0
        %4746 = vmatpush1.msra.mxu0 0.0
        %4747 = vmatprep.subr.mxu0 0.0
        %4748 = vmatpush1.msra.mxu0 0.0
        %4749 = vmatprep.subr.mxu0 0.0
        %v4750 = vand.u32 %v4372, 4294901760
        %v4751 = vsub.f32 %v4372, %v4750
        %v4752 = vand.u32 %v4751, 4294901760
        %4753 = vmatpush1.msra.mxu0 %v4752
        %4754 = vmatprep.subr.mxu0 0.0
        %v4755 = vand.u32 %v4370, 4294901760
        %v4756 = vsub.f32 %v4370, %v4755
        %v4757 = vand.u32 %v4756, 4294901760
        %4758 = vmatpush1.msra.mxu0 %v4757
        %4759 = vmatprep.subr.mxu0 0.0
        %4760 = vmatpush2.msra.mxu0 0.0
        %4761 = vmatprep.subr.mxu0 0.0
        %4762 = vmatpush2.msra.mxu0 0.0
        %4763 = vmatprep.subr.mxu0 0.0
        %4764 = vmatpush2.msra.mxu0 0.0
        %4765 = vmatprep.subr.mxu0 0.0
        %4766 = vmatpush2.msra.mxu0 0.0
        %4767 = vmatprep.subr.mxu0 0.0
        %4768 = vmatpush2.msra.mxu0 0.0
        %4769 = vmatprep.subr.mxu0 0.0
        %4770 = vmatpush2.msra.mxu0 0.0
        %4771 = vmatprep.subr.mxu0 0.0
        %4772 = vmatpush2.msra.mxu0 0.0
        %4773 = vmatprep.subr.mxu0 0.0
        %4774 = vmatpush2.msra.mxu0 0.0
        %4775 = vmatprep.subr.mxu0 0.0
        %4776 = vmatpush2.msra.mxu0 0.0
        %4777 = vmatprep.subr.mxu0 0.0
        %4778 = vmatpush2.msra.mxu0 0.0
        %4779 = vmatprep.subr.mxu0 0.0
        %4780 = vmatpush2.msra.mxu0 0.0
        %4781 = vmatprep.subr.mxu0 0.0
        %4782 = vmatpush2.msra.mxu0 0.0
        %4783 = vmatprep.subr.mxu0 0.0
        %4784 = vmatpush2.msra.mxu0 0.0
        %4785 = vmatprep.subr.mxu0 0.0
        %4786 = vmatpush2.msra.mxu0 0.0
        %4787 = vmatprep.subr.mxu0 0.0
        %4788 = vmatpush2.msra.mxu0 0.0
        %4789 = vmatprep.subr.mxu0 0.0
        %4790 = vmatpush2.msra.mxu0 0.0
        %4791 = vmatprep.mubr.f32.mxu0 0.0
        %v4792 = vand.u32 %v4376, 4294901760
        %4793 = vmatmul.mubr.f32.gmra.mxu0 %v4792
        %v4794 = vpop.f32.mrf.mxu0
        %v4795 = vadd.f32 %v4710, %v4794
        %v4796 = vpop.f32.mrf.mxu0
        %4797 = vmatprep.mubr.f32.mxu0 0.0
        %v4798 = vand.u32 %v4379, 4294901760
        %4799 = vmatmul.mubr.f32.gmra.mxu0 %v4798
        %v4800 = vpop.f32.mrf.mxu0
        %v4801 = vadd.f32 %v4718, %v4800
        %v4802 = vpop.f32.mrf.mxu0
        %4803 = vdwg.mxu0
        %4804 = vmatprep.subr.mxu0 0.0
        %4805 = vmatpush1.msra.mxu0 0.0
        %4806 = vmatprep.subr.mxu0 0.0
        %4807 = vmatpush1.msra.mxu0 0.0
        %4808 = vmatprep.subr.mxu0 0.0
        %4809 = vmatpush1.msra.mxu0 0.0
        %4810 = vmatprep.subr.mxu0 0.0
        %4811 = vmatpush1.msra.mxu0 0.0
        %4812 = vmatprep.subr.mxu0 0.0
        %4813 = vmatpush1.msra.mxu0 0.0
        %4814 = vmatprep.subr.mxu0 0.0
        %4815 = vmatpush1.msra.mxu0 0.0
        %4816 = vmatprep.subr.mxu0 0.0
        %4817 = vmatpush1.msra.mxu0 0.0
        %4818 = vmatprep.subr.mxu0 0.0
        %4819 = vmatpush1.msra.mxu0 0.0
        %4820 = vmatprep.subr.mxu0 0.0
        %4821 = vmatpush1.msra.mxu0 0.0
        %4822 = vmatprep.subr.mxu0 0.0
        %4823 = vmatpush1.msra.mxu0 0.0
        %4824 = vmatprep.subr.mxu0 0.0
        %4825 = vmatpush1.msra.mxu0 0.0
        %4826 = vmatprep.subr.mxu0 0.0
        %4827 = vmatpush1.msra.mxu0 0.0
        %4828 = vmatprep.subr.mxu0 0.0
        %4829 = vmatpush1.msra.mxu0 0.0
        %4830 = vmatprep.subr.mxu0 0.0
        %4831 = vmatpush1.msra.mxu0 0.0
        %4832 = vmatprep.subr.mxu0 0.0
        %v4833 = vand.u32 %v4372, 4294901760
        %4834 = vmatpush1.msra.mxu0 %v4833
        %4835 = vmatprep.subr.mxu0 0.0
        %v4836 = vand.u32 %v4370, 4294901760
        %4837 = vmatpush1.msra.mxu0 %v4836
        %4838 = vmatprep.subr.mxu0 0.0
        %4839 = vmatpush2.msra.mxu0 0.0
        %4840 = vmatprep.subr.mxu0 0.0
        %4841 = vmatpush2.msra.mxu0 0.0
        %4842 = vmatprep.subr.mxu0 0.0
        %4843 = vmatpush2.msra.mxu0 0.0
        %4844 = vmatprep.subr.mxu0 0.0
        %4845 = vmatpush2.msra.mxu0 0.0
        %4846 = vmatprep.subr.mxu0 0.0
        %4847 = vmatpush2.msra.mxu0 0.0
        %4848 = vmatprep.subr.mxu0 0.0
        %4849 = vmatpush2.msra.mxu0 0.0
        %4850 = vmatprep.subr.mxu0 0.0
        %4851 = vmatpush2.msra.mxu0 0.0
        %4852 = vmatprep.subr.mxu0 0.0
        %4853 = vmatpush2.msra.mxu0 0.0
        %4854 = vmatprep.subr.mxu0 0.0
        %4855 = vmatpush2.msra.mxu0 0.0
        %4856 = vmatprep.subr.mxu0 0.0
        %4857 = vmatpush2.msra.mxu0 0.0
        %4858 = vmatprep.subr.mxu0 0.0
        %4859 = vmatpush2.msra.mxu0 0.0
        %4860 = vmatprep.subr.mxu0 0.0
        %4861 = vmatpush2.msra.mxu0 0.0
        %4862 = vmatprep.subr.mxu0 0.0
        %4863 = vmatpush2.msra.mxu0 0.0
        %4864 = vmatprep.subr.mxu0 0.0
        %4865 = vmatpush2.msra.mxu0 0.0
        %4866 = vmatprep.subr.mxu0 0.0
        %4867 = vmatpush2.msra.mxu0 0.0
        %4868 = vmatprep.subr.mxu0 0.0
        %4869 = vmatpush2.msra.mxu0 0.0
        %4870 = vmatprep.mubr.f32.mxu0 0.0
        %v4871 = vand.u32 %v4376, 4294901760
        %4872 = vmatmul.mubr.f32.gmra.mxu0 %v4871
        %v4873 = vpop.f32.mrf.mxu0
        %v4874 = vadd.f32 %v4795, %v4873
        %v4875 = vpop.f32.mrf.mxu0
        %4876 = vmatprep.mubr.f32.mxu0 0.0
        %v4877 = vand.u32 %v4379, 4294901760
        %4878 = vmatmul.mubr.f32.gmra.mxu0 %v4877
        %v4879 = vpop.f32.mrf.mxu0
        %v4880 = vadd.f32 %v4801, %v4879
        %v4881 = vpop.f32.mrf.mxu0
        %4882 = vdwg.mxu0
        %4883 = vrot.lane.b32.xlu0 %v1169, 104
        %v4884 = vpop.permute.xlu0 %4883
        %4885 = vrot.lane.b32.xlu0 %v1175, 104
        %v4886 = vpop.permute.xlu0 %4885
        %4887 = vrot.lane.b32.xlu0 %v1169, 72
        %v4888 = vpop.permute.xlu0 %4887
        %4889 = vrot.lane.b32.xlu0 %v1175, 72
        %v4890 = vpop.permute.xlu0 %4889
        %v4891 = vsel %vm1731, %v4884, 0
        %v4893 = vsel %vm1731, %v4886, 0
        %v4895 = vsel %vm1731, %v4888, 0
        %v4897 = vsel %vm1731, %v4890, 0
        %4899 = vmatprep.subr.mxu0 0.0
        %4900 = vmatpush1.xpose.msra.mxu0 0.0
        %4901 = vmatprep.subr.mxu0 0.0
        %4902 = vmatpush1.xpose.msra.mxu0 0.0
        %4903 = vmatprep.subr.mxu0 0.0
        %4904 = vmatpush1.xpose.msra.mxu0 0.0
        %4905 = vmatprep.subr.mxu0 0.0
        %4906 = vmatpush1.xpose.msra.mxu0 0.0
        %4907 = vmatprep.subr.mxu0 0.0
        %4908 = vmatpush1.xpose.msra.mxu0 0.0
        %4909 = vmatprep.subr.mxu0 0.0
        %4910 = vmatpush1.xpose.msra.mxu0 0.0
        %4911 = vmatprep.subr.mxu0 0.0
        %4912 = vmatpush1.xpose.msra.mxu0 0.0
        %4913 = vmatprep.subr.mxu0 0.0
        %4914 = vmatpush1.xpose.msra.mxu0 0.0
        %4915 = vmatprep.subr.mxu0 0.0
        %4916 = vmatpush1.xpose.msra.mxu0 0.0
        %4917 = vmatprep.subr.mxu0 0.0
        %4918 = vmatpush1.xpose.msra.mxu0 0.0
        %4919 = vmatprep.subr.mxu0 0.0
        %4920 = vmatpush1.xpose.msra.mxu0 0.0
        %4921 = vmatprep.subr.mxu0 0.0
        %4922 = vmatpush1.xpose.msra.mxu0 0.0
        %4923 = vmatprep.subr.mxu0 0.0
        %4924 = vmatpush1.xpose.msra.mxu0 0.0
        %4925 = vmatprep.subr.mxu0 0.0
        %4926 = vmatpush1.xpose.msra.mxu0 0.0
        %4927 = vmatprep.subr.mxu0 0.0
        %v4928 = vand.u32 %v4897, 4294901760
        %4929 = vmatpush1.xpose.msra.mxu0 %v4928
        %4930 = vmatprep.subr.mxu0 0.0
        %v4931 = vand.u32 %v4895, 4294901760
        %4932 = vmatpush1.xpose.msra.mxu0 %v4931
        %4933 = vmatprep.subr.mxu0 0.0
        %4934 = vmatpush2.xpose.msra.mxu0 0.0
        %4935 = vmatprep.subr.mxu0 0.0
        %4936 = vmatpush2.xpose.msra.mxu0 0.0
        %4937 = vmatprep.subr.mxu0 0.0
        %4938 = vmatpush2.xpose.msra.mxu0 0.0
        %4939 = vmatprep.subr.mxu0 0.0
        %4940 = vmatpush2.xpose.msra.mxu0 0.0
        %4941 = vmatprep.subr.mxu0 0.0
        %4942 = vmatpush2.xpose.msra.mxu0 0.0
        %4943 = vmatprep.subr.mxu0 0.0
        %4944 = vmatpush2.xpose.msra.mxu0 0.0
        %4945 = vmatprep.subr.mxu0 0.0
        %4946 = vmatpush2.xpose.msra.mxu0 0.0
        %4947 = vmatprep.subr.mxu0 0.0
        %4948 = vmatpush2.xpose.msra.mxu0 0.0
        %4949 = vmatprep.subr.mxu0 0.0
        %4950 = vmatpush2.xpose.msra.mxu0 0.0
        %4951 = vmatprep.subr.mxu0 0.0
        %4952 = vmatpush2.xpose.msra.mxu0 0.0
        %4953 = vmatprep.subr.mxu0 0.0
        %4954 = vmatpush2.xpose.msra.mxu0 0.0
        %4955 = vmatprep.subr.mxu0 0.0
        %4956 = vmatpush2.xpose.msra.mxu0 0.0
        %4957 = vmatprep.subr.mxu0 0.0
        %4958 = vmatpush2.xpose.msra.mxu0 0.0
        %4959 = vmatprep.subr.mxu0 0.0
        %4960 = vmatpush2.xpose.msra.mxu0 0.0
        %4961 = vmatprep.subr.mxu0 0.0
        %4962 = vmatpush2.xpose.msra.mxu0 0.0
        %4963 = vmatprep.subr.mxu0 0.0
        %4964 = vmatpush2.xpose.msra.mxu0 0.0
        %4965 = vmatprep.mubr.f32.mxu0 0.0
        %v4966 = vand.u32 %v4891, 4294901760
        %v4967 = vsub.f32 %v4891, %v4966
        %v4968 = vand.u32 %v4967, 4294901760
        %v4969 = vsub.f32 %v4967, %v4968
        %v4970 = vand.u32 %v4969, 4294901760
        %4971 = vmatmul.mubr.f32.gmra.mxu0 %v4970
        %v4972 = vpop.f32.mrf.mxu0
        %v4973 = vadd.f32 %v1723, %v4972
        %v4974 = vpop.f32.mrf.mxu0
        %4975 = vmatprep.mubr.f32.mxu0 0.0
        %v4976 = vand.u32 %v4893, 4294901760
        %v4977 = vsub.f32 %v4893, %v4976
        %v4978 = vand.u32 %v4977, 4294901760
        %v4979 = vsub.f32 %v4977, %v4978
        %v4980 = vand.u32 %v4979, 4294901760
        %4981 = vmatmul.mubr.f32.gmra.mxu0 %v4980
        %v4982 = vpop.f32.mrf.mxu0
        %v4983 = vadd.f32 %v1724, %v4982
        %v4984 = vpop.f32.mrf.mxu0
        %4985 = vdwg.mxu0
        %4986 = vmatprep.subr.mxu0 0.0
        %4987 = vmatpush1.xpose.msra.mxu0 0.0
        %4988 = vmatprep.subr.mxu0 0.0
        %4989 = vmatpush1.xpose.msra.mxu0 0.0
        %4990 = vmatprep.subr.mxu0 0.0
        %4991 = vmatpush1.xpose.msra.mxu0 0.0
        %4992 = vmatprep.subr.mxu0 0.0
        %4993 = vmatpush1.xpose.msra.mxu0 0.0
        %4994 = vmatprep.subr.mxu0 0.0
        %4995 = vmatpush1.xpose.msra.mxu0 0.0
        %4996 = vmatprep.subr.mxu0 0.0
        %4997 = vmatpush1.xpose.msra.mxu0 0.0
        %4998 = vmatprep.subr.mxu0 0.0
        %4999 = vmatpush1.xpose.msra.mxu0 0.0
        %5000 = vmatprep.subr.mxu0 0.0
        %5001 = vmatpush1.xpose.msra.mxu0 0.0
        %5002 = vmatprep.subr.mxu0 0.0
        %5003 = vmatpush1.xpose.msra.mxu0 0.0
        %5004 = vmatprep.subr.mxu0 0.0
        %5005 = vmatpush1.xpose.msra.mxu0 0.0
        %5006 = vmatprep.subr.mxu0 0.0
        %5007 = vmatpush1.xpose.msra.mxu0 0.0
        %5008 = vmatprep.subr.mxu0 0.0
        %5009 = vmatpush1.xpose.msra.mxu0 0.0
        %5010 = vmatprep.subr.mxu0 0.0
        %5011 = vmatpush1.xpose.msra.mxu0 0.0
        %5012 = vmatprep.subr.mxu0 0.0
        %5013 = vmatpush1.xpose.msra.mxu0 0.0
        %5014 = vmatprep.subr.mxu0 0.0
        %v5015 = vand.u32 %v4897, 4294901760
        %v5016 = vsub.f32 %v4897, %v5015
        %v5017 = vand.u32 %v5016, 4294901760
        %v5018 = vsub.f32 %v5016, %v5017
        %v5019 = vand.u32 %v5018, 4294901760
        %5020 = vmatpush1.xpose.msra.mxu0 %v5019
        %5021 = vmatprep.subr.mxu0 0.0
        %v5022 = vand.u32 %v4895, 4294901760
        %v5023 = vsub.f32 %v4895, %v5022
        %v5024 = vand.u32 %v5023, 4294901760
        %v5025 = vsub.f32 %v5023, %v5024
        %v5026 = vand.u32 %v5025, 4294901760
        %5027 = vmatpush1.xpose.msra.mxu0 %v5026
        %5028 = vmatprep.subr.mxu0 0.0
        %5029 = vmatpush2.xpose.msra.mxu0 0.0
        %5030 = vmatprep.subr.mxu0 0.0
        %5031 = vmatpush2.xpose.msra.mxu0 0.0
        %5032 = vmatprep.subr.mxu0 0.0
        %5033 = vmatpush2.xpose.msra.mxu0 0.0
        %5034 = vmatprep.subr.mxu0 0.0
        %5035 = vmatpush2.xpose.msra.mxu0 0.0
        %5036 = vmatprep.subr.mxu0 0.0
        %5037 = vmatpush2.xpose.msra.mxu0 0.0
        %5038 = vmatprep.subr.mxu0 0.0
        %5039 = vmatpush2.xpose.msra.mxu0 0.0
        %5040 = vmatprep.subr.mxu0 0.0
        %5041 = vmatpush2.xpose.msra.mxu0 0.0
        %5042 = vmatprep.subr.mxu0 0.0
        %5043 = vmatpush2.xpose.msra.mxu0 0.0
        %5044 = vmatprep.subr.mxu0 0.0
        %5045 = vmatpush2.xpose.msra.mxu0 0.0
        %5046 = vmatprep.subr.mxu0 0.0
        %5047 = vmatpush2.xpose.msra.mxu0 0.0
        %5048 = vmatprep.subr.mxu0 0.0
        %5049 = vmatpush2.xpose.msra.mxu0 0.0
        %5050 = vmatprep.subr.mxu0 0.0
        %5051 = vmatpush2.xpose.msra.mxu0 0.0
        %5052 = vmatprep.subr.mxu0 0.0
        %5053 = vmatpush2.xpose.msra.mxu0 0.0
        %5054 = vmatprep.subr.mxu0 0.0
        %5055 = vmatpush2.xpose.msra.mxu0 0.0
        %5056 = vmatprep.subr.mxu0 0.0
        %5057 = vmatpush2.xpose.msra.mxu0 0.0
        %5058 = vmatprep.subr.mxu0 0.0
        %5059 = vmatpush2.xpose.msra.mxu0 0.0
        %5060 = vmatprep.mubr.f32.mxu0 0.0
        %v5061 = vand.u32 %v4891, 4294901760
        %5062 = vmatmul.mubr.f32.gmra.mxu0 %v5061
        %v5063 = vpop.f32.mrf.mxu0
        %v5064 = vadd.f32 %v4973, %v5063
        %v5065 = vpop.f32.mrf.mxu0
        %5066 = vmatprep.mubr.f32.mxu0 0.0
        %v5067 = vand.u32 %v4893, 4294901760
        %5068 = vmatmul.mubr.f32.gmra.mxu0 %v5067
        %v5069 = vpop.f32.mrf.mxu0
        %v5070 = vadd.f32 %v4983, %v5069
        %v5071 = vpop.f32.mrf.mxu0
        %5072 = vdwg.mxu0
        %5073 = vmatprep.subr.mxu0 0.0
        %5074 = vmatpush1.xpose.msra.mxu0 0.0
        %5075 = vmatprep.subr.mxu0 0.0
        %5076 = vmatpush1.xpose.msra.mxu0 0.0
        %5077 = vmatprep.subr.mxu0 0.0
        %5078 = vmatpush1.xpose.msra.mxu0 0.0
        %5079 = vmatprep.subr.mxu0 0.0
        %5080 = vmatpush1.xpose.msra.mxu0 0.0
        %5081 = vmatprep.subr.mxu0 0.0
        %5082 = vmatpush1.xpose.msra.mxu0 0.0
        %5083 = vmatprep.subr.mxu0 0.0
        %5084 = vmatpush1.xpose.msra.mxu0 0.0
        %5085 = vmatprep.subr.mxu0 0.0
        %5086 = vmatpush1.xpose.msra.mxu0 0.0
        %5087 = vmatprep.subr.mxu0 0.0
        %5088 = vmatpush1.xpose.msra.mxu0 0.0
        %5089 = vmatprep.subr.mxu0 0.0
        %5090 = vmatpush1.xpose.msra.mxu0 0.0
        %5091 = vmatprep.subr.mxu0 0.0
        %5092 = vmatpush1.xpose.msra.mxu0 0.0
        %5093 = vmatprep.subr.mxu0 0.0
        %5094 = vmatpush1.xpose.msra.mxu0 0.0
        %5095 = vmatprep.subr.mxu0 0.0
        %5096 = vmatpush1.xpose.msra.mxu0 0.0
        %5097 = vmatprep.subr.mxu0 0.0
        %5098 = vmatpush1.xpose.msra.mxu0 0.0
        %5099 = vmatprep.subr.mxu0 0.0
        %5100 = vmatpush1.xpose.msra.mxu0 0.0
        %5101 = vmatprep.subr.mxu0 0.0
        %v5102 = vand.u32 %v4897, 4294901760
        %v5103 = vsub.f32 %v4897, %v5102
        %5104 = vmatpush1.xpose.msra.mxu0 %v5103
        %5105 = vmatprep.subr.mxu0 0.0
        %v5106 = vand.u32 %v4895, 4294901760
        %v5107 = vsub.f32 %v4895, %v5106
        %5108 = vmatpush1.xpose.msra.mxu0 %v5107
        %5109 = vmatprep.subr.mxu0 0.0
        %5110 = vmatpush2.xpose.msra.mxu0 0.0
        %5111 = vmatprep.subr.mxu0 0.0
        %5112 = vmatpush2.xpose.msra.mxu0 0.0
        %5113 = vmatprep.subr.mxu0 0.0
        %5114 = vmatpush2.xpose.msra.mxu0 0.0
        %5115 = vmatprep.subr.mxu0 0.0
        %5116 = vmatpush2.xpose.msra.mxu0 0.0
        %5117 = vmatprep.subr.mxu0 0.0
        %5118 = vmatpush2.xpose.msra.mxu0 0.0
        %5119 = vmatprep.subr.mxu0 0.0
        %5120 = vmatpush2.xpose.msra.mxu0 0.0
        %5121 = vmatprep.subr.mxu0 0.0
        %5122 = vmatpush2.xpose.msra.mxu0 0.0
        %5123 = vmatprep.subr.mxu0 0.0
        %5124 = vmatpush2.xpose.msra.mxu0 0.0
        %5125 = vmatprep.subr.mxu0 0.0
        %5126 = vmatpush2.xpose.msra.mxu0 0.0
        %5127 = vmatprep.subr.mxu0 0.0
        %5128 = vmatpush2.xpose.msra.mxu0 0.0
        %5129 = vmatprep.subr.mxu0 0.0
        %5130 = vmatpush2.xpose.msra.mxu0 0.0
        %5131 = vmatprep.subr.mxu0 0.0
        %5132 = vmatpush2.xpose.msra.mxu0 0.0
        %5133 = vmatprep.subr.mxu0 0.0
        %5134 = vmatpush2.xpose.msra.mxu0 0.0
        %5135 = vmatprep.subr.mxu0 0.0
        %5136 = vmatpush2.xpose.msra.mxu0 0.0
        %5137 = vmatprep.subr.mxu0 0.0
        %5138 = vmatpush2.xpose.msra.mxu0 0.0
        %5139 = vmatprep.subr.mxu0 0.0
        %5140 = vmatpush2.xpose.msra.mxu0 0.0
        %5141 = vmatprep.mubr.f32.mxu0 0.0
        %v5142 = vand.u32 %v4891, 4294901760
        %v5143 = vsub.f32 %v4891, %v5142
        %5144 = vmatmul.mubr.f32.gmra.mxu0 %v5143
        %v5145 = vpop.f32.mrf.mxu0
        %v5146 = vadd.f32 %v5064, %v5145
        %v5147 = vpop.f32.mrf.mxu0
        %5148 = vmatprep.mubr.f32.mxu0 0.0
        %v5149 = vand.u32 %v4893, 4294901760
        %v5150 = vsub.f32 %v4893, %v5149
        %5151 = vmatmul.mubr.f32.gmra.mxu0 %v5150
        %v5152 = vpop.f32.mrf.mxu0
        %v5153 = vadd.f32 %v5070, %v5152
        %v5154 = vpop.f32.mrf.mxu0
        %5155 = vdwg.mxu0
        %5156 = vmatprep.subr.mxu0 0.0
        %5157 = vmatpush1.xpose.msra.mxu0 0.0
        %5158 = vmatprep.subr.mxu0 0.0
        %5159 = vmatpush1.xpose.msra.mxu0 0.0
        %5160 = vmatprep.subr.mxu0 0.0
        %5161 = vmatpush1.xpose.msra.mxu0 0.0
        %5162 = vmatprep.subr.mxu0 0.0
        %5163 = vmatpush1.xpose.msra.mxu0 0.0
        %5164 = vmatprep.subr.mxu0 0.0
        %5165 = vmatpush1.xpose.msra.mxu0 0.0
        %5166 = vmatprep.subr.mxu0 0.0
        %5167 = vmatpush1.xpose.msra.mxu0 0.0
        %5168 = vmatprep.subr.mxu0 0.0
        %5169 = vmatpush1.xpose.msra.mxu0 0.0
        %5170 = vmatprep.subr.mxu0 0.0
        %5171 = vmatpush1.xpose.msra.mxu0 0.0
        %5172 = vmatprep.subr.mxu0 0.0
        %5173 = vmatpush1.xpose.msra.mxu0 0.0
        %5174 = vmatprep.subr.mxu0 0.0
        %5175 = vmatpush1.xpose.msra.mxu0 0.0
        %5176 = vmatprep.subr.mxu0 0.0
        %5177 = vmatpush1.xpose.msra.mxu0 0.0
        %5178 = vmatprep.subr.mxu0 0.0
        %5179 = vmatpush1.xpose.msra.mxu0 0.0
        %5180 = vmatprep.subr.mxu0 0.0
        %5181 = vmatpush1.xpose.msra.mxu0 0.0
        %5182 = vmatprep.subr.mxu0 0.0
        %5183 = vmatpush1.xpose.msra.mxu0 0.0
        %5184 = vmatprep.subr.mxu0 0.0
        %v5185 = vand.u32 %v4897, 4294901760
        %5186 = vmatpush1.xpose.msra.mxu0 %v5185
        %5187 = vmatprep.subr.mxu0 0.0
        %v5188 = vand.u32 %v4895, 4294901760
        %5189 = vmatpush1.xpose.msra.mxu0 %v5188
        %5190 = vmatprep.subr.mxu0 0.0
        %5191 = vmatpush2.xpose.msra.mxu0 0.0
        %5192 = vmatprep.subr.mxu0 0.0
        %5193 = vmatpush2.xpose.msra.mxu0 0.0
        %5194 = vmatprep.subr.mxu0 0.0
        %5195 = vmatpush2.xpose.msra.mxu0 0.0
        %5196 = vmatprep.subr.mxu0 0.0
        %5197 = vmatpush2.xpose.msra.mxu0 0.0
        %5198 = vmatprep.subr.mxu0 0.0
        %5199 = vmatpush2.xpose.msra.mxu0 0.0
        %5200 = vmatprep.subr.mxu0 0.0
        %5201 = vmatpush2.xpose.msra.mxu0 0.0
        %5202 = vmatprep.subr.mxu0 0.0
        %5203 = vmatpush2.xpose.msra.mxu0 0.0
        %5204 = vmatprep.subr.mxu0 0.0
        %5205 = vmatpush2.xpose.msra.mxu0 0.0
        %5206 = vmatprep.subr.mxu0 0.0
        %5207 = vmatpush2.xpose.msra.mxu0 0.0
        %5208 = vmatprep.subr.mxu0 0.0
        %5209 = vmatpush2.xpose.msra.mxu0 0.0
        %5210 = vmatprep.subr.mxu0 0.0
        %5211 = vmatpush2.xpose.msra.mxu0 0.0
        %5212 = vmatprep.subr.mxu0 0.0
        %5213 = vmatpush2.xpose.msra.mxu0 0.0
        %5214 = vmatprep.subr.mxu0 0.0
        %5215 = vmatpush2.xpose.msra.mxu0 0.0
        %5216 = vmatprep.subr.mxu0 0.0
        %5217 = vmatpush2.xpose.msra.mxu0 0.0
        %5218 = vmatprep.subr.mxu0 0.0
        %5219 = vmatpush2.xpose.msra.mxu0 0.0
        %5220 = vmatprep.subr.mxu0 0.0
        %5221 = vmatpush2.xpose.msra.mxu0 0.0
        %5222 = vmatprep.mubr.f32.mxu0 0.0
        %v5223 = vand.u32 %v4891, 4294901760
        %v5224 = vsub.f32 %v4891, %v5223
        %v5225 = vand.u32 %v5224, 4294901760
        %5226 = vmatmul.mubr.f32.gmra.mxu0 %v5225
        %v5227 = vpop.f32.mrf.mxu0
        %v5228 = vadd.f32 %v5146, %v5227
        %v5229 = vpop.f32.mrf.mxu0
        %5230 = vmatprep.mubr.f32.mxu0 0.0
        %v5231 = vand.u32 %v4893, 4294901760
        %v5232 = vsub.f32 %v4893, %v5231
        %v5233 = vand.u32 %v5232, 4294901760
        %5234 = vmatmul.mubr.f32.gmra.mxu0 %v5233
        %v5235 = vpop.f32.mrf.mxu0
        %v5236 = vadd.f32 %v5153, %v5235
        %v5237 = vpop.f32.mrf.mxu0
        %5238 = vdwg.mxu0
        %5239 = vmatprep.subr.mxu0 0.0
        %5240 = vmatpush1.xpose.msra.mxu0 0.0
        %5241 = vmatprep.subr.mxu0 0.0
        %5242 = vmatpush1.xpose.msra.mxu0 0.0
        %5243 = vmatprep.subr.mxu0 0.0
        %5244 = vmatpush1.xpose.msra.mxu0 0.0
        %5245 = vmatprep.subr.mxu0 0.0
        %5246 = vmatpush1.xpose.msra.mxu0 0.0
        %5247 = vmatprep.subr.mxu0 0.0
        %5248 = vmatpush1.xpose.msra.mxu0 0.0
        %5249 = vmatprep.subr.mxu0 0.0
        %5250 = vmatpush1.xpose.msra.mxu0 0.0
        %5251 = vmatprep.subr.mxu0 0.0
        %5252 = vmatpush1.xpose.msra.mxu0 0.0
        %5253 = vmatprep.subr.mxu0 0.0
        %5254 = vmatpush1.xpose.msra.mxu0 0.0
        %5255 = vmatprep.subr.mxu0 0.0
        %5256 = vmatpush1.xpose.msra.mxu0 0.0
        %5257 = vmatprep.subr.mxu0 0.0
        %5258 = vmatpush1.xpose.msra.mxu0 0.0
        %5259 = vmatprep.subr.mxu0 0.0
        %5260 = vmatpush1.xpose.msra.mxu0 0.0
        %5261 = vmatprep.subr.mxu0 0.0
        %5262 = vmatpush1.xpose.msra.mxu0 0.0
        %5263 = vmatprep.subr.mxu0 0.0
        %5264 = vmatpush1.xpose.msra.mxu0 0.0
        %5265 = vmatprep.subr.mxu0 0.0
        %5266 = vmatpush1.xpose.msra.mxu0 0.0
        %5267 = vmatprep.subr.mxu0 0.0
        %v5268 = vand.u32 %v4897, 4294901760
        %v5269 = vsub.f32 %v4897, %v5268
        %v5270 = vand.u32 %v5269, 4294901760
        %5271 = vmatpush1.xpose.msra.mxu0 %v5270
        %5272 = vmatprep.subr.mxu0 0.0
        %v5273 = vand.u32 %v4895, 4294901760
        %v5274 = vsub.f32 %v4895, %v5273
        %v5275 = vand.u32 %v5274, 4294901760
        %5276 = vmatpush1.xpose.msra.mxu0 %v5275
        %5277 = vmatprep.subr.mxu0 0.0
        %5278 = vmatpush2.xpose.msra.mxu0 0.0
        %5279 = vmatprep.subr.mxu0 0.0
        %5280 = vmatpush2.xpose.msra.mxu0 0.0
        %5281 = vmatprep.subr.mxu0 0.0
        %5282 = vmatpush2.xpose.msra.mxu0 0.0
        %5283 = vmatprep.subr.mxu0 0.0
        %5284 = vmatpush2.xpose.msra.mxu0 0.0
        %5285 = vmatprep.subr.mxu0 0.0
        %5286 = vmatpush2.xpose.msra.mxu0 0.0
        %5287 = vmatprep.subr.mxu0 0.0
        %5288 = vmatpush2.xpose.msra.mxu0 0.0
        %5289 = vmatprep.subr.mxu0 0.0
        %5290 = vmatpush2.xpose.msra.mxu0 0.0
        %5291 = vmatprep.subr.mxu0 0.0
        %5292 = vmatpush2.xpose.msra.mxu0 0.0
        %5293 = vmatprep.subr.mxu0 0.0
        %5294 = vmatpush2.xpose.msra.mxu0 0.0
        %5295 = vmatprep.subr.mxu0 0.0
        %5296 = vmatpush2.xpose.msra.mxu0 0.0
        %5297 = vmatprep.subr.mxu0 0.0
        %5298 = vmatpush2.xpose.msra.mxu0 0.0
        %5299 = vmatprep.subr.mxu0 0.0
        %5300 = vmatpush2.xpose.msra.mxu0 0.0
        %5301 = vmatprep.subr.mxu0 0.0
        %5302 = vmatpush2.xpose.msra.mxu0 0.0
        %5303 = vmatprep.subr.mxu0 0.0
        %5304 = vmatpush2.xpose.msra.mxu0 0.0
        %5305 = vmatprep.subr.mxu0 0.0
        %5306 = vmatpush2.xpose.msra.mxu0 0.0
        %5307 = vmatprep.subr.mxu0 0.0
        %5308 = vmatpush2.xpose.msra.mxu0 0.0
        %5309 = vmatprep.mubr.f32.mxu0 0.0
        %v5310 = vand.u32 %v4891, 4294901760
        %5311 = vmatmul.mubr.f32.gmra.mxu0 %v5310
        %v5312 = vpop.f32.mrf.mxu0
        %v5313 = vadd.f32 %v5228, %v5312
        %v5314 = vpop.f32.mrf.mxu0
        %5315 = vmatprep.mubr.f32.mxu0 0.0
        %v5316 = vand.u32 %v4893, 4294901760
        %5317 = vmatmul.mubr.f32.gmra.mxu0 %v5316
        %v5318 = vpop.f32.mrf.mxu0
        %v5319 = vadd.f32 %v5236, %v5318
        %v5320 = vpop.f32.mrf.mxu0
        %5321 = vdwg.mxu0
        %5322 = vmatprep.subr.mxu0 0.0
        %5323 = vmatpush1.xpose.msra.mxu0 0.0
        %5324 = vmatprep.subr.mxu0 0.0
        %5325 = vmatpush1.xpose.msra.mxu0 0.0
        %5326 = vmatprep.subr.mxu0 0.0
        %5327 = vmatpush1.xpose.msra.mxu0 0.0
        %5328 = vmatprep.subr.mxu0 0.0
        %5329 = vmatpush1.xpose.msra.mxu0 0.0
        %5330 = vmatprep.subr.mxu0 0.0
        %5331 = vmatpush1.xpose.msra.mxu0 0.0
        %5332 = vmatprep.subr.mxu0 0.0
        %5333 = vmatpush1.xpose.msra.mxu0 0.0
        %5334 = vmatprep.subr.mxu0 0.0
        %5335 = vmatpush1.xpose.msra.mxu0 0.0
        %5336 = vmatprep.subr.mxu0 0.0
        %5337 = vmatpush1.xpose.msra.mxu0 0.0
        %5338 = vmatprep.subr.mxu0 0.0
        %5339 = vmatpush1.xpose.msra.mxu0 0.0
        %5340 = vmatprep.subr.mxu0 0.0
        %5341 = vmatpush1.xpose.msra.mxu0 0.0
        %5342 = vmatprep.subr.mxu0 0.0
        %5343 = vmatpush1.xpose.msra.mxu0 0.0
        %5344 = vmatprep.subr.mxu0 0.0
        %5345 = vmatpush1.xpose.msra.mxu0 0.0
        %5346 = vmatprep.subr.mxu0 0.0
        %5347 = vmatpush1.xpose.msra.mxu0 0.0
        %5348 = vmatprep.subr.mxu0 0.0
        %5349 = vmatpush1.xpose.msra.mxu0 0.0
        %5350 = vmatprep.subr.mxu0 0.0
        %v5351 = vand.u32 %v4897, 4294901760
        %5352 = vmatpush1.xpose.msra.mxu0 %v5351
        %5353 = vmatprep.subr.mxu0 0.0
        %v5354 = vand.u32 %v4895, 4294901760
        %5355 = vmatpush1.xpose.msra.mxu0 %v5354
        %5356 = vmatprep.subr.mxu0 0.0
        %5357 = vmatpush2.xpose.msra.mxu0 0.0
        %5358 = vmatprep.subr.mxu0 0.0
        %5359 = vmatpush2.xpose.msra.mxu0 0.0
        %5360 = vmatprep.subr.mxu0 0.0
        %5361 = vmatpush2.xpose.msra.mxu0 0.0
        %5362 = vmatprep.subr.mxu0 0.0
        %5363 = vmatpush2.xpose.msra.mxu0 0.0
        %5364 = vmatprep.subr.mxu0 0.0
        %5365 = vmatpush2.xpose.msra.mxu0 0.0
        %5366 = vmatprep.subr.mxu0 0.0
        %5367 = vmatpush2.xpose.msra.mxu0 0.0
        %5368 = vmatprep.subr.mxu0 0.0
        %5369 = vmatpush2.xpose.msra.mxu0 0.0
        %5370 = vmatprep.subr.mxu0 0.0
        %5371 = vmatpush2.xpose.msra.mxu0 0.0
        %5372 = vmatprep.subr.mxu0 0.0
        %5373 = vmatpush2.xpose.msra.mxu0 0.0
        %5374 = vmatprep.subr.mxu0 0.0
        %5375 = vmatpush2.xpose.msra.mxu0 0.0
        %5376 = vmatprep.subr.mxu0 0.0
        %5377 = vmatpush2.xpose.msra.mxu0 0.0
        %5378 = vmatprep.subr.mxu0 0.0
        %5379 = vmatpush2.xpose.msra.mxu0 0.0
        %5380 = vmatprep.subr.mxu0 0.0
        %5381 = vmatpush2.xpose.msra.mxu0 0.0
        %5382 = vmatprep.subr.mxu0 0.0
        %5383 = vmatpush2.xpose.msra.mxu0 0.0
        %5384 = vmatprep.subr.mxu0 0.0
        %5385 = vmatpush2.xpose.msra.mxu0 0.0
        %5386 = vmatprep.subr.mxu0 0.0
        %5387 = vmatpush2.xpose.msra.mxu0 0.0
        %5388 = vmatprep.mubr.f32.mxu0 0.0
        %v5389 = vand.u32 %v4891, 4294901760
        %5390 = vmatmul.mubr.f32.gmra.mxu0 %v5389
        %v5391 = vpop.f32.mrf.mxu0
        %v5392 = vadd.f32 %v5313, %v5391
        %v5393 = vpop.f32.mrf.mxu0
        %5394 = vmatprep.mubr.f32.mxu0 0.0
        %v5395 = vand.u32 %v4893, 4294901760
        %5396 = vmatmul.mubr.f32.gmra.mxu0 %v5395
        %v5397 = vpop.f32.mrf.mxu0
        %v5398 = vadd.f32 %v5319, %v5397
        %v5399 = vpop.f32.mrf.mxu0
        %5400 = vdwg.mxu0
        %v5401 = vsel %vm2242, %v5392, -inf
        %5402 = vmax.xlane.f32.xlu0 %v5401
        %v5403 = vpop.xlane.xlu0 %5402
        %v5404 = vsel %vm2242, %v5398, -inf
        %5405 = vmax.xlane.f32.xlu0 %v5404
        %v5406 = vpop.xlane.xlu0 %5405
        %v5407 = vsub.f32 %v5392, %v5403
        %v5408 = vsub.f32 %v5398, %v5406
        %v5409 = vmul.f32 %v5407, 1.442695
        %v5410 = vpow.pop %v5409
        %v5411 = vmul.f32 %v5408, 1.442695
        %v5412 = vpow.pop %v5411
        %v5413 = vsel %vm2242, %v5410, 0.0
        %5414 = vadd.xlane.f32.xlu0 %v5413
        %v5415 = vpop.xlane.xlu0 %5414
        %v5416 = vsel %vm2242, %v5412, 0.0
        %5417 = vadd.xlane.f32.xlu0 %v5416
        %v5418 = vpop.xlane.xlu0 %5417
        %v5419 = vrcp.pop %v5415
        %v5420 = vrcp.pop %v5418
        %v5421 = vmul.f32 %v5410, %v5419
        %v5422 = vmul.f32 %v5412, %v5420
        %5423 = vrot.lane.b32.xlu0 %v1714, 104
        %v5424 = vpop.permute.xlu0 %5423
        %5425 = vrot.lane.b32.xlu0 %v1720, 104
        %v5426 = vpop.permute.xlu0 %5425
        %v5430 = vsel %vm2242, %v5421, 0
        %v5433 = vsel %vm2242, %v5422, 0
        %5435 = vmatprep.subr.mxu0 0.0
        %5436 = vmatpush1.msra.mxu0 0.0
        %5437 = vmatprep.subr.mxu0 0.0
        %5438 = vmatpush1.msra.mxu0 0.0
        %5439 = vmatprep.subr.mxu0 0.0
        %5440 = vmatpush1.msra.mxu0 0.0
        %5441 = vmatprep.subr.mxu0 0.0
        %5442 = vmatpush1.msra.mxu0 0.0
        %5443 = vmatprep.subr.mxu0 0.0
        %5444 = vmatpush1.msra.mxu0 0.0
        %5445 = vmatprep.subr.mxu0 0.0
        %5446 = vmatpush1.msra.mxu0 0.0
        %5447 = vmatprep.subr.mxu0 0.0
        %5448 = vmatpush1.msra.mxu0 0.0
        %5449 = vmatprep.subr.mxu0 0.0
        %5450 = vmatpush1.msra.mxu0 0.0
        %5451 = vmatprep.subr.mxu0 0.0
        %5452 = vmatpush1.msra.mxu0 0.0
        %5453 = vmatprep.subr.mxu0 0.0
        %5454 = vmatpush1.msra.mxu0 0.0
        %5455 = vmatprep.subr.mxu0 0.0
        %5456 = vmatpush1.msra.mxu0 0.0
        %5457 = vmatprep.subr.mxu0 0.0
        %5458 = vmatpush1.msra.mxu0 0.0
        %5459 = vmatprep.subr.mxu0 0.0
        %5460 = vmatpush1.msra.mxu0 0.0
        %5461 = vmatprep.subr.mxu0 0.0
        %5462 = vmatpush1.msra.mxu0 0.0
        %5463 = vmatprep.subr.mxu0 0.0
        %v5464 = vand.u32 %v5426, 4294901760
        %5465 = vmatpush1.msra.mxu0 %v5464
        %5466 = vmatprep.subr.mxu0 0.0
        %v5467 = vand.u32 %v5424, 4294901760
        %5468 = vmatpush1.msra.mxu0 %v5467
        %5469 = vmatprep.subr.mxu0 0.0
        %5470 = vmatpush2.msra.mxu0 0.0
        %5471 = vmatprep.subr.mxu0 0.0
        %5472 = vmatpush2.msra.mxu0 0.0
        %5473 = vmatprep.subr.mxu0 0.0
        %5474 = vmatpush2.msra.mxu0 0.0
        %5475 = vmatprep.subr.mxu0 0.0
        %5476 = vmatpush2.msra.mxu0 0.0
        %5477 = vmatprep.subr.mxu0 0.0
        %5478 = vmatpush2.msra.mxu0 0.0
        %5479 = vmatprep.subr.mxu0 0.0
        %5480 = vmatpush2.msra.mxu0 0.0
        %5481 = vmatprep.subr.mxu0 0.0
        %5482 = vmatpush2.msra.mxu0 0.0
        %5483 = vmatprep.subr.mxu0 0.0
        %5484 = vmatpush2.msra.mxu0 0.0
        %5485 = vmatprep.subr.mxu0 0.0
        %5486 = vmatpush2.msra.mxu0 0.0
        %5487 = vmatprep.subr.mxu0 0.0
        %5488 = vmatpush2.msra.mxu0 0.0
        %5489 = vmatprep.subr.mxu0 0.0
        %5490 = vmatpush2.msra.mxu0 0.0
        %5491 = vmatprep.subr.mxu0 0.0
        %5492 = vmatpush2.msra.mxu0 0.0
        %5493 = vmatprep.subr.mxu0 0.0
        %5494 = vmatpush2.msra.mxu0 0.0
        %5495 = vmatprep.subr.mxu0 0.0
        %5496 = vmatpush2.msra.mxu0 0.0
        %5497 = vmatprep.subr.mxu0 0.0
        %5498 = vmatpush2.msra.mxu0 0.0
        %5499 = vmatprep.subr.mxu0 0.0
        %5500 = vmatpush2.msra.mxu0 0.0
        %5501 = vmatprep.mubr.f32.mxu0 0.0
        %v5502 = vand.u32 %v5430, 4294901760
        %v5503 = vsub.f32 %v5430, %v5502
        %v5504 = vand.u32 %v5503, 4294901760
        %v5505 = vsub.f32 %v5503, %v5504
        %v5506 = vand.u32 %v5505, 4294901760
        %5507 = vmatmul.mubr.f32.gmra.mxu0 %v5506
        %v5508 = vpop.f32.mrf.mxu0
        %v5509 = vadd.f32 0.0, %v5508
        %v5510 = vpop.f32.mrf.mxu0
        %5511 = vmatprep.mubr.f32.mxu0 0.0
        %v5512 = vand.u32 %v5433, 4294901760
        %v5513 = vsub.f32 %v5433, %v5512
        %v5514 = vand.u32 %v5513, 4294901760
        %v5515 = vsub.f32 %v5513, %v5514
        %v5516 = vand.u32 %v5515, 4294901760
        %5517 = vmatmul.mubr.f32.gmra.mxu0 %v5516
        %v5518 = vpop.f32.mrf.mxu0
        %v5519 = vadd.f32 0.0, %v5518
        %v5520 = vpop.f32.mrf.mxu0
        %5521 = vdwg.mxu0
        %5522 = vmatprep.subr.mxu0 0.0
        %5523 = vmatpush1.msra.mxu0 0.0
        %5524 = vmatprep.subr.mxu0 0.0
        %5525 = vmatpush1.msra.mxu0 0.0
        %5526 = vmatprep.subr.mxu0 0.0
        %5527 = vmatpush1.msra.mxu0 0.0
        %5528 = vmatprep.subr.mxu0 0.0
        %5529 = vmatpush1.msra.mxu0 0.0
        %5530 = vmatprep.subr.mxu0 0.0
        %5531 = vmatpush1.msra.mxu0 0.0
        %5532 = vmatprep.subr.mxu0 0.0
        %5533 = vmatpush1.msra.mxu0 0.0
        %5534 = vmatprep.subr.mxu0 0.0
        %5535 = vmatpush1.msra.mxu0 0.0
        %5536 = vmatprep.subr.mxu0 0.0
        %5537 = vmatpush1.msra.mxu0 0.0
        %5538 = vmatprep.subr.mxu0 0.0
        %5539 = vmatpush1.msra.mxu0 0.0
        %5540 = vmatprep.subr.mxu0 0.0
        %5541 = vmatpush1.msra.mxu0 0.0
        %5542 = vmatprep.subr.mxu0 0.0
        %5543 = vmatpush1.msra.mxu0 0.0
        %5544 = vmatprep.subr.mxu0 0.0
        %5545 = vmatpush1.msra.mxu0 0.0
        %5546 = vmatprep.subr.mxu0 0.0
        %5547 = vmatpush1.msra.mxu0 0.0
        %5548 = vmatprep.subr.mxu0 0.0
        %5549 = vmatpush1.msra.mxu0 0.0
        %5550 = vmatprep.subr.mxu0 0.0
        %v5551 = vand.u32 %v5426, 4294901760
        %v5552 = vsub.f32 %v5426, %v5551
        %v5553 = vand.u32 %v5552, 4294901760
        %v5554 = vsub.f32 %v5552, %v5553
        %v5555 = vand.u32 %v5554, 4294901760
        %5556 = vmatpush1.msra.mxu0 %v5555
        %5557 = vmatprep.subr.mxu0 0.0
        %v5558 = vand.u32 %v5424, 4294901760
        %v5559 = vsub.f32 %v5424, %v5558
        %v5560 = vand.u32 %v5559, 4294901760
        %v5561 = vsub.f32 %v5559, %v5560
        %v5562 = vand.u32 %v5561, 4294901760
        %5563 = vmatpush1.msra.mxu0 %v5562
        %5564 = vmatprep.subr.mxu0 0.0
        %5565 = vmatpush2.msra.mxu0 0.0
        %5566 = vmatprep.subr.mxu0 0.0
        %5567 = vmatpush2.msra.mxu0 0.0
        %5568 = vmatprep.subr.mxu0 0.0
        %5569 = vmatpush2.msra.mxu0 0.0
        %5570 = vmatprep.subr.mxu0 0.0
        %5571 = vmatpush2.msra.mxu0 0.0
        %5572 = vmatprep.subr.mxu0 0.0
        %5573 = vmatpush2.msra.mxu0 0.0
        %5574 = vmatprep.subr.mxu0 0.0
        %5575 = vmatpush2.msra.mxu0 0.0
        %5576 = vmatprep.subr.mxu0 0.0
        %5577 = vmatpush2.msra.mxu0 0.0
        %5578 = vmatprep.subr.mxu0 0.0
        %5579 = vmatpush2.msra.mxu0 0.0
        %5580 = vmatprep.subr.mxu0 0.0
        %5581 = vmatpush2.msra.mxu0 0.0
        %5582 = vmatprep.subr.mxu0 0.0
        %5583 = vmatpush2.msra.mxu0 0.0
        %5584 = vmatprep.subr.mxu0 0.0
        %5585 = vmatpush2.msra.mxu0 0.0
        %5586 = vmatprep.subr.mxu0 0.0
        %5587 = vmatpush2.msra.mxu0 0.0
        %5588 = vmatprep.subr.mxu0 0.0
        %5589 = vmatpush2.msra.mxu0 0.0
        %5590 = vmatprep.subr.mxu0 0.0
        %5591 = vmatpush2.msra.mxu0 0.0
        %5592 = vmatprep.subr.mxu0 0.0
        %5593 = vmatpush2.msra.mxu0 0.0
        %5594 = vmatprep.subr.mxu0 0.0
        %5595 = vmatpush2.msra.mxu0 0.0
        %5596 = vmatprep.mubr.f32.mxu0 0.0
        %v5597 = vand.u32 %v5430, 4294901760
        %5598 = vmatmul.mubr.f32.gmra.mxu0 %v5597
        %v5599 = vpop.f32.mrf.mxu0
        %v5600 = vadd.f32 %v5509, %v5599
        %v5601 = vpop.f32.mrf.mxu0
        %5602 = vmatprep.mubr.f32.mxu0 0.0
        %v5603 = vand.u32 %v5433, 4294901760
        %5604 = vmatmul.mubr.f32.gmra.mxu0 %v5603
        %v5605 = vpop.f32.mrf.mxu0
        %v5606 = vadd.f32 %v5519, %v5605
        %v5607 = vpop.f32.mrf.mxu0
        %5608 = vdwg.mxu0
        %5609 = vmatprep.subr.mxu0 0.0
        %5610 = vmatpush1.msra.mxu0 0.0
        %5611 = vmatprep.subr.mxu0 0.0
        %5612 = vmatpush1.msra.mxu0 0.0
        %5613 = vmatprep.subr.mxu0 0.0
        %5614 = vmatpush1.msra.mxu0 0.0
        %5615 = vmatprep.subr.mxu0 0.0
        %5616 = vmatpush1.msra.mxu0 0.0
        %5617 = vmatprep.subr.mxu0 0.0
        %5618 = vmatpush1.msra.mxu0 0.0
        %5619 = vmatprep.subr.mxu0 0.0
        %5620 = vmatpush1.msra.mxu0 0.0
        %5621 = vmatprep.subr.mxu0 0.0
        %5622 = vmatpush1.msra.mxu0 0.0
        %5623 = vmatprep.subr.mxu0 0.0
        %5624 = vmatpush1.msra.mxu0 0.0
        %5625 = vmatprep.subr.mxu0 0.0
        %5626 = vmatpush1.msra.mxu0 0.0
        %5627 = vmatprep.subr.mxu0 0.0
        %5628 = vmatpush1.msra.mxu0 0.0
        %5629 = vmatprep.subr.mxu0 0.0
        %5630 = vmatpush1.msra.mxu0 0.0
        %5631 = vmatprep.subr.mxu0 0.0
        %5632 = vmatpush1.msra.mxu0 0.0
        %5633 = vmatprep.subr.mxu0 0.0
        %5634 = vmatpush1.msra.mxu0 0.0
        %5635 = vmatprep.subr.mxu0 0.0
        %5636 = vmatpush1.msra.mxu0 0.0
        %5637 = vmatprep.subr.mxu0 0.0
        %v5638 = vand.u32 %v5426, 4294901760
        %v5639 = vsub.f32 %v5426, %v5638
        %5640 = vmatpush1.msra.mxu0 %v5639
        %5641 = vmatprep.subr.mxu0 0.0
        %v5642 = vand.u32 %v5424, 4294901760
        %v5643 = vsub.f32 %v5424, %v5642
        %5644 = vmatpush1.msra.mxu0 %v5643
        %5645 = vmatprep.subr.mxu0 0.0
        %5646 = vmatpush2.msra.mxu0 0.0
        %5647 = vmatprep.subr.mxu0 0.0
        %5648 = vmatpush2.msra.mxu0 0.0
        %5649 = vmatprep.subr.mxu0 0.0
        %5650 = vmatpush2.msra.mxu0 0.0
        %5651 = vmatprep.subr.mxu0 0.0
        %5652 = vmatpush2.msra.mxu0 0.0
        %5653 = vmatprep.subr.mxu0 0.0
        %5654 = vmatpush2.msra.mxu0 0.0
        %5655 = vmatprep.subr.mxu0 0.0
        %5656 = vmatpush2.msra.mxu0 0.0
        %5657 = vmatprep.subr.mxu0 0.0
        %5658 = vmatpush2.msra.mxu0 0.0
        %5659 = vmatprep.subr.mxu0 0.0
        %5660 = vmatpush2.msra.mxu0 0.0
        %5661 = vmatprep.subr.mxu0 0.0
        %5662 = vmatpush2.msra.mxu0 0.0
        %5663 = vmatprep.subr.mxu0 0.0
        %5664 = vmatpush2.msra.mxu0 0.0
        %5665 = vmatprep.subr.mxu0 0.0
        %5666 = vmatpush2.msra.mxu0 0.0
        %5667 = vmatprep.subr.mxu0 0.0
        %5668 = vmatpush2.msra.mxu0 0.0
        %5669 = vmatprep.subr.mxu0 0.0
        %5670 = vmatpush2.msra.mxu0 0.0
        %5671 = vmatprep.subr.mxu0 0.0
        %5672 = vmatpush2.msra.mxu0 0.0
        %5673 = vmatprep.subr.mxu0 0.0
        %5674 = vmatpush2.msra.mxu0 0.0
        %5675 = vmatprep.subr.mxu0 0.0
        %5676 = vmatpush2.msra.mxu0 0.0
        %5677 = vmatprep.mubr.f32.mxu0 0.0
        %v5678 = vand.u32 %v5430, 4294901760
        %v5679 = vsub.f32 %v5430, %v5678
        %5680 = vmatmul.mubr.f32.gmra.mxu0 %v5679
        %v5681 = vpop.f32.mrf.mxu0
        %v5682 = vadd.f32 %v5600, %v5681
        %v5683 = vpop.f32.mrf.mxu0
        %5684 = vmatprep.mubr.f32.mxu0 0.0
        %v5685 = vand.u32 %v5433, 4294901760
        %v5686 = vsub.f32 %v5433, %v5685
        %5687 = vmatmul.mubr.f32.gmra.mxu0 %v5686
        %v5688 = vpop.f32.mrf.mxu0
        %v5689 = vadd.f32 %v5606, %v5688
        %v5690 = vpop.f32.mrf.mxu0
        %5691 = vdwg.mxu0
        %5692 = vmatprep.subr.mxu0 0.0
        %5693 = vmatpush1.msra.mxu0 0.0
        %5694 = vmatprep.subr.mxu0 0.0
        %5695 = vmatpush1.msra.mxu0 0.0
        %5696 = vmatprep.subr.mxu0 0.0
        %5697 = vmatpush1.msra.mxu0 0.0
        %5698 = vmatprep.subr.mxu0 0.0
        %5699 = vmatpush1.msra.mxu0 0.0
        %5700 = vmatprep.subr.mxu0 0.0
        %5701 = vmatpush1.msra.mxu0 0.0
        %5702 = vmatprep.subr.mxu0 0.0
        %5703 = vmatpush1.msra.mxu0 0.0
        %5704 = vmatprep.subr.mxu0 0.0
        %5705 = vmatpush1.msra.mxu0 0.0
        %5706 = vmatprep.subr.mxu0 0.0
        %5707 = vmatpush1.msra.mxu0 0.0
        %5708 = vmatprep.subr.mxu0 0.0
        %5709 = vmatpush1.msra.mxu0 0.0
        %5710 = vmatprep.subr.mxu0 0.0
        %5711 = vmatpush1.msra.mxu0 0.0
        %5712 = vmatprep.subr.mxu0 0.0
        %5713 = vmatpush1.msra.mxu0 0.0
        %5714 = vmatprep.subr.mxu0 0.0
        %5715 = vmatpush1.msra.mxu0 0.0
        %5716 = vmatprep.subr.mxu0 0.0
        %5717 = vmatpush1.msra.mxu0 0.0
        %5718 = vmatprep.subr.mxu0 0.0
        %5719 = vmatpush1.msra.mxu0 0.0
        %5720 = vmatprep.subr.mxu0 0.0
        %v5721 = vand.u32 %v5426, 4294901760
        %5722 = vmatpush1.msra.mxu0 %v5721
        %5723 = vmatprep.subr.mxu0 0.0
        %v5724 = vand.u32 %v5424, 4294901760
        %5725 = vmatpush1.msra.mxu0 %v5724
        %5726 = vmatprep.subr.mxu0 0.0
        %5727 = vmatpush2.msra.mxu0 0.0
        %5728 = vmatprep.subr.mxu0 0.0
        %5729 = vmatpush2.msra.mxu0 0.0
        %5730 = vmatprep.subr.mxu0 0.0
        %5731 = vmatpush2.msra.mxu0 0.0
        %5732 = vmatprep.subr.mxu0 0.0
        %5733 = vmatpush2.msra.mxu0 0.0
        %5734 = vmatprep.subr.mxu0 0.0
        %5735 = vmatpush2.msra.mxu0 0.0
        %5736 = vmatprep.subr.mxu0 0.0
        %5737 = vmatpush2.msra.mxu0 0.0
        %5738 = vmatprep.subr.mxu0 0.0
        %5739 = vmatpush2.msra.mxu0 0.0
        %5740 = vmatprep.subr.mxu0 0.0
        %5741 = vmatpush2.msra.mxu0 0.0
        %5742 = vmatprep.subr.mxu0 0.0
        %5743 = vmatpush2.msra.mxu0 0.0
        %5744 = vmatprep.subr.mxu0 0.0
        %5745 = vmatpush2.msra.mxu0 0.0
        %5746 = vmatprep.subr.mxu0 0.0
        %5747 = vmatpush2.msra.mxu0 0.0
        %5748 = vmatprep.subr.mxu0 0.0
        %5749 = vmatpush2.msra.mxu0 0.0
        %5750 = vmatprep.subr.mxu0 0.0
        %5751 = vmatpush2.msra.mxu0 0.0
        %5752 = vmatprep.subr.mxu0 0.0
        %5753 = vmatpush2.msra.mxu0 0.0
        %5754 = vmatprep.subr.mxu0 0.0
        %5755 = vmatpush2.msra.mxu0 0.0
        %5756 = vmatprep.subr.mxu0 0.0
        %5757 = vmatpush2.msra.mxu0 0.0
        %5758 = vmatprep.mubr.f32.mxu0 0.0
        %v5759 = vand.u32 %v5430, 4294901760
        %v5760 = vsub.f32 %v5430, %v5759
        %v5761 = vand.u32 %v5760, 4294901760
        %5762 = vmatmul.mubr.f32.gmra.mxu0 %v5761
        %v5763 = vpop.f32.mrf.mxu0
        %v5764 = vadd.f32 %v5682, %v5763
        %v5765 = vpop.f32.mrf.mxu0
        %5766 = vmatprep.mubr.f32.mxu0 0.0
        %v5767 = vand.u32 %v5433, 4294901760
        %v5768 = vsub.f32 %v5433, %v5767
        %v5769 = vand.u32 %v5768, 4294901760
        %5770 = vmatmul.mubr.f32.gmra.mxu0 %v5769
        %v5771 = vpop.f32.mrf.mxu0
        %v5772 = vadd.f32 %v5689, %v5771
        %v5773 = vpop.f32.mrf.mxu0
        %5774 = vdwg.mxu0
        %5775 = vmatprep.subr.mxu0 0.0
        %5776 = vmatpush1.msra.mxu0 0.0
        %5777 = vmatprep.subr.mxu0 0.0
        %5778 = vmatpush1.msra.mxu0 0.0
        %5779 = vmatprep.subr.mxu0 0.0
        %5780 = vmatpush1.msra.mxu0 0.0
        %5781 = vmatprep.subr.mxu0 0.0
        %5782 = vmatpush1.msra.mxu0 0.0
        %5783 = vmatprep.subr.mxu0 0.0
        %5784 = vmatpush1.msra.mxu0 0.0
        %5785 = vmatprep.subr.mxu0 0.0
        %5786 = vmatpush1.msra.mxu0 0.0
        %5787 = vmatprep.subr.mxu0 0.0
        %5788 = vmatpush1.msra.mxu0 0.0
        %5789 = vmatprep.subr.mxu0 0.0
        %5790 = vmatpush1.msra.mxu0 0.0
        %5791 = vmatprep.subr.mxu0 0.0
        %5792 = vmatpush1.msra.mxu0 0.0
        %5793 = vmatprep.subr.mxu0 0.0
        %5794 = vmatpush1.msra.mxu0 0.0
        %5795 = vmatprep.subr.mxu0 0.0
        %5796 = vmatpush1.msra.mxu0 0.0
        %5797 = vmatprep.subr.mxu0 0.0
        %5798 = vmatpush1.msra.mxu0 0.0
        %5799 = vmatprep.subr.mxu0 0.0
        %5800 = vmatpush1.msra.mxu0 0.0
        %5801 = vmatprep.subr.mxu0 0.0
        %5802 = vmatpush1.msra.mxu0 0.0
        %5803 = vmatprep.subr.mxu0 0.0
        %v5804 = vand.u32 %v5426, 4294901760
        %v5805 = vsub.f32 %v5426, %v5804
        %v5806 = vand.u32 %v5805, 4294901760
        %5807 = vmatpush1.msra.mxu0 %v5806
        %5808 = vmatprep.subr.mxu0 0.0
        %v5809 = vand.u32 %v5424, 4294901760
        %v5810 = vsub.f32 %v5424, %v5809
        %v5811 = vand.u32 %v5810, 4294901760
        %5812 = vmatpush1.msra.mxu0 %v5811
        %5813 = vmatprep.subr.mxu0 0.0
        %5814 = vmatpush2.msra.mxu0 0.0
        %5815 = vmatprep.subr.mxu0 0.0
        %5816 = vmatpush2.msra.mxu0 0.0
        %5817 = vmatprep.subr.mxu0 0.0
        %5818 = vmatpush2.msra.mxu0 0.0
        %5819 = vmatprep.subr.mxu0 0.0
        %5820 = vmatpush2.msra.mxu0 0.0
        %5821 = vmatprep.subr.mxu0 0.0
        %5822 = vmatpush2.msra.mxu0 0.0
        %5823 = vmatprep.subr.mxu0 0.0
        %5824 = vmatpush2.msra.mxu0 0.0
        %5825 = vmatprep.subr.mxu0 0.0
        %5826 = vmatpush2.msra.mxu0 0.0
        %5827 = vmatprep.subr.mxu0 0.0
        %5828 = vmatpush2.msra.mxu0 0.0
        %5829 = vmatprep.subr.mxu0 0.0
        %5830 = vmatpush2.msra.mxu0 0.0
        %5831 = vmatprep.subr.mxu0 0.0
        %5832 = vmatpush2.msra.mxu0 0.0
        %5833 = vmatprep.subr.mxu0 0.0
        %5834 = vmatpush2.msra.mxu0 0.0
        %5835 = vmatprep.subr.mxu0 0.0
        %5836 = vmatpush2.msra.mxu0 0.0
        %5837 = vmatprep.subr.mxu0 0.0
        %5838 = vmatpush2.msra.mxu0 0.0
        %5839 = vmatprep.subr.mxu0 0.0
        %5840 = vmatpush2.msra.mxu0 0.0
        %5841 = vmatprep.subr.mxu0 0.0
        %5842 = vmatpush2.msra.mxu0 0.0
        %5843 = vmatprep.subr.mxu0 0.0
        %5844 = vmatpush2.msra.mxu0 0.0
        %5845 = vmatprep.mubr.f32.mxu0 0.0
        %v5846 = vand.u32 %v5430, 4294901760
        %5847 = vmatmul.mubr.f32.gmra.mxu0 %v5846
        %v5848 = vpop.f32.mrf.mxu0
        %v5849 = vadd.f32 %v5764, %v5848
        %v5850 = vpop.f32.mrf.mxu0
        %5851 = vmatprep.mubr.f32.mxu0 0.0
        %v5852 = vand.u32 %v5433, 4294901760
        %5853 = vmatmul.mubr.f32.gmra.mxu0 %v5852
        %v5854 = vpop.f32.mrf.mxu0
        %v5855 = vadd.f32 %v5772, %v5854
        %v5856 = vpop.f32.mrf.mxu0
        %5857 = vdwg.mxu0
        %5858 = vmatprep.subr.mxu0 0.0
        %5859 = vmatpush1.msra.mxu0 0.0
        %5860 = vmatprep.subr.mxu0 0.0
        %5861 = vmatpush1.msra.mxu0 0.0
        %5862 = vmatprep.subr.mxu0 0.0
        %5863 = vmatpush1.msra.mxu0 0.0
        %5864 = vmatprep.subr.mxu0 0.0
        %5865 = vmatpush1.msra.mxu0 0.0
        %5866 = vmatprep.subr.mxu0 0.0
        %5867 = vmatpush1.msra.mxu0 0.0
        %5868 = vmatprep.subr.mxu0 0.0
        %5869 = vmatpush1.msra.mxu0 0.0
        %5870 = vmatprep.subr.mxu0 0.0
        %5871 = vmatpush1.msra.mxu0 0.0
        %5872 = vmatprep.subr.mxu0 0.0
        %5873 = vmatpush1.msra.mxu0 0.0
        %5874 = vmatprep.subr.mxu0 0.0
        %5875 = vmatpush1.msra.mxu0 0.0
        %5876 = vmatprep.subr.mxu0 0.0
        %5877 = vmatpush1.msra.mxu0 0.0
        %5878 = vmatprep.subr.mxu0 0.0
        %5879 = vmatpush1.msra.mxu0 0.0
        %5880 = vmatprep.subr.mxu0 0.0
        %5881 = vmatpush1.msra.mxu0 0.0
        %5882 = vmatprep.subr.mxu0 0.0
        %5883 = vmatpush1.msra.mxu0 0.0
        %5884 = vmatprep.subr.mxu0 0.0
        %5885 = vmatpush1.msra.mxu0 0.0
        %5886 = vmatprep.subr.mxu0 0.0
        %v5887 = vand.u32 %v5426, 4294901760
        %5888 = vmatpush1.msra.mxu0 %v5887
        %5889 = vmatprep.subr.mxu0 0.0
        %v5890 = vand.u32 %v5424, 4294901760
        %5891 = vmatpush1.msra.mxu0 %v5890
        %5892 = vmatprep.subr.mxu0 0.0
        %5893 = vmatpush2.msra.mxu0 0.0
        %5894 = vmatprep.subr.mxu0 0.0
        %5895 = vmatpush2.msra.mxu0 0.0
        %5896 = vmatprep.subr.mxu0 0.0
        %5897 = vmatpush2.msra.mxu0 0.0
        %5898 = vmatprep.subr.mxu0 0.0
        %5899 = vmatpush2.msra.mxu0 0.0
        %5900 = vmatprep.subr.mxu0 0.0
        %5901 = vmatpush2.msra.mxu0 0.0
        %5902 = vmatprep.subr.mxu0 0.0
        %5903 = vmatpush2.msra.mxu0 0.0
        %5904 = vmatprep.subr.mxu0 0.0
        %5905 = vmatpush2.msra.mxu0 0.0
        %5906 = vmatprep.subr.mxu0 0.0
        %5907 = vmatpush2.msra.mxu0 0.0
        %5908 = vmatprep.subr.mxu0 0.0
        %5909 = vmatpush2.msra.mxu0 0.0
        %5910 = vmatprep.subr.mxu0 0.0
        %5911 = vmatpush2.msra.mxu0 0.0
        %5912 = vmatprep.subr.mxu0 0.0
        %5913 = vmatpush2.msra.mxu0 0.0
        %5914 = vmatprep.subr.mxu0 0.0
        %5915 = vmatpush2.msra.mxu0 0.0
        %5916 = vmatprep.subr.mxu0 0.0
        %5917 = vmatpush2.msra.mxu0 0.0
        %5918 = vmatprep.subr.mxu0 0.0
        %5919 = vmatpush2.msra.mxu0 0.0
        %5920 = vmatprep.subr.mxu0 0.0
        %5921 = vmatpush2.msra.mxu0 0.0
        %5922 = vmatprep.subr.mxu0 0.0
        %5923 = vmatpush2.msra.mxu0 0.0
        %5924 = vmatprep.mubr.f32.mxu0 0.0
        %v5925 = vand.u32 %v5430, 4294901760
        %5926 = vmatmul.mubr.f32.gmra.mxu0 %v5925
        %v5927 = vpop.f32.mrf.mxu0
        %v5928 = vadd.f32 %v5849, %v5927
        %v5929 = vpop.f32.mrf.mxu0
        %5930 = vmatprep.mubr.f32.mxu0 0.0
        %v5931 = vand.u32 %v5433, 4294901760
        %5932 = vmatmul.mubr.f32.gmra.mxu0 %v5931
        %v5933 = vpop.f32.mrf.mxu0
        %v5934 = vadd.f32 %v5855, %v5933
        %v5935 = vpop.f32.mrf.mxu0
        %5936 = vdwg.mxu0
        %5939 = vrot.lane.b32.xlu0 %v3820, 8
        %v5940 = vpop.permute.xlu0 %5939
        %5941 = vrot.lane.b32.xlu0 %v3826, 8
        %v5942 = vpop.permute.xlu0 %5941
        %5947 = vrot.lane.b32.xlu0 %v4874, 16
        %v5948 = vpop.permute.xlu0 %5947
        %5949 = vrot.lane.b32.xlu0 %v4880, 16
        %v5950 = vpop.permute.xlu0 %5949
        %5955 = vrot.lane.b32.xlu0 %v5928, 24
        %v5956 = vpop.permute.xlu0 %5955
        %5957 = vrot.lane.b32.xlu0 %v5934, 24
        %v5958 = vpop.permute.xlu0 %5957
        %v5961 = vsel %vm1731, %v2764, %v5940
        %v5962 = vsel %vm1731, %v2770, %v5942
        %v5963 = vsel %vm2242, %v5961, %v5948
        %v5964 = vsel %vm2242, %v5962, %v5950
        %vm5965 = vcmask 195584
        %v5966 = vsel %vm5965, %v5963, %v5956
        %v5967 = vsel %vm5965, %v5964, %v5958
        %v5968 = vld [vmem:[#allocation7] sm:$0xff]
        %v5969 = vld [vmem:[#allocation7 + $0x8] sm:$0xff]
        %v5970 = vld [vmem:[#allocation7 + $0x10] sm:$0xff]
        %v5971 = vld [vmem:[#allocation7 + $0x18] sm:$0xff]
        %v5972 = vld [vmem:[%s8] sm:$0x1]
        %v5974 = vlaneseq
        %v5975 = vshrl.u32 %v5974, 7
        %v5976 = vsub.s32 0, %v5975
        %v5977 = vrot.slane %v5972, %v5976
        %v5980 = vsel %vm643, %v5966, 0
        %v5983 = vsel %vm643, %v5967, 0
        %5985 = vmatprep.subr.mxu0 0.0
        %5986 = vmatpush1.msra.mxu0 0.0
        %5987 = vmatprep.subr.mxu0 0.0
        %5988 = vmatpush1.msra.mxu0 0.0
        %5989 = vmatprep.subr.mxu0 0.0
        %5990 = vmatpush1.msra.mxu0 0.0
        %5991 = vmatprep.subr.mxu0 0.0
        %5992 = vmatpush1.msra.mxu0 0.0
        %5993 = vmatprep.subr.mxu0 0.0
        %5994 = vmatpush1.msra.mxu0 0.0
        %5995 = vmatprep.subr.mxu0 0.0
        %5996 = vmatpush1.msra.mxu0 0.0
        %5997 = vmatprep.subr.mxu0 0.0
        %5998 = vmatpush1.msra.mxu0 0.0
        %5999 = vmatprep.subr.mxu0 0.0
        %6000 = vmatpush1.msra.mxu0 0.0
        %6001 = vmatprep.subr.mxu0 0.0
        %6002 = vmatpush1.msra.mxu0 0.0
        %6003 = vmatprep.subr.mxu0 0.0
        %6004 = vmatpush1.msra.mxu0 0.0
        %6005 = vmatprep.subr.mxu0 0.0
        %6006 = vmatpush1.msra.mxu0 0.0
        %6007 = vmatprep.subr.mxu0 0.0
        %6008 = vmatpush1.msra.mxu0 0.0
        %6009 = vmatprep.subr.mxu0 0.0
        %v6010 = vand.u32 %v5971, 4294901760
        %6011 = vmatpush1.msra.mxu0 %v6010
        %6012 = vmatprep.subr.mxu0 0.0
        %v6013 = vand.u32 %v5970, 4294901760
        %6014 = vmatpush1.msra.mxu0 %v6013
        %6015 = vmatprep.subr.mxu0 0.0
        %v6016 = vand.u32 %v5969, 4294901760
        %6017 = vmatpush1.msra.mxu0 %v6016
        %6018 = vmatprep.subr.mxu0 0.0
        %v6019 = vand.u32 %v5968, 4294901760
        %6020 = vmatpush1.msra.mxu0 %v6019
        %6021 = vmatprep.subr.mxu0 0.0
        %6022 = vmatpush2.msra.mxu0 0.0
        %6023 = vmatprep.subr.mxu0 0.0
        %6024 = vmatpush2.msra.mxu0 0.0
        %6025 = vmatprep.subr.mxu0 0.0
        %6026 = vmatpush2.msra.mxu0 0.0
        %6027 = vmatprep.subr.mxu0 0.0
        %6028 = vmatpush2.msra.mxu0 0.0
        %6029 = vmatprep.subr.mxu0 0.0
        %6030 = vmatpush2.msra.mxu0 0.0
        %6031 = vmatprep.subr.mxu0 0.0
        %6032 = vmatpush2.msra.mxu0 0.0
        %6033 = vmatprep.subr.mxu0 0.0
        %6034 = vmatpush2.msra.mxu0 0.0
        %6035 = vmatprep.subr.mxu0 0.0
        %6036 = vmatpush2.msra.mxu0 0.0
        %6037 = vmatprep.subr.mxu0 0.0
        %6038 = vmatpush2.msra.mxu0 0.0
        %6039 = vmatprep.subr.mxu0 0.0
        %6040 = vmatpush2.msra.mxu0 0.0
        %6041 = vmatprep.subr.mxu0 0.0
        %6042 = vmatpush2.msra.mxu0 0.0
        %6043 = vmatprep.subr.mxu0 0.0
        %6044 = vmatpush2.msra.mxu0 0.0
        %6045 = vmatprep.subr.mxu0 0.0
        %6046 = vmatpush2.msra.mxu0 0.0
        %6047 = vmatprep.subr.mxu0 0.0
        %6048 = vmatpush2.msra.mxu0 0.0
        %6049 = vmatprep.subr.mxu0 0.0
        %6050 = vmatpush2.msra.mxu0 0.0
        %6051 = vmatprep.subr.mxu0 0.0
        %6052 = vmatpush2.msra.mxu0 0.0
        %6053 = vmatprep.mubr.f32.mxu0 0.0
        %v6054 = vand.u32 %v5980, 4294901760
        %v6055 = vsub.f32 %v5980, %v6054
        %v6056 = vand.u32 %v6055, 4294901760
        %v6057 = vsub.f32 %v6055, %v6056
        %v6058 = vand.u32 %v6057, 4294901760
        %6059 = vmatmul.mubr.f32.gmra.mxu0 %v6058
        %v6060 = vpop.f32.mrf.mxu0
        %v6061 = vadd.f32 %v5977, %v6060
        %v6062 = vpop.f32.mrf.mxu0
        %6063 = vmatprep.mubr.f32.mxu0 0.0
        %v6064 = vand.u32 %v5983, 4294901760
        %v6065 = vsub.f32 %v5983, %v6064
        %v6066 = vand.u32 %v6065, 4294901760
        %v6067 = vsub.f32 %v6065, %v6066
        %v6068 = vand.u32 %v6067, 4294901760
        %6069 = vmatmul.mubr.f32.gmra.mxu0 %v6068
        %v6070 = vpop.f32.mrf.mxu0
        %v6071 = vadd.f32 %v5977, %v6070
        %v6072 = vpop.f32.mrf.mxu0
        %6073 = vdwg.mxu0
        %6074 = vmatprep.subr.mxu0 0.0
        %6075 = vmatpush1.msra.mxu0 0.0
        %6076 = vmatprep.subr.mxu0 0.0
        %6077 = vmatpush1.msra.mxu0 0.0
        %6078 = vmatprep.subr.mxu0 0.0
        %6079 = vmatpush1.msra.mxu0 0.0
        %6080 = vmatprep.subr.mxu0 0.0
        %6081 = vmatpush1.msra.mxu0 0.0
        %6082 = vmatprep.subr.mxu0 0.0
        %6083 = vmatpush1.msra.mxu0 0.0
        %6084 = vmatprep.subr.mxu0 0.0
        %6085 = vmatpush1.msra.mxu0 0.0
        %6086 = vmatprep.subr.mxu0 0.0
        %6087 = vmatpush1.msra.mxu0 0.0
        %6088 = vmatprep.subr.mxu0 0.0
        %6089 = vmatpush1.msra.mxu0 0.0
        %6090 = vmatprep.subr.mxu0 0.0
        %6091 = vmatpush1.msra.mxu0 0.0
        %6092 = vmatprep.subr.mxu0 0.0
        %6093 = vmatpush1.msra.mxu0 0.0
        %6094 = vmatprep.subr.mxu0 0.0
        %6095 = vmatpush1.msra.mxu0 0.0
        %6096 = vmatprep.subr.mxu0 0.0
        %6097 = vmatpush1.msra.mxu0 0.0
        %6098 = vmatprep.subr.mxu0 0.0
        %v6099 = vand.u32 %v5971, 4294901760
        %v6100 = vsub.f32 %v5971, %v6099
        %v6101 = vand.u32 %v6100, 4294901760
        %v6102 = vsub.f32 %v6100, %v6101
        %v6103 = vand.u32 %v6102, 4294901760
        %6104 = vmatpush1.msra.mxu0 %v6103
        %6105 = vmatprep.subr.mxu0 0.0
        %v6106 = vand.u32 %v5970, 4294901760
        %v6107 = vsub.f32 %v5970, %v6106
        %v6108 = vand.u32 %v6107, 4294901760
        %v6109 = vsub.f32 %v6107, %v6108
        %v6110 = vand.u32 %v6109, 4294901760
        %6111 = vmatpush1.msra.mxu0 %v6110
        %6112 = vmatprep.subr.mxu0 0.0
        %v6113 = vand.u32 %v5969, 4294901760
        %v6114 = vsub.f32 %v5969, %v6113
        %v6115 = vand.u32 %v6114, 4294901760
        %v6116 = vsub.f32 %v6114, %v6115
        %v6117 = vand.u32 %v6116, 4294901760
        %6118 = vmatpush1.msra.mxu0 %v6117
        %6119 = vmatprep.subr.mxu0 0.0
        %v6120 = vand.u32 %v5968, 4294901760
        %v6121 = vsub.f32 %v5968, %v6120
        %v6122 = vand.u32 %v6121, 4294901760
        %v6123 = vsub.f32 %v6121, %v6122
        %v6124 = vand.u32 %v6123, 4294901760
        %6125 = vmatpush1.msra.mxu0 %v6124
        %6126 = vmatprep.subr.mxu0 0.0
        %6127 = vmatpush2.msra.mxu0 0.0
        %6128 = vmatprep.subr.mxu0 0.0
        %6129 = vmatpush2.msra.mxu0 0.0
        %6130 = vmatprep.subr.mxu0 0.0
        %6131 = vmatpush2.msra.mxu0 0.0
        %6132 = vmatprep.subr.mxu0 0.0
        %6133 = vmatpush2.msra.mxu0 0.0
        %6134 = vmatprep.subr.mxu0 0.0
        %6135 = vmatpush2.msra.mxu0 0.0
        %6136 = vmatprep.subr.mxu0 0.0
        %6137 = vmatpush2.msra.mxu0 0.0
        %6138 = vmatprep.subr.mxu0 0.0
        %6139 = vmatpush2.msra.mxu0 0.0
        %6140 = vmatprep.subr.mxu0 0.0
        %6141 = vmatpush2.msra.mxu0 0.0
        %6142 = vmatprep.subr.mxu0 0.0
        %6143 = vmatpush2.msra.mxu0 0.0
        %6144 = vmatprep.subr.mxu0 0.0
        %6145 = vmatpush2.msra.mxu0 0.0
        %6146 = vmatprep.subr.mxu0 0.0
        %6147 = vmatpush2.msra.mxu0 0.0
        %6148 = vmatprep.subr.mxu0 0.0
        %6149 = vmatpush2.msra.mxu0 0.0
        %6150 = vmatprep.subr.mxu0 0.0
        %6151 = vmatpush2.msra.mxu0 0.0
        %6152 = vmatprep.subr.mxu0 0.0
        %6153 = vmatpush2.msra.mxu0 0.0
        %6154 = vmatprep.subr.mxu0 0.0
        %6155 = vmatpush2.msra.mxu0 0.0
        %6156 = vmatprep.subr.mxu0 0.0
        %6157 = vmatpush2.msra.mxu0 0.0
        %6158 = vmatprep.mubr.f32.mxu0 0.0
        %v6159 = vand.u32 %v5980, 4294901760
        %6160 = vmatmul.mubr.f32.gmra.mxu0 %v6159
        %v6161 = vpop.f32.mrf.mxu0
        %v6162 = vadd.f32 %v6061, %v6161
        %v6163 = vpop.f32.mrf.mxu0
        %6164 = vmatprep.mubr.f32.mxu0 0.0
        %v6165 = vand.u32 %v5983, 4294901760
        %6166 = vmatmul.mubr.f32.gmra.mxu0 %v6165
        %v6167 = vpop.f32.mrf.mxu0
        %v6168 = vadd.f32 %v6071, %v6167
        %v6169 = vpop.f32.mrf.mxu0
        %6170 = vdwg.mxu0
        %6171 = vmatprep.subr.mxu0 0.0
        %6172 = vmatpush1.msra.mxu0 0.0
        %6173 = vmatprep.subr.mxu0 0.0
        %6174 = vmatpush1.msra.mxu0 0.0
        %6175 = vmatprep.subr.mxu0 0.0
        %6176 = vmatpush1.msra.mxu0 0.0
        %6177 = vmatprep.subr.mxu0 0.0
        %6178 = vmatpush1.msra.mxu0 0.0
        %6179 = vmatprep.subr.mxu0 0.0
        %6180 = vmatpush1.msra.mxu0 0.0
        %6181 = vmatprep.subr.mxu0 0.0
        %6182 = vmatpush1.msra.mxu0 0.0
        %6183 = vmatprep.subr.mxu0 0.0
        %6184 = vmatpush1.msra.mxu0 0.0
        %6185 = vmatprep.subr.mxu0 0.0
        %6186 = vmatpush1.msra.mxu0 0.0
        %6187 = vmatprep.subr.mxu0 0.0
        %6188 = vmatpush1.msra.mxu0 0.0
        %6189 = vmatprep.subr.mxu0 0.0
        %6190 = vmatpush1.msra.mxu0 0.0
        %6191 = vmatprep.subr.mxu0 0.0
        %6192 = vmatpush1.msra.mxu0 0.0
        %6193 = vmatprep.subr.mxu0 0.0
        %6194 = vmatpush1.msra.mxu0 0.0
        %6195 = vmatprep.subr.mxu0 0.0
        %v6196 = vand.u32 %v5971, 4294901760
        %v6197 = vsub.f32 %v5971, %v6196
        %6198 = vmatpush1.msra.mxu0 %v6197
        %6199 = vmatprep.subr.mxu0 0.0
        %v6200 = vand.u32 %v5970, 4294901760
        %v6201 = vsub.f32 %v5970, %v6200
        %6202 = vmatpush1.msra.mxu0 %v6201
        %6203 = vmatprep.subr.mxu0 0.0
        %v6204 = vand.u32 %v5969, 4294901760
        %v6205 = vsub.f32 %v5969, %v6204
        %6206 = vmatpush1.msra.mxu0 %v6205
        %6207 = vmatprep.subr.mxu0 0.0
        %v6208 = vand.u32 %v5968, 4294901760
        %v6209 = vsub.f32 %v5968, %v6208
        %6210 = vmatpush1.msra.mxu0 %v6209
        %6211 = vmatprep.subr.mxu0 0.0
        %6212 = vmatpush2.msra.mxu0 0.0
        %6213 = vmatprep.subr.mxu0 0.0
        %6214 = vmatpush2.msra.mxu0 0.0
        %6215 = vmatprep.subr.mxu0 0.0
        %6216 = vmatpush2.msra.mxu0 0.0
        %6217 = vmatprep.subr.mxu0 0.0
        %6218 = vmatpush2.msra.mxu0 0.0
        %6219 = vmatprep.subr.mxu0 0.0
        %6220 = vmatpush2.msra.mxu0 0.0
        %6221 = vmatprep.subr.mxu0 0.0
        %6222 = vmatpush2.msra.mxu0 0.0
        %6223 = vmatprep.subr.mxu0 0.0
        %6224 = vmatpush2.msra.mxu0 0.0
        %6225 = vmatprep.subr.mxu0 0.0
        %6226 = vmatpush2.msra.mxu0 0.0
        %6227 = vmatprep.subr.mxu0 0.0
        %6228 = vmatpush2.msra.mxu0 0.0
        %6229 = vmatprep.subr.mxu0 0.0
        %6230 = vmatpush2.msra.mxu0 0.0
        %6231 = vmatprep.subr.mxu0 0.0
        %6232 = vmatpush2.msra.mxu0 0.0
        %6233 = vmatprep.subr.mxu0 0.0
        %6234 = vmatpush2.msra.mxu0 0.0
        %6235 = vmatprep.subr.mxu0 0.0
        %6236 = vmatpush2.msra.mxu0 0.0
        %6237 = vmatprep.subr.mxu0 0.0
        %6238 = vmatpush2.msra.mxu0 0.0
        %6239 = vmatprep.subr.mxu0 0.0
        %6240 = vmatpush2.msra.mxu0 0.0
        %6241 = vmatprep.subr.mxu0 0.0
        %6242 = vmatpush2.msra.mxu0 0.0
        %6243 = vmatprep.mubr.f32.mxu0 0.0
        %v6244 = vand.u32 %v5980, 4294901760
        %v6245 = vsub.f32 %v5980, %v6244
        %6246 = vmatmul.mubr.f32.gmra.mxu0 %v6245
        %v6247 = vpop.f32.mrf.mxu0
        %v6248 = vadd.f32 %v6162, %v6247
        %v6249 = vpop.f32.mrf.mxu0
        %6250 = vmatprep.mubr.f32.mxu0 0.0
        %v6251 = vand.u32 %v5983, 4294901760
        %v6252 = vsub.f32 %v5983, %v6251
        %6253 = vmatmul.mubr.f32.gmra.mxu0 %v6252
        %v6254 = vpop.f32.mrf.mxu0
        %v6255 = vadd.f32 %v6168, %v6254
        %v6256 = vpop.f32.mrf.mxu0
        %6257 = vdwg.mxu0
        %6258 = vmatprep.subr.mxu0 0.0
        %6259 = vmatpush1.msra.mxu0 0.0
        %6260 = vmatprep.subr.mxu0 0.0
        %6261 = vmatpush1.msra.mxu0 0.0
        %6262 = vmatprep.subr.mxu0 0.0
        %6263 = vmatpush1.msra.mxu0 0.0
        %6264 = vmatprep.subr.mxu0 0.0
        %6265 = vmatpush1.msra.mxu0 0.0
        %6266 = vmatprep.subr.mxu0 0.0
        %6267 = vmatpush1.msra.mxu0 0.0
        %6268 = vmatprep.subr.mxu0 0.0
        %6269 = vmatpush1.msra.mxu0 0.0
        %6270 = vmatprep.subr.mxu0 0.0
        %6271 = vmatpush1.msra.mxu0 0.0
        %6272 = vmatprep.subr.mxu0 0.0
        %6273 = vmatpush1.msra.mxu0 0.0
        %6274 = vmatprep.subr.mxu0 0.0
        %6275 = vmatpush1.msra.mxu0 0.0
        %6276 = vmatprep.subr.mxu0 0.0
        %6277 = vmatpush1.msra.mxu0 0.0
        %6278 = vmatprep.subr.mxu0 0.0
        %6279 = vmatpush1.msra.mxu0 0.0
        %6280 = vmatprep.subr.mxu0 0.0
        %6281 = vmatpush1.msra.mxu0 0.0
        %6282 = vmatprep.subr.mxu0 0.0
        %v6283 = vand.u32 %v5971, 4294901760
        %6284 = vmatpush1.msra.mxu0 %v6283
        %6285 = vmatprep.subr.mxu0 0.0
        %v6286 = vand.u32 %v5970, 4294901760
        %6287 = vmatpush1.msra.mxu0 %v6286
        %6288 = vmatprep.subr.mxu0 0.0
        %v6289 = vand.u32 %v5969, 4294901760
        %6290 = vmatpush1.msra.mxu0 %v6289
        %6291 = vmatprep.subr.mxu0 0.0
        %v6292 = vand.u32 %v5968, 4294901760
        %6293 = vmatpush1.msra.mxu0 %v6292
        %6294 = vmatprep.subr.mxu0 0.0
        %6295 = vmatpush2.msra.mxu0 0.0
        %6296 = vmatprep.subr.mxu0 0.0
        %6297 = vmatpush2.msra.mxu0 0.0
        %6298 = vmatprep.subr.mxu0 0.0
        %6299 = vmatpush2.msra.mxu0 0.0
        %6300 = vmatprep.subr.mxu0 0.0
        %6301 = vmatpush2.msra.mxu0 0.0
        %6302 = vmatprep.subr.mxu0 0.0
        %6303 = vmatpush2.msra.mxu0 0.0
        %6304 = vmatprep.subr.mxu0 0.0
        %6305 = vmatpush2.msra.mxu0 0.0
        %6306 = vmatprep.subr.mxu0 0.0
        %6307 = vmatpush2.msra.mxu0 0.0
        %6308 = vmatprep.subr.mxu0 0.0
        %6309 = vmatpush2.msra.mxu0 0.0
        %6310 = vmatprep.subr.mxu0 0.0
        %6311 = vmatpush2.msra.mxu0 0.0
        %6312 = vmatprep.subr.mxu0 0.0
        %6313 = vmatpush2.msra.mxu0 0.0
        %6314 = vmatprep.subr.mxu0 0.0
        %6315 = vmatpush2.msra.mxu0 0.0
        %6316 = vmatprep.subr.mxu0 0.0
        %6317 = vmatpush2.msra.mxu0 0.0
        %6318 = vmatprep.subr.mxu0 0.0
        %6319 = vmatpush2.msra.mxu0 0.0
        %6320 = vmatprep.subr.mxu0 0.0
        %6321 = vmatpush2.msra.mxu0 0.0
        %6322 = vmatprep.subr.mxu0 0.0
        %6323 = vmatpush2.msra.mxu0 0.0
        %6324 = vmatprep.subr.mxu0 0.0
        %6325 = vmatpush2.msra.mxu0 0.0
        %6326 = vmatprep.mubr.f32.mxu0 0.0
        %v6327 = vand.u32 %v5980, 4294901760
        %v6328 = vsub.f32 %v5980, %v6327
        %v6329 = vand.u32 %v6328, 4294901760
        %6330 = vmatmul.mubr.f32.gmra.mxu0 %v6329
        %v6331 = vpop.f32.mrf.mxu0
        %v6332 = vadd.f32 %v6248, %v6331
        %v6333 = vpop.f32.mrf.mxu0
        %6334 = vmatprep.mubr.f32.mxu0 0.0
        %v6335 = vand.u32 %v5983, 4294901760
        %v6336 = vsub.f32 %v5983, %v6335
        %v6337 = vand.u32 %v6336, 4294901760
        %6338 = vmatmul.mubr.f32.gmra.mxu0 %v6337
        %v6339 = vpop.f32.mrf.mxu0
        %v6340 = vadd.f32 %v6255, %v6339
        %v6341 = vpop.f32.mrf.mxu0
        %6342 = vdwg.mxu0
        %6343 = vmatprep.subr.mxu0 0.0
        %6344 = vmatpush1.msra.mxu0 0.0
        %6345 = vmatprep.subr.mxu0 0.0
        %6346 = vmatpush1.msra.mxu0 0.0
        %6347 = vmatprep.subr.mxu0 0.0
        %6348 = vmatpush1.msra.mxu0 0.0
        %6349 = vmatprep.subr.mxu0 0.0
        %6350 = vmatpush1.msra.mxu0 0.0
        %6351 = vmatprep.subr.mxu0 0.0
        %6352 = vmatpush1.msra.mxu0 0.0
        %6353 = vmatprep.subr.mxu0 0.0
        %6354 = vmatpush1.msra.mxu0 0.0
        %6355 = vmatprep.subr.mxu0 0.0
        %6356 = vmatpush1.msra.mxu0 0.0
        %6357 = vmatprep.subr.mxu0 0.0
        %6358 = vmatpush1.msra.mxu0 0.0
        %6359 = vmatprep.subr.mxu0 0.0
        %6360 = vmatpush1.msra.mxu0 0.0
        %6361 = vmatprep.subr.mxu0 0.0
        %6362 = vmatpush1.msra.mxu0 0.0
        %6363 = vmatprep.subr.mxu0 0.0
        %6364 = vmatpush1.msra.mxu0 0.0
        %6365 = vmatprep.subr.mxu0 0.0
        %6366 = vmatpush1.msra.mxu0 0.0
        %6367 = vmatprep.subr.mxu0 0.0
        %v6368 = vand.u32 %v5971, 4294901760
        %v6369 = vsub.f32 %v5971, %v6368
        %v6370 = vand.u32 %v6369, 4294901760
        %6371 = vmatpush1.msra.mxu0 %v6370
        %6372 = vmatprep.subr.mxu0 0.0
        %v6373 = vand.u32 %v5970, 4294901760
        %v6374 = vsub.f32 %v5970, %v6373
        %v6375 = vand.u32 %v6374, 4294901760
        %6376 = vmatpush1.msra.mxu0 %v6375
        %6377 = vmatprep.subr.mxu0 0.0
        %v6378 = vand.u32 %v5969, 4294901760
        %v6379 = vsub.f32 %v5969, %v6378
        %v6380 = vand.u32 %v6379, 4294901760
        %6381 = vmatpush1.msra.mxu0 %v6380
        %6382 = vmatprep.subr.mxu0 0.0
        %v6383 = vand.u32 %v5968, 4294901760
        %v6384 = vsub.f32 %v5968, %v6383
        %v6385 = vand.u32 %v6384, 4294901760
        %6386 = vmatpush1.msra.mxu0 %v6385
        %6387 = vmatprep.subr.mxu0 0.0
        %6388 = vmatpush2.msra.mxu0 0.0
        %6389 = vmatprep.subr.mxu0 0.0
        %6390 = vmatpush2.msra.mxu0 0.0
        %6391 = vmatprep.subr.mxu0 0.0
        %6392 = vmatpush2.msra.mxu0 0.0
        %6393 = vmatprep.subr.mxu0 0.0
        %6394 = vmatpush2.msra.mxu0 0.0
        %6395 = vmatprep.subr.mxu0 0.0
        %6396 = vmatpush2.msra.mxu0 0.0
        %6397 = vmatprep.subr.mxu0 0.0
        %6398 = vmatpush2.msra.mxu0 0.0
        %6399 = vmatprep.subr.mxu0 0.0
        %6400 = vmatpush2.msra.mxu0 0.0
        %6401 = vmatprep.subr.mxu0 0.0
        %6402 = vmatpush2.msra.mxu0 0.0
        %6403 = vmatprep.subr.mxu0 0.0
        %6404 = vmatpush2.msra.mxu0 0.0
        %6405 = vmatprep.subr.mxu0 0.0
        %6406 = vmatpush2.msra.mxu0 0.0
        %6407 = vmatprep.subr.mxu0 0.0
        %6408 = vmatpush2.msra.mxu0 0.0
        %6409 = vmatprep.subr.mxu0 0.0
        %6410 = vmatpush2.msra.mxu0 0.0
        %6411 = vmatprep.subr.mxu0 0.0
        %6412 = vmatpush2.msra.mxu0 0.0
        %6413 = vmatprep.subr.mxu0 0.0
        %6414 = vmatpush2.msra.mxu0 0.0
        %6415 = vmatprep.subr.mxu0 0.0
        %6416 = vmatpush2.msra.mxu0 0.0
        %6417 = vmatprep.subr.mxu0 0.0
        %6418 = vmatpush2.msra.mxu0 0.0
        %6419 = vmatprep.mubr.f32.mxu0 0.0
        %v6420 = vand.u32 %v5980, 4294901760
        %6421 = vmatmul.mubr.f32.gmra.mxu0 %v6420
        %v6422 = vpop.f32.mrf.mxu0
        %v6423 = vadd.f32 %v6332, %v6422
        %v6424 = vpop.f32.mrf.mxu0
        %6425 = vmatprep.mubr.f32.mxu0 0.0
        %v6426 = vand.u32 %v5983, 4294901760
        %6427 = vmatmul.mubr.f32.gmra.mxu0 %v6426
        %v6428 = vpop.f32.mrf.mxu0
        %v6429 = vadd.f32 %v6340, %v6428
        %v6430 = vpop.f32.mrf.mxu0
        %6431 = vdwg.mxu0
        %6432 = vmatprep.subr.mxu0 0.0
        %6433 = vmatpush1.msra.mxu0 0.0
        %6434 = vmatprep.subr.mxu0 0.0
        %6435 = vmatpush1.msra.mxu0 0.0
        %6436 = vmatprep.subr.mxu0 0.0
        %6437 = vmatpush1.msra.mxu0 0.0
        %6438 = vmatprep.subr.mxu0 0.0
        %6439 = vmatpush1.msra.mxu0 0.0
        %6440 = vmatprep.subr.mxu0 0.0
        %6441 = vmatpush1.msra.mxu0 0.0
        %6442 = vmatprep.subr.mxu0 0.0
        %6443 = vmatpush1.msra.mxu0 0.0
        %6444 = vmatprep.subr.mxu0 0.0
        %6445 = vmatpush1.msra.mxu0 0.0
        %6446 = vmatprep.subr.mxu0 0.0
        %6447 = vmatpush1.msra.mxu0 0.0
        %6448 = vmatprep.subr.mxu0 0.0
        %6449 = vmatpush1.msra.mxu0 0.0
        %6450 = vmatprep.subr.mxu0 0.0
        %6451 = vmatpush1.msra.mxu0 0.0
        %6452 = vmatprep.subr.mxu0 0.0
        %6453 = vmatpush1.msra.mxu0 0.0
        %6454 = vmatprep.subr.mxu0 0.0
        %6455 = vmatpush1.msra.mxu0 0.0
        %6456 = vmatprep.subr.mxu0 0.0
        %v6457 = vand.u32 %v5971, 4294901760
        %6458 = vmatpush1.msra.mxu0 %v6457
        %6459 = vmatprep.subr.mxu0 0.0
        %v6460 = vand.u32 %v5970, 4294901760
        %6461 = vmatpush1.msra.mxu0 %v6460
        %6462 = vmatprep.subr.mxu0 0.0
        %v6463 = vand.u32 %v5969, 4294901760
        %6464 = vmatpush1.msra.mxu0 %v6463
        %6465 = vmatprep.subr.mxu0 0.0
        %v6466 = vand.u32 %v5968, 4294901760
        %6467 = vmatpush1.msra.mxu0 %v6466
        %6468 = vmatprep.subr.mxu0 0.0
        %6469 = vmatpush2.msra.mxu0 0.0
        %6470 = vmatprep.subr.mxu0 0.0
        %6471 = vmatpush2.msra.mxu0 0.0
        %6472 = vmatprep.subr.mxu0 0.0
        %6473 = vmatpush2.msra.mxu0 0.0
        %6474 = vmatprep.subr.mxu0 0.0
        %6475 = vmatpush2.msra.mxu0 0.0
        %6476 = vmatprep.subr.mxu0 0.0
        %6477 = vmatpush2.msra.mxu0 0.0
        %6478 = vmatprep.subr.mxu0 0.0
        %6479 = vmatpush2.msra.mxu0 0.0
        %6480 = vmatprep.subr.mxu0 0.0
        %6481 = vmatpush2.msra.mxu0 0.0
        %6482 = vmatprep.subr.mxu0 0.0
        %6483 = vmatpush2.msra.mxu0 0.0
        %6484 = vmatprep.subr.mxu0 0.0
        %6485 = vmatpush2.msra.mxu0 0.0
        %6486 = vmatprep.subr.mxu0 0.0
        %6487 = vmatpush2.msra.mxu0 0.0
        %6488 = vmatprep.subr.mxu0 0.0
        %6489 = vmatpush2.msra.mxu0 0.0
        %6490 = vmatprep.subr.mxu0 0.0
        %6491 = vmatpush2.msra.mxu0 0.0
        %6492 = vmatprep.subr.mxu0 0.0
        %6493 = vmatpush2.msra.mxu0 0.0
        %6494 = vmatprep.subr.mxu0 0.0
        %6495 = vmatpush2.msra.mxu0 0.0
        %6496 = vmatprep.subr.mxu0 0.0
        %6497 = vmatpush2.msra.mxu0 0.0
        %6498 = vmatprep.subr.mxu0 0.0
        %6499 = vmatpush2.msra.mxu0 0.0
        %6500 = vmatprep.mubr.f32.mxu0 0.0
        %v6501 = vand.u32 %v5980, 4294901760
        %6502 = vmatmul.mubr.f32.gmra.mxu0 %v6501
        %v6503 = vpop.f32.mrf.mxu0
        %v6504 = vadd.f32 %v6423, %v6503
        %v6505 = vpop.f32.mrf.mxu0
        %6506 = vmatprep.mubr.f32.mxu0 0.0
        %v6507 = vand.u32 %v5983, 4294901760
        %6508 = vmatmul.mubr.f32.gmra.mxu0 %v6507
        %v6509 = vpop.f32.mrf.mxu0
        %v6510 = vadd.f32 %v6429, %v6509
        %v6511 = vpop.f32.mrf.mxu0
        %6512 = vdwg.mxu0
        %v6513 = vadd.f32 %v626, %v6504
        %v6514 = vadd.f32 %v627, %v6510
        %v6515 = vld [vmem:[%s9] sm:$0x1]
        %v6516 = vld [vmem:[%s10] sm:$0x1]
        %v6517 = vsel %vm643, %v6513, 0.0
        %6518 = vadd.xlane.f32.xlu0 %v6517
        %v6519 = vpop.xlane.xlu0 %6518
        %v6520 = vsel %vm643, %v6514, 0.0
        %6521 = vadd.xlane.f32.xlu0 %v6520
        %v6522 = vpop.xlane.xlu0 %6521
        %v6523 = vrcp.pop 32.0
        %v6524 = vmul.f32 %v6519, %v6523
        %v6525 = vmul.f32 %v6522, %v6523
        %v6526 = vsub.f32 %v6513, %v6524
        %v6527 = vsub.f32 %v6514, %v6525
        %v6528 = vmul.f32 %v6526, %v6526
        %v6529 = vmul.f32 %v6527, %v6527
        %v6530 = vsel %vm643, %v6528, 0.0
        %6531 = vadd.xlane.f32.xlu0 %v6530
        %v6532 = vpop.xlane.xlu0 %6531
        %v6533 = vsel %vm643, %v6529, 0.0
        %6534 = vadd.xlane.f32.xlu0 %v6533
        %v6535 = vpop.xlane.xlu0 %6534
        %v6536 = vmul.f32 %v6532, %v6523
        %v6537 = vmul.f32 %v6535, %v6523
        %v6538 = vadd.f32 %v6536, 1e-05
        %v6539 = vadd.f32 %v6537, 1e-05
        %v6540 = vrsqrt.pop %v6538
        %v6541 = vrsqrt.pop %v6539
        %v6542 = vmul.f32 %v6526, %v6540
        %v6543 = vmul.f32 %v6527, %v6541
        %v6545 = vlaneseq
        %v6546 = vshrl.u32 %v6545, 7
        %v6547 = vsub.s32 0, %v6546
        %v6548 = vrot.slane %v6515, %v6547
        %v6550 = vmul.f32 %v6542, %v6548
        %v6551 = vmul.f32 %v6543, %v6548
        %v6553 = vlaneseq
        %v6554 = vshrl.u32 %v6553, 7
        %v6555 = vsub.s32 0, %v6554
        %v6556 = vrot.slane %v6516, %v6555
        %v6558 = vadd.f32 %v6550, %v6556
        %v6559 = vadd.f32 %v6551, %v6556
        %v6560 = vld [vmem:[#allocation8] sm:$0xff]
        %v6561 = vld [vmem:[#allocation8 + $0x8] sm:$0xff]
        %v6562 = vld [vmem:[#allocation8 + $0x10] sm:$0xff]
        %v6563 = vld [vmem:[#allocation8 + $0x18] sm:$0xff]
        %v6564 = vld [vmem:[%s12] sm:$0x1]
        %v6566 = vlaneseq
        %v6567 = vshrl.u32 %v6566, 7
        %v6568 = vsub.s32 0, %v6567
        %v6569 = vrot.slane %v6564, %v6568
        %v6572 = vsel %vm643, %v6558, 0
        %v6575 = vsel %vm643, %v6559, 0
        %6577 = vmatprep.subr.mxu0 0.0
        %6578 = vmatpush1.msra.mxu0 0.0
        %6579 = vmatprep.subr.mxu0 0.0
        %6580 = vmatpush1.msra.mxu0 0.0
        %6581 = vmatprep.subr.mxu0 0.0
        %6582 = vmatpush1.msra.mxu0 0.0
        %6583 = vmatprep.subr.mxu0 0.0
        %6584 = vmatpush1.msra.mxu0 0.0
        %6585 = vmatprep.subr.mxu0 0.0
        %6586 = vmatpush1.msra.mxu0 0.0
        %6587 = vmatprep.subr.mxu0 0.0
        %6588 = vmatpush1.msra.mxu0 0.0
        %6589 = vmatprep.subr.mxu0 0.0
        %6590 = vmatpush1.msra.mxu0 0.0
        %6591 = vmatprep.subr.mxu0 0.0
        %6592 = vmatpush1.msra.mxu0 0.0
        %6593 = vmatprep.subr.mxu0 0.0
        %6594 = vmatpush1.msra.mxu0 0.0
        %6595 = vmatprep.subr.mxu0 0.0
        %6596 = vmatpush1.msra.mxu0 0.0
        %6597 = vmatprep.subr.mxu0 0.0
        %6598 = vmatpush1.msra.mxu0 0.0
        %6599 = vmatprep.subr.mxu0 0.0
        %6600 = vmatpush1.msra.mxu0 0.0
        %6601 = vmatprep.subr.mxu0 0.0
        %v6602 = vand.u32 %v6563, 4294901760
        %6603 = vmatpush1.msra.mxu0 %v6602
        %6604 = vmatprep.subr.mxu0 0.0
        %v6605 = vand.u32 %v6562, 4294901760
        %6606 = vmatpush1.msra.mxu0 %v6605
        %6607 = vmatprep.subr.mxu0 0.0
        %v6608 = vand.u32 %v6561, 4294901760
        %6609 = vmatpush1.msra.mxu0 %v6608
        %6610 = vmatprep.subr.mxu0 0.0
        %v6611 = vand.u32 %v6560, 4294901760
        %6612 = vmatpush1.msra.mxu0 %v6611
        %6613 = vmatprep.subr.mxu0 0.0
        %6614 = vmatpush2.msra.mxu0 0.0
        %6615 = vmatprep.subr.mxu0 0.0
        %6616 = vmatpush2.msra.mxu0 0.0
        %6617 = vmatprep.subr.mxu0 0.0
        %6618 = vmatpush2.msra.mxu0 0.0
        %6619 = vmatprep.subr.mxu0 0.0
        %6620 = vmatpush2.msra.mxu0 0.0
        %6621 = vmatprep.subr.mxu0 0.0
        %6622 = vmatpush2.msra.mxu0 0.0
        %6623 = vmatprep.subr.mxu0 0.0
        %6624 = vmatpush2.msra.mxu0 0.0
        %6625 = vmatprep.subr.mxu0 0.0
        %6626 = vmatpush2.msra.mxu0 0.0
        %6627 = vmatprep.subr.mxu0 0.0
        %6628 = vmatpush2.msra.mxu0 0.0
        %6629 = vmatprep.subr.mxu0 0.0
        %6630 = vmatpush2.msra.mxu0 0.0
        %6631 = vmatprep.subr.mxu0 0.0
        %6632 = vmatpush2.msra.mxu0 0.0
        %6633 = vmatprep.subr.mxu0 0.0
        %6634 = vmatpush2.msra.mxu0 0.0
        %6635 = vmatprep.subr.mxu0 0.0
        %6636 = vmatpush2.msra.mxu0 0.0
        %6637 = vmatprep.subr.mxu0 0.0
        %6638 = vmatpush2.msra.mxu0 0.0
        %6639 = vmatprep.subr.mxu0 0.0
        %6640 = vmatpush2.msra.mxu0 0.0
        %6641 = vmatprep.subr.mxu0 0.0
        %6642 = vmatpush2.msra.mxu0 0.0
        %6643 = vmatprep.subr.mxu0 0.0
        %6644 = vmatpush2.msra.mxu0 0.0
        %6645 = vmatprep.mubr.f32.mxu0 0.0
        %v6646 = vand.u32 %v6572, 4294901760
        %v6647 = vsub.f32 %v6572, %v6646
        %v6648 = vand.u32 %v6647, 4294901760
        %v6649 = vsub.f32 %v6647, %v6648
        %v6650 = vand.u32 %v6649, 4294901760
        %6651 = vmatmul.mubr.f32.gmra.mxu0 %v6650
        %v6652 = vpop.f32.mrf.mxu0
        %v6653 = vadd.f32 %v6569, %v6652
        %v6654 = vpop.f32.mrf.mxu0
        %6655 = vmatprep.mubr.f32.mxu0 0.0
        %v6656 = vand.u32 %v6575, 4294901760
        %v6657 = vsub.f32 %v6575, %v6656
        %v6658 = vand.u32 %v6657, 4294901760
        %v6659 = vsub.f32 %v6657, %v6658
        %v6660 = vand.u32 %v6659, 4294901760
        %6661 = vmatmul.mubr.f32.gmra.mxu0 %v6660
        %v6662 = vpop.f32.mrf.mxu0
        %v6663 = vadd.f32 %v6569, %v6662
        %v6664 = vpop.f32.mrf.mxu0
        %6665 = vdwg.mxu0
        %6666 = vmatprep.subr.mxu0 0.0
        %6667 = vmatpush1.msra.mxu0 0.0
        %6668 = vmatprep.subr.mxu0 0.0
        %6669 = vmatpush1.msra.mxu0 0.0
        %6670 = vmatprep.subr.mxu0 0.0
        %6671 = vmatpush1.msra.mxu0 0.0
        %6672 = vmatprep.subr.mxu0 0.0
        %6673 = vmatpush1.msra.mxu0 0.0
        %6674 = vmatprep.subr.mxu0 0.0
        %6675 = vmatpush1.msra.mxu0 0.0
        %6676 = vmatprep.subr.mxu0 0.0
        %6677 = vmatpush1.msra.mxu0 0.0
        %6678 = vmatprep.subr.mxu0 0.0
        %6679 = vmatpush1.msra.mxu0 0.0
        %6680 = vmatprep.subr.mxu0 0.0
        %6681 = vmatpush1.msra.mxu0 0.0
        %6682 = vmatprep.subr.mxu0 0.0
        %6683 = vmatpush1.msra.mxu0 0.0
        %6684 = vmatprep.subr.mxu0 0.0
        %6685 = vmatpush1.msra.mxu0 0.0
        %6686 = vmatprep.subr.mxu0 0.0
        %6687 = vmatpush1.msra.mxu0 0.0
        %6688 = vmatprep.subr.mxu0 0.0
        %6689 = vmatpush1.msra.mxu0 0.0
        %6690 = vmatprep.subr.mxu0 0.0
        %v6691 = vand.u32 %v6563, 4294901760
        %v6692 = vsub.f32 %v6563, %v6691
        %v6693 = vand.u32 %v6692, 4294901760
        %v6694 = vsub.f32 %v6692, %v6693
        %v6695 = vand.u32 %v6694, 4294901760
        %6696 = vmatpush1.msra.mxu0 %v6695
        %6697 = vmatprep.subr.mxu0 0.0
        %v6698 = vand.u32 %v6562, 4294901760
        %v6699 = vsub.f32 %v6562, %v6698
        %v6700 = vand.u32 %v6699, 4294901760
        %v6701 = vsub.f32 %v6699, %v6700
        %v6702 = vand.u32 %v6701, 4294901760
        %6703 = vmatpush1.msra.mxu0 %v6702
        %6704 = vmatprep.subr.mxu0 0.0
        %v6705 = vand.u32 %v6561, 4294901760
        %v6706 = vsub.f32 %v6561, %v6705
        %v6707 = vand.u32 %v6706, 4294901760
        %v6708 = vsub.f32 %v6706, %v6707
        %v6709 = vand.u32 %v6708, 4294901760
        %6710 = vmatpush1.msra.mxu0 %v6709
        %6711 = vmatprep.subr.mxu0 0.0
        %v6712 = vand.u32 %v6560, 4294901760
        %v6713 = vsub.f32 %v6560, %v6712
        %v6714 = vand.u32 %v6713, 4294901760
        %v6715 = vsub.f32 %v6713, %v6714
        %v6716 = vand.u32 %v6715, 4294901760
        %6717 = vmatpush1.msra.mxu0 %v6716
        %6718 = vmatprep.subr.mxu0 0.0
        %6719 = vmatpush2.msra.mxu0 0.0
        %6720 = vmatprep.subr.mxu0 0.0
        %6721 = vmatpush2.msra.mxu0 0.0
        %6722 = vmatprep.subr.mxu0 0.0
        %6723 = vmatpush2.msra.mxu0 0.0
        %6724 = vmatprep.subr.mxu0 0.0
        %6725 = vmatpush2.msra.mxu0 0.0
        %6726 = vmatprep.subr.mxu0 0.0
        %6727 = vmatpush2.msra.mxu0 0.0
        %6728 = vmatprep.subr.mxu0 0.0
        %6729 = vmatpush2.msra.mxu0 0.0
        %6730 = vmatprep.subr.mxu0 0.0
        %6731 = vmatpush2.msra.mxu0 0.0
        %6732 = vmatprep.subr.mxu0 0.0
        %6733 = vmatpush2.msra.mxu0 0.0
        %6734 = vmatprep.subr.mxu0 0.0
        %6735 = vmatpush2.msra.mxu0 0.0
        %6736 = vmatprep.subr.mxu0 0.0
        %6737 = vmatpush2.msra.mxu0 0.0
        %6738 = vmatprep.subr.mxu0 0.0
        %6739 = vmatpush2.msra.mxu0 0.0
        %6740 = vmatprep.subr.mxu0 0.0
        %6741 = vmatpush2.msra.mxu0 0.0
        %6742 = vmatprep.subr.mxu0 0.0
        %6743 = vmatpush2.msra.mxu0 0.0
        %6744 = vmatprep.subr.mxu0 0.0
        %6745 = vmatpush2.msra.mxu0 0.0
        %6746 = vmatprep.subr.mxu0 0.0
        %6747 = vmatpush2.msra.mxu0 0.0
        %6748 = vmatprep.subr.mxu0 0.0
        %6749 = vmatpush2.msra.mxu0 0.0
        %6750 = vmatprep.mubr.f32.mxu0 0.0
        %v6751 = vand.u32 %v6572, 4294901760
        %6752 = vmatmul.mubr.f32.gmra.mxu0 %v6751
        %v6753 = vpop.f32.mrf.mxu0
        %v6754 = vadd.f32 %v6653, %v6753
        %v6755 = vpop.f32.mrf.mxu0
        %6756 = vmatprep.mubr.f32.mxu0 0.0
        %v6757 = vand.u32 %v6575, 4294901760
        %6758 = vmatmul.mubr.f32.gmra.mxu0 %v6757
        %v6759 = vpop.f32.mrf.mxu0
        %v6760 = vadd.f32 %v6663, %v6759
        %v6761 = vpop.f32.mrf.mxu0
        %6762 = vdwg.mxu0
        %6763 = vmatprep.subr.mxu0 0.0
        %6764 = vmatpush1.msra.mxu0 0.0
        %6765 = vmatprep.subr.mxu0 0.0
        %6766 = vmatpush1.msra.mxu0 0.0
        %6767 = vmatprep.subr.mxu0 0.0
        %6768 = vmatpush1.msra.mxu0 0.0
        %6769 = vmatprep.subr.mxu0 0.0
        %6770 = vmatpush1.msra.mxu0 0.0
        %6771 = vmatprep.subr.mxu0 0.0
        %6772 = vmatpush1.msra.mxu0 0.0
        %6773 = vmatprep.subr.mxu0 0.0
        %6774 = vmatpush1.msra.mxu0 0.0
        %6775 = vmatprep.subr.mxu0 0.0
        %6776 = vmatpush1.msra.mxu0 0.0
        %6777 = vmatprep.subr.mxu0 0.0
        %6778 = vmatpush1.msra.mxu0 0.0
        %6779 = vmatprep.subr.mxu0 0.0
        %6780 = vmatpush1.msra.mxu0 0.0
        %6781 = vmatprep.subr.mxu0 0.0
        %6782 = vmatpush1.msra.mxu0 0.0
        %6783 = vmatprep.subr.mxu0 0.0
        %6784 = vmatpush1.msra.mxu0 0.0
        %6785 = vmatprep.subr.mxu0 0.0
        %6786 = vmatpush1.msra.mxu0 0.0
        %6787 = vmatprep.subr.mxu0 0.0
        %v6788 = vand.u32 %v6563, 4294901760
        %v6789 = vsub.f32 %v6563, %v6788
        %6790 = vmatpush1.msra.mxu0 %v6789
        %6791 = vmatprep.subr.mxu0 0.0
        %v6792 = vand.u32 %v6562, 4294901760
        %v6793 = vsub.f32 %v6562, %v6792
        %6794 = vmatpush1.msra.mxu0 %v6793
        %6795 = vmatprep.subr.mxu0 0.0
        %v6796 = vand.u32 %v6561, 4294901760
        %v6797 = vsub.f32 %v6561, %v6796
        %6798 = vmatpush1.msra.mxu0 %v6797
        %6799 = vmatprep.subr.mxu0 0.0
        %v6800 = vand.u32 %v6560, 4294901760
        %v6801 = vsub.f32 %v6560, %v6800
        %6802 = vmatpush1.msra.mxu0 %v6801
        %6803 = vmatprep.subr.mxu0 0.0
        %6804 = vmatpush2.msra.mxu0 0.0
        %6805 = vmatprep.subr.mxu0 0.0
        %6806 = vmatpush2.msra.mxu0 0.0
        %6807 = vmatprep.subr.mxu0 0.0
        %6808 = vmatpush2.msra.mxu0 0.0
        %6809 = vmatprep.subr.mxu0 0.0
        %6810 = vmatpush2.msra.mxu0 0.0
        %6811 = vmatprep.subr.mxu0 0.0
        %6812 = vmatpush2.msra.mxu0 0.0
        %6813 = vmatprep.subr.mxu0 0.0
        %6814 = vmatpush2.msra.mxu0 0.0
        %6815 = vmatprep.subr.mxu0 0.0
        %6816 = vmatpush2.msra.mxu0 0.0
        %6817 = vmatprep.subr.mxu0 0.0
        %6818 = vmatpush2.msra.mxu0 0.0
        %6819 = vmatprep.subr.mxu0 0.0
        %6820 = vmatpush2.msra.mxu0 0.0
        %6821 = vmatprep.subr.mxu0 0.0
        %6822 = vmatpush2.msra.mxu0 0.0
        %6823 = vmatprep.subr.mxu0 0.0
        %6824 = vmatpush2.msra.mxu0 0.0
        %6825 = vmatprep.subr.mxu0 0.0
        %6826 = vmatpush2.msra.mxu0 0.0
        %6827 = vmatprep.subr.mxu0 0.0
        %6828 = vmatpush2.msra.mxu0 0.0
        %6829 = vmatprep.subr.mxu0 0.0
        %6830 = vmatpush2.msra.mxu0 0.0
        %6831 = vmatprep.subr.mxu0 0.0
        %6832 = vmatpush2.msra.mxu0 0.0
        %6833 = vmatprep.subr.mxu0 0.0
        %6834 = vmatpush2.msra.mxu0 0.0
        %6835 = vmatprep.mubr.f32.mxu0 0.0
        %v6836 = vand.u32 %v6572, 4294901760
        %v6837 = vsub.f32 %v6572, %v6836
        %6838 = vmatmul.mubr.f32.gmra.mxu0 %v6837
        %v6839 = vpop.f32.mrf.mxu0
        %v6840 = vadd.f32 %v6754, %v6839
        %v6841 = vpop.f32.mrf.mxu0
        %6842 = vmatprep.mubr.f32.mxu0 0.0
        %v6843 = vand.u32 %v6575, 4294901760
        %v6844 = vsub.f32 %v6575, %v6843
        %6845 = vmatmul.mubr.f32.gmra.mxu0 %v6844
        %v6846 = vpop.f32.mrf.mxu0
        %v6847 = vadd.f32 %v6760, %v6846
        %v6848 = vpop.f32.mrf.mxu0
        %6849 = vdwg.mxu0
        %6850 = vmatprep.subr.mxu0 0.0
        %6851 = vmatpush1.msra.mxu0 0.0
        %6852 = vmatprep.subr.mxu0 0.0
        %6853 = vmatpush1.msra.mxu0 0.0
        %6854 = vmatprep.subr.mxu0 0.0
        %6855 = vmatpush1.msra.mxu0 0.0
        %6856 = vmatprep.subr.mxu0 0.0
        %6857 = vmatpush1.msra.mxu0 0.0
        %6858 = vmatprep.subr.mxu0 0.0
        %6859 = vmatpush1.msra.mxu0 0.0
        %6860 = vmatprep.subr.mxu0 0.0
        %6861 = vmatpush1.msra.mxu0 0.0
        %6862 = vmatprep.subr.mxu0 0.0
        %6863 = vmatpush1.msra.mxu0 0.0
        %6864 = vmatprep.subr.mxu0 0.0
        %6865 = vmatpush1.msra.mxu0 0.0
        %6866 = vmatprep.subr.mxu0 0.0
        %6867 = vmatpush1.msra.mxu0 0.0
        %6868 = vmatprep.subr.mxu0 0.0
        %6869 = vmatpush1.msra.mxu0 0.0
        %6870 = vmatprep.subr.mxu0 0.0
        %6871 = vmatpush1.msra.mxu0 0.0
        %6872 = vmatprep.subr.mxu0 0.0
        %6873 = vmatpush1.msra.mxu0 0.0
        %6874 = vmatprep.subr.mxu0 0.0
        %v6875 = vand.u32 %v6563, 4294901760
        %6876 = vmatpush1.msra.mxu0 %v6875
        %6877 = vmatprep.subr.mxu0 0.0
        %v6878 = vand.u32 %v6562, 4294901760
        %6879 = vmatpush1.msra.mxu0 %v6878
        %6880 = vmatprep.subr.mxu0 0.0
        %v6881 = vand.u32 %v6561, 4294901760
        %6882 = vmatpush1.msra.mxu0 %v6881
        %6883 = vmatprep.subr.mxu0 0.0
        %v6884 = vand.u32 %v6560, 4294901760
        %6885 = vmatpush1.msra.mxu0 %v6884
        %6886 = vmatprep.subr.mxu0 0.0
        %6887 = vmatpush2.msra.mxu0 0.0
        %6888 = vmatprep.subr.mxu0 0.0
        %6889 = vmatpush2.msra.mxu0 0.0
        %6890 = vmatprep.subr.mxu0 0.0
        %6891 = vmatpush2.msra.mxu0 0.0
        %6892 = vmatprep.subr.mxu0 0.0
        %6893 = vmatpush2.msra.mxu0 0.0
        %6894 = vmatprep.subr.mxu0 0.0
        %6895 = vmatpush2.msra.mxu0 0.0
        %6896 = vmatprep.subr.mxu0 0.0
        %6897 = vmatpush2.msra.mxu0 0.0
        %6898 = vmatprep.subr.mxu0 0.0
        %6899 = vmatpush2.msra.mxu0 0.0
        %6900 = vmatprep.subr.mxu0 0.0
        %6901 = vmatpush2.msra.mxu0 0.0
        %6902 = vmatprep.subr.mxu0 0.0
        %6903 = vmatpush2.msra.mxu0 0.0
        %6904 = vmatprep.subr.mxu0 0.0
        %6905 = vmatpush2.msra.mxu0 0.0
        %6906 = vmatprep.subr.mxu0 0.0
        %6907 = vmatpush2.msra.mxu0 0.0
        %6908 = vmatprep.subr.mxu0 0.0
        %6909 = vmatpush2.msra.mxu0 0.0
        %6910 = vmatprep.subr.mxu0 0.0
        %6911 = vmatpush2.msra.mxu0 0.0
        %6912 = vmatprep.subr.mxu0 0.0
        %6913 = vmatpush2.msra.mxu0 0.0
        %6914 = vmatprep.subr.mxu0 0.0
        %6915 = vmatpush2.msra.mxu0 0.0
        %6916 = vmatprep.subr.mxu0 0.0
        %6917 = vmatpush2.msra.mxu0 0.0
        %6918 = vmatprep.mubr.f32.mxu0 0.0
        %v6919 = vand.u32 %v6572, 4294901760
        %v6920 = vsub.f32 %v6572, %v6919
        %v6921 = vand.u32 %v6920, 4294901760
        %6922 = vmatmul.mubr.f32.gmra.mxu0 %v6921
        %v6923 = vpop.f32.mrf.mxu0
        %v6924 = vadd.f32 %v6840, %v6923
        %v6925 = vpop.f32.mrf.mxu0
        %6926 = vmatprep.mubr.f32.mxu0 0.0
        %v6927 = vand.u32 %v6575, 4294901760
        %v6928 = vsub.f32 %v6575, %v6927
        %v6929 = vand.u32 %v6928, 4294901760
        %6930 = vmatmul.mubr.f32.gmra.mxu0 %v6929
        %v6931 = vpop.f32.mrf.mxu0
        %v6932 = vadd.f32 %v6847, %v6931
        %v6933 = vpop.f32.mrf.mxu0
        %6934 = vdwg.mxu0
        %6935 = vmatprep.subr.mxu0 0.0
        %6936 = vmatpush1.msra.mxu0 0.0
        %6937 = vmatprep.subr.mxu0 0.0
        %6938 = vmatpush1.msra.mxu0 0.0
        %6939 = vmatprep.subr.mxu0 0.0
        %6940 = vmatpush1.msra.mxu0 0.0
        %6941 = vmatprep.subr.mxu0 0.0
        %6942 = vmatpush1.msra.mxu0 0.0
        %6943 = vmatprep.subr.mxu0 0.0
        %6944 = vmatpush1.msra.mxu0 0.0
        %6945 = vmatprep.subr.mxu0 0.0
        %6946 = vmatpush1.msra.mxu0 0.0
        %6947 = vmatprep.subr.mxu0 0.0
        %6948 = vmatpush1.msra.mxu0 0.0
        %6949 = vmatprep.subr.mxu0 0.0
        %6950 = vmatpush1.msra.mxu0 0.0
        %6951 = vmatprep.subr.mxu0 0.0
        %6952 = vmatpush1.msra.mxu0 0.0
        %6953 = vmatprep.subr.mxu0 0.0
        %6954 = vmatpush1.msra.mxu0 0.0
        %6955 = vmatprep.subr.mxu0 0.0
        %6956 = vmatpush1.msra.mxu0 0.0
        %6957 = vmatprep.subr.mxu0 0.0
        %6958 = vmatpush1.msra.mxu0 0.0
        %6959 = vmatprep.subr.mxu0 0.0
        %v6960 = vand.u32 %v6563, 4294901760
        %v6961 = vsub.f32 %v6563, %v6960
        %v6962 = vand.u32 %v6961, 4294901760
        %6963 = vmatpush1.msra.mxu0 %v6962
        %6964 = vmatprep.subr.mxu0 0.0
        %v6965 = vand.u32 %v6562, 4294901760
        %v6966 = vsub.f32 %v6562, %v6965
        %v6967 = vand.u32 %v6966, 4294901760
        %6968 = vmatpush1.msra.mxu0 %v6967
        %6969 = vmatprep.subr.mxu0 0.0
        %v6970 = vand.u32 %v6561, 4294901760
        %v6971 = vsub.f32 %v6561, %v6970
        %v6972 = vand.u32 %v6971, 4294901760
        %6973 = vmatpush1.msra.mxu0 %v6972
        %6974 = vmatprep.subr.mxu0 0.0
        %v6975 = vand.u32 %v6560, 4294901760
        %v6976 = vsub.f32 %v6560, %v6975
        %v6977 = vand.u32 %v6976, 4294901760
        %6978 = vmatpush1.msra.mxu0 %v6977
        %6979 = vmatprep.subr.mxu0 0.0
        %6980 = vmatpush2.msra.mxu0 0.0
        %6981 = vmatprep.subr.mxu0 0.0
        %6982 = vmatpush2.msra.mxu0 0.0
        %6983 = vmatprep.subr.mxu0 0.0
        %6984 = vmatpush2.msra.mxu0 0.0
        %6985 = vmatprep.subr.mxu0 0.0
        %6986 = vmatpush2.msra.mxu0 0.0
        %6987 = vmatprep.subr.mxu0 0.0
        %6988 = vmatpush2.msra.mxu0 0.0
        %6989 = vmatprep.subr.mxu0 0.0
        %6990 = vmatpush2.msra.mxu0 0.0
        %6991 = vmatprep.subr.mxu0 0.0
        %6992 = vmatpush2.msra.mxu0 0.0
        %6993 = vmatprep.subr.mxu0 0.0
        %6994 = vmatpush2.msra.mxu0 0.0
        %6995 = vmatprep.subr.mxu0 0.0
        %6996 = vmatpush2.msra.mxu0 0.0
        %6997 = vmatprep.subr.mxu0 0.0
        %6998 = vmatpush2.msra.mxu0 0.0
        %6999 = vmatprep.subr.mxu0 0.0
        %7000 = vmatpush2.msra.mxu0 0.0
        %7001 = vmatprep.subr.mxu0 0.0
        %7002 = vmatpush2.msra.mxu0 0.0
        %7003 = vmatprep.subr.mxu0 0.0
        %7004 = vmatpush2.msra.mxu0 0.0
        %7005 = vmatprep.subr.mxu0 0.0
        %7006 = vmatpush2.msra.mxu0 0.0
        %7007 = vmatprep.subr.mxu0 0.0
        %7008 = vmatpush2.msra.mxu0 0.0
        %7009 = vmatprep.subr.mxu0 0.0
        %7010 = vmatpush2.msra.mxu0 0.0
        %7011 = vmatprep.mubr.f32.mxu0 0.0
        %v7012 = vand.u32 %v6572, 4294901760
        %7013 = vmatmul.mubr.f32.gmra.mxu0 %v7012
        %v7014 = vpop.f32.mrf.mxu0
        %v7015 = vadd.f32 %v6924, %v7014
        %v7016 = vpop.f32.mrf.mxu0
        %7017 = vmatprep.mubr.f32.mxu0 0.0
        %v7018 = vand.u32 %v6575, 4294901760
        %7019 = vmatmul.mubr.f32.gmra.mxu0 %v7018
        %v7020 = vpop.f32.mrf.mxu0
        %v7021 = vadd.f32 %v6932, %v7020
        %v7022 = vpop.f32.mrf.mxu0
        %7023 = vdwg.mxu0
        %7024 = vmatprep.subr.mxu0 0.0
        %7025 = vmatpush1.msra.mxu0 0.0
        %7026 = vmatprep.subr.mxu0 0.0
        %7027 = vmatpush1.msra.mxu0 0.0
        %7028 = vmatprep.subr.mxu0 0.0
        %7029 = vmatpush1.msra.mxu0 0.0
        %7030 = vmatprep.subr.mxu0 0.0
        %7031 = vmatpush1.msra.mxu0 0.0
        %7032 = vmatprep.subr.mxu0 0.0
        %7033 = vmatpush1.msra.mxu0 0.0
        %7034 = vmatprep.subr.mxu0 0.0
        %7035 = vmatpush1.msra.mxu0 0.0
        %7036 = vmatprep.subr.mxu0 0.0
        %7037 = vmatpush1.msra.mxu0 0.0
        %7038 = vmatprep.subr.mxu0 0.0
        %7039 = vmatpush1.msra.mxu0 0.0
        %7040 = vmatprep.subr.mxu0 0.0
        %7041 = vmatpush1.msra.mxu0 0.0
        %7042 = vmatprep.subr.mxu0 0.0
        %7043 = vmatpush1.msra.mxu0 0.0
        %7044 = vmatprep.subr.mxu0 0.0
        %7045 = vmatpush1.msra.mxu0 0.0
        %7046 = vmatprep.subr.mxu0 0.0
        %7047 = vmatpush1.msra.mxu0 0.0
        %7048 = vmatprep.subr.mxu0 0.0
        %v7049 = vand.u32 %v6563, 4294901760
        %7050 = vmatpush1.msra.mxu0 %v7049
        %7051 = vmatprep.subr.mxu0 0.0
        %v7052 = vand.u32 %v6562, 4294901760
        %7053 = vmatpush1.msra.mxu0 %v7052
        %7054 = vmatprep.subr.mxu0 0.0
        %v7055 = vand.u32 %v6561, 4294901760
        %7056 = vmatpush1.msra.mxu0 %v7055
        %7057 = vmatprep.subr.mxu0 0.0
        %v7058 = vand.u32 %v6560, 4294901760
        %7059 = vmatpush1.msra.mxu0 %v7058
        %7060 = vmatprep.subr.mxu0 0.0
        %7061 = vmatpush2.msra.mxu0 0.0
        %7062 = vmatprep.subr.mxu0 0.0
        %7063 = vmatpush2.msra.mxu0 0.0
        %7064 = vmatprep.subr.mxu0 0.0
        %7065 = vmatpush2.msra.mxu0 0.0
        %7066 = vmatprep.subr.mxu0 0.0
        %7067 = vmatpush2.msra.mxu0 0.0
        %7068 = vmatprep.subr.mxu0 0.0
        %7069 = vmatpush2.msra.mxu0 0.0
        %7070 = vmatprep.subr.mxu0 0.0
        %7071 = vmatpush2.msra.mxu0 0.0
        %7072 = vmatprep.subr.mxu0 0.0
        %7073 = vmatpush2.msra.mxu0 0.0
        %7074 = vmatprep.subr.mxu0 0.0
        %7075 = vmatpush2.msra.mxu0 0.0
        %7076 = vmatprep.subr.mxu0 0.0
        %7077 = vmatpush2.msra.mxu0 0.0
        %7078 = vmatprep.subr.mxu0 0.0
        %7079 = vmatpush2.msra.mxu0 0.0
        %7080 = vmatprep.subr.mxu0 0.0
        %7081 = vmatpush2.msra.mxu0 0.0
        %7082 = vmatprep.subr.mxu0 0.0
        %7083 = vmatpush2.msra.mxu0 0.0
        %7084 = vmatprep.subr.mxu0 0.0
        %7085 = vmatpush2.msra.mxu0 0.0
        %7086 = vmatprep.subr.mxu0 0.0
        %7087 = vmatpush2.msra.mxu0 0.0
        %7088 = vmatprep.subr.mxu0 0.0
        %7089 = vmatpush2.msra.mxu0 0.0
        %7090 = vmatprep.subr.mxu0 0.0
        %7091 = vmatpush2.msra.mxu0 0.0
        %7092 = vmatprep.mubr.f32.mxu0 0.0
        %v7093 = vand.u32 %v6572, 4294901760
        %7094 = vmatmul.mubr.f32.gmra.mxu0 %v7093
        %v7095 = vpop.f32.mrf.mxu0
        %v7096 = vadd.f32 %v7015, %v7095
        %v7097 = vpop.f32.mrf.mxu0
        %7098 = vmatprep.mubr.f32.mxu0 0.0
        %v7099 = vand.u32 %v6575, 4294901760
        %7100 = vmatmul.mubr.f32.gmra.mxu0 %v7099
        %v7101 = vpop.f32.mrf.mxu0
        %v7102 = vadd.f32 %v7021, %v7101
        %v7103 = vpop.f32.mrf.mxu0
        %7104 = vdwg.mxu0
        %v7105 = vmax.f32 %v7096, 0.0
        %v7106 = vmax.f32 %v7102, 0.0
        %v7107 = vld [vmem:[%s13] sm:$0xff]
        %v7108 = vld [vmem:[%s13 + $0x8] sm:$0xff]
        %v7109 = vld [vmem:[%s13 + $0x10] sm:$0xff]
        %v7110 = vld [vmem:[%s13 + $0x18] sm:$0xff]
        %v7111 = vld [vmem:[%s13 + $0x20] sm:$0xff]
        %v7112 = vld [vmem:[%s13 + $0x28] sm:$0xff]
        %v7113 = vld [vmem:[%s13 + $0x30] sm:$0xff]
        %v7114 = vld [vmem:[%s13 + $0x38] sm:$0xff]
        %v7115 = vld [vmem:[%s14] sm:$0x1]
        %v7117 = vlaneseq
        %v7118 = vshrl.u32 %v7117, 7
        %v7119 = vsub.s32 0, %v7118
        %v7120 = vrot.slane %v7115, %v7119
        %vm7122 = vcmask 523264
        %v7124 = vsel %vm7122, %v7105, 0
        %v7127 = vsel %vm7122, %v7106, 0
        %7129 = vmatprep.subr.mxu0 0.0
        %7130 = vmatpush1.msra.mxu0 0.0
        %7131 = vmatprep.subr.mxu0 0.0
        %7132 = vmatpush1.msra.mxu0 0.0
        %7133 = vmatprep.subr.mxu0 0.0
        %7134 = vmatpush1.msra.mxu0 0.0
        %7135 = vmatprep.subr.mxu0 0.0
        %7136 = vmatpush1.msra.mxu0 0.0
        %7137 = vmatprep.subr.mxu0 0.0
        %7138 = vmatpush1.msra.mxu0 0.0
        %7139 = vmatprep.subr.mxu0 0.0
        %7140 = vmatpush1.msra.mxu0 0.0
        %7141 = vmatprep.subr.mxu0 0.0
        %7142 = vmatpush1.msra.mxu0 0.0
        %7143 = vmatprep.subr.mxu0 0.0
        %7144 = vmatpush1.msra.mxu0 0.0
        %7145 = vmatprep.subr.mxu0 0.0
        %v7146 = vand.u32 %v7114, 4294901760
        %7147 = vmatpush1.msra.mxu0 %v7146
        %7148 = vmatprep.subr.mxu0 0.0
        %v7149 = vand.u32 %v7113, 4294901760
        %7150 = vmatpush1.msra.mxu0 %v7149
        %7151 = vmatprep.subr.mxu0 0.0
        %v7152 = vand.u32 %v7112, 4294901760
        %7153 = vmatpush1.msra.mxu0 %v7152
        %7154 = vmatprep.subr.mxu0 0.0
        %v7155 = vand.u32 %v7111, 4294901760
        %7156 = vmatpush1.msra.mxu0 %v7155
        %7157 = vmatprep.subr.mxu0 0.0
        %v7158 = vand.u32 %v7110, 4294901760
        %7159 = vmatpush1.msra.mxu0 %v7158
        %7160 = vmatprep.subr.mxu0 0.0
        %v7161 = vand.u32 %v7109, 4294901760
        %7162 = vmatpush1.msra.mxu0 %v7161
        %7163 = vmatprep.subr.mxu0 0.0
        %v7164 = vand.u32 %v7108, 4294901760
        %7165 = vmatpush1.msra.mxu0 %v7164
        %7166 = vmatprep.subr.mxu0 0.0
        %v7167 = vand.u32 %v7107, 4294901760
        %7168 = vmatpush1.msra.mxu0 %v7167
        %7169 = vmatprep.subr.mxu0 0.0
        %7170 = vmatpush2.msra.mxu0 0.0
        %7171 = vmatprep.subr.mxu0 0.0
        %7172 = vmatpush2.msra.mxu0 0.0
        %7173 = vmatprep.subr.mxu0 0.0
        %7174 = vmatpush2.msra.mxu0 0.0
        %7175 = vmatprep.subr.mxu0 0.0
        %7176 = vmatpush2.msra.mxu0 0.0
        %7177 = vmatprep.subr.mxu0 0.0
        %7178 = vmatpush2.msra.mxu0 0.0
        %7179 = vmatprep.subr.mxu0 0.0
        %7180 = vmatpush2.msra.mxu0 0.0
        %7181 = vmatprep.subr.mxu0 0.0
        %7182 = vmatpush2.msra.mxu0 0.0
        %7183 = vmatprep.subr.mxu0 0.0
        %7184 = vmatpush2.msra.mxu0 0.0
        %7185 = vmatprep.subr.mxu0 0.0
        %7186 = vmatpush2.msra.mxu0 0.0
        %7187 = vmatprep.subr.mxu0 0.0
        %7188 = vmatpush2.msra.mxu0 0.0
        %7189 = vmatprep.subr.mxu0 0.0
        %7190 = vmatpush2.msra.mxu0 0.0
        %7191 = vmatprep.subr.mxu0 0.0
        %7192 = vmatpush2.msra.mxu0 0.0
        %7193 = vmatprep.subr.mxu0 0.0
        %7194 = vmatpush2.msra.mxu0 0.0
        %7195 = vmatprep.subr.mxu0 0.0
        %7196 = vmatpush2.msra.mxu0 0.0
        %7197 = vmatprep.subr.mxu0 0.0
        %7198 = vmatpush2.msra.mxu0 0.0
        %7199 = vmatprep.subr.mxu0 0.0
        %7200 = vmatpush2.msra.mxu0 0.0
        %7201 = vmatprep.mubr.f32.mxu0 0.0
        %v7202 = vand.u32 %v7124, 4294901760
        %v7203 = vsub.f32 %v7124, %v7202
        %v7204 = vand.u32 %v7203, 4294901760
        %v7205 = vsub.f32 %v7203, %v7204
        %v7206 = vand.u32 %v7205, 4294901760
        %7207 = vmatmul.mubr.f32.gmra.mxu0 %v7206
        %v7208 = vpop.f32.mrf.mxu0
        %v7209 = vadd.f32 %v7120, %v7208
        %v7210 = vpop.f32.mrf.mxu0
        %7211 = vmatprep.mubr.f32.mxu0 0.0
        %v7212 = vand.u32 %v7127, 4294901760
        %v7213 = vsub.f32 %v7127, %v7212
        %v7214 = vand.u32 %v7213, 4294901760
        %v7215 = vsub.f32 %v7213, %v7214
        %v7216 = vand.u32 %v7215, 4294901760
        %7217 = vmatmul.mubr.f32.gmra.mxu0 %v7216
        %v7218 = vpop.f32.mrf.mxu0
        %v7219 = vadd.f32 %v7120, %v7218
        %v7220 = vpop.f32.mrf.mxu0
        %7221 = vdwg.mxu0
        %7222 = vmatprep.subr.mxu0 0.0
        %7223 = vmatpush1.msra.mxu0 0.0
        %7224 = vmatprep.subr.mxu0 0.0
        %7225 = vmatpush1.msra.mxu0 0.0
        %7226 = vmatprep.subr.mxu0 0.0
        %7227 = vmatpush1.msra.mxu0 0.0
        %7228 = vmatprep.subr.mxu0 0.0
        %7229 = vmatpush1.msra.mxu0 0.0
        %7230 = vmatprep.subr.mxu0 0.0
        %7231 = vmatpush1.msra.mxu0 0.0
        %7232 = vmatprep.subr.mxu0 0.0
        %7233 = vmatpush1.msra.mxu0 0.0
        %7234 = vmatprep.subr.mxu0 0.0
        %7235 = vmatpush1.msra.mxu0 0.0
        %7236 = vmatprep.subr.mxu0 0.0
        %7237 = vmatpush1.msra.mxu0 0.0
        %7238 = vmatprep.subr.mxu0 0.0
        %v7239 = vand.u32 %v7114, 4294901760
        %v7240 = vsub.f32 %v7114, %v7239
        %v7241 = vand.u32 %v7240, 4294901760
        %v7242 = vsub.f32 %v7240, %v7241
        %v7243 = vand.u32 %v7242, 4294901760
        %7244 = vmatpush1.msra.mxu0 %v7243
        %7245 = vmatprep.subr.mxu0 0.0
        %v7246 = vand.u32 %v7113, 4294901760
        %v7247 = vsub.f32 %v7113, %v7246
        %v7248 = vand.u32 %v7247, 4294901760
        %v7249 = vsub.f32 %v7247, %v7248
        %v7250 = vand.u32 %v7249, 4294901760
        %7251 = vmatpush1.msra.mxu0 %v7250
        %7252 = vmatprep.subr.mxu0 0.0
        %v7253 = vand.u32 %v7112, 4294901760
        %v7254 = vsub.f32 %v7112, %v7253
        %v7255 = vand.u32 %v7254, 4294901760
        %v7256 = vsub.f32 %v7254, %v7255
        %v7257 = vand.u32 %v7256, 4294901760
        %7258 = vmatpush1.msra.mxu0 %v7257
        %7259 = vmatprep.subr.mxu0 0.0
        %v7260 = vand.u32 %v7111, 4294901760
        %v7261 = vsub.f32 %v7111, %v7260
        %v7262 = vand.u32 %v7261, 4294901760
        %v7263 = vsub.f32 %v7261, %v7262
        %v7264 = vand.u32 %v7263, 4294901760
        %7265 = vmatpush1.msra.mxu0 %v7264
        %7266 = vmatprep.subr.mxu0 0.0
        %v7267 = vand.u32 %v7110, 4294901760
        %v7268 = vsub.f32 %v7110, %v7267
        %v7269 = vand.u32 %v7268, 4294901760
        %v7270 = vsub.f32 %v7268, %v7269
        %v7271 = vand.u32 %v7270, 4294901760
        %7272 = vmatpush1.msra.mxu0 %v7271
        %7273 = vmatprep.subr.mxu0 0.0
        %v7274 = vand.u32 %v7109, 4294901760
        %v7275 = vsub.f32 %v7109, %v7274
        %v7276 = vand.u32 %v7275, 4294901760
        %v7277 = vsub.f32 %v7275, %v7276
        %v7278 = vand.u32 %v7277, 4294901760
        %7279 = vmatpush1.msra.mxu0 %v7278
        %7280 = vmatprep.subr.mxu0 0.0
        %v7281 = vand.u32 %v7108, 4294901760
        %v7282 = vsub.f32 %v7108, %v7281
        %v7283 = vand.u32 %v7282, 4294901760
        %v7284 = vsub.f32 %v7282, %v7283
        %v7285 = vand.u32 %v7284, 4294901760
        %7286 = vmatpush1.msra.mxu0 %v7285
        %7287 = vmatprep.subr.mxu0 0.0
        %v7288 = vand.u32 %v7107, 4294901760
        %v7289 = vsub.f32 %v7107, %v7288
        %v7290 = vand.u32 %v7289, 4294901760
        %v7291 = vsub.f32 %v7289, %v7290
        %v7292 = vand.u32 %v7291, 4294901760
        %7293 = vmatpush1.msra.mxu0 %v7292
        %7294 = vmatprep.subr.mxu0 0.0
        %7295 = vmatpush2.msra.mxu0 0.0
        %7296 = vmatprep.subr.mxu0 0.0
        %7297 = vmatpush2.msra.mxu0 0.0
        %7298 = vmatprep.subr.mxu0 0.0
        %7299 = vmatpush2.msra.mxu0 0.0
        %7300 = vmatprep.subr.mxu0 0.0
        %7301 = vmatpush2.msra.mxu0 0.0
        %7302 = vmatprep.subr.mxu0 0.0
        %7303 = vmatpush2.msra.mxu0 0.0
        %7304 = vmatprep.subr.mxu0 0.0
        %7305 = vmatpush2.msra.mxu0 0.0
        %7306 = vmatprep.subr.mxu0 0.0
        %7307 = vmatpush2.msra.mxu0 0.0
        %7308 = vmatprep.subr.mxu0 0.0
        %7309 = vmatpush2.msra.mxu0 0.0
        %7310 = vmatprep.subr.mxu0 0.0
        %7311 = vmatpush2.msra.mxu0 0.0
        %7312 = vmatprep.subr.mxu0 0.0
        %7313 = vmatpush2.msra.mxu0 0.0
        %7314 = vmatprep.subr.mxu0 0.0
        %7315 = vmatpush2.msra.mxu0 0.0
        %7316 = vmatprep.subr.mxu0 0.0
        %7317 = vmatpush2.msra.mxu0 0.0
        %7318 = vmatprep.subr.mxu0 0.0
        %7319 = vmatpush2.msra.mxu0 0.0
        %7320 = vmatprep.subr.mxu0 0.0
        %7321 = vmatpush2.msra.mxu0 0.0
        %7322 = vmatprep.subr.mxu0 0.0
        %7323 = vmatpush2.msra.mxu0 0.0
        %7324 = vmatprep.subr.mxu0 0.0
        %7325 = vmatpush2.msra.mxu0 0.0
        %7326 = vmatprep.mubr.f32.mxu0 0.0
        %v7327 = vand.u32 %v7124, 4294901760
        %7328 = vmatmul.mubr.f32.gmra.mxu0 %v7327
        %v7329 = vpop.f32.mrf.mxu0
        %v7330 = vadd.f32 %v7209, %v7329
        %v7331 = vpop.f32.mrf.mxu0
        %7332 = vmatprep.mubr.f32.mxu0 0.0
        %v7333 = vand.u32 %v7127, 4294901760
        %7334 = vmatmul.mubr.f32.gmra.mxu0 %v7333
        %v7335 = vpop.f32.mrf.mxu0
        %v7336 = vadd.f32 %v7219, %v7335
        %v7337 = vpop.f32.mrf.mxu0
        %7338 = vdwg.mxu0
        %7339 = vmatprep.subr.mxu0 0.0
        %7340 = vmatpush1.msra.mxu0 0.0
        %7341 = vmatprep.subr.mxu0 0.0
        %7342 = vmatpush1.msra.mxu0 0.0
        %7343 = vmatprep.subr.mxu0 0.0
        %7344 = vmatpush1.msra.mxu0 0.0
        %7345 = vmatprep.subr.mxu0 0.0
        %7346 = vmatpush1.msra.mxu0 0.0
        %7347 = vmatprep.subr.mxu0 0.0
        %7348 = vmatpush1.msra.mxu0 0.0
        %7349 = vmatprep.subr.mxu0 0.0
        %7350 = vmatpush1.msra.mxu0 0.0
        %7351 = vmatprep.subr.mxu0 0.0
        %7352 = vmatpush1.msra.mxu0 0.0
        %7353 = vmatprep.subr.mxu0 0.0
        %7354 = vmatpush1.msra.mxu0 0.0
        %7355 = vmatprep.subr.mxu0 0.0
        %v7356 = vand.u32 %v7114, 4294901760
        %v7357 = vsub.f32 %v7114, %v7356
        %7358 = vmatpush1.msra.mxu0 %v7357
        %7359 = vmatprep.subr.mxu0 0.0
        %v7360 = vand.u32 %v7113, 4294901760
        %v7361 = vsub.f32 %v7113, %v7360
        %7362 = vmatpush1.msra.mxu0 %v7361
        %7363 = vmatprep.subr.mxu0 0.0
        %v7364 = vand.u32 %v7112, 4294901760
        %v7365 = vsub.f32 %v7112, %v7364
        %7366 = vmatpush1.msra.mxu0 %v7365
        %7367 = vmatprep.subr.mxu0 0.0
        %v7368 = vand.u32 %v7111, 4294901760
        %v7369 = vsub.f32 %v7111, %v7368
        %7370 = vmatpush1.msra.mxu0 %v7369
        %7371 = vmatprep.subr.mxu0 0.0
        %v7372 = vand.u32 %v7110, 4294901760
        %v7373 = vsub.f32 %v7110, %v7372
        %7374 = vmatpush1.msra.mxu0 %v7373
        %7375 = vmatprep.subr.mxu0 0.0
        %v7376 = vand.u32 %v7109, 4294901760
        %v7377 = vsub.f32 %v7109, %v7376
        %7378 = vmatpush1.msra.mxu0 %v7377
        %7379 = vmatprep.subr.mxu0 0.0
        %v7380 = vand.u32 %v7108, 4294901760
        %v7381 = vsub.f32 %v7108, %v7380
        %7382 = vmatpush1.msra.mxu0 %v7381
        %7383 = vmatprep.subr.mxu0 0.0
        %v7384 = vand.u32 %v7107, 4294901760
        %v7385 = vsub.f32 %v7107, %v7384
        %7386 = vmatpush1.msra.mxu0 %v7385
        %7387 = vmatprep.subr.mxu0 0.0
        %7388 = vmatpush2.msra.mxu0 0.0
        %7389 = vmatprep.subr.mxu0 0.0
        %7390 = vmatpush2.msra.mxu0 0.0
        %7391 = vmatprep.subr.mxu0 0.0
        %7392 = vmatpush2.msra.mxu0 0.0
        %7393 = vmatprep.subr.mxu0 0.0
        %7394 = vmatpush2.msra.mxu0 0.0
        %7395 = vmatprep.subr.mxu0 0.0
        %7396 = vmatpush2.msra.mxu0 0.0
        %7397 = vmatprep.subr.mxu0 0.0
        %7398 = vmatpush2.msra.mxu0 0.0
        %7399 = vmatprep.subr.mxu0 0.0
        %7400 = vmatpush2.msra.mxu0 0.0
        %7401 = vmatprep.subr.mxu0 0.0
        %7402 = vmatpush2.msra.mxu0 0.0
        %7403 = vmatprep.subr.mxu0 0.0
        %7404 = vmatpush2.msra.mxu0 0.0
        %7405 = vmatprep.subr.mxu0 0.0
        %7406 = vmatpush2.msra.mxu0 0.0
        %7407 = vmatprep.subr.mxu0 0.0
        %7408 = vmatpush2.msra.mxu0 0.0
        %7409 = vmatprep.subr.mxu0 0.0
        %7410 = vmatpush2.msra.mxu0 0.0
        %7411 = vmatprep.subr.mxu0 0.0
        %7412 = vmatpush2.msra.mxu0 0.0
        %7413 = vmatprep.subr.mxu0 0.0
        %7414 = vmatpush2.msra.mxu0 0.0
        %7415 = vmatprep.subr.mxu0 0.0
        %7416 = vmatpush2.msra.mxu0 0.0
        %7417 = vmatprep.subr.mxu0 0.0
        %7418 = vmatpush2.msra.mxu0 0.0
        %7419 = vmatprep.mubr.f32.mxu0 0.0
        %v7420 = vand.u32 %v7124, 4294901760
        %v7421 = vsub.f32 %v7124, %v7420
        %7422 = vmatmul.mubr.f32.gmra.mxu0 %v7421
        %v7423 = vpop.f32.mrf.mxu0
        %v7424 = vadd.f32 %v7330, %v7423
        %v7425 = vpop.f32.mrf.mxu0
        %7426 = vmatprep.mubr.f32.mxu0 0.0
        %v7427 = vand.u32 %v7127, 4294901760
        %v7428 = vsub.f32 %v7127, %v7427
        %7429 = vmatmul.mubr.f32.gmra.mxu0 %v7428
        %v7430 = vpop.f32.mrf.mxu0
        %v7431 = vadd.f32 %v7336, %v7430
        %v7432 = vpop.f32.mrf.mxu0
        %7433 = vdwg.mxu0
        %7434 = vmatprep.subr.mxu0 0.0
        %7435 = vmatpush1.msra.mxu0 0.0
        %7436 = vmatprep.subr.mxu0 0.0
        %7437 = vmatpush1.msra.mxu0 0.0
        %7438 = vmatprep.subr.mxu0 0.0
        %7439 = vmatpush1.msra.mxu0 0.0
        %7440 = vmatprep.subr.mxu0 0.0
        %7441 = vmatpush1.msra.mxu0 0.0
        %7442 = vmatprep.subr.mxu0 0.0
        %7443 = vmatpush1.msra.mxu0 0.0
        %7444 = vmatprep.subr.mxu0 0.0
        %7445 = vmatpush1.msra.mxu0 0.0
        %7446 = vmatprep.subr.mxu0 0.0
        %7447 = vmatpush1.msra.mxu0 0.0
        %7448 = vmatprep.subr.mxu0 0.0
        %7449 = vmatpush1.msra.mxu0 0.0
        %7450 = vmatprep.subr.mxu0 0.0
        %v7451 = vand.u32 %v7114, 4294901760
        %7452 = vmatpush1.msra.mxu0 %v7451
        %7453 = vmatprep.subr.mxu0 0.0
        %v7454 = vand.u32 %v7113, 4294901760
        %7455 = vmatpush1.msra.mxu0 %v7454
        %7456 = vmatprep.subr.mxu0 0.0
        %v7457 = vand.u32 %v7112, 4294901760
        %7458 = vmatpush1.msra.mxu0 %v7457
        %7459 = vmatprep.subr.mxu0 0.0
        %v7460 = vand.u32 %v7111, 4294901760
        %7461 = vmatpush1.msra.mxu0 %v7460
        %7462 = vmatprep.subr.mxu0 0.0
        %v7463 = vand.u32 %v7110, 4294901760
        %7464 = vmatpush1.msra.mxu0 %v7463
        %7465 = vmatprep.subr.mxu0 0.0
        %v7466 = vand.u32 %v7109, 4294901760
        %7467 = vmatpush1.msra.mxu0 %v7466
        %7468 = vmatprep.subr.mxu0 0.0
        %v7469 = vand.u32 %v7108, 4294901760
        %7470 = vmatpush1.msra.mxu0 %v7469
        %7471 = vmatprep.subr.mxu0 0.0
        %v7472 = vand.u32 %v7107, 4294901760
        %7473 = vmatpush1.msra.mxu0 %v7472
        %7474 = vmatprep.subr.mxu0 0.0
        %7475 = vmatpush2.msra.mxu0 0.0
        %7476 = vmatprep.subr.mxu0 0.0
        %7477 = vmatpush2.msra.mxu0 0.0
        %7478 = vmatprep.subr.mxu0 0.0
        %7479 = vmatpush2.msra.mxu0 0.0
        %7480 = vmatprep.subr.mxu0 0.0
        %7481 = vmatpush2.msra.mxu0 0.0
        %7482 = vmatprep.subr.mxu0 0.0
        %7483 = vmatpush2.msra.mxu0 0.0
        %7484 = vmatprep.subr.mxu0 0.0
        %7485 = vmatpush2.msra.mxu0 0.0
        %7486 = vmatprep.subr.mxu0 0.0
        %7487 = vmatpush2.msra.mxu0 0.0
        %7488 = vmatprep.subr.mxu0 0.0
        %7489 = vmatpush2.msra.mxu0 0.0
        %7490 = vmatprep.subr.mxu0 0.0
        %7491 = vmatpush2.msra.mxu0 0.0
        %7492 = vmatprep.subr.mxu0 0.0
        %7493 = vmatpush2.msra.mxu0 0.0
        %7494 = vmatprep.subr.mxu0 0.0
        %7495 = vmatpush2.msra.mxu0 0.0
        %7496 = vmatprep.subr.mxu0 0.0
        %7497 = vmatpush2.msra.mxu0 0.0
        %7498 = vmatprep.subr.mxu0 0.0
        %7499 = vmatpush2.msra.mxu0 0.0
        %7500 = vmatprep.subr.mxu0 0.0
        %7501 = vmatpush2.msra.mxu0 0.0
        %7502 = vmatprep.subr.mxu0 0.0
        %7503 = vmatpush2.msra.mxu0 0.0
        %7504 = vmatprep.subr.mxu0 0.0
        %7505 = vmatpush2.msra.mxu0 0.0
        %7506 = vmatprep.mubr.f32.mxu0 0.0
        %v7507 = vand.u32 %v7124, 4294901760
        %v7508 = vsub.f32 %v7124, %v7507
        %v7509 = vand.u32 %v7508, 4294901760
        %7510 = vmatmul.mubr.f32.gmra.mxu0 %v7509
        %v7511 = vpop.f32.mrf.mxu0
        %v7512 = vadd.f32 %v7424, %v7511
        %v7513 = vpop.f32.mrf.mxu0
        %7514 = vmatprep.mubr.f32.mxu0 0.0
        %v7515 = vand.u32 %v7127, 4294901760
        %v7516 = vsub.f32 %v7127, %v7515
        %v7517 = vand.u32 %v7516, 4294901760
        %7518 = vmatmul.mubr.f32.gmra.mxu0 %v7517
        %v7519 = vpop.f32.mrf.mxu0
        %v7520 = vadd.f32 %v7431, %v7519
        %v7521 = vpop.f32.mrf.mxu0
        %7522 = vdwg.mxu0
        %7523 = vmatprep.subr.mxu0 0.0
        %7524 = vmatpush1.msra.mxu0 0.0
        %7525 = vmatprep.subr.mxu0 0.0
        %7526 = vmatpush1.msra.mxu0 0.0
        %7527 = vmatprep.subr.mxu0 0.0
        %7528 = vmatpush1.msra.mxu0 0.0
        %7529 = vmatprep.subr.mxu0 0.0
        %7530 = vmatpush1.msra.mxu0 0.0
        %7531 = vmatprep.subr.mxu0 0.0
        %7532 = vmatpush1.msra.mxu0 0.0
        %7533 = vmatprep.subr.mxu0 0.0
        %7534 = vmatpush1.msra.mxu0 0.0
        %7535 = vmatprep.subr.mxu0 0.0
        %7536 = vmatpush1.msra.mxu0 0.0
        %7537 = vmatprep.subr.mxu0 0.0
        %7538 = vmatpush1.msra.mxu0 0.0
        %7539 = vmatprep.subr.mxu0 0.0
        %v7540 = vand.u32 %v7114, 4294901760
        %v7541 = vsub.f32 %v7114, %v7540
        %v7542 = vand.u32 %v7541, 4294901760
        %7543 = vmatpush1.msra.mxu0 %v7542
        %7544 = vmatprep.subr.mxu0 0.0
        %v7545 = vand.u32 %v7113, 4294901760
        %v7546 = vsub.f32 %v7113, %v7545
        %v7547 = vand.u32 %v7546, 4294901760
        %7548 = vmatpush1.msra.mxu0 %v7547
        %7549 = vmatprep.subr.mxu0 0.0
        %v7550 = vand.u32 %v7112, 4294901760
        %v7551 = vsub.f32 %v7112, %v7550
        %v7552 = vand.u32 %v7551, 4294901760
        %7553 = vmatpush1.msra.mxu0 %v7552
        %7554 = vmatprep.subr.mxu0 0.0
        %v7555 = vand.u32 %v7111, 4294901760
        %v7556 = vsub.f32 %v7111, %v7555
        %v7557 = vand.u32 %v7556, 4294901760
        %7558 = vmatpush1.msra.mxu0 %v7557
        %7559 = vmatprep.subr.mxu0 0.0
        %v7560 = vand.u32 %v7110, 4294901760
        %v7561 = vsub.f32 %v7110, %v7560
        %v7562 = vand.u32 %v7561, 4294901760
        %7563 = vmatpush1.msra.mxu0 %v7562
        %7564 = vmatprep.subr.mxu0 0.0
        %v7565 = vand.u32 %v7109, 4294901760
        %v7566 = vsub.f32 %v7109, %v7565
        %v7567 = vand.u32 %v7566, 4294901760
        %7568 = vmatpush1.msra.mxu0 %v7567
        %7569 = vmatprep.subr.mxu0 0.0
        %v7570 = vand.u32 %v7108, 4294901760
        %v7571 = vsub.f32 %v7108, %v7570
        %v7572 = vand.u32 %v7571, 4294901760
        %7573 = vmatpush1.msra.mxu0 %v7572
        %7574 = vmatprep.subr.mxu0 0.0
        %v7575 = vand.u32 %v7107, 4294901760
        %v7576 = vsub.f32 %v7107, %v7575
        %v7577 = vand.u32 %v7576, 4294901760
        %7578 = vmatpush1.msra.mxu0 %v7577
        %7579 = vmatprep.subr.mxu0 0.0
        %7580 = vmatpush2.msra.mxu0 0.0
        %7581 = vmatprep.subr.mxu0 0.0
        %7582 = vmatpush2.msra.mxu0 0.0
        %7583 = vmatprep.subr.mxu0 0.0
        %7584 = vmatpush2.msra.mxu0 0.0
        %7585 = vmatprep.subr.mxu0 0.0
        %7586 = vmatpush2.msra.mxu0 0.0
        %7587 = vmatprep.subr.mxu0 0.0
        %7588 = vmatpush2.msra.mxu0 0.0
        %7589 = vmatprep.subr.mxu0 0.0
        %7590 = vmatpush2.msra.mxu0 0.0
        %7591 = vmatprep.subr.mxu0 0.0
        %7592 = vmatpush2.msra.mxu0 0.0
        %7593 = vmatprep.subr.mxu0 0.0
        %7594 = vmatpush2.msra.mxu0 0.0
        %7595 = vmatprep.subr.mxu0 0.0
        %7596 = vmatpush2.msra.mxu0 0.0
        %7597 = vmatprep.subr.mxu0 0.0
        %7598 = vmatpush2.msra.mxu0 0.0
        %7599 = vmatprep.subr.mxu0 0.0
        %7600 = vmatpush2.msra.mxu0 0.0
        %7601 = vmatprep.subr.mxu0 0.0
        %7602 = vmatpush2.msra.mxu0 0.0
        %7603 = vmatprep.subr.mxu0 0.0
        %7604 = vmatpush2.msra.mxu0 0.0
        %7605 = vmatprep.subr.mxu0 0.0
        %7606 = vmatpush2.msra.mxu0 0.0
        %7607 = vmatprep.subr.mxu0 0.0
        %7608 = vmatpush2.msra.mxu0 0.0
        %7609 = vmatprep.subr.mxu0 0.0
        %7610 = vmatpush2.msra.mxu0 0.0
        %7611 = vmatprep.mubr.f32.mxu0 0.0
        %v7612 = vand.u32 %v7124, 4294901760
        %7613 = vmatmul.mubr.f32.gmra.mxu0 %v7612
        %v7614 = vpop.f32.mrf.mxu0
        %v7615 = vadd.f32 %v7512, %v7614
        %v7616 = vpop.f32.mrf.mxu0
        %7617 = vmatprep.mubr.f32.mxu0 0.0
        %v7618 = vand.u32 %v7127, 4294901760
        %7619 = vmatmul.mubr.f32.gmra.mxu0 %v7618
        %v7620 = vpop.f32.mrf.mxu0
        %v7621 = vadd.f32 %v7520, %v7620
        %v7622 = vpop.f32.mrf.mxu0
        %7623 = vdwg.mxu0
        %7624 = vmatprep.subr.mxu0 0.0
        %7625 = vmatpush1.msra.mxu0 0.0
        %7626 = vmatprep.subr.mxu0 0.0
        %7627 = vmatpush1.msra.mxu0 0.0
        %7628 = vmatprep.subr.mxu0 0.0
        %7629 = vmatpush1.msra.mxu0 0.0
        %7630 = vmatprep.subr.mxu0 0.0
        %7631 = vmatpush1.msra.mxu0 0.0
        %7632 = vmatprep.subr.mxu0 0.0
        %7633 = vmatpush1.msra.mxu0 0.0
        %7634 = vmatprep.subr.mxu0 0.0
        %7635 = vmatpush1.msra.mxu0 0.0
        %7636 = vmatprep.subr.mxu0 0.0
        %7637 = vmatpush1.msra.mxu0 0.0
        %7638 = vmatprep.subr.mxu0 0.0
        %7639 = vmatpush1.msra.mxu0 0.0
        %7640 = vmatprep.subr.mxu0 0.0
        %v7641 = vand.u32 %v7114, 4294901760
        %7642 = vmatpush1.msra.mxu0 %v7641
        %7643 = vmatprep.subr.mxu0 0.0
        %v7644 = vand.u32 %v7113, 4294901760
        %7645 = vmatpush1.msra.mxu0 %v7644
        %7646 = vmatprep.subr.mxu0 0.0
        %v7647 = vand.u32 %v7112, 4294901760
        %7648 = vmatpush1.msra.mxu0 %v7647
        %7649 = vmatprep.subr.mxu0 0.0
        %v7650 = vand.u32 %v7111, 4294901760
        %7651 = vmatpush1.msra.mxu0 %v7650
        %7652 = vmatprep.subr.mxu0 0.0
        %v7653 = vand.u32 %v7110, 4294901760
        %7654 = vmatpush1.msra.mxu0 %v7653
        %7655 = vmatprep.subr.mxu0 0.0
        %v7656 = vand.u32 %v7109, 4294901760
        %7657 = vmatpush1.msra.mxu0 %v7656
        %7658 = vmatprep.subr.mxu0 0.0
        %v7659 = vand.u32 %v7108, 4294901760
        %7660 = vmatpush1.msra.mxu0 %v7659
        %7661 = vmatprep.subr.mxu0 0.0
        %v7662 = vand.u32 %v7107, 4294901760
        %7663 = vmatpush1.msra.mxu0 %v7662
        %7664 = vmatprep.subr.mxu0 0.0
        %7665 = vmatpush2.msra.mxu0 0.0
        %7666 = vmatprep.subr.mxu0 0.0
        %7667 = vmatpush2.msra.mxu0 0.0
        %7668 = vmatprep.subr.mxu0 0.0
        %7669 = vmatpush2.msra.mxu0 0.0
        %7670 = vmatprep.subr.mxu0 0.0
        %7671 = vmatpush2.msra.mxu0 0.0
        %7672 = vmatprep.subr.mxu0 0.0
        %7673 = vmatpush2.msra.mxu0 0.0
        %7674 = vmatprep.subr.mxu0 0.0
        %7675 = vmatpush2.msra.mxu0 0.0
        %7676 = vmatprep.subr.mxu0 0.0
        %7677 = vmatpush2.msra.mxu0 0.0
        %7678 = vmatprep.subr.mxu0 0.0
        %7679 = vmatpush2.msra.mxu0 0.0
        %7680 = vmatprep.subr.mxu0 0.0
        %7681 = vmatpush2.msra.mxu0 0.0
        %7682 = vmatprep.subr.mxu0 0.0
        %7683 = vmatpush2.msra.mxu0 0.0
        %7684 = vmatprep.subr.mxu0 0.0
        %7685 = vmatpush2.msra.mxu0 0.0
        %7686 = vmatprep.subr.mxu0 0.0
        %7687 = vmatpush2.msra.mxu0 0.0
        %7688 = vmatprep.subr.mxu0 0.0
        %7689 = vmatpush2.msra.mxu0 0.0
        %7690 = vmatprep.subr.mxu0 0.0
        %7691 = vmatpush2.msra.mxu0 0.0
        %7692 = vmatprep.subr.mxu0 0.0
        %7693 = vmatpush2.msra.mxu0 0.0
        %7694 = vmatprep.subr.mxu0 0.0
        %7695 = vmatpush2.msra.mxu0 0.0
        %7696 = vmatprep.mubr.f32.mxu0 0.0
        %v7697 = vand.u32 %v7124, 4294901760
        %7698 = vmatmul.mubr.f32.gmra.mxu0 %v7697
        %v7699 = vpop.f32.mrf.mxu0
        %v7700 = vadd.f32 %v7615, %v7699
        %v7701 = vpop.f32.mrf.mxu0
        %7702 = vmatprep.mubr.f32.mxu0 0.0
        %v7703 = vand.u32 %v7127, 4294901760
        %7704 = vmatmul.mubr.f32.gmra.mxu0 %v7703
        %v7705 = vpop.f32.mrf.mxu0
        %v7706 = vadd.f32 %v7621, %v7705
        %v7707 = vpop.f32.mrf.mxu0
        %7708 = vdwg.mxu0
        %v7709 = vadd.f32 %v6558, %v7700
        %v7710 = vadd.f32 %v6559, %v7706
        %v7711 = vld [vmem:[%s15] sm:$0x1]
        %v7712 = vld [vmem:[%s16] sm:$0x1]
        %v7713 = vsel %vm643, %v7709, 0.0
        %7714 = vadd.xlane.f32.xlu0 %v7713
        %v7715 = vpop.xlane.xlu0 %7714
        %v7716 = vsel %vm643, %v7710, 0.0
        %7717 = vadd.xlane.f32.xlu0 %v7716
        %v7718 = vpop.xlane.xlu0 %7717
        %v7719 = vmul.f32 %v7715, %v6523
        %v7720 = vmul.f32 %v7718, %v6523
        %v7721 = vsub.f32 %v7709, %v7719
        %v7722 = vsub.f32 %v7710, %v7720
        %v7723 = vmul.f32 %v7721, %v7721
        %v7724 = vmul.f32 %v7722, %v7722
        %v7725 = vsel %vm643, %v7723, 0.0
        %7726 = vadd.xlane.f32.xlu0 %v7725
        %v7727 = vpop.xlane.xlu0 %7726
        %v7728 = vsel %vm643, %v7724, 0.0
        %7729 = vadd.xlane.f32.xlu0 %v7728
        %v7730 = vpop.xlane.xlu0 %7729
        %v7731 = vmul.f32 %v7727, %v6523
        %v7732 = vmul.f32 %v7730, %v6523
        %v7733 = vadd.f32 %v7731, 1e-05
        %v7734 = vadd.f32 %v7732, 1e-05
        %v7735 = vrsqrt.pop %v7733
        %v7736 = vrsqrt.pop %v7734
        %v7737 = vmul.f32 %v7721, %v7735
        %v7738 = vmul.f32 %v7722, %v7736
        %v7740 = vlaneseq
        %v7741 = vshrl.u32 %v7740, 7
        %v7742 = vsub.s32 0, %v7741
        %v7743 = vrot.slane %v7711, %v7742
        %v7745 = vmul.f32 %v7737, %v7743
        %v7746 = vmul.f32 %v7738, %v7743
        %v7748 = vlaneseq
        %v7749 = vshrl.u32 %v7748, 7
        %v7750 = vsub.s32 0, %v7749
        %v7751 = vrot.slane %v7712, %v7750
        %v7753 = vadd.f32 %v7745, %v7751
        %v7754 = vadd.f32 %v7746, %v7751
        %7755 = vst.msk [vmem:[%s615] sm:$0xff] %vm643, %v7753
        %7756 = vst.msk [vmem:[%s615 + $0x8] sm:$0xff] %vm643, %v7754
        %s7757 = sand.u32 %s409, 1
        %s7758 = scalar_lea.sflag [#allocation4], %s7757
        %s7759 = sand.u32 %s409, 1
        %s7760 = smul.addr %s7759, 16
        %s7761 = scalar_lea.vmem [#allocation10], %s7760
        // Predicated region
        $region105: #{tpu_custom_call.1} parent=87 // pred_check
          %p7762 = pneg %p419
        $region106: #{tpu_custom_call.1} parent=87 // pred_check_branch
          %7764 = sbr.rel (%p7762) target = $region108
        $region107: #{tpu_custom_call.1} parent=87 // pred_region
          %s7766 = ssub.s32 256, 256
          %7767 = vsyncadd %s7758, %s7766
          %s7768 = smul.addr %s34, 2
          %s7769 = smul.addr %s7768, 128
          %s7770 = scalar_lea.hbm %s17, %s7769
          %s7771 = sshll.u32 %s7761, 4
          %s7772 = int_to_ptr.vmem [resolvable:$true] %s7771
          %7777 = dma.vmem_to_hbm [thread:$0]  %s7772, 256, %s7770, %s7758, 128, 128, 8
        $region108: #{tpu_custom_call.1} parent=87 // pred_fallthru
          _
      $region88: #{tpu_custom_call.1} parent=5 // pred_fallthru
        _
      %p7778 = scmp.le.s32.totalorder 2, %s29
      // Predicated region
      $region109: #{tpu_custom_call.1} parent=5 // pred_check
        %p7779 = pneg %p7778
      $region110: #{tpu_custom_call.1} parent=5 // pred_check_branch
        %7781 = sbr.rel (%p7779) target = $region112
      $region111: #{tpu_custom_call.1} parent=5 // pred_region
        %s7782 = ssub.s32 %s29, 2
        // Predicated region
        $region113: #{tpu_custom_call.1} parent=111 // pred_check
          %p7783 = pneg %p425
        $region114: #{tpu_custom_call.1} parent=111 // pred_check_branch
          %7785 = sbr.rel (%p7783) target = $region116
        $region115: #{tpu_custom_call.1} parent=111 // pred_region
          %s7786 = sand.u32 %s410, 1
          %s7787 = scalar_lea.sflag [#allocation4], %s7786
          %s7788 = sand.u32 %s410, 1
          %s7789 = smul.addr %s7788, 16
          %s7790 = scalar_lea.vmem [#allocation10], %s7789
          %7791 = dma.done %s7787, 256
        $region116: #{tpu_custom_call.1} parent=111 // pred_fallthru
          _
      $region112: #{tpu_custom_call.1} parent=5 // pred_fallthru
        _
    $region6: #{tpu_custom_call.1} parent=1 // loop_footer
      %s33 = sadd.s32 1, %s29
    $region7: #{tpu_custom_call.1} parent=1 // loop_footer_branch
      %28 = sbr.rel target = $region3
    $region8: #{tpu_custom_call.1} parent=1 // loop_exit
      _
    %7792 = vsyncpa [#allocation3], 1
    %s7793 = scalar_lea.sflag [#allocation3], 1
    %7794 = vsyncpa %s7793, 1
    %7795 = vsyncpa [#allocation6], 1
    %7796 = vsyncpa [#allocation9], 1
    %7797 = vsyncpa [#allocation4], 1
    %s7798 = scalar_lea.sflag [#allocation4], 1
    %7799 = vsyncpa %s7798, 1

</llo_original>
